<compile_context>
chip_gen: v7x
topology: tpu7x:2x2x1
jax: 0.10.0
libtpu: 0.0.40
codegen_flags: <defaults>
</compile_context>

<pallas_src>
import functools

import jax
import jax.numpy as jnp
from jax.experimental import pallas as pl
from jax.experimental.pallas import tpu as pltpu


def _pick_images_per_block(n, max_nb=8):
    """Largest Nb <= max_nb dividing n that still leaves >= 2 grid steps."""
    best = 1
    for nb in range(1, min(n, max_nb) + 1):
        if n % nb == 0 and n // nb >= 2:
            best = nb
    return best


# ---------------------------------------------------------------------------
# Fused kernel: one grid step = Nb whole images.
# ---------------------------------------------------------------------------
def _aab_kernel(wcf_ref, wk1_ref, wk4_ref, wna1_ref, wna2_ref, wlast_ref,
                w1_ref, w2_ref, x_ref, xe_ref, o_ref, pad_ref, *, width, t):
    # wcf_ref  : (C, C)       SMEM  conv_first 1x1 weight (out_ch, in_ch)
    # wk1_ref  : (C, Ce*9)    SMEM  attention k1 3x3 weight (idx = ci*9+kh*3+kw)
    # wk4_ref  : (C, C)       SMEM  attention k4 1x1 weight
    # wna1_ref : (C, C*9)     SMEM  non_attention 3x3 weight (same flattening)
    # wna2_ref : (C, C)       SMEM  non_attention 1x1 weight
    # wlast_ref: (C, C)       SMEM  conv_last 1x1 weight
    # w1_ref   : (Hd, C)      SMEM  ADM linear 1 weight
    # w2_ref   : (K, Hd)      SMEM  ADM linear 2 weight
    # x_ref    : (Nb, C, P)   VMEM  input block, P = H*W on the lane axis
    # xe_ref   : (Nb, Ce, P)  VMEM  edge block
    # o_ref    : (Nb, C, P)   VMEM  output block
    # pad_ref  : (C+Ce, PP)   VMEM  halo scratch, PP = P + 2*LPAD (zero borders)
    nb, c_nf, p = x_ref.shape
    c_edge = xe_ref.shape[1]
    hidden = w1_ref.shape[0]
    k_gate = w2_ref.shape[0]
    pp = pad_ref.shape[-1]
    lpad = (pp - p) // 2
    w = width
    inv_p = 1.0 / float(p)
    inv_t = 1.0 / float(t)

    # Column-validity masks (output space), shared by every 3x3 tap.
    col = jax.lax.broadcasted_iota(jnp.int32, (1, p), 1) % w
    ok_left = col > 0            # tap dw == -1 is invalid in the first column
    ok_right = col < (w - 1)     # tap dw == +1 is invalid in the last column

    # Zero the halo scratch each step (cheap, keeps the borders valid and is
    # safe under megacore sharding of the batch axis).
    pad_ref[...] = jnp.zeros(pad_ref.shape, pad_ref.dtype)

    def leaky(v):
        return jnp.where(v >= 0.0, v, 0.2 * v)

    def tap(ch, dh, dw):
        # Shifted (zero-padded) view of scratch row `ch`: result[p] = row[p + dh*W + dw]
        off = lpad + dh * w + dw
        v = pad_ref[ch:ch + 1, off:off + p]           # (1, P)
        if dw == -1:
            v = jnp.where(ok_left, v, 0.0)
        elif dw == 1:
            v = jnp.where(ok_right, v, 0.0)
        return v

    def conv3x3(ch_base, c_in, w_flat_ref):
        # 3x3 conv over scratch rows [ch_base, ch_base+c_in); unrolled VPU FMAs.
        acc = [None] * c_nf
        for ci in range(c_in):
            for dh in (-1, 0, 1):
                for dw in (-1, 0, 1):
                    v = tap(ch_base + ci, dh, dw)
                    kidx = ci * 9 + (dh + 1) * 3 + (dw + 1)
                    for co in range(c_nf):
                        term = w_flat_ref[co, kidx] * v
                        acc[co] = term if acc[co] is None else acc[co] + term
        return acc

    def conv1x1(planes, w_ref):
        outs = []
        for co in range(c_nf):
            a = w_ref[co, 0] * planes[0]
            for ci in range(1, c_nf):
                a = a + w_ref[co, ci] * planes[ci]
            outs.append(a)
        return outs

    for i in range(nb):                                # static unroll, Nb small
        xv = x_ref[i, :, :]                            # (C, P)  original x (residual)
        xev = xe_ref[i, :, :]                          # (Ce, P)

        # ---- conv_first (1x1) + LeakyReLU; stash x1 rows into the halo
        #      scratch and accumulate the global-average-pool per channel. ----
        pool = []
        for co in range(c_nf):
            acc = wcf_ref[co, 0] * xv[0:1, :]
            for ci in range(1, c_nf):
                acc = acc + wcf_ref[co, ci] * xv[ci:ci + 1, :]
            y = leaky(acc)                             # (1, P)
            pad_ref[co:co + 1, lpad:lpad + p] = y
            pool.append(jnp.sum(y, axis=-1, keepdims=True) * inv_p)   # (1, 1)

        # ---- x_edge rows into the halo scratch. ----
        for ci in range(c_edge):
            pad_ref[c_nf + ci:c_nf + ci + 1, lpad:lpad + p] = xev[ci:ci + 1, :]

        # ---- ADM gate (in-kernel): Linear -> ReLU -> Linear -> softmax(./t). ----
        hid = []
        for j in range(hidden):
            a = w1_ref[j, 0] * pool[0]
            for ci in range(1, c_nf):
                a = a + w1_ref[j, ci] * pool[ci]
            hid.append(jnp.maximum(a, 0.0))
        logits = []
        for kk in range(k_gate):
            a = w2_ref[kk, 0] * hid[0]
            for j in range(1, hidden):
                a = a + w2_ref[kk, j] * hid[j]
            logits.append(a * inv_t)
        m = logits[0]
        for kk in range(1, k_gate):
            m = jnp.maximum(m, logits[kk])
        exps = [jnp.exp(l - m) for l in logits]
        denom = exps[0]
        for kk in range(1, k_gate):
            denom = denom + exps[kk]
        gate = [e / denom for e in exps]               # each (1, 1)
        a0, a1 = gate[0], gate[1]                      # module only uses ax[:,0], ax[:,1]

        # ---- attention branch: k4_1x1(k1_3x3(x_edge)). ----
        att = conv1x1(conv3x3(c_nf, c_edge, wk1_ref), wk4_ref)
        # ---- non-attention branch: na2_1x1(relu(na1_3x3(x1))). ----
        na = conv3x3(0, c_nf, wna1_ref)
        na = [jnp.maximum(v, 0.0) for v in na]
        na = conv1x1(na, wna2_ref)

        # ---- gated mix + LeakyReLU, then conv_last + residual. ----
        z = [leaky(a0 * att[co] + a1 * na[co]) for co in range(c_nf)]
        out_rows = []
        for co in range(c_nf):
            a = wlast_ref[co, 0] * z[0]
            for ci in range(1, c_nf):
                a = a + wlast_ref[co, ci] * z[ci]
            out_rows.append(a)
        o_ref[i, :, :] = jnp.concatenate(out_rows, axis=0) + xv


# ---------------------------------------------------------------------------
# Wrapper: full AABplus forward (single fused pallas_call).
# ---------------------------------------------------------------------------
def aabplus_forward(x, x_edge, params, *, t=30.0, max_images_per_block=8):
    """x: (N, nf, H, W), x_edge: (N, 4, H, W).  Returns [out, x_edge]."""
    N, C, H, W = x.shape
    Ce = x_edge.shape[1]
    P = H * W
    LPAD = ((W + 1 + 127) // 128) * 128      # lane-aligned halo so interior stores are unmasked
    PP = P + 2 * LPAD
    Nb = _pick_images_per_block(N, max_images_per_block)
    assert N % Nb == 0
    grid = (N // Nb,)

    x_flat = x.reshape(N, C, P)              # free views: spatial on the lane axis
    xe_flat = x_edge.reshape(N, Ce, P)

    smem = pl.BlockSpec(memory_space=pltpu.MemorySpace.SMEM)
    kernel = functools.partial(_aab_kernel, width=W, t=float(t))

    out_flat = pl.pallas_call(
        kernel,
        out_shape=jax.ShapeDtypeStruct((N, C, P), jnp.float32),
        grid=grid,
        in_specs=[smem] * 8 + [
            pl.BlockSpec((Nb, C, P), lambda b: (b, 0, 0)),
            pl.BlockSpec((Nb, Ce, P), lambda b: (b, 0, 0)),
        ],
        out_specs=pl.BlockSpec((Nb, C, P), lambda b: (b, 0, 0)),
        scratch_shapes=[pltpu.VMEM((C + Ce, PP), jnp.float32)],
        compiler_params=pltpu.CompilerParams(
            dimension_semantics=("parallel",)),
    )(params["conv_first"],
      params["att_k1"].reshape(C, Ce * 9),
      params["att_k4"],
      params["na_conv3"].reshape(C, C * 9),
      params["na_conv1"],
      params["conv_last"],
      params["adm_w1"],
      params["adm_w2"],
      x_flat, xe_flat)

    return [out_flat.reshape(N, C, H, W), x_edge]


# ---------------------------------------------------------------------------
# Pure-JAX reference (mirrors the PyTorch module).
# ---------------------------------------------------------------------------
def _reference(x, x_edge, params, *, t=30.0):
    def conv3(inp, w):
        return jax.lax.conv_general_dilated(
            inp, w, window_strides=(1, 1), padding=((1, 1), (1, 1)),
            dimension_numbers=("NCHW", "OIHW", "NCHW"))

    def conv1(inp, w):
        return jnp.einsum("oc,nchw->nohw", w, inp)

    def lrelu(v):
        return jnp.where(v >= 0.0, v, 0.2 * v)

    residual = x
    x1 = lrelu(conv1(x, params["conv_first"]))
    y = jnp.mean(x1, axis=(2, 3))
    hid = jnp.maximum(y @ params["adm_w1"].T, 0.0)
    ax = jax.nn.softmax((hid @ params["adm_w2"].T) / t, axis=1)
    att = conv1(conv3(x_edge, params["att_k1"]), params["att_k4"])
    na = conv1(jnp.maximum(conv3(x1, params["na_conv3"]), 0.0), params["na_conv1"])
    z = lrelu(att * ax[:, 0][:, None, None, None] + na * ax[:, 1][:, None, None, None])
    out = conv1(z, params["conv_last"]) + residual
    return out, x_edge


if __name__ == "__main__":
    key = jax.random.PRNGKey(0)
    keys = jax.random.split(key, 10)

    N, nf, H, W = 2, 4, 16, 16       # batch=2, nf=4, 16x16 feature maps
    Ce, reduction, K, t = 4, 4, 2, 30.0
    hidden = max(nf // reduction, 1)

    x = jax.random.normal(keys[0], (N, nf, H, W), dtype=jnp.float32)
    x_edge = jax.random.normal(keys[1], (N, Ce, H, W), dtype=jnp.float32)

    def unif(k, shape, fan_in):
        b = 1.0 / (fan_in ** 0.5)
        return jax.random.uniform(k, shape, jnp.float32, -b, b)

    params = {
        "conv_first": unif(keys[2], (nf, nf), nf),
        "att_k1":     unif(keys[3], (nf, Ce, 3, 3), Ce * 9),
        "att_k4":     unif(keys[4], (nf, nf), nf),
        "na_conv3":   unif(keys[5], (nf, nf, 3, 3), nf * 9),
        "na_conv1":   unif(keys[6], (nf, nf), nf),
        "conv_last":  unif(keys[7], (nf, nf), nf),
        "adm_w1":     unif(keys[8], (hidden, nf), nf),
        "adm_w2":     unif(keys[9], (K, hidden), hidden),
    }

    out, edge_out = aabplus_forward(x, x_edge, params, t=t)
    out = jax.block_until_ready(out)

    ref_out, _ = _reference(x, x_edge, params, t=t)
    assert out.shape == (N, nf, H, W)
    assert edge_out.shape == (N, Ce, H, W)
    assert jnp.allclose(out, ref_out, atol=1e-4, rtol=1e-4), \
        float(jnp.max(jnp.abs(out - ref_out)))
    assert jnp.allclose(edge_out, x_edge)

    print("KERNEL_OK")
</pallas_src>

<mosaic_0001>
module attributes {stable_mosaic.version = 11 : i64} {
  func.func @_aab_kernel(%arg0: i32, %arg1: memref<4x4xf32, #tpu.memory_space<smem>>, %arg2: memref<4x36xf32, #tpu.memory_space<smem>>, %arg3: memref<4x4xf32, #tpu.memory_space<smem>>, %arg4: memref<4x36xf32, #tpu.memory_space<smem>>, %arg5: memref<4x4xf32, #tpu.memory_space<smem>>, %arg6: memref<4x4xf32, #tpu.memory_space<smem>>, %arg7: memref<1x4xf32, #tpu.memory_space<smem>>, %arg8: memref<2x1xf32, #tpu.memory_space<smem>>, %arg9: memref<1x4x256xf32, #tpu.memory_space<vmem>>, %arg10: memref<1x4x256xf32, #tpu.memory_space<vmem>>, %arg11: memref<1x4x256xf32, #tpu.memory_space<vmem>>, %arg12: memref<8x512xf32, #tpu.memory_space<vmem>>) attributes {dimension_semantics = [#tpu.dimension_semantics<parallel>], iteration_bounds = array<i64: 2>, scalar_prefetch = 0 : i64, scratch_operands = 1 : i64, tpu.core_type = #tpu.core_type<tc>, window_params = [{transform_indices = @transform_0, window_bounds = array<i64: 4, 4>}, {transform_indices = @transform_1, window_bounds = array<i64: 4, 36>}, {transform_indices = @transform_2, window_bounds = array<i64: 4, 4>}, {transform_indices = @transform_3, window_bounds = array<i64: 4, 36>}, {transform_indices = @transform_4, window_bounds = array<i64: 4, 4>}, {transform_indices = @transform_5, window_bounds = array<i64: 4, 4>}, {transform_indices = @transform_6, window_bounds = array<i64: 1, 4>}, {transform_indices = @transform_7, window_bounds = array<i64: 2, 1>}, {transform_indices = @transform_8, window_bounds = array<i64: 1, 4, 256>}, {transform_indices = @transform_9, window_bounds = array<i64: 1, 4, 256>}, {transform_indices = @transform_10, window_bounds = array<i64: 1, 4, 256>}]} {
    %0 = tpu.iota {dimensions = array<i32: 1>} : vector<1x256xi32>
    %c16_i32 = arith.constant 16 : i32
    %c0_i32 = arith.constant 0 : i32
    %1 = arith.cmpi eq, %c16_i32, %c0_i32 : i32
    %c1_i32 = arith.constant 1 : i32
    %2 = arith.select %1, %c1_i32, %c16_i32 : i32
    %3 = vector.broadcast %2 : i32 to vector<1x256xi32>
    %4 = arith.remsi %0, %3 : vector<1x256xi32>
    %c0_i32_0 = arith.constant 0 : i32
    %5 = vector.broadcast %c0_i32_0 : i32 to vector<1x256xi32>
    %6 = arith.cmpi ne, %4, %5 : vector<1x256xi32>
    %c0_i32_1 = arith.constant 0 : i32
    %7 = vector.broadcast %c0_i32_1 : i32 to vector<1x256xi32>
    %8 = arith.cmpi slt, %4, %7 : vector<1x256xi32>
    %c0_i32_2 = arith.constant 0 : i32
    %9 = arith.cmpi slt, %2, %c0_i32_2 : i32
    %10 = vector.broadcast %9 : i1 to vector<1x256xi1>
    %11 = vector.broadcast %10 : vector<1x256xi1> to vector<1x256xi1>
    %12 = arith.xori %8, %11 : vector<1x256xi1>
    %13 = arith.andi %12, %6 : vector<1x256xi1>
    %14 = vector.broadcast %2 : i32 to vector<1x256xi32>
    %15 = arith.addi %4, %14 : vector<1x256xi32>
    %16 = arith.select %13, %15, %4 : vector<1x256xi1>, vector<1x256xi32>
    %c0_i32_3 = arith.constant 0 : i32
    %17 = vector.broadcast %c0_i32_3 : i32 to vector<1x256xi32>
    %18 = arith.cmpi sgt, %16, %17 : vector<1x256xi32>
    %c15_i32 = arith.constant 15 : i32
    %19 = vector.broadcast %c15_i32 : i32 to vector<1x256xi32>
    %20 = arith.cmpi slt, %16, %19 : vector<1x256xi32>
    %cst = arith.constant 0.000000e+00 : f32
    %21 = vector.broadcast %cst : f32 to vector<8x512xf32>
    %c0 = arith.constant 0 : index
    %c0_4 = arith.constant 0 : index
    %22 = vector.load %arg12[%c0, %c0_4] : memref<8x512xf32, #tpu.memory_space<vmem>>, vector<8x512xf32>
    tpu.vector_store %arg12[%c0, %c0_4], %21 {strides = array<i32>} : memref<8x512xf32, #tpu.memory_space<vmem>>, vector<8x512xf32>,
    %c0_5 = arith.constant 0 : index
    %c0_6 = arith.constant 0 : index
    %c0_7 = arith.constant 0 : index
    %23 = vector.load %arg9[%c0_5, %c0_6, %c0_7] : memref<1x4x256xf32, #tpu.memory_space<vmem>>, vector<1x4x256xf32>
    %24 = vector.shape_cast %23 : vector<1x4x256xf32> to vector<4x256xf32>
    %c0_8 = arith.constant 0 : index
    %c0_9 = arith.constant 0 : index
    %c0_10 = arith.constant 0 : index
    %25 = vector.load %arg10[%c0_8, %c0_9, %c0_10] : memref<1x4x256xf32, #tpu.memory_space<vmem>>, vector<1x4x256xf32>
    %26 = vector.shape_cast %25 : vector<1x4x256xf32> to vector<4x256xf32>
    %c0_11 = arith.constant 0 : index
    %c0_12 = arith.constant 0 : index
    %27 = memref.load %arg1[%c0_11, %c0_12] : memref<4x4xf32, #tpu.memory_space<smem>>
    %28 = vector.extract_strided_slice %24 {offsets = [0, 0], sizes = [1, 256], strides = [1, 1]} : vector<4x256xf32> to vector<1x256xf32>
    %29 = vector.broadcast %27 : f32 to vector<1x256xf32>
    %30 = arith.mulf %29, %28 : vector<1x256xf32>
    %c0_13 = arith.constant 0 : index
    %c1 = arith.constant 1 : index
    %31 = memref.load %arg1[%c0_13, %c1] : memref<4x4xf32, #tpu.memory_space<smem>>
    %32 = vector.extract_strided_slice %24 {offsets = [1, 0], sizes = [1, 256], strides = [1, 1]} : vector<4x256xf32> to vector<1x256xf32>
    %33 = vector.broadcast %31 : f32 to vector<1x256xf32>
    %34 = arith.mulf %33, %32 : vector<1x256xf32>
    %35 = arith.addf %30, %34 : vector<1x256xf32>
    %c0_14 = arith.constant 0 : index
    %c2 = arith.constant 2 : index
    %36 = memref.load %arg1[%c0_14, %c2] : memref<4x4xf32, #tpu.memory_space<smem>>
    %37 = vector.extract_strided_slice %24 {offsets = [2, 0], sizes = [1, 256], strides = [1, 1]} : vector<4x256xf32> to vector<1x256xf32>
    %38 = vector.broadcast %36 : f32 to vector<1x256xf32>
    %39 = arith.mulf %38, %37 : vector<1x256xf32>
    %40 = arith.addf %35, %39 : vector<1x256xf32>
    %c0_15 = arith.constant 0 : index
    %c3 = arith.constant 3 : index
    %41 = memref.load %arg1[%c0_15, %c3] : memref<4x4xf32, #tpu.memory_space<smem>>
    %42 = vector.extract_strided_slice %24 {offsets = [3, 0], sizes = [1, 256], strides = [1, 1]} : vector<4x256xf32> to vector<1x256xf32>
    %43 = vector.broadcast %41 : f32 to vector<1x256xf32>
    %44 = arith.mulf %43, %42 : vector<1x256xf32>
    %45 = arith.addf %40, %44 : vector<1x256xf32>
    %cst_16 = arith.constant 0.000000e+00 : f32
    %46 = vector.broadcast %cst_16 : f32 to vector<1x256xf32>
    %47 = arith.cmpf oge, %45, %46 : vector<1x256xf32>
    %cst_17 = arith.constant 2.000000e-01 : f32
    %48 = vector.broadcast %cst_17 : f32 to vector<1x256xf32>
    %49 = arith.mulf %48, %45 : vector<1x256xf32>
    %50 = arith.select %47, %45, %49 : vector<1x256xi1>, vector<1x256xf32>
    %c0_18 = arith.constant 0 : index
    %c128 = arith.constant 128 : index
    %51 = vector.load %arg12[%c0_18, %c128] : memref<8x512xf32, #tpu.memory_space<vmem>>, vector<1x256xf32>
    tpu.vector_store %arg12[%c0_18, %c128], %50 {strides = array<i32>} : memref<8x512xf32, #tpu.memory_space<vmem>>, vector<1x256xf32>,
    %cst_19 = arith.constant dense<0.000000e+00> : vector<1xf32>
    %52 = vector.multi_reduction <add>, %50, %cst_19 [1] : vector<1x256xf32> to vector<1xf32>
    %53 = vector.shape_cast %52 : vector<1xf32> to vector<1x1xf32>
    %cst_20 = arith.constant 3.906250e-03 : f32
    %54 = vector.broadcast %cst_20 : f32 to vector<1x1xf32>
    %55 = arith.mulf %53, %54 : vector<1x1xf32>
    %c1_21 = arith.constant 1 : index
    %c0_22 = arith.constant 0 : index
    %56 = memref.load %arg1[%c1_21, %c0_22] : memref<4x4xf32, #tpu.memory_space<smem>>
    %57 = vector.extract_strided_slice %24 {offsets = [0, 0], sizes = [1, 256], strides = [1, 1]} : vector<4x256xf32> to vector<1x256xf32>
    %58 = vector.broadcast %56 : f32 to vector<1x256xf32>
    %59 = arith.mulf %58, %57 : vector<1x256xf32>
    %c1_23 = arith.constant 1 : index
    %c1_24 = arith.constant 1 : index
    %60 = memref.load %arg1[%c1_23, %c1_24] : memref<4x4xf32, #tpu.memory_space<smem>>
    %61 = vector.extract_strided_slice %24 {offsets = [1, 0], sizes = [1, 256], strides = [1, 1]} : vector<4x256xf32> to vector<1x256xf32>
    %62 = vector.broadcast %60 : f32 to vector<1x256xf32>
    %63 = arith.mulf %62, %61 : vector<1x256xf32>
    %64 = arith.addf %59, %63 : vector<1x256xf32>
    %c1_25 = arith.constant 1 : index
    %c2_26 = arith.constant 2 : index
    %65 = memref.load %arg1[%c1_25, %c2_26] : memref<4x4xf32, #tpu.memory_space<smem>>
    %66 = vector.extract_strided_slice %24 {offsets = [2, 0], sizes = [1, 256], strides = [1, 1]} : vector<4x256xf32> to vector<1x256xf32>
    %67 = vector.broadcast %65 : f32 to vector<1x256xf32>
    %68 = arith.mulf %67, %66 : vector<1x256xf32>
    %69 = arith.addf %64, %68 : vector<1x256xf32>
    %c1_27 = arith.constant 1 : index
    %c3_28 = arith.constant 3 : index
    %70 = memref.load %arg1[%c1_27, %c3_28] : memref<4x4xf32, #tpu.memory_space<smem>>
    %71 = vector.extract_strided_slice %24 {offsets = [3, 0], sizes = [1, 256], strides = [1, 1]} : vector<4x256xf32> to vector<1x256xf32>
    %72 = vector.broadcast %70 : f32 to vector<1x256xf32>
    %73 = arith.mulf %72, %71 : vector<1x256xf32>
    %74 = arith.addf %69, %73 : vector<1x256xf32>
    %cst_29 = arith.constant 0.000000e+00 : f32
    %75 = vector.broadcast %cst_29 : f32 to vector<1x256xf32>
    %76 = arith.cmpf oge, %74, %75 : vector<1x256xf32>
    %cst_30 = arith.constant 2.000000e-01 : f32
    %77 = vector.broadcast %cst_30 : f32 to vector<1x256xf32>
    %78 = arith.mulf %77, %74 : vector<1x256xf32>
    %79 = arith.select %76, %74, %78 : vector<1x256xi1>, vector<1x256xf32>
    %c1_31 = arith.constant 1 : index
    %c128_32 = arith.constant 128 : index
    %80 = vector.load %arg12[%c1_31, %c128_32] : memref<8x512xf32, #tpu.memory_space<vmem>>, vector<1x256xf32>
    tpu.vector_store %arg12[%c1_31, %c128_32], %79 {strides = array<i32>} : memref<8x512xf32, #tpu.memory_space<vmem>>, vector<1x256xf32>,
    %cst_33 = arith.constant dense<0.000000e+00> : vector<1xf32>
    %81 = vector.multi_reduction <add>, %79, %cst_33 [1] : vector<1x256xf32> to vector<1xf32>
    %82 = vector.shape_cast %81 : vector<1xf32> to vector<1x1xf32>
    %cst_34 = arith.constant 3.906250e-03 : f32
    %83 = vector.broadcast %cst_34 : f32 to vector<1x1xf32>
    %84 = arith.mulf %82, %83 : vector<1x1xf32>
    %c2_35 = arith.constant 2 : index
    %c0_36 = arith.constant 0 : index
    %85 = memref.load %arg1[%c2_35, %c0_36] : memref<4x4xf32, #tpu.memory_space<smem>>
    %86 = vector.extract_strided_slice %24 {offsets = [0, 0], sizes = [1, 256], strides = [1, 1]} : vector<4x256xf32> to vector<1x256xf32>
    %87 = vector.broadcast %85 : f32 to vector<1x256xf32>
    %88 = arith.mulf %87, %86 : vector<1x256xf32>
    %c2_37 = arith.constant 2 : index
    %c1_38 = arith.constant 1 : index
    %89 = memref.load %arg1[%c2_37, %c1_38] : memref<4x4xf32, #tpu.memory_space<smem>>
    %90 = vector.extract_strided_slice %24 {offsets = [1, 0], sizes = [1, 256], strides = [1, 1]} : vector<4x256xf32> to vector<1x256xf32>
    %91 = vector.broadcast %89 : f32 to vector<1x256xf32>
    %92 = arith.mulf %91, %90 : vector<1x256xf32>
    %93 = arith.addf %88, %92 : vector<1x256xf32>
    %c2_39 = arith.constant 2 : index
    %c2_40 = arith.constant 2 : index
    %94 = memref.load %arg1[%c2_39, %c2_40] : memref<4x4xf32, #tpu.memory_space<smem>>
    %95 = vector.extract_strided_slice %24 {offsets = [2, 0], sizes = [1, 256], strides = [1, 1]} : vector<4x256xf32> to vector<1x256xf32>
    %96 = vector.broadcast %94 : f32 to vector<1x256xf32>
    %97 = arith.mulf %96, %95 : vector<1x256xf32>
    %98 = arith.addf %93, %97 : vector<1x256xf32>
    %c2_41 = arith.constant 2 : index
    %c3_42 = arith.constant 3 : index
    %99 = memref.load %arg1[%c2_41, %c3_42] : memref<4x4xf32, #tpu.memory_space<smem>>
    %100 = vector.extract_strided_slice %24 {offsets = [3, 0], sizes = [1, 256], strides = [1, 1]} : vector<4x256xf32> to vector<1x256xf32>
    %101 = vector.broadcast %99 : f32 to vector<1x256xf32>
    %102 = arith.mulf %101, %100 : vector<1x256xf32>
    %103 = arith.addf %98, %102 : vector<1x256xf32>
    %cst_43 = arith.constant 0.000000e+00 : f32
    %104 = vector.broadcast %cst_43 : f32 to vector<1x256xf32>
    %105 = arith.cmpf oge, %103, %104 : vector<1x256xf32>
    %cst_44 = arith.constant 2.000000e-01 : f32
    %106 = vector.broadcast %cst_44 : f32 to vector<1x256xf32>
    %107 = arith.mulf %106, %103 : vector<1x256xf32>
    %108 = arith.select %105, %103, %107 : vector<1x256xi1>, vector<1x256xf32>
    %c2_45 = arith.constant 2 : index
    %c128_46 = arith.constant 128 : index
    %109 = vector.load %arg12[%c2_45, %c128_46] : memref<8x512xf32, #tpu.memory_space<vmem>>, vector<1x256xf32>
    tpu.vector_store %arg12[%c2_45, %c128_46], %108 {strides = array<i32>} : memref<8x512xf32, #tpu.memory_space<vmem>>, vector<1x256xf32>,
    %cst_47 = arith.constant dense<0.000000e+00> : vector<1xf32>
    %110 = vector.multi_reduction <add>, %108, %cst_47 [1] : vector<1x256xf32> to vector<1xf32>
    %111 = vector.shape_cast %110 : vector<1xf32> to vector<1x1xf32>
    %cst_48 = arith.constant 3.906250e-03 : f32
    %112 = vector.broadcast %cst_48 : f32 to vector<1x1xf32>
    %113 = arith.mulf %111, %112 : vector<1x1xf32>
    %c3_49 = arith.constant 3 : index
    %c0_50 = arith.constant 0 : index
    %114 = memref.load %arg1[%c3_49, %c0_50] : memref<4x4xf32, #tpu.memory_space<smem>>
    %115 = vector.extract_strided_slice %24 {offsets = [0, 0], sizes = [1, 256], strides = [1, 1]} : vector<4x256xf32> to vector<1x256xf32>
    %116 = vector.broadcast %114 : f32 to vector<1x256xf32>
    %117 = arith.mulf %116, %115 : vector<1x256xf32>
    %c3_51 = arith.constant 3 : index
    %c1_52 = arith.constant 1 : index
    %118 = memref.load %arg1[%c3_51, %c1_52] : memref<4x4xf32, #tpu.memory_space<smem>>
    %119 = vector.extract_strided_slice %24 {offsets = [1, 0], sizes = [1, 256], strides = [1, 1]} : vector<4x256xf32> to vector<1x256xf32>
    %120 = vector.broadcast %118 : f32 to vector<1x256xf32>
    %121 = arith.mulf %120, %119 : vector<1x256xf32>
    %122 = arith.addf %117, %121 : vector<1x256xf32>
    %c3_53 = arith.constant 3 : index
    %c2_54 = arith.constant 2 : index
    %123 = memref.load %arg1[%c3_53, %c2_54] : memref<4x4xf32, #tpu.memory_space<smem>>
    %124 = vector.extract_strided_slice %24 {offsets = [2, 0], sizes = [1, 256], strides = [1, 1]} : vector<4x256xf32> to vector<1x256xf32>
    %125 = vector.broadcast %123 : f32 to vector<1x256xf32>
    %126 = arith.mulf %125, %124 : vector<1x256xf32>
    %127 = arith.addf %122, %126 : vector<1x256xf32>
    %c3_55 = arith.constant 3 : index
    %c3_56 = arith.constant 3 : index
    %128 = memref.load %arg1[%c3_55, %c3_56] : memref<4x4xf32, #tpu.memory_space<smem>>
    %129 = vector.extract_strided_slice %24 {offsets = [3, 0], sizes = [1, 256], strides = [1, 1]} : vector<4x256xf32> to vector<1x256xf32>
    %130 = vector.broadcast %128 : f32 to vector<1x256xf32>
    %131 = arith.mulf %130, %129 : vector<1x256xf32>
    %132 = arith.addf %127, %131 : vector<1x256xf32>
    %cst_57 = arith.constant 0.000000e+00 : f32
    %133 = vector.broadcast %cst_57 : f32 to vector<1x256xf32>
    %134 = arith.cmpf oge, %132, %133 : vector<1x256xf32>
    %cst_58 = arith.constant 2.000000e-01 : f32
    %135 = vector.broadcast %cst_58 : f32 to vector<1x256xf32>
    %136 = arith.mulf %135, %132 : vector<1x256xf32>
    %137 = arith.select %134, %132, %136 : vector<1x256xi1>, vector<1x256xf32>
    %c3_59 = arith.constant 3 : index
    %c128_60 = arith.constant 128 : index
    %138 = vector.load %arg12[%c3_59, %c128_60] : memref<8x512xf32, #tpu.memory_space<vmem>>, vector<1x256xf32>
    tpu.vector_store %arg12[%c3_59, %c128_60], %137 {strides = array<i32>} : memref<8x512xf32, #tpu.memory_space<vmem>>, vector<1x256xf32>,
    %cst_61 = arith.constant dense<0.000000e+00> : vector<1xf32>
    %139 = vector.multi_reduction <add>, %137, %cst_61 [1] : vector<1x256xf32> to vector<1xf32>
    %140 = vector.shape_cast %139 : vector<1xf32> to vector<1x1xf32>
    %cst_62 = arith.constant 3.906250e-03 : f32
    %141 = vector.broadcast %cst_62 : f32 to vector<1x1xf32>
    %142 = arith.mulf %140, %141 : vector<1x1xf32>
    %143 = vector.extract_strided_slice %26 {offsets = [0, 0], sizes = [1, 256], strides = [1, 1]} : vector<4x256xf32> to vector<1x256xf32>
    %c4 = arith.constant 4 : index
    %c128_63 = arith.constant 128 : index
    %144 = vector.load %arg12[%c4, %c128_63] : memref<8x512xf32, #tpu.memory_space<vmem>>, vector<1x256xf32>
    tpu.vector_store %arg12[%c4, %c128_63], %143 {strides = array<i32>} : memref<8x512xf32, #tpu.memory_space<vmem>>, vector<1x256xf32>,
    %145 = vector.extract_strided_slice %26 {offsets = [1, 0], sizes = [1, 256], strides = [1, 1]} : vector<4x256xf32> to vector<1x256xf32>
    %c5 = arith.constant 5 : index
    %c128_64 = arith.constant 128 : index
    %146 = vector.load %arg12[%c5, %c128_64] : memref<8x512xf32, #tpu.memory_space<vmem>>, vector<1x256xf32>
    tpu.vector_store %arg12[%c5, %c128_64], %145 {strides = array<i32>} : memref<8x512xf32, #tpu.memory_space<vmem>>, vector<1x256xf32>,
    %147 = vector.extract_strided_slice %26 {offsets = [2, 0], sizes = [1, 256], strides = [1, 1]} : vector<4x256xf32> to vector<1x256xf32>
    %c6 = arith.constant 6 : index
    %c128_65 = arith.constant 128 : index
    %148 = vector.load %arg12[%c6, %c128_65] : memref<8x512xf32, #tpu.memory_space<vmem>>, vector<1x256xf32>
    tpu.vector_store %arg12[%c6, %c128_65], %147 {strides = array<i32>} : memref<8x512xf32, #tpu.memory_space<vmem>>, vector<1x256xf32>,
    %149 = vector.extract_strided_slice %26 {offsets = [3, 0], sizes = [1, 256], strides = [1, 1]} : vector<4x256xf32> to vector<1x256xf32>
    %c7 = arith.constant 7 : index
    %c128_66 = arith.constant 128 : index
    %150 = vector.load %arg12[%c7, %c128_66] : memref<8x512xf32, #tpu.memory_space<vmem>>, vector<1x256xf32>
    tpu.vector_store %arg12[%c7, %c128_66], %149 {strides = array<i32>} : memref<8x512xf32, #tpu.memory_space<vmem>>, vector<1x256xf32>,
    %c0_67 = arith.constant 0 : index
    %c0_68 = arith.constant 0 : index
    %151 = memref.load %arg7[%c0_67, %c0_68] : memref<1x4xf32, #tpu.memory_space<smem>>
    %152 = vector.broadcast %151 : f32 to vector<1x1xf32>
    %153 = arith.mulf %152, %55 : vector<1x1xf32>
    %c0_69 = arith.constant 0 : index
    %c1_70 = arith.constant 1 : index
    %154 = memref.load %arg7[%c0_69, %c1_70] : memref<1x4xf32, #tpu.memory_space<smem>>
    %155 = vector.broadcast %154 : f32 to vector<1x1xf32>
    %156 = arith.mulf %155, %84 : vector<1x1xf32>
    %157 = arith.addf %153, %156 : vector<1x1xf32>
    %c0_71 = arith.constant 0 : index
    %c2_72 = arith.constant 2 : index
    %158 = memref.load %arg7[%c0_71, %c2_72] : memref<1x4xf32, #tpu.memory_space<smem>>
    %159 = vector.broadcast %158 : f32 to vector<1x1xf32>
    %160 = arith.mulf %159, %113 : vector<1x1xf32>
    %161 = arith.addf %157, %160 : vector<1x1xf32>
    %c0_73 = arith.constant 0 : index
    %c3_74 = arith.constant 3 : index
    %162 = memref.load %arg7[%c0_73, %c3_74] : memref<1x4xf32, #tpu.memory_space<smem>>
    %163 = vector.broadcast %162 : f32 to vector<1x1xf32>
    %164 = arith.mulf %163, %142 : vector<1x1xf32>
    %165 = arith.addf %161, %164 : vector<1x1xf32>
    %cst_75 = arith.constant 0.000000e+00 : f32
    %166 = vector.broadcast %cst_75 : f32 to vector<1x1xf32>
    %167 = arith.maximumf %165, %166 : vector<1x1xf32>
    %c0_76 = arith.constant 0 : index
    %c0_77 = arith.constant 0 : index
    %168 = memref.load %arg8[%c0_76, %c0_77] : memref<2x1xf32, #tpu.memory_space<smem>>
    %169 = vector.broadcast %168 : f32 to vector<1x1xf32>
    %170 = arith.mulf %169, %167 : vector<1x1xf32>
    %cst_78 = arith.constant 0.0333333351 : f32
    %171 = vector.broadcast %cst_78 : f32 to vector<1x1xf32>
    %172 = arith.mulf %170, %171 : vector<1x1xf32>
    %c1_79 = arith.constant 1 : index
    %c0_80 = arith.constant 0 : index
    %173 = memref.load %arg8[%c1_79, %c0_80] : memref<2x1xf32, #tpu.memory_space<smem>>
    %174 = vector.broadcast %173 : f32 to vector<1x1xf32>
    %175 = arith.mulf %174, %167 : vector<1x1xf32>
    %cst_81 = arith.constant 0.0333333351 : f32
    %176 = vector.broadcast %cst_81 : f32 to vector<1x1xf32>
    %177 = arith.mulf %175, %176 : vector<1x1xf32>
    %178 = arith.maximumf %172, %177 : vector<1x1xf32>
    %179 = arith.subf %172, %178 : vector<1x1xf32>
    %180 = math.exp %179 : vector<1x1xf32>
    %181 = arith.subf %177, %178 : vector<1x1xf32>
    %182 = math.exp %181 : vector<1x1xf32>
    %183 = arith.addf %180, %182 : vector<1x1xf32>
    %184 = arith.divf %180, %183 : vector<1x1xf32>
    %185 = arith.divf %182, %183 : vector<1x1xf32>
    %c4_82 = arith.constant 4 : index
    %c111 = arith.constant 111 : index
    %186 = vector.load %arg12[%c4_82, %c111] : memref<8x512xf32, #tpu.memory_space<vmem>>, vector<1x256xf32>
    %cst_83 = arith.constant 0.000000e+00 : f32
    %187 = vector.broadcast %cst_83 : f32 to vector<1x256xf32>
    %188 = arith.select %18, %186, %187 : vector<1x256xi1>, vector<1x256xf32>
    %c0_84 = arith.constant 0 : index
    %c0_85 = arith.constant 0 : index
    %189 = memref.load %arg2[%c0_84, %c0_85] : memref<4x36xf32, #tpu.memory_space<smem>>
    %190 = vector.broadcast %189 : f32 to vector<1x256xf32>
    %191 = arith.mulf %190, %188 : vector<1x256xf32>
    %c1_86 = arith.constant 1 : index
    %c0_87 = arith.constant 0 : index
    %192 = memref.load %arg2[%c1_86, %c0_87] : memref<4x36xf32, #tpu.memory_space<smem>>
    %193 = vector.broadcast %192 : f32 to vector<1x256xf32>
    %194 = arith.mulf %193, %188 : vector<1x256xf32>
    %c2_88 = arith.constant 2 : index
    %c0_89 = arith.constant 0 : index
    %195 = memref.load %arg2[%c2_88, %c0_89] : memref<4x36xf32, #tpu.memory_space<smem>>
    %196 = vector.broadcast %195 : f32 to vector<1x256xf32>
    %197 = arith.mulf %196, %188 : vector<1x256xf32>
    %c3_90 = arith.constant 3 : index
    %c0_91 = arith.constant 0 : index
    %198 = memref.load %arg2[%c3_90, %c0_91] : memref<4x36xf32, #tpu.memory_space<smem>>
    %199 = vector.broadcast %198 : f32 to vector<1x256xf32>
    %200 = arith.mulf %199, %188 : vector<1x256xf32>
    %c4_92 = arith.constant 4 : index
    %c112 = arith.constant 112 : index
    %201 = vector.load %arg12[%c4_92, %c112] : memref<8x512xf32, #tpu.memory_space<vmem>>, vector<1x256xf32>
    %c0_93 = arith.constant 0 : index
    %c1_94 = arith.constant 1 : index
    %202 = memref.load %arg2[%c0_93, %c1_94] : memref<4x36xf32, #tpu.memory_space<smem>>
    %203 = vector.broadcast %202 : f32 to vector<1x256xf32>
    %204 = arith.mulf %203, %201 : vector<1x256xf32>
    %205 = arith.addf %191, %204 : vector<1x256xf32>
    %c1_95 = arith.constant 1 : index
    %c1_96 = arith.constant 1 : index
    %206 = memref.load %arg2[%c1_95, %c1_96] : memref<4x36xf32, #tpu.memory_space<smem>>
    %207 = vector.broadcast %206 : f32 to vector<1x256xf32>
    %208 = arith.mulf %207, %201 : vector<1x256xf32>
    %209 = arith.addf %194, %208 : vector<1x256xf32>
    %c2_97 = arith.constant 2 : index
    %c1_98 = arith.constant 1 : index
    %210 = memref.load %arg2[%c2_97, %c1_98] : memref<4x36xf32, #tpu.memory_space<smem>>
    %211 = vector.broadcast %210 : f32 to vector<1x256xf32>
    %212 = arith.mulf %211, %201 : vector<1x256xf32>
    %213 = arith.addf %197, %212 : vector<1x256xf32>
    %c3_99 = arith.constant 3 : index
    %c1_100 = arith.constant 1 : index
    %214 = memref.load %arg2[%c3_99, %c1_100] : memref<4x36xf32, #tpu.memory_space<smem>>
    %215 = vector.broadcast %214 : f32 to vector<1x256xf32>
    %216 = arith.mulf %215, %201 : vector<1x256xf32>
    %217 = arith.addf %200, %216 : vector<1x256xf32>
    %c4_101 = arith.constant 4 : index
    %c113 = arith.constant 113 : index
    %218 = vector.load %arg12[%c4_101, %c113] : memref<8x512xf32, #tpu.memory_space<vmem>>, vector<1x256xf32>
    %cst_102 = arith.constant 0.000000e+00 : f32
    %219 = vector.broadcast %cst_102 : f32 to vector<1x256xf32>
    %220 = arith.select %20, %218, %219 : vector<1x256xi1>, vector<1x256xf32>
    %c0_103 = arith.constant 0 : index
    %c2_104 = arith.constant 2 : index
    %221 = memref.load %arg2[%c0_103, %c2_104] : memref<4x36xf32, #tpu.memory_space<smem>>
    %222 = vector.broadcast %221 : f32 to vector<1x256xf32>
    %223 = arith.mulf %222, %220 : vector<1x256xf32>
    %224 = arith.addf %205, %223 : vector<1x256xf32>
    %c1_105 = arith.constant 1 : index
    %c2_106 = arith.constant 2 : index
    %225 = memref.load %arg2[%c1_105, %c2_106] : memref<4x36xf32, #tpu.memory_space<smem>>
    %226 = vector.broadcast %225 : f32 to vector<1x256xf32>
    %227 = arith.mulf %226, %220 : vector<1x256xf32>
    %228 = arith.addf %209, %227 : vector<1x256xf32>
    %c2_107 = arith.constant 2 : index
    %c2_108 = arith.constant 2 : index
    %229 = memref.load %arg2[%c2_107, %c2_108] : memref<4x36xf32, #tpu.memory_space<smem>>
    %230 = vector.broadcast %229 : f32 to vector<1x256xf32>
    %231 = arith.mulf %230, %220 : vector<1x256xf32>
    %232 = arith.addf %213, %231 : vector<1x256xf32>
    %c3_109 = arith.constant 3 : index
    %c2_110 = arith.constant 2 : index
    %233 = memref.load %arg2[%c3_109, %c2_110] : memref<4x36xf32, #tpu.memory_space<smem>>
    %234 = vector.broadcast %233 : f32 to vector<1x256xf32>
    %235 = arith.mulf %234, %220 : vector<1x256xf32>
    %236 = arith.addf %217, %235 : vector<1x256xf32>
    %c4_111 = arith.constant 4 : index
    %c127 = arith.constant 127 : index
    %237 = vector.load %arg12[%c4_111, %c127] : memref<8x512xf32, #tpu.memory_space<vmem>>, vector<1x256xf32>
    %cst_112 = arith.constant 0.000000e+00 : f32
    %238 = vector.broadcast %cst_112 : f32 to vector<1x256xf32>
    %239 = arith.select %18, %237, %238 : vector<1x256xi1>, vector<1x256xf32>
    %c0_113 = arith.constant 0 : index
    %c3_114 = arith.constant 3 : index
    %240 = memref.load %arg2[%c0_113, %c3_114] : memref<4x36xf32, #tpu.memory_space<smem>>
    %241 = vector.broadcast %240 : f32 to vector<1x256xf32>
    %242 = arith.mulf %241, %239 : vector<1x256xf32>
    %243 = arith.addf %224, %242 : vector<1x256xf32>
    %c1_115 = arith.constant 1 : index
    %c3_116 = arith.constant 3 : index
    %244 = memref.load %arg2[%c1_115, %c3_116] : memref<4x36xf32, #tpu.memory_space<smem>>
    %245 = vector.broadcast %244 : f32 to vector<1x256xf32>
    %246 = arith.mulf %245, %239 : vector<1x256xf32>
    %247 = arith.addf %228, %246 : vector<1x256xf32>
    %c2_117 = arith.constant 2 : index
    %c3_118 = arith.constant 3 : index
    %248 = memref.load %arg2[%c2_117, %c3_118] : memref<4x36xf32, #tpu.memory_space<smem>>
    %249 = vector.broadcast %248 : f32 to vector<1x256xf32>
    %250 = arith.mulf %249, %239 : vector<1x256xf32>
    %251 = arith.addf %232, %250 : vector<1x256xf32>
    %c3_119 = arith.constant 3 : index
    %c3_120 = arith.constant 3 : index
    %252 = memref.load %arg2[%c3_119, %c3_120] : memref<4x36xf32, #tpu.memory_space<smem>>
    %253 = vector.broadcast %252 : f32 to vector<1x256xf32>
    %254 = arith.mulf %253, %239 : vector<1x256xf32>
    %255 = arith.addf %236, %254 : vector<1x256xf32>
    %c4_121 = arith.constant 4 : index
    %c128_122 = arith.constant 128 : index
    %256 = vector.load %arg12[%c4_121, %c128_122] : memref<8x512xf32, #tpu.memory_space<vmem>>, vector<1x256xf32>
    %c0_123 = arith.constant 0 : index
    %c4_124 = arith.constant 4 : index
    %257 = memref.load %arg2[%c0_123, %c4_124] : memref<4x36xf32, #tpu.memory_space<smem>>
    %258 = vector.broadcast %257 : f32 to vector<1x256xf32>
    %259 = arith.mulf %258, %256 : vector<1x256xf32>
    %260 = arith.addf %243, %259 : vector<1x256xf32>
    %c1_125 = arith.constant 1 : index
    %c4_126 = arith.constant 4 : index
    %261 = memref.load %arg2[%c1_125, %c4_126] : memref<4x36xf32, #tpu.memory_space<smem>>
    %262 = vector.broadcast %261 : f32 to vector<1x256xf32>
    %263 = arith.mulf %262, %256 : vector<1x256xf32>
    %264 = arith.addf %247, %263 : vector<1x256xf32>
    %c2_127 = arith.constant 2 : index
    %c4_128 = arith.constant 4 : index
    %265 = memref.load %arg2[%c2_127, %c4_128] : memref<4x36xf32, #tpu.memory_space<smem>>
    %266 = vector.broadcast %265 : f32 to vector<1x256xf32>
    %267 = arith.mulf %266, %256 : vector<1x256xf32>
    %268 = arith.addf %251, %267 : vector<1x256xf32>
    %c3_129 = arith.constant 3 : index
    %c4_130 = arith.constant 4 : index
    %269 = memref.load %arg2[%c3_129, %c4_130] : memref<4x36xf32, #tpu.memory_space<smem>>
    %270 = vector.broadcast %269 : f32 to vector<1x256xf32>
    %271 = arith.mulf %270, %256 : vector<1x256xf32>
    %272 = arith.addf %255, %271 : vector<1x256xf32>
    %c4_131 = arith.constant 4 : index
    %c129 = arith.constant 129 : index
    %273 = vector.load %arg12[%c4_131, %c129] : memref<8x512xf32, #tpu.memory_space<vmem>>, vector<1x256xf32>
    %cst_132 = arith.constant 0.000000e+00 : f32
    %274 = vector.broadcast %cst_132 : f32 to vector<1x256xf32>
    %275 = arith.select %20, %273, %274 : vector<1x256xi1>, vector<1x256xf32>
    %c0_133 = arith.constant 0 : index
    %c5_134 = arith.constant 5 : index
    %276 = memref.load %arg2[%c0_133, %c5_134] : memref<4x36xf32, #tpu.memory_space<smem>>
    %277 = vector.broadcast %276 : f32 to vector<1x256xf32>
    %278 = arith.mulf %277, %275 : vector<1x256xf32>
    %279 = arith.addf %260, %278 : vector<1x256xf32>
    %c1_135 = arith.constant 1 : index
    %c5_136 = arith.constant 5 : index
    %280 = memref.load %arg2[%c1_135, %c5_136] : memref<4x36xf32, #tpu.memory_space<smem>>
    %281 = vector.broadcast %280 : f32 to vector<1x256xf32>
    %282 = arith.mulf %281, %275 : vector<1x256xf32>
    %283 = arith.addf %264, %282 : vector<1x256xf32>
    %c2_137 = arith.constant 2 : index
    %c5_138 = arith.constant 5 : index
    %284 = memref.load %arg2[%c2_137, %c5_138] : memref<4x36xf32, #tpu.memory_space<smem>>
    %285 = vector.broadcast %284 : f32 to vector<1x256xf32>
    %286 = arith.mulf %285, %275 : vector<1x256xf32>
    %287 = arith.addf %268, %286 : vector<1x256xf32>
    %c3_139 = arith.constant 3 : index
    %c5_140 = arith.constant 5 : index
    %288 = memref.load %arg2[%c3_139, %c5_140] : memref<4x36xf32, #tpu.memory_space<smem>>
    %289 = vector.broadcast %288 : f32 to vector<1x256xf32>
    %290 = arith.mulf %289, %275 : vector<1x256xf32>
    %291 = arith.addf %272, %290 : vector<1x256xf32>
    %c4_141 = arith.constant 4 : index
    %c143 = arith.constant 143 : index
    %292 = vector.load %arg12[%c4_141, %c143] : memref<8x512xf32, #tpu.memory_space<vmem>>, vector<1x256xf32>
    %cst_142 = arith.constant 0.000000e+00 : f32
    %293 = vector.broadcast %cst_142 : f32 to vector<1x256xf32>
    %294 = arith.select %18, %292, %293 : vector<1x256xi1>, vector<1x256xf32>
    %c0_143 = arith.constant 0 : index
    %c6_144 = arith.constant 6 : index
    %295 = memref.load %arg2[%c0_143, %c6_144] : memref<4x36xf32, #tpu.memory_space<smem>>
    %296 = vector.broadcast %295 : f32 to vector<1x256xf32>
    %297 = arith.mulf %296, %294 : vector<1x256xf32>
    %298 = arith.addf %279, %297 : vector<1x256xf32>
    %c1_145 = arith.constant 1 : index
    %c6_146 = arith.constant 6 : index
    %299 = memref.load %arg2[%c1_145, %c6_146] : memref<4x36xf32, #tpu.memory_space<smem>>
    %300 = vector.broadcast %299 : f32 to vector<1x256xf32>
    %301 = arith.mulf %300, %294 : vector<1x256xf32>
    %302 = arith.addf %283, %301 : vector<1x256xf32>
    %c2_147 = arith.constant 2 : index
    %c6_148 = arith.constant 6 : index
    %303 = memref.load %arg2[%c2_147, %c6_148] : memref<4x36xf32, #tpu.memory_space<smem>>
    %304 = vector.broadcast %303 : f32 to vector<1x256xf32>
    %305 = arith.mulf %304, %294 : vector<1x256xf32>
    %306 = arith.addf %287, %305 : vector<1x256xf32>
    %c3_149 = arith.constant 3 : index
    %c6_150 = arith.constant 6 : index
    %307 = memref.load %arg2[%c3_149, %c6_150] : memref<4x36xf32, #tpu.memory_space<smem>>
    %308 = vector.broadcast %307 : f32 to vector<1x256xf32>
    %309 = arith.mulf %308, %294 : vector<1x256xf32>
    %310 = arith.addf %291, %309 : vector<1x256xf32>
    %c4_151 = arith.constant 4 : index
    %c144 = arith.constant 144 : index
    %311 = vector.load %arg12[%c4_151, %c144] : memref<8x512xf32, #tpu.memory_space<vmem>>, vector<1x256xf32>
    %c0_152 = arith.constant 0 : index
    %c7_153 = arith.constant 7 : index
    %312 = memref.load %arg2[%c0_152, %c7_153] : memref<4x36xf32, #tpu.memory_space<smem>>
    %313 = vector.broadcast %312 : f32 to vector<1x256xf32>
    %314 = arith.mulf %313, %311 : vector<1x256xf32>
    %315 = arith.addf %298, %314 : vector<1x256xf32>
    %c1_154 = arith.constant 1 : index
    %c7_155 = arith.constant 7 : index
    %316 = memref.load %arg2[%c1_154, %c7_155] : memref<4x36xf32, #tpu.memory_space<smem>>
    %317 = vector.broadcast %316 : f32 to vector<1x256xf32>
    %318 = arith.mulf %317, %311 : vector<1x256xf32>
    %319 = arith.addf %302, %318 : vector<1x256xf32>
    %c2_156 = arith.constant 2 : index
    %c7_157 = arith.constant 7 : index
    %320 = memref.load %arg2[%c2_156, %c7_157] : memref<4x36xf32, #tpu.memory_space<smem>>
    %321 = vector.broadcast %320 : f32 to vector<1x256xf32>
    %322 = arith.mulf %321, %311 : vector<1x256xf32>
    %323 = arith.addf %306, %322 : vector<1x256xf32>
    %c3_158 = arith.constant 3 : index
    %c7_159 = arith.constant 7 : index
    %324 = memref.load %arg2[%c3_158, %c7_159] : memref<4x36xf32, #tpu.memory_space<smem>>
    %325 = vector.broadcast %324 : f32 to vector<1x256xf32>
    %326 = arith.mulf %325, %311 : vector<1x256xf32>
    %327 = arith.addf %310, %326 : vector<1x256xf32>
    %c4_160 = arith.constant 4 : index
    %c145 = arith.constant 145 : index
    %328 = vector.load %arg12[%c4_160, %c145] : memref<8x512xf32, #tpu.memory_space<vmem>>, vector<1x256xf32>
    %cst_161 = arith.constant 0.000000e+00 : f32
    %329 = vector.broadcast %cst_161 : f32 to vector<1x256xf32>
    %330 = arith.select %20, %328, %329 : vector<1x256xi1>, vector<1x256xf32>
    %c0_162 = arith.constant 0 : index
    %c8 = arith.constant 8 : index
    %331 = memref.load %arg2[%c0_162, %c8] : memref<4x36xf32, #tpu.memory_space<smem>>
    %332 = vector.broadcast %331 : f32 to vector<1x256xf32>
    %333 = arith.mulf %332, %330 : vector<1x256xf32>
    %334 = arith.addf %315, %333 : vector<1x256xf32>
    %c1_163 = arith.constant 1 : index
    %c8_164 = arith.constant 8 : index
    %335 = memref.load %arg2[%c1_163, %c8_164] : memref<4x36xf32, #tpu.memory_space<smem>>
    %336 = vector.broadcast %335 : f32 to vector<1x256xf32>
    %337 = arith.mulf %336, %330 : vector<1x256xf32>
    %338 = arith.addf %319, %337 : vector<1x256xf32>
    %c2_165 = arith.constant 2 : index
    %c8_166 = arith.constant 8 : index
    %339 = memref.load %arg2[%c2_165, %c8_166] : memref<4x36xf32, #tpu.memory_space<smem>>
    %340 = vector.broadcast %339 : f32 to vector<1x256xf32>
    %341 = arith.mulf %340, %330 : vector<1x256xf32>
    %342 = arith.addf %323, %341 : vector<1x256xf32>
    %c3_167 = arith.constant 3 : index
    %c8_168 = arith.constant 8 : index
    %343 = memref.load %arg2[%c3_167, %c8_168] : memref<4x36xf32, #tpu.memory_space<smem>>
    %344 = vector.broadcast %343 : f32 to vector<1x256xf32>
    %345 = arith.mulf %344, %330 : vector<1x256xf32>
    %346 = arith.addf %327, %345 : vector<1x256xf32>
    %c5_169 = arith.constant 5 : index
    %c111_170 = arith.constant 111 : index
    %347 = vector.load %arg12[%c5_169, %c111_170] : memref<8x512xf32, #tpu.memory_space<vmem>>, vector<1x256xf32>
    %cst_171 = arith.constant 0.000000e+00 : f32
    %348 = vector.broadcast %cst_171 : f32 to vector<1x256xf32>
    %349 = arith.select %18, %347, %348 : vector<1x256xi1>, vector<1x256xf32>
    %c0_172 = arith.constant 0 : index
    %c9 = arith.constant 9 : index
    %350 = memref.load %arg2[%c0_172, %c9] : memref<4x36xf32, #tpu.memory_space<smem>>
    %351 = vector.broadcast %350 : f32 to vector<1x256xf32>
    %352 = arith.mulf %351, %349 : vector<1x256xf32>
    %353 = arith.addf %334, %352 : vector<1x256xf32>
    %c1_173 = arith.constant 1 : index
    %c9_174 = arith.constant 9 : index
    %354 = memref.load %arg2[%c1_173, %c9_174] : memref<4x36xf32, #tpu.memory_space<smem>>
    %355 = vector.broadcast %354 : f32 to vector<1x256xf32>
    %356 = arith.mulf %355, %349 : vector<1x256xf32>
    %357 = arith.addf %338, %356 : vector<1x256xf32>
    %c2_175 = arith.constant 2 : index
    %c9_176 = arith.constant 9 : index
    %358 = memref.load %arg2[%c2_175, %c9_176] : memref<4x36xf32, #tpu.memory_space<smem>>
    %359 = vector.broadcast %358 : f32 to vector<1x256xf32>
    %360 = arith.mulf %359, %349 : vector<1x256xf32>
    %361 = arith.addf %342, %360 : vector<1x256xf32>
    %c3_177 = arith.constant 3 : index
    %c9_178 = arith.constant 9 : index
    %362 = memref.load %arg2[%c3_177, %c9_178] : memref<4x36xf32, #tpu.memory_space<smem>>
    %363 = vector.broadcast %362 : f32 to vector<1x256xf32>
    %364 = arith.mulf %363, %349 : vector<1x256xf32>
    %365 = arith.addf %346, %364 : vector<1x256xf32>
    %c5_179 = arith.constant 5 : index
    %c112_180 = arith.constant 112 : index
    %366 = vector.load %arg12[%c5_179, %c112_180] : memref<8x512xf32, #tpu.memory_space<vmem>>, vector<1x256xf32>
    %c0_181 = arith.constant 0 : index
    %c10 = arith.constant 10 : index
    %367 = memref.load %arg2[%c0_181, %c10] : memref<4x36xf32, #tpu.memory_space<smem>>
    %368 = vector.broadcast %367 : f32 to vector<1x256xf32>
    %369 = arith.mulf %368, %366 : vector<1x256xf32>
    %370 = arith.addf %353, %369 : vector<1x256xf32>
    %c1_182 = arith.constant 1 : index
    %c10_183 = arith.constant 10 : index
    %371 = memref.load %arg2[%c1_182, %c10_183] : memref<4x36xf32, #tpu.memory_space<smem>>
    %372 = vector.broadcast %371 : f32 to vector<1x256xf32>
    %373 = arith.mulf %372, %366 : vector<1x256xf32>
    %374 = arith.addf %357, %373 : vector<1x256xf32>
    %c2_184 = arith.constant 2 : index
    %c10_185 = arith.constant 10 : index
    %375 = memref.load %arg2[%c2_184, %c10_185] : memref<4x36xf32, #tpu.memory_space<smem>>
    %376 = vector.broadcast %375 : f32 to vector<1x256xf32>
    %377 = arith.mulf %376, %366 : vector<1x256xf32>
    %378 = arith.addf %361, %377 : vector<1x256xf32>
    %c3_186 = arith.constant 3 : index
    %c10_187 = arith.constant 10 : index
    %379 = memref.load %arg2[%c3_186, %c10_187] : memref<4x36xf32, #tpu.memory_space<smem>>
    %380 = vector.broadcast %379 : f32 to vector<1x256xf32>
    %381 = arith.mulf %380, %366 : vector<1x256xf32>
    %382 = arith.addf %365, %381 : vector<1x256xf32>
    %c5_188 = arith.constant 5 : index
    %c113_189 = arith.constant 113 : index
    %383 = vector.load %arg12[%c5_188, %c113_189] : memref<8x512xf32, #tpu.memory_space<vmem>>, vector<1x256xf32>
    %cst_190 = arith.constant 0.000000e+00 : f32
    %384 = vector.broadcast %cst_190 : f32 to vector<1x256xf32>
    %385 = arith.select %20, %383, %384 : vector<1x256xi1>, vector<1x256xf32>
    %c0_191 = arith.constant 0 : index
    %c11 = arith.constant 11 : index
    %386 = memref.load %arg2[%c0_191, %c11] : memref<4x36xf32, #tpu.memory_space<smem>>
    %387 = vector.broadcast %386 : f32 to vector<1x256xf32>
    %388 = arith.mulf %387, %385 : vector<1x256xf32>
    %389 = arith.addf %370, %388 : vector<1x256xf32>
    %c1_192 = arith.constant 1 : index
    %c11_193 = arith.constant 11 : index
    %390 = memref.load %arg2[%c1_192, %c11_193] : memref<4x36xf32, #tpu.memory_space<smem>>
    %391 = vector.broadcast %390 : f32 to vector<1x256xf32>
    %392 = arith.mulf %391, %385 : vector<1x256xf32>
    %393 = arith.addf %374, %392 : vector<1x256xf32>
    %c2_194 = arith.constant 2 : index
    %c11_195 = arith.constant 11 : index
    %394 = memref.load %arg2[%c2_194, %c11_195] : memref<4x36xf32, #tpu.memory_space<smem>>
    %395 = vector.broadcast %394 : f32 to vector<1x256xf32>
    %396 = arith.mulf %395, %385 : vector<1x256xf32>
    %397 = arith.addf %378, %396 : vector<1x256xf32>
    %c3_196 = arith.constant 3 : index
    %c11_197 = arith.constant 11 : index
    %398 = memref.load %arg2[%c3_196, %c11_197] : memref<4x36xf32, #tpu.memory_space<smem>>
    %399 = vector.broadcast %398 : f32 to vector<1x256xf32>
    %400 = arith.mulf %399, %385 : vector<1x256xf32>
    %401 = arith.addf %382, %400 : vector<1x256xf32>
    %c5_198 = arith.constant 5 : index
    %c127_199 = arith.constant 127 : index
    %402 = vector.load %arg12[%c5_198, %c127_199] : memref<8x512xf32, #tpu.memory_space<vmem>>, vector<1x256xf32>
    %cst_200 = arith.constant 0.000000e+00 : f32
    %403 = vector.broadcast %cst_200 : f32 to vector<1x256xf32>
    %404 = arith.select %18, %402, %403 : vector<1x256xi1>, vector<1x256xf32>
    %c0_201 = arith.constant 0 : index
    %c12 = arith.constant 12 : index
    %405 = memref.load %arg2[%c0_201, %c12] : memref<4x36xf32, #tpu.memory_space<smem>>
    %406 = vector.broadcast %405 : f32 to vector<1x256xf32>
    %407 = arith.mulf %406, %404 : vector<1x256xf32>
    %408 = arith.addf %389, %407 : vector<1x256xf32>
    %c1_202 = arith.constant 1 : index
    %c12_203 = arith.constant 12 : index
    %409 = memref.load %arg2[%c1_202, %c12_203] : memref<4x36xf32, #tpu.memory_space<smem>>
    %410 = vector.broadcast %409 : f32 to vector<1x256xf32>
    %411 = arith.mulf %410, %404 : vector<1x256xf32>
    %412 = arith.addf %393, %411 : vector<1x256xf32>
    %c2_204 = arith.constant 2 : index
    %c12_205 = arith.constant 12 : index
    %413 = memref.load %arg2[%c2_204, %c12_205] : memref<4x36xf32, #tpu.memory_space<smem>>
    %414 = vector.broadcast %413 : f32 to vector<1x256xf32>
    %415 = arith.mulf %414, %404 : vector<1x256xf32>
    %416 = arith.addf %397, %415 : vector<1x256xf32>
    %c3_206 = arith.constant 3 : index
    %c12_207 = arith.constant 12 : index
    %417 = memref.load %arg2[%c3_206, %c12_207] : memref<4x36xf32, #tpu.memory_space<smem>>
    %418 = vector.broadcast %417 : f32 to vector<1x256xf32>
    %419 = arith.mulf %418, %404 : vector<1x256xf32>
    %420 = arith.addf %401, %419 : vector<1x256xf32>
    %c5_208 = arith.constant 5 : index
    %c128_209 = arith.constant 128 : index
    %421 = vector.load %arg12[%c5_208, %c128_209] : memref<8x512xf32, #tpu.memory_space<vmem>>, vector<1x256xf32>
    %c0_210 = arith.constant 0 : index
    %c13 = arith.constant 13 : index
    %422 = memref.load %arg2[%c0_210, %c13] : memref<4x36xf32, #tpu.memory_space<smem>>
    %423 = vector.broadcast %422 : f32 to vector<1x256xf32>
    %424 = arith.mulf %423, %421 : vector<1x256xf32>
    %425 = arith.addf %408, %424 : vector<1x256xf32>
    %c1_211 = arith.constant 1 : index
    %c13_212 = arith.constant 13 : index
    %426 = memref.load %arg2[%c1_211, %c13_212] : memref<4x36xf32, #tpu.memory_space<smem>>
    %427 = vector.broadcast %426 : f32 to vector<1x256xf32>
    %428 = arith.mulf %427, %421 : vector<1x256xf32>
    %429 = arith.addf %412, %428 : vector<1x256xf32>
    %c2_213 = arith.constant 2 : index
    %c13_214 = arith.constant 13 : index
    %430 = memref.load %arg2[%c2_213, %c13_214] : memref<4x36xf32, #tpu.memory_space<smem>>
    %431 = vector.broadcast %430 : f32 to vector<1x256xf32>
    %432 = arith.mulf %431, %421 : vector<1x256xf32>
    %433 = arith.addf %416, %432 : vector<1x256xf32>
    %c3_215 = arith.constant 3 : index
    %c13_216 = arith.constant 13 : index
    %434 = memref.load %arg2[%c3_215, %c13_216] : memref<4x36xf32, #tpu.memory_space<smem>>
    %435 = vector.broadcast %434 : f32 to vector<1x256xf32>
    %436 = arith.mulf %435, %421 : vector<1x256xf32>
    %437 = arith.addf %420, %436 : vector<1x256xf32>
    %c5_217 = arith.constant 5 : index
    %c129_218 = arith.constant 129 : index
    %438 = vector.load %arg12[%c5_217, %c129_218] : memref<8x512xf32, #tpu.memory_space<vmem>>, vector<1x256xf32>
    %cst_219 = arith.constant 0.000000e+00 : f32
    %439 = vector.broadcast %cst_219 : f32 to vector<1x256xf32>
    %440 = arith.select %20, %438, %439 : vector<1x256xi1>, vector<1x256xf32>
    %c0_220 = arith.constant 0 : index
    %c14 = arith.constant 14 : index
    %441 = memref.load %arg2[%c0_220, %c14] : memref<4x36xf32, #tpu.memory_space<smem>>
    %442 = vector.broadcast %441 : f32 to vector<1x256xf32>
    %443 = arith.mulf %442, %440 : vector<1x256xf32>
    %444 = arith.addf %425, %443 : vector<1x256xf32>
    %c1_221 = arith.constant 1 : index
    %c14_222 = arith.constant 14 : index
    %445 = memref.load %arg2[%c1_221, %c14_222] : memref<4x36xf32, #tpu.memory_space<smem>>
    %446 = vector.broadcast %445 : f32 to vector<1x256xf32>
    %447 = arith.mulf %446, %440 : vector<1x256xf32>
    %448 = arith.addf %429, %447 : vector<1x256xf32>
    %c2_223 = arith.constant 2 : index
    %c14_224 = arith.constant 14 : index
    %449 = memref.load %arg2[%c2_223, %c14_224] : memref<4x36xf32, #tpu.memory_space<smem>>
    %450 = vector.broadcast %449 : f32 to vector<1x256xf32>
    %451 = arith.mulf %450, %440 : vector<1x256xf32>
    %452 = arith.addf %433, %451 : vector<1x256xf32>
    %c3_225 = arith.constant 3 : index
    %c14_226 = arith.constant 14 : index
    %453 = memref.load %arg2[%c3_225, %c14_226] : memref<4x36xf32, #tpu.memory_space<smem>>
    %454 = vector.broadcast %453 : f32 to vector<1x256xf32>
    %455 = arith.mulf %454, %440 : vector<1x256xf32>
    %456 = arith.addf %437, %455 : vector<1x256xf32>
    %c5_227 = arith.constant 5 : index
    %c143_228 = arith.constant 143 : index
    %457 = vector.load %arg12[%c5_227, %c143_228] : memref<8x512xf32, #tpu.memory_space<vmem>>, vector<1x256xf32>
    %cst_229 = arith.constant 0.000000e+00 : f32
    %458 = vector.broadcast %cst_229 : f32 to vector<1x256xf32>
    %459 = arith.select %18, %457, %458 : vector<1x256xi1>, vector<1x256xf32>
    %c0_230 = arith.constant 0 : index
    %c15 = arith.constant 15 : index
    %460 = memref.load %arg2[%c0_230, %c15] : memref<4x36xf32, #tpu.memory_space<smem>>
    %461 = vector.broadcast %460 : f32 to vector<1x256xf32>
    %462 = arith.mulf %461, %459 : vector<1x256xf32>
    %463 = arith.addf %444, %462 : vector<1x256xf32>
    %c1_231 = arith.constant 1 : index
    %c15_232 = arith.constant 15 : index
    %464 = memref.load %arg2[%c1_231, %c15_232] : memref<4x36xf32, #tpu.memory_space<smem>>
    %465 = vector.broadcast %464 : f32 to vector<1x256xf32>
    %466 = arith.mulf %465, %459 : vector<1x256xf32>
    %467 = arith.addf %448, %466 : vector<1x256xf32>
    %c2_233 = arith.constant 2 : index
    %c15_234 = arith.constant 15 : index
    %468 = memref.load %arg2[%c2_233, %c15_234] : memref<4x36xf32, #tpu.memory_space<smem>>
    %469 = vector.broadcast %468 : f32 to vector<1x256xf32>
    %470 = arith.mulf %469, %459 : vector<1x256xf32>
    %471 = arith.addf %452, %470 : vector<1x256xf32>
    %c3_235 = arith.constant 3 : index
    %c15_236 = arith.constant 15 : index
    %472 = memref.load %arg2[%c3_235, %c15_236] : memref<4x36xf32, #tpu.memory_space<smem>>
    %473 = vector.broadcast %472 : f32 to vector<1x256xf32>
    %474 = arith.mulf %473, %459 : vector<1x256xf32>
    %475 = arith.addf %456, %474 : vector<1x256xf32>
    %c5_237 = arith.constant 5 : index
    %c144_238 = arith.constant 144 : index
    %476 = vector.load %arg12[%c5_237, %c144_238] : memref<8x512xf32, #tpu.memory_space<vmem>>, vector<1x256xf32>
    %c0_239 = arith.constant 0 : index
    %c16 = arith.constant 16 : index
    %477 = memref.load %arg2[%c0_239, %c16] : memref<4x36xf32, #tpu.memory_space<smem>>
    %478 = vector.broadcast %477 : f32 to vector<1x256xf32>
    %479 = arith.mulf %478, %476 : vector<1x256xf32>
    %480 = arith.addf %463, %479 : vector<1x256xf32>
    %c1_240 = arith.constant 1 : index
    %c16_241 = arith.constant 16 : index
    %481 = memref.load %arg2[%c1_240, %c16_241] : memref<4x36xf32, #tpu.memory_space<smem>>
    %482 = vector.broadcast %481 : f32 to vector<1x256xf32>
    %483 = arith.mulf %482, %476 : vector<1x256xf32>
    %484 = arith.addf %467, %483 : vector<1x256xf32>
    %c2_242 = arith.constant 2 : index
    %c16_243 = arith.constant 16 : index
    %485 = memref.load %arg2[%c2_242, %c16_243] : memref<4x36xf32, #tpu.memory_space<smem>>
    %486 = vector.broadcast %485 : f32 to vector<1x256xf32>
    %487 = arith.mulf %486, %476 : vector<1x256xf32>
    %488 = arith.addf %471, %487 : vector<1x256xf32>
    %c3_244 = arith.constant 3 : index
    %c16_245 = arith.constant 16 : index
    %489 = memref.load %arg2[%c3_244, %c16_245] : memref<4x36xf32, #tpu.memory_space<smem>>
    %490 = vector.broadcast %489 : f32 to vector<1x256xf32>
    %491 = arith.mulf %490, %476 : vector<1x256xf32>
    %492 = arith.addf %475, %491 : vector<1x256xf32>
    %c5_246 = arith.constant 5 : index
    %c145_247 = arith.constant 145 : index
    %493 = vector.load %arg12[%c5_246, %c145_247] : memref<8x512xf32, #tpu.memory_space<vmem>>, vector<1x256xf32>
    %cst_248 = arith.constant 0.000000e+00 : f32
    %494 = vector.broadcast %cst_248 : f32 to vector<1x256xf32>
    %495 = arith.select %20, %493, %494 : vector<1x256xi1>, vector<1x256xf32>
    %c0_249 = arith.constant 0 : index
    %c17 = arith.constant 17 : index
    %496 = memref.load %arg2[%c0_249, %c17] : memref<4x36xf32, #tpu.memory_space<smem>>
    %497 = vector.broadcast %496 : f32 to vector<1x256xf32>
    %498 = arith.mulf %497, %495 : vector<1x256xf32>
    %499 = arith.addf %480, %498 : vector<1x256xf32>
    %c1_250 = arith.constant 1 : index
    %c17_251 = arith.constant 17 : index
    %500 = memref.load %arg2[%c1_250, %c17_251] : memref<4x36xf32, #tpu.memory_space<smem>>
    %501 = vector.broadcast %500 : f32 to vector<1x256xf32>
    %502 = arith.mulf %501, %495 : vector<1x256xf32>
    %503 = arith.addf %484, %502 : vector<1x256xf32>
    %c2_252 = arith.constant 2 : index
    %c17_253 = arith.constant 17 : index
    %504 = memref.load %arg2[%c2_252, %c17_253] : memref<4x36xf32, #tpu.memory_space<smem>>
    %505 = vector.broadcast %504 : f32 to vector<1x256xf32>
    %506 = arith.mulf %505, %495 : vector<1x256xf32>
    %507 = arith.addf %488, %506 : vector<1x256xf32>
    %c3_254 = arith.constant 3 : index
    %c17_255 = arith.constant 17 : index
    %508 = memref.load %arg2[%c3_254, %c17_255] : memref<4x36xf32, #tpu.memory_space<smem>>
    %509 = vector.broadcast %508 : f32 to vector<1x256xf32>
    %510 = arith.mulf %509, %495 : vector<1x256xf32>
    %511 = arith.addf %492, %510 : vector<1x256xf32>
    %c6_256 = arith.constant 6 : index
    %c111_257 = arith.constant 111 : index
    %512 = vector.load %arg12[%c6_256, %c111_257] : memref<8x512xf32, #tpu.memory_space<vmem>>, vector<1x256xf32>
    %cst_258 = arith.constant 0.000000e+00 : f32
    %513 = vector.broadcast %cst_258 : f32 to vector<1x256xf32>
    %514 = arith.select %18, %512, %513 : vector<1x256xi1>, vector<1x256xf32>
    %c0_259 = arith.constant 0 : index
    %c18 = arith.constant 18 : index
    %515 = memref.load %arg2[%c0_259, %c18] : memref<4x36xf32, #tpu.memory_space<smem>>
    %516 = vector.broadcast %515 : f32 to vector<1x256xf32>
    %517 = arith.mulf %516, %514 : vector<1x256xf32>
    %518 = arith.addf %499, %517 : vector<1x256xf32>
    %c1_260 = arith.constant 1 : index
    %c18_261 = arith.constant 18 : index
    %519 = memref.load %arg2[%c1_260, %c18_261] : memref<4x36xf32, #tpu.memory_space<smem>>
    %520 = vector.broadcast %519 : f32 to vector<1x256xf32>
    %521 = arith.mulf %520, %514 : vector<1x256xf32>
    %522 = arith.addf %503, %521 : vector<1x256xf32>
    %c2_262 = arith.constant 2 : index
    %c18_263 = arith.constant 18 : index
    %523 = memref.load %arg2[%c2_262, %c18_263] : memref<4x36xf32, #tpu.memory_space<smem>>
    %524 = vector.broadcast %523 : f32 to vector<1x256xf32>
    %525 = arith.mulf %524, %514 : vector<1x256xf32>
    %526 = arith.addf %507, %525 : vector<1x256xf32>
    %c3_264 = arith.constant 3 : index
    %c18_265 = arith.constant 18 : index
    %527 = memref.load %arg2[%c3_264, %c18_265] : memref<4x36xf32, #tpu.memory_space<smem>>
    %528 = vector.broadcast %527 : f32 to vector<1x256xf32>
    %529 = arith.mulf %528, %514 : vector<1x256xf32>
    %530 = arith.addf %511, %529 : vector<1x256xf32>
    %c6_266 = arith.constant 6 : index
    %c112_267 = arith.constant 112 : index
    %531 = vector.load %arg12[%c6_266, %c112_267] : memref<8x512xf32, #tpu.memory_space<vmem>>, vector<1x256xf32>
    %c0_268 = arith.constant 0 : index
    %c19 = arith.constant 19 : index
    %532 = memref.load %arg2[%c0_268, %c19] : memref<4x36xf32, #tpu.memory_space<smem>>
    %533 = vector.broadcast %532 : f32 to vector<1x256xf32>
    %534 = arith.mulf %533, %531 : vector<1x256xf32>
    %535 = arith.addf %518, %534 : vector<1x256xf32>
    %c1_269 = arith.constant 1 : index
    %c19_270 = arith.constant 19 : index
    %536 = memref.load %arg2[%c1_269, %c19_270] : memref<4x36xf32, #tpu.memory_space<smem>>
    %537 = vector.broadcast %536 : f32 to vector<1x256xf32>
    %538 = arith.mulf %537, %531 : vector<1x256xf32>
    %539 = arith.addf %522, %538 : vector<1x256xf32>
    %c2_271 = arith.constant 2 : index
    %c19_272 = arith.constant 19 : index
    %540 = memref.load %arg2[%c2_271, %c19_272] : memref<4x36xf32, #tpu.memory_space<smem>>
    %541 = vector.broadcast %540 : f32 to vector<1x256xf32>
    %542 = arith.mulf %541, %531 : vector<1x256xf32>
    %543 = arith.addf %526, %542 : vector<1x256xf32>
    %c3_273 = arith.constant 3 : index
    %c19_274 = arith.constant 19 : index
    %544 = memref.load %arg2[%c3_273, %c19_274] : memref<4x36xf32, #tpu.memory_space<smem>>
    %545 = vector.broadcast %544 : f32 to vector<1x256xf32>
    %546 = arith.mulf %545, %531 : vector<1x256xf32>
    %547 = arith.addf %530, %546 : vector<1x256xf32>
    %c6_275 = arith.constant 6 : index
    %c113_276 = arith.constant 113 : index
    %548 = vector.load %arg12[%c6_275, %c113_276] : memref<8x512xf32, #tpu.memory_space<vmem>>, vector<1x256xf32>
    %cst_277 = arith.constant 0.000000e+00 : f32
    %549 = vector.broadcast %cst_277 : f32 to vector<1x256xf32>
    %550 = arith.select %20, %548, %549 : vector<1x256xi1>, vector<1x256xf32>
    %c0_278 = arith.constant 0 : index
    %c20 = arith.constant 20 : index
    %551 = memref.load %arg2[%c0_278, %c20] : memref<4x36xf32, #tpu.memory_space<smem>>
    %552 = vector.broadcast %551 : f32 to vector<1x256xf32>
    %553 = arith.mulf %552, %550 : vector<1x256xf32>
    %554 = arith.addf %535, %553 : vector<1x256xf32>
    %c1_279 = arith.constant 1 : index
    %c20_280 = arith.constant 20 : index
    %555 = memref.load %arg2[%c1_279, %c20_280] : memref<4x36xf32, #tpu.memory_space<smem>>
    %556 = vector.broadcast %555 : f32 to vector<1x256xf32>
    %557 = arith.mulf %556, %550 : vector<1x256xf32>
    %558 = arith.addf %539, %557 : vector<1x256xf32>
    %c2_281 = arith.constant 2 : index
    %c20_282 = arith.constant 20 : index
    %559 = memref.load %arg2[%c2_281, %c20_282] : memref<4x36xf32, #tpu.memory_space<smem>>
    %560 = vector.broadcast %559 : f32 to vector<1x256xf32>
    %561 = arith.mulf %560, %550 : vector<1x256xf32>
    %562 = arith.addf %543, %561 : vector<1x256xf32>
    %c3_283 = arith.constant 3 : index
    %c20_284 = arith.constant 20 : index
    %563 = memref.load %arg2[%c3_283, %c20_284] : memref<4x36xf32, #tpu.memory_space<smem>>
    %564 = vector.broadcast %563 : f32 to vector<1x256xf32>
    %565 = arith.mulf %564, %550 : vector<1x256xf32>
    %566 = arith.addf %547, %565 : vector<1x256xf32>
    %c6_285 = arith.constant 6 : index
    %c127_286 = arith.constant 127 : index
    %567 = vector.load %arg12[%c6_285, %c127_286] : memref<8x512xf32, #tpu.memory_space<vmem>>, vector<1x256xf32>
    %cst_287 = arith.constant 0.000000e+00 : f32
    %568 = vector.broadcast %cst_287 : f32 to vector<1x256xf32>
    %569 = arith.select %18, %567, %568 : vector<1x256xi1>, vector<1x256xf32>
    %c0_288 = arith.constant 0 : index
    %c21 = arith.constant 21 : index
    %570 = memref.load %arg2[%c0_288, %c21] : memref<4x36xf32, #tpu.memory_space<smem>>
    %571 = vector.broadcast %570 : f32 to vector<1x256xf32>
    %572 = arith.mulf %571, %569 : vector<1x256xf32>
    %573 = arith.addf %554, %572 : vector<1x256xf32>
    %c1_289 = arith.constant 1 : index
    %c21_290 = arith.constant 21 : index
    %574 = memref.load %arg2[%c1_289, %c21_290] : memref<4x36xf32, #tpu.memory_space<smem>>
    %575 = vector.broadcast %574 : f32 to vector<1x256xf32>
    %576 = arith.mulf %575, %569 : vector<1x256xf32>
    %577 = arith.addf %558, %576 : vector<1x256xf32>
    %c2_291 = arith.constant 2 : index
    %c21_292 = arith.constant 21 : index
    %578 = memref.load %arg2[%c2_291, %c21_292] : memref<4x36xf32, #tpu.memory_space<smem>>
    %579 = vector.broadcast %578 : f32 to vector<1x256xf32>
    %580 = arith.mulf %579, %569 : vector<1x256xf32>
    %581 = arith.addf %562, %580 : vector<1x256xf32>
    %c3_293 = arith.constant 3 : index
    %c21_294 = arith.constant 21 : index
    %582 = memref.load %arg2[%c3_293, %c21_294] : memref<4x36xf32, #tpu.memory_space<smem>>
    %583 = vector.broadcast %582 : f32 to vector<1x256xf32>
    %584 = arith.mulf %583, %569 : vector<1x256xf32>
    %585 = arith.addf %566, %584 : vector<1x256xf32>
    %c6_295 = arith.constant 6 : index
    %c128_296 = arith.constant 128 : index
    %586 = vector.load %arg12[%c6_295, %c128_296] : memref<8x512xf32, #tpu.memory_space<vmem>>, vector<1x256xf32>
    %c0_297 = arith.constant 0 : index
    %c22 = arith.constant 22 : index
    %587 = memref.load %arg2[%c0_297, %c22] : memref<4x36xf32, #tpu.memory_space<smem>>
    %588 = vector.broadcast %587 : f32 to vector<1x256xf32>
    %589 = arith.mulf %588, %586 : vector<1x256xf32>
    %590 = arith.addf %573, %589 : vector<1x256xf32>
    %c1_298 = arith.constant 1 : index
    %c22_299 = arith.constant 22 : index
    %591 = memref.load %arg2[%c1_298, %c22_299] : memref<4x36xf32, #tpu.memory_space<smem>>
    %592 = vector.broadcast %591 : f32 to vector<1x256xf32>
    %593 = arith.mulf %592, %586 : vector<1x256xf32>
    %594 = arith.addf %577, %593 : vector<1x256xf32>
    %c2_300 = arith.constant 2 : index
    %c22_301 = arith.constant 22 : index
    %595 = memref.load %arg2[%c2_300, %c22_301] : memref<4x36xf32, #tpu.memory_space<smem>>
    %596 = vector.broadcast %595 : f32 to vector<1x256xf32>
    %597 = arith.mulf %596, %586 : vector<1x256xf32>
    %598 = arith.addf %581, %597 : vector<1x256xf32>
    %c3_302 = arith.constant 3 : index
    %c22_303 = arith.constant 22 : index
    %599 = memref.load %arg2[%c3_302, %c22_303] : memref<4x36xf32, #tpu.memory_space<smem>>
    %600 = vector.broadcast %599 : f32 to vector<1x256xf32>
    %601 = arith.mulf %600, %586 : vector<1x256xf32>
    %602 = arith.addf %585, %601 : vector<1x256xf32>
    %c6_304 = arith.constant 6 : index
    %c129_305 = arith.constant 129 : index
    %603 = vector.load %arg12[%c6_304, %c129_305] : memref<8x512xf32, #tpu.memory_space<vmem>>, vector<1x256xf32>
    %cst_306 = arith.constant 0.000000e+00 : f32
    %604 = vector.broadcast %cst_306 : f32 to vector<1x256xf32>
    %605 = arith.select %20, %603, %604 : vector<1x256xi1>, vector<1x256xf32>
    %c0_307 = arith.constant 0 : index
    %c23 = arith.constant 23 : index
    %606 = memref.load %arg2[%c0_307, %c23] : memref<4x36xf32, #tpu.memory_space<smem>>
    %607 = vector.broadcast %606 : f32 to vector<1x256xf32>
    %608 = arith.mulf %607, %605 : vector<1x256xf32>
    %609 = arith.addf %590, %608 : vector<1x256xf32>
    %c1_308 = arith.constant 1 : index
    %c23_309 = arith.constant 23 : index
    %610 = memref.load %arg2[%c1_308, %c23_309] : memref<4x36xf32, #tpu.memory_space<smem>>
    %611 = vector.broadcast %610 : f32 to vector<1x256xf32>
    %612 = arith.mulf %611, %605 : vector<1x256xf32>
    %613 = arith.addf %594, %612 : vector<1x256xf32>
    %c2_310 = arith.constant 2 : index
    %c23_311 = arith.constant 23 : index
    %614 = memref.load %arg2[%c2_310, %c23_311] : memref<4x36xf32, #tpu.memory_space<smem>>
    %615 = vector.broadcast %614 : f32 to vector<1x256xf32>
    %616 = arith.mulf %615, %605 : vector<1x256xf32>
    %617 = arith.addf %598, %616 : vector<1x256xf32>
    %c3_312 = arith.constant 3 : index
    %c23_313 = arith.constant 23 : index
    %618 = memref.load %arg2[%c3_312, %c23_313] : memref<4x36xf32, #tpu.memory_space<smem>>
    %619 = vector.broadcast %618 : f32 to vector<1x256xf32>
    %620 = arith.mulf %619, %605 : vector<1x256xf32>
    %621 = arith.addf %602, %620 : vector<1x256xf32>
    %c6_314 = arith.constant 6 : index
    %c143_315 = arith.constant 143 : index
    %622 = vector.load %arg12[%c6_314, %c143_315] : memref<8x512xf32, #tpu.memory_space<vmem>>, vector<1x256xf32>
    %cst_316 = arith.constant 0.000000e+00 : f32
    %623 = vector.broadcast %cst_316 : f32 to vector<1x256xf32>
    %624 = arith.select %18, %622, %623 : vector<1x256xi1>, vector<1x256xf32>
    %c0_317 = arith.constant 0 : index
    %c24 = arith.constant 24 : index
    %625 = memref.load %arg2[%c0_317, %c24] : memref<4x36xf32, #tpu.memory_space<smem>>
    %626 = vector.broadcast %625 : f32 to vector<1x256xf32>
    %627 = arith.mulf %626, %624 : vector<1x256xf32>
    %628 = arith.addf %609, %627 : vector<1x256xf32>
    %c1_318 = arith.constant 1 : index
    %c24_319 = arith.constant 24 : index
    %629 = memref.load %arg2[%c1_318, %c24_319] : memref<4x36xf32, #tpu.memory_space<smem>>
    %630 = vector.broadcast %629 : f32 to vector<1x256xf32>
    %631 = arith.mulf %630, %624 : vector<1x256xf32>
    %632 = arith.addf %613, %631 : vector<1x256xf32>
    %c2_320 = arith.constant 2 : index
    %c24_321 = arith.constant 24 : index
    %633 = memref.load %arg2[%c2_320, %c24_321] : memref<4x36xf32, #tpu.memory_space<smem>>
    %634 = vector.broadcast %633 : f32 to vector<1x256xf32>
    %635 = arith.mulf %634, %624 : vector<1x256xf32>
    %636 = arith.addf %617, %635 : vector<1x256xf32>
    %c3_322 = arith.constant 3 : index
    %c24_323 = arith.constant 24 : index
    %637 = memref.load %arg2[%c3_322, %c24_323] : memref<4x36xf32, #tpu.memory_space<smem>>
    %638 = vector.broadcast %637 : f32 to vector<1x256xf32>
    %639 = arith.mulf %638, %624 : vector<1x256xf32>
    %640 = arith.addf %621, %639 : vector<1x256xf32>
    %c6_324 = arith.constant 6 : index
    %c144_325 = arith.constant 144 : index
    %641 = vector.load %arg12[%c6_324, %c144_325] : memref<8x512xf32, #tpu.memory_space<vmem>>, vector<1x256xf32>
    %c0_326 = arith.constant 0 : index
    %c25 = arith.constant 25 : index
    %642 = memref.load %arg2[%c0_326, %c25] : memref<4x36xf32, #tpu.memory_space<smem>>
    %643 = vector.broadcast %642 : f32 to vector<1x256xf32>
    %644 = arith.mulf %643, %641 : vector<1x256xf32>
    %645 = arith.addf %628, %644 : vector<1x256xf32>
    %c1_327 = arith.constant 1 : index
    %c25_328 = arith.constant 25 : index
    %646 = memref.load %arg2[%c1_327, %c25_328] : memref<4x36xf32, #tpu.memory_space<smem>>
    %647 = vector.broadcast %646 : f32 to vector<1x256xf32>
    %648 = arith.mulf %647, %641 : vector<1x256xf32>
    %649 = arith.addf %632, %648 : vector<1x256xf32>
    %c2_329 = arith.constant 2 : index
    %c25_330 = arith.constant 25 : index
    %650 = memref.load %arg2[%c2_329, %c25_330] : memref<4x36xf32, #tpu.memory_space<smem>>
    %651 = vector.broadcast %650 : f32 to vector<1x256xf32>
    %652 = arith.mulf %651, %641 : vector<1x256xf32>
    %653 = arith.addf %636, %652 : vector<1x256xf32>
    %c3_331 = arith.constant 3 : index
    %c25_332 = arith.constant 25 : index
    %654 = memref.load %arg2[%c3_331, %c25_332] : memref<4x36xf32, #tpu.memory_space<smem>>
    %655 = vector.broadcast %654 : f32 to vector<1x256xf32>
    %656 = arith.mulf %655, %641 : vector<1x256xf32>
    %657 = arith.addf %640, %656 : vector<1x256xf32>
    %c6_333 = arith.constant 6 : index
    %c145_334 = arith.constant 145 : index
    %658 = vector.load %arg12[%c6_333, %c145_334] : memref<8x512xf32, #tpu.memory_space<vmem>>, vector<1x256xf32>
    %cst_335 = arith.constant 0.000000e+00 : f32
    %659 = vector.broadcast %cst_335 : f32 to vector<1x256xf32>
    %660 = arith.select %20, %658, %659 : vector<1x256xi1>, vector<1x256xf32>
    %c0_336 = arith.constant 0 : index
    %c26 = arith.constant 26 : index
    %661 = memref.load %arg2[%c0_336, %c26] : memref<4x36xf32, #tpu.memory_space<smem>>
    %662 = vector.broadcast %661 : f32 to vector<1x256xf32>
    %663 = arith.mulf %662, %660 : vector<1x256xf32>
    %664 = arith.addf %645, %663 : vector<1x256xf32>
    %c1_337 = arith.constant 1 : index
    %c26_338 = arith.constant 26 : index
    %665 = memref.load %arg2[%c1_337, %c26_338] : memref<4x36xf32, #tpu.memory_space<smem>>
    %666 = vector.broadcast %665 : f32 to vector<1x256xf32>
    %667 = arith.mulf %666, %660 : vector<1x256xf32>
    %668 = arith.addf %649, %667 : vector<1x256xf32>
    %c2_339 = arith.constant 2 : index
    %c26_340 = arith.constant 26 : index
    %669 = memref.load %arg2[%c2_339, %c26_340] : memref<4x36xf32, #tpu.memory_space<smem>>
    %670 = vector.broadcast %669 : f32 to vector<1x256xf32>
    %671 = arith.mulf %670, %660 : vector<1x256xf32>
    %672 = arith.addf %653, %671 : vector<1x256xf32>
    %c3_341 = arith.constant 3 : index
    %c26_342 = arith.constant 26 : index
    %673 = memref.load %arg2[%c3_341, %c26_342] : memref<4x36xf32, #tpu.memory_space<smem>>
    %674 = vector.broadcast %673 : f32 to vector<1x256xf32>
    %675 = arith.mulf %674, %660 : vector<1x256xf32>
    %676 = arith.addf %657, %675 : vector<1x256xf32>
    %c7_343 = arith.constant 7 : index
    %c111_344 = arith.constant 111 : index
    %677 = vector.load %arg12[%c7_343, %c111_344] : memref<8x512xf32, #tpu.memory_space<vmem>>, vector<1x256xf32>
    %cst_345 = arith.constant 0.000000e+00 : f32
    %678 = vector.broadcast %cst_345 : f32 to vector<1x256xf32>
    %679 = arith.select %18, %677, %678 : vector<1x256xi1>, vector<1x256xf32>
    %c0_346 = arith.constant 0 : index
    %c27 = arith.constant 27 : index
    %680 = memref.load %arg2[%c0_346, %c27] : memref<4x36xf32, #tpu.memory_space<smem>>
    %681 = vector.broadcast %680 : f32 to vector<1x256xf32>
    %682 = arith.mulf %681, %679 : vector<1x256xf32>
    %683 = arith.addf %664, %682 : vector<1x256xf32>
    %c1_347 = arith.constant 1 : index
    %c27_348 = arith.constant 27 : index
    %684 = memref.load %arg2[%c1_347, %c27_348] : memref<4x36xf32, #tpu.memory_space<smem>>
    %685 = vector.broadcast %684 : f32 to vector<1x256xf32>
    %686 = arith.mulf %685, %679 : vector<1x256xf32>
    %687 = arith.addf %668, %686 : vector<1x256xf32>
    %c2_349 = arith.constant 2 : index
    %c27_350 = arith.constant 27 : index
    %688 = memref.load %arg2[%c2_349, %c27_350] : memref<4x36xf32, #tpu.memory_space<smem>>
    %689 = vector.broadcast %688 : f32 to vector<1x256xf32>
    %690 = arith.mulf %689, %679 : vector<1x256xf32>
    %691 = arith.addf %672, %690 : vector<1x256xf32>
    %c3_351 = arith.constant 3 : index
    %c27_352 = arith.constant 27 : index
    %692 = memref.load %arg2[%c3_351, %c27_352] : memref<4x36xf32, #tpu.memory_space<smem>>
    %693 = vector.broadcast %692 : f32 to vector<1x256xf32>
    %694 = arith.mulf %693, %679 : vector<1x256xf32>
    %695 = arith.addf %676, %694 : vector<1x256xf32>
    %c7_353 = arith.constant 7 : index
    %c112_354 = arith.constant 112 : index
    %696 = vector.load %arg12[%c7_353, %c112_354] : memref<8x512xf32, #tpu.memory_space<vmem>>, vector<1x256xf32>
    %c0_355 = arith.constant 0 : index
    %c28 = arith.constant 28 : index
    %697 = memref.load %arg2[%c0_355, %c28] : memref<4x36xf32, #tpu.memory_space<smem>>
    %698 = vector.broadcast %697 : f32 to vector<1x256xf32>
    %699 = arith.mulf %698, %696 : vector<1x256xf32>
    %700 = arith.addf %683, %699 : vector<1x256xf32>
    %c1_356 = arith.constant 1 : index
    %c28_357 = arith.constant 28 : index
    %701 = memref.load %arg2[%c1_356, %c28_357] : memref<4x36xf32, #tpu.memory_space<smem>>
    %702 = vector.broadcast %701 : f32 to vector<1x256xf32>
    %703 = arith.mulf %702, %696 : vector<1x256xf32>
    %704 = arith.addf %687, %703 : vector<1x256xf32>
    %c2_358 = arith.constant 2 : index
    %c28_359 = arith.constant 28 : index
    %705 = memref.load %arg2[%c2_358, %c28_359] : memref<4x36xf32, #tpu.memory_space<smem>>
    %706 = vector.broadcast %705 : f32 to vector<1x256xf32>
    %707 = arith.mulf %706, %696 : vector<1x256xf32>
    %708 = arith.addf %691, %707 : vector<1x256xf32>
    %c3_360 = arith.constant 3 : index
    %c28_361 = arith.constant 28 : index
    %709 = memref.load %arg2[%c3_360, %c28_361] : memref<4x36xf32, #tpu.memory_space<smem>>
    %710 = vector.broadcast %709 : f32 to vector<1x256xf32>
    %711 = arith.mulf %710, %696 : vector<1x256xf32>
    %712 = arith.addf %695, %711 : vector<1x256xf32>
    %c7_362 = arith.constant 7 : index
    %c113_363 = arith.constant 113 : index
    %713 = vector.load %arg12[%c7_362, %c113_363] : memref<8x512xf32, #tpu.memory_space<vmem>>, vector<1x256xf32>
    %cst_364 = arith.constant 0.000000e+00 : f32
    %714 = vector.broadcast %cst_364 : f32 to vector<1x256xf32>
    %715 = arith.select %20, %713, %714 : vector<1x256xi1>, vector<1x256xf32>
    %c0_365 = arith.constant 0 : index
    %c29 = arith.constant 29 : index
    %716 = memref.load %arg2[%c0_365, %c29] : memref<4x36xf32, #tpu.memory_space<smem>>
    %717 = vector.broadcast %716 : f32 to vector<1x256xf32>
    %718 = arith.mulf %717, %715 : vector<1x256xf32>
    %719 = arith.addf %700, %718 : vector<1x256xf32>
    %c1_366 = arith.constant 1 : index
    %c29_367 = arith.constant 29 : index
    %720 = memref.load %arg2[%c1_366, %c29_367] : memref<4x36xf32, #tpu.memory_space<smem>>
    %721 = vector.broadcast %720 : f32 to vector<1x256xf32>
    %722 = arith.mulf %721, %715 : vector<1x256xf32>
    %723 = arith.addf %704, %722 : vector<1x256xf32>
    %c2_368 = arith.constant 2 : index
    %c29_369 = arith.constant 29 : index
    %724 = memref.load %arg2[%c2_368, %c29_369] : memref<4x36xf32, #tpu.memory_space<smem>>
    %725 = vector.broadcast %724 : f32 to vector<1x256xf32>
    %726 = arith.mulf %725, %715 : vector<1x256xf32>
    %727 = arith.addf %708, %726 : vector<1x256xf32>
    %c3_370 = arith.constant 3 : index
    %c29_371 = arith.constant 29 : index
    %728 = memref.load %arg2[%c3_370, %c29_371] : memref<4x36xf32, #tpu.memory_space<smem>>
    %729 = vector.broadcast %728 : f32 to vector<1x256xf32>
    %730 = arith.mulf %729, %715 : vector<1x256xf32>
    %731 = arith.addf %712, %730 : vector<1x256xf32>
    %c7_372 = arith.constant 7 : index
    %c127_373 = arith.constant 127 : index
    %732 = vector.load %arg12[%c7_372, %c127_373] : memref<8x512xf32, #tpu.memory_space<vmem>>, vector<1x256xf32>
    %cst_374 = arith.constant 0.000000e+00 : f32
    %733 = vector.broadcast %cst_374 : f32 to vector<1x256xf32>
    %734 = arith.select %18, %732, %733 : vector<1x256xi1>, vector<1x256xf32>
    %c0_375 = arith.constant 0 : index
    %c30 = arith.constant 30 : index
    %735 = memref.load %arg2[%c0_375, %c30] : memref<4x36xf32, #tpu.memory_space<smem>>
    %736 = vector.broadcast %735 : f32 to vector<1x256xf32>
    %737 = arith.mulf %736, %734 : vector<1x256xf32>
    %738 = arith.addf %719, %737 : vector<1x256xf32>
    %c1_376 = arith.constant 1 : index
    %c30_377 = arith.constant 30 : index
    %739 = memref.load %arg2[%c1_376, %c30_377] : memref<4x36xf32, #tpu.memory_space<smem>>
    %740 = vector.broadcast %739 : f32 to vector<1x256xf32>
    %741 = arith.mulf %740, %734 : vector<1x256xf32>
    %742 = arith.addf %723, %741 : vector<1x256xf32>
    %c2_378 = arith.constant 2 : index
    %c30_379 = arith.constant 30 : index
    %743 = memref.load %arg2[%c2_378, %c30_379] : memref<4x36xf32, #tpu.memory_space<smem>>
    %744 = vector.broadcast %743 : f32 to vector<1x256xf32>
    %745 = arith.mulf %744, %734 : vector<1x256xf32>
    %746 = arith.addf %727, %745 : vector<1x256xf32>
    %c3_380 = arith.constant 3 : index
    %c30_381 = arith.constant 30 : index
    %747 = memref.load %arg2[%c3_380, %c30_381] : memref<4x36xf32, #tpu.memory_space<smem>>
    %748 = vector.broadcast %747 : f32 to vector<1x256xf32>
    %749 = arith.mulf %748, %734 : vector<1x256xf32>
    %750 = arith.addf %731, %749 : vector<1x256xf32>
    %c7_382 = arith.constant 7 : index
    %c128_383 = arith.constant 128 : index
    %751 = vector.load %arg12[%c7_382, %c128_383] : memref<8x512xf32, #tpu.memory_space<vmem>>, vector<1x256xf32>
    %c0_384 = arith.constant 0 : index
    %c31 = arith.constant 31 : index
    %752 = memref.load %arg2[%c0_384, %c31] : memref<4x36xf32, #tpu.memory_space<smem>>
    %753 = vector.broadcast %752 : f32 to vector<1x256xf32>
    %754 = arith.mulf %753, %751 : vector<1x256xf32>
    %755 = arith.addf %738, %754 : vector<1x256xf32>
    %c1_385 = arith.constant 1 : index
    %c31_386 = arith.constant 31 : index
    %756 = memref.load %arg2[%c1_385, %c31_386] : memref<4x36xf32, #tpu.memory_space<smem>>
    %757 = vector.broadcast %756 : f32 to vector<1x256xf32>
    %758 = arith.mulf %757, %751 : vector<1x256xf32>
    %759 = arith.addf %742, %758 : vector<1x256xf32>
    %c2_387 = arith.constant 2 : index
    %c31_388 = arith.constant 31 : index
    %760 = memref.load %arg2[%c2_387, %c31_388] : memref<4x36xf32, #tpu.memory_space<smem>>
    %761 = vector.broadcast %760 : f32 to vector<1x256xf32>
    %762 = arith.mulf %761, %751 : vector<1x256xf32>
    %763 = arith.addf %746, %762 : vector<1x256xf32>
    %c3_389 = arith.constant 3 : index
    %c31_390 = arith.constant 31 : index
    %764 = memref.load %arg2[%c3_389, %c31_390] : memref<4x36xf32, #tpu.memory_space<smem>>
    %765 = vector.broadcast %764 : f32 to vector<1x256xf32>
    %766 = arith.mulf %765, %751 : vector<1x256xf32>
    %767 = arith.addf %750, %766 : vector<1x256xf32>
    %c7_391 = arith.constant 7 : index
    %c129_392 = arith.constant 129 : index
    %768 = vector.load %arg12[%c7_391, %c129_392] : memref<8x512xf32, #tpu.memory_space<vmem>>, vector<1x256xf32>
    %cst_393 = arith.constant 0.000000e+00 : f32
    %769 = vector.broadcast %cst_393 : f32 to vector<1x256xf32>
    %770 = arith.select %20, %768, %769 : vector<1x256xi1>, vector<1x256xf32>
    %c0_394 = arith.constant 0 : index
    %c32 = arith.constant 32 : index
    %771 = memref.load %arg2[%c0_394, %c32] : memref<4x36xf32, #tpu.memory_space<smem>>
    %772 = vector.broadcast %771 : f32 to vector<1x256xf32>
    %773 = arith.mulf %772, %770 : vector<1x256xf32>
    %774 = arith.addf %755, %773 : vector<1x256xf32>
    %c1_395 = arith.constant 1 : index
    %c32_396 = arith.constant 32 : index
    %775 = memref.load %arg2[%c1_395, %c32_396] : memref<4x36xf32, #tpu.memory_space<smem>>
    %776 = vector.broadcast %775 : f32 to vector<1x256xf32>
    %777 = arith.mulf %776, %770 : vector<1x256xf32>
    %778 = arith.addf %759, %777 : vector<1x256xf32>
    %c2_397 = arith.constant 2 : index
    %c32_398 = arith.constant 32 : index
    %779 = memref.load %arg2[%c2_397, %c32_398] : memref<4x36xf32, #tpu.memory_space<smem>>
    %780 = vector.broadcast %779 : f32 to vector<1x256xf32>
    %781 = arith.mulf %780, %770 : vector<1x256xf32>
    %782 = arith.addf %763, %781 : vector<1x256xf32>
    %c3_399 = arith.constant 3 : index
    %c32_400 = arith.constant 32 : index
    %783 = memref.load %arg2[%c3_399, %c32_400] : memref<4x36xf32, #tpu.memory_space<smem>>
    %784 = vector.broadcast %783 : f32 to vector<1x256xf32>
    %785 = arith.mulf %784, %770 : vector<1x256xf32>
    %786 = arith.addf %767, %785 : vector<1x256xf32>
    %c7_401 = arith.constant 7 : index
    %c143_402 = arith.constant 143 : index
    %787 = vector.load %arg12[%c7_401, %c143_402] : memref<8x512xf32, #tpu.memory_space<vmem>>, vector<1x256xf32>
    %cst_403 = arith.constant 0.000000e+00 : f32
    %788 = vector.broadcast %cst_403 : f32 to vector<1x256xf32>
    %789 = arith.select %18, %787, %788 : vector<1x256xi1>, vector<1x256xf32>
    %c0_404 = arith.constant 0 : index
    %c33 = arith.constant 33 : index
    %790 = memref.load %arg2[%c0_404, %c33] : memref<4x36xf32, #tpu.memory_space<smem>>
    %791 = vector.broadcast %790 : f32 to vector<1x256xf32>
    %792 = arith.mulf %791, %789 : vector<1x256xf32>
    %793 = arith.addf %774, %792 : vector<1x256xf32>
    %c1_405 = arith.constant 1 : index
    %c33_406 = arith.constant 33 : index
    %794 = memref.load %arg2[%c1_405, %c33_406] : memref<4x36xf32, #tpu.memory_space<smem>>
    %795 = vector.broadcast %794 : f32 to vector<1x256xf32>
    %796 = arith.mulf %795, %789 : vector<1x256xf32>
    %797 = arith.addf %778, %796 : vector<1x256xf32>
    %c2_407 = arith.constant 2 : index
    %c33_408 = arith.constant 33 : index
    %798 = memref.load %arg2[%c2_407, %c33_408] : memref<4x36xf32, #tpu.memory_space<smem>>
    %799 = vector.broadcast %798 : f32 to vector<1x256xf32>
    %800 = arith.mulf %799, %789 : vector<1x256xf32>
    %801 = arith.addf %782, %800 : vector<1x256xf32>
    %c3_409 = arith.constant 3 : index
    %c33_410 = arith.constant 33 : index
    %802 = memref.load %arg2[%c3_409, %c33_410] : memref<4x36xf32, #tpu.memory_space<smem>>
    %803 = vector.broadcast %802 : f32 to vector<1x256xf32>
    %804 = arith.mulf %803, %789 : vector<1x256xf32>
    %805 = arith.addf %786, %804 : vector<1x256xf32>
    %c7_411 = arith.constant 7 : index
    %c144_412 = arith.constant 144 : index
    %806 = vector.load %arg12[%c7_411, %c144_412] : memref<8x512xf32, #tpu.memory_space<vmem>>, vector<1x256xf32>
    %c0_413 = arith.constant 0 : index
    %c34 = arith.constant 34 : index
    %807 = memref.load %arg2[%c0_413, %c34] : memref<4x36xf32, #tpu.memory_space<smem>>
    %808 = vector.broadcast %807 : f32 to vector<1x256xf32>
    %809 = arith.mulf %808, %806 : vector<1x256xf32>
    %810 = arith.addf %793, %809 : vector<1x256xf32>
    %c1_414 = arith.constant 1 : index
    %c34_415 = arith.constant 34 : index
    %811 = memref.load %arg2[%c1_414, %c34_415] : memref<4x36xf32, #tpu.memory_space<smem>>
    %812 = vector.broadcast %811 : f32 to vector<1x256xf32>
    %813 = arith.mulf %812, %806 : vector<1x256xf32>
    %814 = arith.addf %797, %813 : vector<1x256xf32>
    %c2_416 = arith.constant 2 : index
    %c34_417 = arith.constant 34 : index
    %815 = memref.load %arg2[%c2_416, %c34_417] : memref<4x36xf32, #tpu.memory_space<smem>>
    %816 = vector.broadcast %815 : f32 to vector<1x256xf32>
    %817 = arith.mulf %816, %806 : vector<1x256xf32>
    %818 = arith.addf %801, %817 : vector<1x256xf32>
    %c3_418 = arith.constant 3 : index
    %c34_419 = arith.constant 34 : index
    %819 = memref.load %arg2[%c3_418, %c34_419] : memref<4x36xf32, #tpu.memory_space<smem>>
    %820 = vector.broadcast %819 : f32 to vector<1x256xf32>
    %821 = arith.mulf %820, %806 : vector<1x256xf32>
    %822 = arith.addf %805, %821 : vector<1x256xf32>
    %c7_420 = arith.constant 7 : index
    %c145_421 = arith.constant 145 : index
    %823 = vector.load %arg12[%c7_420, %c145_421] : memref<8x512xf32, #tpu.memory_space<vmem>>, vector<1x256xf32>
    %cst_422 = arith.constant 0.000000e+00 : f32
    %824 = vector.broadcast %cst_422 : f32 to vector<1x256xf32>
    %825 = arith.select %20, %823, %824 : vector<1x256xi1>, vector<1x256xf32>
    %c0_423 = arith.constant 0 : index
    %c35 = arith.constant 35 : index
    %826 = memref.load %arg2[%c0_423, %c35] : memref<4x36xf32, #tpu.memory_space<smem>>
    %827 = vector.broadcast %826 : f32 to vector<1x256xf32>
    %828 = arith.mulf %827, %825 : vector<1x256xf32>
    %829 = arith.addf %810, %828 : vector<1x256xf32>
    %c1_424 = arith.constant 1 : index
    %c35_425 = arith.constant 35 : index
    %830 = memref.load %arg2[%c1_424, %c35_425] : memref<4x36xf32, #tpu.memory_space<smem>>
    %831 = vector.broadcast %830 : f32 to vector<1x256xf32>
    %832 = arith.mulf %831, %825 : vector<1x256xf32>
    %833 = arith.addf %814, %832 : vector<1x256xf32>
    %c2_426 = arith.constant 2 : index
    %c35_427 = arith.constant 35 : index
    %834 = memref.load %arg2[%c2_426, %c35_427] : memref<4x36xf32, #tpu.memory_space<smem>>
    %835 = vector.broadcast %834 : f32 to vector<1x256xf32>
    %836 = arith.mulf %835, %825 : vector<1x256xf32>
    %837 = arith.addf %818, %836 : vector<1x256xf32>
    %c3_428 = arith.constant 3 : index
    %c35_429 = arith.constant 35 : index
    %838 = memref.load %arg2[%c3_428, %c35_429] : memref<4x36xf32, #tpu.memory_space<smem>>
    %839 = vector.broadcast %838 : f32 to vector<1x256xf32>
    %840 = arith.mulf %839, %825 : vector<1x256xf32>
    %841 = arith.addf %822, %840 : vector<1x256xf32>
    %c0_430 = arith.constant 0 : index
    %c0_431 = arith.constant 0 : index
    %842 = memref.load %arg3[%c0_430, %c0_431] : memref<4x4xf32, #tpu.memory_space<smem>>
    %843 = vector.broadcast %842 : f32 to vector<1x256xf32>
    %844 = arith.mulf %843, %829 : vector<1x256xf32>
    %c0_432 = arith.constant 0 : index
    %c1_433 = arith.constant 1 : index
    %845 = memref.load %arg3[%c0_432, %c1_433] : memref<4x4xf32, #tpu.memory_space<smem>>
    %846 = vector.broadcast %845 : f32 to vector<1x256xf32>
    %847 = arith.mulf %846, %833 : vector<1x256xf32>
    %848 = arith.addf %844, %847 : vector<1x256xf32>
    %c0_434 = arith.constant 0 : index
    %c2_435 = arith.constant 2 : index
    %849 = memref.load %arg3[%c0_434, %c2_435] : memref<4x4xf32, #tpu.memory_space<smem>>
    %850 = vector.broadcast %849 : f32 to vector<1x256xf32>
    %851 = arith.mulf %850, %837 : vector<1x256xf32>
    %852 = arith.addf %848, %851 : vector<1x256xf32>
    %c0_436 = arith.constant 0 : index
    %c3_437 = arith.constant 3 : index
    %853 = memref.load %arg3[%c0_436, %c3_437] : memref<4x4xf32, #tpu.memory_space<smem>>
    %854 = vector.broadcast %853 : f32 to vector<1x256xf32>
    %855 = arith.mulf %854, %841 : vector<1x256xf32>
    %856 = arith.addf %852, %855 : vector<1x256xf32>
    %c1_438 = arith.constant 1 : index
    %c0_439 = arith.constant 0 : index
    %857 = memref.load %arg3[%c1_438, %c0_439] : memref<4x4xf32, #tpu.memory_space<smem>>
    %858 = vector.broadcast %857 : f32 to vector<1x256xf32>
    %859 = arith.mulf %858, %829 : vector<1x256xf32>
    %c1_440 = arith.constant 1 : index
    %c1_441 = arith.constant 1 : index
    %860 = memref.load %arg3[%c1_440, %c1_441] : memref<4x4xf32, #tpu.memory_space<smem>>
    %861 = vector.broadcast %860 : f32 to vector<1x256xf32>
    %862 = arith.mulf %861, %833 : vector<1x256xf32>
    %863 = arith.addf %859, %862 : vector<1x256xf32>
    %c1_442 = arith.constant 1 : index
    %c2_443 = arith.constant 2 : index
    %864 = memref.load %arg3[%c1_442, %c2_443] : memref<4x4xf32, #tpu.memory_space<smem>>
    %865 = vector.broadcast %864 : f32 to vector<1x256xf32>
    %866 = arith.mulf %865, %837 : vector<1x256xf32>
    %867 = arith.addf %863, %866 : vector<1x256xf32>
    %c1_444 = arith.constant 1 : index
    %c3_445 = arith.constant 3 : index
    %868 = memref.load %arg3[%c1_444, %c3_445] : memref<4x4xf32, #tpu.memory_space<smem>>
    %869 = vector.broadcast %868 : f32 to vector<1x256xf32>
    %870 = arith.mulf %869, %841 : vector<1x256xf32>
    %871 = arith.addf %867, %870 : vector<1x256xf32>
    %c2_446 = arith.constant 2 : index
    %c0_447 = arith.constant 0 : index
    %872 = memref.load %arg3[%c2_446, %c0_447] : memref<4x4xf32, #tpu.memory_space<smem>>
    %873 = vector.broadcast %872 : f32 to vector<1x256xf32>
    %874 = arith.mulf %873, %829 : vector<1x256xf32>
    %c2_448 = arith.constant 2 : index
    %c1_449 = arith.constant 1 : index
    %875 = memref.load %arg3[%c2_448, %c1_449] : memref<4x4xf32, #tpu.memory_space<smem>>
    %876 = vector.broadcast %875 : f32 to vector<1x256xf32>
    %877 = arith.mulf %876, %833 : vector<1x256xf32>
    %878 = arith.addf %874, %877 : vector<1x256xf32>
    %c2_450 = arith.constant 2 : index
    %c2_451 = arith.constant 2 : index
    %879 = memref.load %arg3[%c2_450, %c2_451] : memref<4x4xf32, #tpu.memory_space<smem>>
    %880 = vector.broadcast %879 : f32 to vector<1x256xf32>
    %881 = arith.mulf %880, %837 : vector<1x256xf32>
    %882 = arith.addf %878, %881 : vector<1x256xf32>
    %c2_452 = arith.constant 2 : index
    %c3_453 = arith.constant 3 : index
    %883 = memref.load %arg3[%c2_452, %c3_453] : memref<4x4xf32, #tpu.memory_space<smem>>
    %884 = vector.broadcast %883 : f32 to vector<1x256xf32>
    %885 = arith.mulf %884, %841 : vector<1x256xf32>
    %886 = arith.addf %882, %885 : vector<1x256xf32>
    %c3_454 = arith.constant 3 : index
    %c0_455 = arith.constant 0 : index
    %887 = memref.load %arg3[%c3_454, %c0_455] : memref<4x4xf32, #tpu.memory_space<smem>>
    %888 = vector.broadcast %887 : f32 to vector<1x256xf32>
    %889 = arith.mulf %888, %829 : vector<1x256xf32>
    %c3_456 = arith.constant 3 : index
    %c1_457 = arith.constant 1 : index
    %890 = memref.load %arg3[%c3_456, %c1_457] : memref<4x4xf32, #tpu.memory_space<smem>>
    %891 = vector.broadcast %890 : f32 to vector<1x256xf32>
    %892 = arith.mulf %891, %833 : vector<1x256xf32>
    %893 = arith.addf %889, %892 : vector<1x256xf32>
    %c3_458 = arith.constant 3 : index
    %c2_459 = arith.constant 2 : index
    %894 = memref.load %arg3[%c3_458, %c2_459] : memref<4x4xf32, #tpu.memory_space<smem>>
    %895 = vector.broadcast %894 : f32 to vector<1x256xf32>
    %896 = arith.mulf %895, %837 : vector<1x256xf32>
    %897 = arith.addf %893, %896 : vector<1x256xf32>
    %c3_460 = arith.constant 3 : index
    %c3_461 = arith.constant 3 : index
    %898 = memref.load %arg3[%c3_460, %c3_461] : memref<4x4xf32, #tpu.memory_space<smem>>
    %899 = vector.broadcast %898 : f32 to vector<1x256xf32>
    %900 = arith.mulf %899, %841 : vector<1x256xf32>
    %901 = arith.addf %897, %900 : vector<1x256xf32>
    %c0_462 = arith.constant 0 : index
    %c111_463 = arith.constant 111 : index
    %902 = vector.load %arg12[%c0_462, %c111_463] : memref<8x512xf32, #tpu.memory_space<vmem>>, vector<1x256xf32>
    %cst_464 = arith.constant 0.000000e+00 : f32
    %903 = vector.broadcast %cst_464 : f32 to vector<1x256xf32>
    %904 = arith.select %18, %902, %903 : vector<1x256xi1>, vector<1x256xf32>
    %c0_465 = arith.constant 0 : index
    %c0_466 = arith.constant 0 : index
    %905 = memref.load %arg4[%c0_465, %c0_466] : memref<4x36xf32, #tpu.memory_space<smem>>
    %906 = vector.broadcast %905 : f32 to vector<1x256xf32>
    %907 = arith.mulf %906, %904 : vector<1x256xf32>
    %c1_467 = arith.constant 1 : index
    %c0_468 = arith.constant 0 : index
    %908 = memref.load %arg4[%c1_467, %c0_468] : memref<4x36xf32, #tpu.memory_space<smem>>
    %909 = vector.broadcast %908 : f32 to vector<1x256xf32>
    %910 = arith.mulf %909, %904 : vector<1x256xf32>
    %c2_469 = arith.constant 2 : index
    %c0_470 = arith.constant 0 : index
    %911 = memref.load %arg4[%c2_469, %c0_470] : memref<4x36xf32, #tpu.memory_space<smem>>
    %912 = vector.broadcast %911 : f32 to vector<1x256xf32>
    %913 = arith.mulf %912, %904 : vector<1x256xf32>
    %c3_471 = arith.constant 3 : index
    %c0_472 = arith.constant 0 : index
    %914 = memref.load %arg4[%c3_471, %c0_472] : memref<4x36xf32, #tpu.memory_space<smem>>
    %915 = vector.broadcast %914 : f32 to vector<1x256xf32>
    %916 = arith.mulf %915, %904 : vector<1x256xf32>
    %c0_473 = arith.constant 0 : index
    %c112_474 = arith.constant 112 : index
    %917 = vector.load %arg12[%c0_473, %c112_474] : memref<8x512xf32, #tpu.memory_space<vmem>>, vector<1x256xf32>
    %c0_475 = arith.constant 0 : index
    %c1_476 = arith.constant 1 : index
    %918 = memref.load %arg4[%c0_475, %c1_476] : memref<4x36xf32, #tpu.memory_space<smem>>
    %919 = vector.broadcast %918 : f32 to vector<1x256xf32>
    %920 = arith.mulf %919, %917 : vector<1x256xf32>
    %921 = arith.addf %907, %920 : vector<1x256xf32>
    %c1_477 = arith.constant 1 : index
    %c1_478 = arith.constant 1 : index
    %922 = memref.load %arg4[%c1_477, %c1_478] : memref<4x36xf32, #tpu.memory_space<smem>>
    %923 = vector.broadcast %922 : f32 to vector<1x256xf32>
    %924 = arith.mulf %923, %917 : vector<1x256xf32>
    %925 = arith.addf %910, %924 : vector<1x256xf32>
    %c2_479 = arith.constant 2 : index
    %c1_480 = arith.constant 1 : index
    %926 = memref.load %arg4[%c2_479, %c1_480] : memref<4x36xf32, #tpu.memory_space<smem>>
    %927 = vector.broadcast %926 : f32 to vector<1x256xf32>
    %928 = arith.mulf %927, %917 : vector<1x256xf32>
    %929 = arith.addf %913, %928 : vector<1x256xf32>
    %c3_481 = arith.constant 3 : index
    %c1_482 = arith.constant 1 : index
    %930 = memref.load %arg4[%c3_481, %c1_482] : memref<4x36xf32, #tpu.memory_space<smem>>
    %931 = vector.broadcast %930 : f32 to vector<1x256xf32>
    %932 = arith.mulf %931, %917 : vector<1x256xf32>
    %933 = arith.addf %916, %932 : vector<1x256xf32>
    %c0_483 = arith.constant 0 : index
    %c113_484 = arith.constant 113 : index
    %934 = vector.load %arg12[%c0_483, %c113_484] : memref<8x512xf32, #tpu.memory_space<vmem>>, vector<1x256xf32>
    %cst_485 = arith.constant 0.000000e+00 : f32
    %935 = vector.broadcast %cst_485 : f32 to vector<1x256xf32>
    %936 = arith.select %20, %934, %935 : vector<1x256xi1>, vector<1x256xf32>
    %c0_486 = arith.constant 0 : index
    %c2_487 = arith.constant 2 : index
    %937 = memref.load %arg4[%c0_486, %c2_487] : memref<4x36xf32, #tpu.memory_space<smem>>
    %938 = vector.broadcast %937 : f32 to vector<1x256xf32>
    %939 = arith.mulf %938, %936 : vector<1x256xf32>
    %940 = arith.addf %921, %939 : vector<1x256xf32>
    %c1_488 = arith.constant 1 : index
    %c2_489 = arith.constant 2 : index
    %941 = memref.load %arg4[%c1_488, %c2_489] : memref<4x36xf32, #tpu.memory_space<smem>>
    %942 = vector.broadcast %941 : f32 to vector<1x256xf32>
    %943 = arith.mulf %942, %936 : vector<1x256xf32>
    %944 = arith.addf %925, %943 : vector<1x256xf32>
    %c2_490 = arith.constant 2 : index
    %c2_491 = arith.constant 2 : index
    %945 = memref.load %arg4[%c2_490, %c2_491] : memref<4x36xf32, #tpu.memory_space<smem>>
    %946 = vector.broadcast %945 : f32 to vector<1x256xf32>
    %947 = arith.mulf %946, %936 : vector<1x256xf32>
    %948 = arith.addf %929, %947 : vector<1x256xf32>
    %c3_492 = arith.constant 3 : index
    %c2_493 = arith.constant 2 : index
    %949 = memref.load %arg4[%c3_492, %c2_493] : memref<4x36xf32, #tpu.memory_space<smem>>
    %950 = vector.broadcast %949 : f32 to vector<1x256xf32>
    %951 = arith.mulf %950, %936 : vector<1x256xf32>
    %952 = arith.addf %933, %951 : vector<1x256xf32>
    %c0_494 = arith.constant 0 : index
    %c127_495 = arith.constant 127 : index
    %953 = vector.load %arg12[%c0_494, %c127_495] : memref<8x512xf32, #tpu.memory_space<vmem>>, vector<1x256xf32>
    %cst_496 = arith.constant 0.000000e+00 : f32
    %954 = vector.broadcast %cst_496 : f32 to vector<1x256xf32>
    %955 = arith.select %18, %953, %954 : vector<1x256xi1>, vector<1x256xf32>
    %c0_497 = arith.constant 0 : index
    %c3_498 = arith.constant 3 : index
    %956 = memref.load %arg4[%c0_497, %c3_498] : memref<4x36xf32, #tpu.memory_space<smem>>
    %957 = vector.broadcast %956 : f32 to vector<1x256xf32>
    %958 = arith.mulf %957, %955 : vector<1x256xf32>
    %959 = arith.addf %940, %958 : vector<1x256xf32>
    %c1_499 = arith.constant 1 : index
    %c3_500 = arith.constant 3 : index
    %960 = memref.load %arg4[%c1_499, %c3_500] : memref<4x36xf32, #tpu.memory_space<smem>>
    %961 = vector.broadcast %960 : f32 to vector<1x256xf32>
    %962 = arith.mulf %961, %955 : vector<1x256xf32>
    %963 = arith.addf %944, %962 : vector<1x256xf32>
    %c2_501 = arith.constant 2 : index
    %c3_502 = arith.constant 3 : index
    %964 = memref.load %arg4[%c2_501, %c3_502] : memref<4x36xf32, #tpu.memory_space<smem>>
    %965 = vector.broadcast %964 : f32 to vector<1x256xf32>
    %966 = arith.mulf %965, %955 : vector<1x256xf32>
    %967 = arith.addf %948, %966 : vector<1x256xf32>
    %c3_503 = arith.constant 3 : index
    %c3_504 = arith.constant 3 : index
    %968 = memref.load %arg4[%c3_503, %c3_504] : memref<4x36xf32, #tpu.memory_space<smem>>
    %969 = vector.broadcast %968 : f32 to vector<1x256xf32>
    %970 = arith.mulf %969, %955 : vector<1x256xf32>
    %971 = arith.addf %952, %970 : vector<1x256xf32>
    %c0_505 = arith.constant 0 : index
    %c128_506 = arith.constant 128 : index
    %972 = vector.load %arg12[%c0_505, %c128_506] : memref<8x512xf32, #tpu.memory_space<vmem>>, vector<1x256xf32>
    %c0_507 = arith.constant 0 : index
    %c4_508 = arith.constant 4 : index
    %973 = memref.load %arg4[%c0_507, %c4_508] : memref<4x36xf32, #tpu.memory_space<smem>>
    %974 = vector.broadcast %973 : f32 to vector<1x256xf32>
    %975 = arith.mulf %974, %972 : vector<1x256xf32>
    %976 = arith.addf %959, %975 : vector<1x256xf32>
    %c1_509 = arith.constant 1 : index
    %c4_510 = arith.constant 4 : index
    %977 = memref.load %arg4[%c1_509, %c4_510] : memref<4x36xf32, #tpu.memory_space<smem>>
    %978 = vector.broadcast %977 : f32 to vector<1x256xf32>
    %979 = arith.mulf %978, %972 : vector<1x256xf32>
    %980 = arith.addf %963, %979 : vector<1x256xf32>
    %c2_511 = arith.constant 2 : index
    %c4_512 = arith.constant 4 : index
    %981 = memref.load %arg4[%c2_511, %c4_512] : memref<4x36xf32, #tpu.memory_space<smem>>
    %982 = vector.broadcast %981 : f32 to vector<1x256xf32>
    %983 = arith.mulf %982, %972 : vector<1x256xf32>
    %984 = arith.addf %967, %983 : vector<1x256xf32>
    %c3_513 = arith.constant 3 : index
    %c4_514 = arith.constant 4 : index
    %985 = memref.load %arg4[%c3_513, %c4_514] : memref<4x36xf32, #tpu.memory_space<smem>>
    %986 = vector.broadcast %985 : f32 to vector<1x256xf32>
    %987 = arith.mulf %986, %972 : vector<1x256xf32>
    %988 = arith.addf %971, %987 : vector<1x256xf32>
    %c0_515 = arith.constant 0 : index
    %c129_516 = arith.constant 129 : index
    %989 = vector.load %arg12[%c0_515, %c129_516] : memref<8x512xf32, #tpu.memory_space<vmem>>, vector<1x256xf32>
    %cst_517 = arith.constant 0.000000e+00 : f32
    %990 = vector.broadcast %cst_517 : f32 to vector<1x256xf32>
    %991 = arith.select %20, %989, %990 : vector<1x256xi1>, vector<1x256xf32>
    %c0_518 = arith.constant 0 : index
    %c5_519 = arith.constant 5 : index
    %992 = memref.load %arg4[%c0_518, %c5_519] : memref<4x36xf32, #tpu.memory_space<smem>>
    %993 = vector.broadcast %992 : f32 to vector<1x256xf32>
    %994 = arith.mulf %993, %991 : vector<1x256xf32>
    %995 = arith.addf %976, %994 : vector<1x256xf32>
    %c1_520 = arith.constant 1 : index
    %c5_521 = arith.constant 5 : index
    %996 = memref.load %arg4[%c1_520, %c5_521] : memref<4x36xf32, #tpu.memory_space<smem>>
    %997 = vector.broadcast %996 : f32 to vector<1x256xf32>
    %998 = arith.mulf %997, %991 : vector<1x256xf32>
    %999 = arith.addf %980, %998 : vector<1x256xf32>
    %c2_522 = arith.constant 2 : index
    %c5_523 = arith.constant 5 : index
    %1000 = memref.load %arg4[%c2_522, %c5_523] : memref<4x36xf32, #tpu.memory_space<smem>>
    %1001 = vector.broadcast %1000 : f32 to vector<1x256xf32>
    %1002 = arith.mulf %1001, %991 : vector<1x256xf32>
    %1003 = arith.addf %984, %1002 : vector<1x256xf32>
    %c3_524 = arith.constant 3 : index
    %c5_525 = arith.constant 5 : index
    %1004 = memref.load %arg4[%c3_524, %c5_525] : memref<4x36xf32, #tpu.memory_space<smem>>
    %1005 = vector.broadcast %1004 : f32 to vector<1x256xf32>
    %1006 = arith.mulf %1005, %991 : vector<1x256xf32>
    %1007 = arith.addf %988, %1006 : vector<1x256xf32>
    %c0_526 = arith.constant 0 : index
    %c143_527 = arith.constant 143 : index
    %1008 = vector.load %arg12[%c0_526, %c143_527] : memref<8x512xf32, #tpu.memory_space<vmem>>, vector<1x256xf32>
    %cst_528 = arith.constant 0.000000e+00 : f32
    %1009 = vector.broadcast %cst_528 : f32 to vector<1x256xf32>
    %1010 = arith.select %18, %1008, %1009 : vector<1x256xi1>, vector<1x256xf32>
    %c0_529 = arith.constant 0 : index
    %c6_530 = arith.constant 6 : index
    %1011 = memref.load %arg4[%c0_529, %c6_530] : memref<4x36xf32, #tpu.memory_space<smem>>
    %1012 = vector.broadcast %1011 : f32 to vector<1x256xf32>
    %1013 = arith.mulf %1012, %1010 : vector<1x256xf32>
    %1014 = arith.addf %995, %1013 : vector<1x256xf32>
    %c1_531 = arith.constant 1 : index
    %c6_532 = arith.constant 6 : index
    %1015 = memref.load %arg4[%c1_531, %c6_532] : memref<4x36xf32, #tpu.memory_space<smem>>
    %1016 = vector.broadcast %1015 : f32 to vector<1x256xf32>
    %1017 = arith.mulf %1016, %1010 : vector<1x256xf32>
    %1018 = arith.addf %999, %1017 : vector<1x256xf32>
    %c2_533 = arith.constant 2 : index
    %c6_534 = arith.constant 6 : index
    %1019 = memref.load %arg4[%c2_533, %c6_534] : memref<4x36xf32, #tpu.memory_space<smem>>
    %1020 = vector.broadcast %1019 : f32 to vector<1x256xf32>
    %1021 = arith.mulf %1020, %1010 : vector<1x256xf32>
    %1022 = arith.addf %1003, %1021 : vector<1x256xf32>
    %c3_535 = arith.constant 3 : index
    %c6_536 = arith.constant 6 : index
    %1023 = memref.load %arg4[%c3_535, %c6_536] : memref<4x36xf32, #tpu.memory_space<smem>>
    %1024 = vector.broadcast %1023 : f32 to vector<1x256xf32>
    %1025 = arith.mulf %1024, %1010 : vector<1x256xf32>
    %1026 = arith.addf %1007, %1025 : vector<1x256xf32>
    %c0_537 = arith.constant 0 : index
    %c144_538 = arith.constant 144 : index
    %1027 = vector.load %arg12[%c0_537, %c144_538] : memref<8x512xf32, #tpu.memory_space<vmem>>, vector<1x256xf32>
    %c0_539 = arith.constant 0 : index
    %c7_540 = arith.constant 7 : index
    %1028 = memref.load %arg4[%c0_539, %c7_540] : memref<4x36xf32, #tpu.memory_space<smem>>
    %1029 = vector.broadcast %1028 : f32 to vector<1x256xf32>
    %1030 = arith.mulf %1029, %1027 : vector<1x256xf32>
    %1031 = arith.addf %1014, %1030 : vector<1x256xf32>
    %c1_541 = arith.constant 1 : index
    %c7_542 = arith.constant 7 : index
    %1032 = memref.load %arg4[%c1_541, %c7_542] : memref<4x36xf32, #tpu.memory_space<smem>>
    %1033 = vector.broadcast %1032 : f32 to vector<1x256xf32>
    %1034 = arith.mulf %1033, %1027 : vector<1x256xf32>
    %1035 = arith.addf %1018, %1034 : vector<1x256xf32>
    %c2_543 = arith.constant 2 : index
    %c7_544 = arith.constant 7 : index
    %1036 = memref.load %arg4[%c2_543, %c7_544] : memref<4x36xf32, #tpu.memory_space<smem>>
    %1037 = vector.broadcast %1036 : f32 to vector<1x256xf32>
    %1038 = arith.mulf %1037, %1027 : vector<1x256xf32>
    %1039 = arith.addf %1022, %1038 : vector<1x256xf32>
    %c3_545 = arith.constant 3 : index
    %c7_546 = arith.constant 7 : index
    %1040 = memref.load %arg4[%c3_545, %c7_546] : memref<4x36xf32, #tpu.memory_space<smem>>
    %1041 = vector.broadcast %1040 : f32 to vector<1x256xf32>
    %1042 = arith.mulf %1041, %1027 : vector<1x256xf32>
    %1043 = arith.addf %1026, %1042 : vector<1x256xf32>
    %c0_547 = arith.constant 0 : index
    %c145_548 = arith.constant 145 : index
    %1044 = vector.load %arg12[%c0_547, %c145_548] : memref<8x512xf32, #tpu.memory_space<vmem>>, vector<1x256xf32>
    %cst_549 = arith.constant 0.000000e+00 : f32
    %1045 = vector.broadcast %cst_549 : f32 to vector<1x256xf32>
    %1046 = arith.select %20, %1044, %1045 : vector<1x256xi1>, vector<1x256xf32>
    %c0_550 = arith.constant 0 : index
    %c8_551 = arith.constant 8 : index
    %1047 = memref.load %arg4[%c0_550, %c8_551] : memref<4x36xf32, #tpu.memory_space<smem>>
    %1048 = vector.broadcast %1047 : f32 to vector<1x256xf32>
    %1049 = arith.mulf %1048, %1046 : vector<1x256xf32>
    %1050 = arith.addf %1031, %1049 : vector<1x256xf32>
    %c1_552 = arith.constant 1 : index
    %c8_553 = arith.constant 8 : index
    %1051 = memref.load %arg4[%c1_552, %c8_553] : memref<4x36xf32, #tpu.memory_space<smem>>
    %1052 = vector.broadcast %1051 : f32 to vector<1x256xf32>
    %1053 = arith.mulf %1052, %1046 : vector<1x256xf32>
    %1054 = arith.addf %1035, %1053 : vector<1x256xf32>
    %c2_554 = arith.constant 2 : index
    %c8_555 = arith.constant 8 : index
    %1055 = memref.load %arg4[%c2_554, %c8_555] : memref<4x36xf32, #tpu.memory_space<smem>>
    %1056 = vector.broadcast %1055 : f32 to vector<1x256xf32>
    %1057 = arith.mulf %1056, %1046 : vector<1x256xf32>
    %1058 = arith.addf %1039, %1057 : vector<1x256xf32>
    %c3_556 = arith.constant 3 : index
    %c8_557 = arith.constant 8 : index
    %1059 = memref.load %arg4[%c3_556, %c8_557] : memref<4x36xf32, #tpu.memory_space<smem>>
    %1060 = vector.broadcast %1059 : f32 to vector<1x256xf32>
    %1061 = arith.mulf %1060, %1046 : vector<1x256xf32>
    %1062 = arith.addf %1043, %1061 : vector<1x256xf32>
    %c1_558 = arith.constant 1 : index
    %c111_559 = arith.constant 111 : index
    %1063 = vector.load %arg12[%c1_558, %c111_559] : memref<8x512xf32, #tpu.memory_space<vmem>>, vector<1x256xf32>
    %cst_560 = arith.constant 0.000000e+00 : f32
    %1064 = vector.broadcast %cst_560 : f32 to vector<1x256xf32>
    %1065 = arith.select %18, %1063, %1064 : vector<1x256xi1>, vector<1x256xf32>
    %c0_561 = arith.constant 0 : index
    %c9_562 = arith.constant 9 : index
    %1066 = memref.load %arg4[%c0_561, %c9_562] : memref<4x36xf32, #tpu.memory_space<smem>>
    %1067 = vector.broadcast %1066 : f32 to vector<1x256xf32>
    %1068 = arith.mulf %1067, %1065 : vector<1x256xf32>
    %1069 = arith.addf %1050, %1068 : vector<1x256xf32>
    %c1_563 = arith.constant 1 : index
    %c9_564 = arith.constant 9 : index
    %1070 = memref.load %arg4[%c1_563, %c9_564] : memref<4x36xf32, #tpu.memory_space<smem>>
    %1071 = vector.broadcast %1070 : f32 to vector<1x256xf32>
    %1072 = arith.mulf %1071, %1065 : vector<1x256xf32>
    %1073 = arith.addf %1054, %1072 : vector<1x256xf32>
    %c2_565 = arith.constant 2 : index
    %c9_566 = arith.constant 9 : index
    %1074 = memref.load %arg4[%c2_565, %c9_566] : memref<4x36xf32, #tpu.memory_space<smem>>
    %1075 = vector.broadcast %1074 : f32 to vector<1x256xf32>
    %1076 = arith.mulf %1075, %1065 : vector<1x256xf32>
    %1077 = arith.addf %1058, %1076 : vector<1x256xf32>
    %c3_567 = arith.constant 3 : index
    %c9_568 = arith.constant 9 : index
    %1078 = memref.load %arg4[%c3_567, %c9_568] : memref<4x36xf32, #tpu.memory_space<smem>>
    %1079 = vector.broadcast %1078 : f32 to vector<1x256xf32>
    %1080 = arith.mulf %1079, %1065 : vector<1x256xf32>
    %1081 = arith.addf %1062, %1080 : vector<1x256xf32>
    %c1_569 = arith.constant 1 : index
    %c112_570 = arith.constant 112 : index
    %1082 = vector.load %arg12[%c1_569, %c112_570] : memref<8x512xf32, #tpu.memory_space<vmem>>, vector<1x256xf32>
    %c0_571 = arith.constant 0 : index
    %c10_572 = arith.constant 10 : index
    %1083 = memref.load %arg4[%c0_571, %c10_572] : memref<4x36xf32, #tpu.memory_space<smem>>
    %1084 = vector.broadcast %1083 : f32 to vector<1x256xf32>
    %1085 = arith.mulf %1084, %1082 : vector<1x256xf32>
    %1086 = arith.addf %1069, %1085 : vector<1x256xf32>
    %c1_573 = arith.constant 1 : index
    %c10_574 = arith.constant 10 : index
    %1087 = memref.load %arg4[%c1_573, %c10_574] : memref<4x36xf32, #tpu.memory_space<smem>>
    %1088 = vector.broadcast %1087 : f32 to vector<1x256xf32>
    %1089 = arith.mulf %1088, %1082 : vector<1x256xf32>
    %1090 = arith.addf %1073, %1089 : vector<1x256xf32>
    %c2_575 = arith.constant 2 : index
    %c10_576 = arith.constant 10 : index
    %1091 = memref.load %arg4[%c2_575, %c10_576] : memref<4x36xf32, #tpu.memory_space<smem>>
    %1092 = vector.broadcast %1091 : f32 to vector<1x256xf32>
    %1093 = arith.mulf %1092, %1082 : vector<1x256xf32>
    %1094 = arith.addf %1077, %1093 : vector<1x256xf32>
    %c3_577 = arith.constant 3 : index
    %c10_578 = arith.constant 10 : index
    %1095 = memref.load %arg4[%c3_577, %c10_578] : memref<4x36xf32, #tpu.memory_space<smem>>
    %1096 = vector.broadcast %1095 : f32 to vector<1x256xf32>
    %1097 = arith.mulf %1096, %1082 : vector<1x256xf32>
    %1098 = arith.addf %1081, %1097 : vector<1x256xf32>
    %c1_579 = arith.constant 1 : index
    %c113_580 = arith.constant 113 : index
    %1099 = vector.load %arg12[%c1_579, %c113_580] : memref<8x512xf32, #tpu.memory_space<vmem>>, vector<1x256xf32>
    %cst_581 = arith.constant 0.000000e+00 : f32
    %1100 = vector.broadcast %cst_581 : f32 to vector<1x256xf32>
    %1101 = arith.select %20, %1099, %1100 : vector<1x256xi1>, vector<1x256xf32>
    %c0_582 = arith.constant 0 : index
    %c11_583 = arith.constant 11 : index
    %1102 = memref.load %arg4[%c0_582, %c11_583] : memref<4x36xf32, #tpu.memory_space<smem>>
    %1103 = vector.broadcast %1102 : f32 to vector<1x256xf32>
    %1104 = arith.mulf %1103, %1101 : vector<1x256xf32>
    %1105 = arith.addf %1086, %1104 : vector<1x256xf32>
    %c1_584 = arith.constant 1 : index
    %c11_585 = arith.constant 11 : index
    %1106 = memref.load %arg4[%c1_584, %c11_585] : memref<4x36xf32, #tpu.memory_space<smem>>
    %1107 = vector.broadcast %1106 : f32 to vector<1x256xf32>
    %1108 = arith.mulf %1107, %1101 : vector<1x256xf32>
    %1109 = arith.addf %1090, %1108 : vector<1x256xf32>
    %c2_586 = arith.constant 2 : index
    %c11_587 = arith.constant 11 : index
    %1110 = memref.load %arg4[%c2_586, %c11_587] : memref<4x36xf32, #tpu.memory_space<smem>>
    %1111 = vector.broadcast %1110 : f32 to vector<1x256xf32>
    %1112 = arith.mulf %1111, %1101 : vector<1x256xf32>
    %1113 = arith.addf %1094, %1112 : vector<1x256xf32>
    %c3_588 = arith.constant 3 : index
    %c11_589 = arith.constant 11 : index
    %1114 = memref.load %arg4[%c3_588, %c11_589] : memref<4x36xf32, #tpu.memory_space<smem>>
    %1115 = vector.broadcast %1114 : f32 to vector<1x256xf32>
    %1116 = arith.mulf %1115, %1101 : vector<1x256xf32>
    %1117 = arith.addf %1098, %1116 : vector<1x256xf32>
    %c1_590 = arith.constant 1 : index
    %c127_591 = arith.constant 127 : index
    %1118 = vector.load %arg12[%c1_590, %c127_591] : memref<8x512xf32, #tpu.memory_space<vmem>>, vector<1x256xf32>
    %cst_592 = arith.constant 0.000000e+00 : f32
    %1119 = vector.broadcast %cst_592 : f32 to vector<1x256xf32>
    %1120 = arith.select %18, %1118, %1119 : vector<1x256xi1>, vector<1x256xf32>
    %c0_593 = arith.constant 0 : index
    %c12_594 = arith.constant 12 : index
    %1121 = memref.load %arg4[%c0_593, %c12_594] : memref<4x36xf32, #tpu.memory_space<smem>>
    %1122 = vector.broadcast %1121 : f32 to vector<1x256xf32>
    %1123 = arith.mulf %1122, %1120 : vector<1x256xf32>
    %1124 = arith.addf %1105, %1123 : vector<1x256xf32>
    %c1_595 = arith.constant 1 : index
    %c12_596 = arith.constant 12 : index
    %1125 = memref.load %arg4[%c1_595, %c12_596] : memref<4x36xf32, #tpu.memory_space<smem>>
    %1126 = vector.broadcast %1125 : f32 to vector<1x256xf32>
    %1127 = arith.mulf %1126, %1120 : vector<1x256xf32>
    %1128 = arith.addf %1109, %1127 : vector<1x256xf32>
    %c2_597 = arith.constant 2 : index
    %c12_598 = arith.constant 12 : index
    %1129 = memref.load %arg4[%c2_597, %c12_598] : memref<4x36xf32, #tpu.memory_space<smem>>
    %1130 = vector.broadcast %1129 : f32 to vector<1x256xf32>
    %1131 = arith.mulf %1130, %1120 : vector<1x256xf32>
    %1132 = arith.addf %1113, %1131 : vector<1x256xf32>
    %c3_599 = arith.constant 3 : index
    %c12_600 = arith.constant 12 : index
    %1133 = memref.load %arg4[%c3_599, %c12_600] : memref<4x36xf32, #tpu.memory_space<smem>>
    %1134 = vector.broadcast %1133 : f32 to vector<1x256xf32>
    %1135 = arith.mulf %1134, %1120 : vector<1x256xf32>
    %1136 = arith.addf %1117, %1135 : vector<1x256xf32>
    %c1_601 = arith.constant 1 : index
    %c128_602 = arith.constant 128 : index
    %1137 = vector.load %arg12[%c1_601, %c128_602] : memref<8x512xf32, #tpu.memory_space<vmem>>, vector<1x256xf32>
    %c0_603 = arith.constant 0 : index
    %c13_604 = arith.constant 13 : index
    %1138 = memref.load %arg4[%c0_603, %c13_604] : memref<4x36xf32, #tpu.memory_space<smem>>
    %1139 = vector.broadcast %1138 : f32 to vector<1x256xf32>
    %1140 = arith.mulf %1139, %1137 : vector<1x256xf32>
    %1141 = arith.addf %1124, %1140 : vector<1x256xf32>
    %c1_605 = arith.constant 1 : index
    %c13_606 = arith.constant 13 : index
    %1142 = memref.load %arg4[%c1_605, %c13_606] : memref<4x36xf32, #tpu.memory_space<smem>>
    %1143 = vector.broadcast %1142 : f32 to vector<1x256xf32>
    %1144 = arith.mulf %1143, %1137 : vector<1x256xf32>
    %1145 = arith.addf %1128, %1144 : vector<1x256xf32>
    %c2_607 = arith.constant 2 : index
    %c13_608 = arith.constant 13 : index
    %1146 = memref.load %arg4[%c2_607, %c13_608] : memref<4x36xf32, #tpu.memory_space<smem>>
    %1147 = vector.broadcast %1146 : f32 to vector<1x256xf32>
    %1148 = arith.mulf %1147, %1137 : vector<1x256xf32>
    %1149 = arith.addf %1132, %1148 : vector<1x256xf32>
    %c3_609 = arith.constant 3 : index
    %c13_610 = arith.constant 13 : index
    %1150 = memref.load %arg4[%c3_609, %c13_610] : memref<4x36xf32, #tpu.memory_space<smem>>
    %1151 = vector.broadcast %1150 : f32 to vector<1x256xf32>
    %1152 = arith.mulf %1151, %1137 : vector<1x256xf32>
    %1153 = arith.addf %1136, %1152 : vector<1x256xf32>
    %c1_611 = arith.constant 1 : index
    %c129_612 = arith.constant 129 : index
    %1154 = vector.load %arg12[%c1_611, %c129_612] : memref<8x512xf32, #tpu.memory_space<vmem>>, vector<1x256xf32>
    %cst_613 = arith.constant 0.000000e+00 : f32
    %1155 = vector.broadcast %cst_613 : f32 to vector<1x256xf32>
    %1156 = arith.select %20, %1154, %1155 : vector<1x256xi1>, vector<1x256xf32>
    %c0_614 = arith.constant 0 : index
    %c14_615 = arith.constant 14 : index
    %1157 = memref.load %arg4[%c0_614, %c14_615] : memref<4x36xf32, #tpu.memory_space<smem>>
    %1158 = vector.broadcast %1157 : f32 to vector<1x256xf32>
    %1159 = arith.mulf %1158, %1156 : vector<1x256xf32>
    %1160 = arith.addf %1141, %1159 : vector<1x256xf32>
    %c1_616 = arith.constant 1 : index
    %c14_617 = arith.constant 14 : index
    %1161 = memref.load %arg4[%c1_616, %c14_617] : memref<4x36xf32, #tpu.memory_space<smem>>
    %1162 = vector.broadcast %1161 : f32 to vector<1x256xf32>
    %1163 = arith.mulf %1162, %1156 : vector<1x256xf32>
    %1164 = arith.addf %1145, %1163 : vector<1x256xf32>
    %c2_618 = arith.constant 2 : index
    %c14_619 = arith.constant 14 : index
    %1165 = memref.load %arg4[%c2_618, %c14_619] : memref<4x36xf32, #tpu.memory_space<smem>>
    %1166 = vector.broadcast %1165 : f32 to vector<1x256xf32>
    %1167 = arith.mulf %1166, %1156 : vector<1x256xf32>
    %1168 = arith.addf %1149, %1167 : vector<1x256xf32>
    %c3_620 = arith.constant 3 : index
    %c14_621 = arith.constant 14 : index
    %1169 = memref.load %arg4[%c3_620, %c14_621] : memref<4x36xf32, #tpu.memory_space<smem>>
    %1170 = vector.broadcast %1169 : f32 to vector<1x256xf32>
    %1171 = arith.mulf %1170, %1156 : vector<1x256xf32>
    %1172 = arith.addf %1153, %1171 : vector<1x256xf32>
    %c1_622 = arith.constant 1 : index
    %c143_623 = arith.constant 143 : index
    %1173 = vector.load %arg12[%c1_622, %c143_623] : memref<8x512xf32, #tpu.memory_space<vmem>>, vector<1x256xf32>
    %cst_624 = arith.constant 0.000000e+00 : f32
    %1174 = vector.broadcast %cst_624 : f32 to vector<1x256xf32>
    %1175 = arith.select %18, %1173, %1174 : vector<1x256xi1>, vector<1x256xf32>
    %c0_625 = arith.constant 0 : index
    %c15_626 = arith.constant 15 : index
    %1176 = memref.load %arg4[%c0_625, %c15_626] : memref<4x36xf32, #tpu.memory_space<smem>>
    %1177 = vector.broadcast %1176 : f32 to vector<1x256xf32>
    %1178 = arith.mulf %1177, %1175 : vector<1x256xf32>
    %1179 = arith.addf %1160, %1178 : vector<1x256xf32>
    %c1_627 = arith.constant 1 : index
    %c15_628 = arith.constant 15 : index
    %1180 = memref.load %arg4[%c1_627, %c15_628] : memref<4x36xf32, #tpu.memory_space<smem>>
    %1181 = vector.broadcast %1180 : f32 to vector<1x256xf32>
    %1182 = arith.mulf %1181, %1175 : vector<1x256xf32>
    %1183 = arith.addf %1164, %1182 : vector<1x256xf32>
    %c2_629 = arith.constant 2 : index
    %c15_630 = arith.constant 15 : index
    %1184 = memref.load %arg4[%c2_629, %c15_630] : memref<4x36xf32, #tpu.memory_space<smem>>
    %1185 = vector.broadcast %1184 : f32 to vector<1x256xf32>
    %1186 = arith.mulf %1185, %1175 : vector<1x256xf32>
    %1187 = arith.addf %1168, %1186 : vector<1x256xf32>
    %c3_631 = arith.constant 3 : index
    %c15_632 = arith.constant 15 : index
    %1188 = memref.load %arg4[%c3_631, %c15_632] : memref<4x36xf32, #tpu.memory_space<smem>>
    %1189 = vector.broadcast %1188 : f32 to vector<1x256xf32>
    %1190 = arith.mulf %1189, %1175 : vector<1x256xf32>
    %1191 = arith.addf %1172, %1190 : vector<1x256xf32>
    %c1_633 = arith.constant 1 : index
    %c144_634 = arith.constant 144 : index
    %1192 = vector.load %arg12[%c1_633, %c144_634] : memref<8x512xf32, #tpu.memory_space<vmem>>, vector<1x256xf32>
    %c0_635 = arith.constant 0 : index
    %c16_636 = arith.constant 16 : index
    %1193 = memref.load %arg4[%c0_635, %c16_636] : memref<4x36xf32, #tpu.memory_space<smem>>
    %1194 = vector.broadcast %1193 : f32 to vector<1x256xf32>
    %1195 = arith.mulf %1194, %1192 : vector<1x256xf32>
    %1196 = arith.addf %1179, %1195 : vector<1x256xf32>
    %c1_637 = arith.constant 1 : index
    %c16_638 = arith.constant 16 : index
    %1197 = memref.load %arg4[%c1_637, %c16_638] : memref<4x36xf32, #tpu.memory_space<smem>>
    %1198 = vector.broadcast %1197 : f32 to vector<1x256xf32>
    %1199 = arith.mulf %1198, %1192 : vector<1x256xf32>
    %1200 = arith.addf %1183, %1199 : vector<1x256xf32>
    %c2_639 = arith.constant 2 : index
    %c16_640 = arith.constant 16 : index
    %1201 = memref.load %arg4[%c2_639, %c16_640] : memref<4x36xf32, #tpu.memory_space<smem>>
    %1202 = vector.broadcast %1201 : f32 to vector<1x256xf32>
    %1203 = arith.mulf %1202, %1192 : vector<1x256xf32>
    %1204 = arith.addf %1187, %1203 : vector<1x256xf32>
    %c3_641 = arith.constant 3 : index
    %c16_642 = arith.constant 16 : index
    %1205 = memref.load %arg4[%c3_641, %c16_642] : memref<4x36xf32, #tpu.memory_space<smem>>
    %1206 = vector.broadcast %1205 : f32 to vector<1x256xf32>
    %1207 = arith.mulf %1206, %1192 : vector<1x256xf32>
    %1208 = arith.addf %1191, %1207 : vector<1x256xf32>
    %c1_643 = arith.constant 1 : index
    %c145_644 = arith.constant 145 : index
    %1209 = vector.load %arg12[%c1_643, %c145_644] : memref<8x512xf32, #tpu.memory_space<vmem>>, vector<1x256xf32>
    %cst_645 = arith.constant 0.000000e+00 : f32
    %1210 = vector.broadcast %cst_645 : f32 to vector<1x256xf32>
    %1211 = arith.select %20, %1209, %1210 : vector<1x256xi1>, vector<1x256xf32>
    %c0_646 = arith.constant 0 : index
    %c17_647 = arith.constant 17 : index
    %1212 = memref.load %arg4[%c0_646, %c17_647] : memref<4x36xf32, #tpu.memory_space<smem>>
    %1213 = vector.broadcast %1212 : f32 to vector<1x256xf32>
    %1214 = arith.mulf %1213, %1211 : vector<1x256xf32>
    %1215 = arith.addf %1196, %1214 : vector<1x256xf32>
    %c1_648 = arith.constant 1 : index
    %c17_649 = arith.constant 17 : index
    %1216 = memref.load %arg4[%c1_648, %c17_649] : memref<4x36xf32, #tpu.memory_space<smem>>
    %1217 = vector.broadcast %1216 : f32 to vector<1x256xf32>
    %1218 = arith.mulf %1217, %1211 : vector<1x256xf32>
    %1219 = arith.addf %1200, %1218 : vector<1x256xf32>
    %c2_650 = arith.constant 2 : index
    %c17_651 = arith.constant 17 : index
    %1220 = memref.load %arg4[%c2_650, %c17_651] : memref<4x36xf32, #tpu.memory_space<smem>>
    %1221 = vector.broadcast %1220 : f32 to vector<1x256xf32>
    %1222 = arith.mulf %1221, %1211 : vector<1x256xf32>
    %1223 = arith.addf %1204, %1222 : vector<1x256xf32>
    %c3_652 = arith.constant 3 : index
    %c17_653 = arith.constant 17 : index
    %1224 = memref.load %arg4[%c3_652, %c17_653] : memref<4x36xf32, #tpu.memory_space<smem>>
    %1225 = vector.broadcast %1224 : f32 to vector<1x256xf32>
    %1226 = arith.mulf %1225, %1211 : vector<1x256xf32>
    %1227 = arith.addf %1208, %1226 : vector<1x256xf32>
    %c2_654 = arith.constant 2 : index
    %c111_655 = arith.constant 111 : index
    %1228 = vector.load %arg12[%c2_654, %c111_655] : memref<8x512xf32, #tpu.memory_space<vmem>>, vector<1x256xf32>
    %cst_656 = arith.constant 0.000000e+00 : f32
    %1229 = vector.broadcast %cst_656 : f32 to vector<1x256xf32>
    %1230 = arith.select %18, %1228, %1229 : vector<1x256xi1>, vector<1x256xf32>
    %c0_657 = arith.constant 0 : index
    %c18_658 = arith.constant 18 : index
    %1231 = memref.load %arg4[%c0_657, %c18_658] : memref<4x36xf32, #tpu.memory_space<smem>>
    %1232 = vector.broadcast %1231 : f32 to vector<1x256xf32>
    %1233 = arith.mulf %1232, %1230 : vector<1x256xf32>
    %1234 = arith.addf %1215, %1233 : vector<1x256xf32>
    %c1_659 = arith.constant 1 : index
    %c18_660 = arith.constant 18 : index
    %1235 = memref.load %arg4[%c1_659, %c18_660] : memref<4x36xf32, #tpu.memory_space<smem>>
    %1236 = vector.broadcast %1235 : f32 to vector<1x256xf32>
    %1237 = arith.mulf %1236, %1230 : vector<1x256xf32>
    %1238 = arith.addf %1219, %1237 : vector<1x256xf32>
    %c2_661 = arith.constant 2 : index
    %c18_662 = arith.constant 18 : index
    %1239 = memref.load %arg4[%c2_661, %c18_662] : memref<4x36xf32, #tpu.memory_space<smem>>
    %1240 = vector.broadcast %1239 : f32 to vector<1x256xf32>
    %1241 = arith.mulf %1240, %1230 : vector<1x256xf32>
    %1242 = arith.addf %1223, %1241 : vector<1x256xf32>
    %c3_663 = arith.constant 3 : index
    %c18_664 = arith.constant 18 : index
    %1243 = memref.load %arg4[%c3_663, %c18_664] : memref<4x36xf32, #tpu.memory_space<smem>>
    %1244 = vector.broadcast %1243 : f32 to vector<1x256xf32>
    %1245 = arith.mulf %1244, %1230 : vector<1x256xf32>
    %1246 = arith.addf %1227, %1245 : vector<1x256xf32>
    %c2_665 = arith.constant 2 : index
    %c112_666 = arith.constant 112 : index
    %1247 = vector.load %arg12[%c2_665, %c112_666] : memref<8x512xf32, #tpu.memory_space<vmem>>, vector<1x256xf32>
    %c0_667 = arith.constant 0 : index
    %c19_668 = arith.constant 19 : index
    %1248 = memref.load %arg4[%c0_667, %c19_668] : memref<4x36xf32, #tpu.memory_space<smem>>
    %1249 = vector.broadcast %1248 : f32 to vector<1x256xf32>
    %1250 = arith.mulf %1249, %1247 : vector<1x256xf32>
    %1251 = arith.addf %1234, %1250 : vector<1x256xf32>
    %c1_669 = arith.constant 1 : index
    %c19_670 = arith.constant 19 : index
    %1252 = memref.load %arg4[%c1_669, %c19_670] : memref<4x36xf32, #tpu.memory_space<smem>>
    %1253 = vector.broadcast %1252 : f32 to vector<1x256xf32>
    %1254 = arith.mulf %1253, %1247 : vector<1x256xf32>
    %1255 = arith.addf %1238, %1254 : vector<1x256xf32>
    %c2_671 = arith.constant 2 : index
    %c19_672 = arith.constant 19 : index
    %1256 = memref.load %arg4[%c2_671, %c19_672] : memref<4x36xf32, #tpu.memory_space<smem>>
    %1257 = vector.broadcast %1256 : f32 to vector<1x256xf32>
    %1258 = arith.mulf %1257, %1247 : vector<1x256xf32>
    %1259 = arith.addf %1242, %1258 : vector<1x256xf32>
    %c3_673 = arith.constant 3 : index
    %c19_674 = arith.constant 19 : index
    %1260 = memref.load %arg4[%c3_673, %c19_674] : memref<4x36xf32, #tpu.memory_space<smem>>
    %1261 = vector.broadcast %1260 : f32 to vector<1x256xf32>
    %1262 = arith.mulf %1261, %1247 : vector<1x256xf32>
    %1263 = arith.addf %1246, %1262 : vector<1x256xf32>
    %c2_675 = arith.constant 2 : index
    %c113_676 = arith.constant 113 : index
    %1264 = vector.load %arg12[%c2_675, %c113_676] : memref<8x512xf32, #tpu.memory_space<vmem>>, vector<1x256xf32>
    %cst_677 = arith.constant 0.000000e+00 : f32
    %1265 = vector.broadcast %cst_677 : f32 to vector<1x256xf32>
    %1266 = arith.select %20, %1264, %1265 : vector<1x256xi1>, vector<1x256xf32>
    %c0_678 = arith.constant 0 : index
    %c20_679 = arith.constant 20 : index
    %1267 = memref.load %arg4[%c0_678, %c20_679] : memref<4x36xf32, #tpu.memory_space<smem>>
    %1268 = vector.broadcast %1267 : f32 to vector<1x256xf32>
    %1269 = arith.mulf %1268, %1266 : vector<1x256xf32>
    %1270 = arith.addf %1251, %1269 : vector<1x256xf32>
    %c1_680 = arith.constant 1 : index
    %c20_681 = arith.constant 20 : index
    %1271 = memref.load %arg4[%c1_680, %c20_681] : memref<4x36xf32, #tpu.memory_space<smem>>
    %1272 = vector.broadcast %1271 : f32 to vector<1x256xf32>
    %1273 = arith.mulf %1272, %1266 : vector<1x256xf32>
    %1274 = arith.addf %1255, %1273 : vector<1x256xf32>
    %c2_682 = arith.constant 2 : index
    %c20_683 = arith.constant 20 : index
    %1275 = memref.load %arg4[%c2_682, %c20_683] : memref<4x36xf32, #tpu.memory_space<smem>>
    %1276 = vector.broadcast %1275 : f32 to vector<1x256xf32>
    %1277 = arith.mulf %1276, %1266 : vector<1x256xf32>
    %1278 = arith.addf %1259, %1277 : vector<1x256xf32>
    %c3_684 = arith.constant 3 : index
    %c20_685 = arith.constant 20 : index
    %1279 = memref.load %arg4[%c3_684, %c20_685] : memref<4x36xf32, #tpu.memory_space<smem>>
    %1280 = vector.broadcast %1279 : f32 to vector<1x256xf32>
    %1281 = arith.mulf %1280, %1266 : vector<1x256xf32>
    %1282 = arith.addf %1263, %1281 : vector<1x256xf32>
    %c2_686 = arith.constant 2 : index
    %c127_687 = arith.constant 127 : index
    %1283 = vector.load %arg12[%c2_686, %c127_687] : memref<8x512xf32, #tpu.memory_space<vmem>>, vector<1x256xf32>
    %cst_688 = arith.constant 0.000000e+00 : f32
    %1284 = vector.broadcast %cst_688 : f32 to vector<1x256xf32>
    %1285 = arith.select %18, %1283, %1284 : vector<1x256xi1>, vector<1x256xf32>
    %c0_689 = arith.constant 0 : index
    %c21_690 = arith.constant 21 : index
    %1286 = memref.load %arg4[%c0_689, %c21_690] : memref<4x36xf32, #tpu.memory_space<smem>>
    %1287 = vector.broadcast %1286 : f32 to vector<1x256xf32>
    %1288 = arith.mulf %1287, %1285 : vector<1x256xf32>
    %1289 = arith.addf %1270, %1288 : vector<1x256xf32>
    %c1_691 = arith.constant 1 : index
    %c21_692 = arith.constant 21 : index
    %1290 = memref.load %arg4[%c1_691, %c21_692] : memref<4x36xf32, #tpu.memory_space<smem>>
    %1291 = vector.broadcast %1290 : f32 to vector<1x256xf32>
    %1292 = arith.mulf %1291, %1285 : vector<1x256xf32>
    %1293 = arith.addf %1274, %1292 : vector<1x256xf32>
    %c2_693 = arith.constant 2 : index
    %c21_694 = arith.constant 21 : index
    %1294 = memref.load %arg4[%c2_693, %c21_694] : memref<4x36xf32, #tpu.memory_space<smem>>
    %1295 = vector.broadcast %1294 : f32 to vector<1x256xf32>
    %1296 = arith.mulf %1295, %1285 : vector<1x256xf32>
    %1297 = arith.addf %1278, %1296 : vector<1x256xf32>
    %c3_695 = arith.constant 3 : index
    %c21_696 = arith.constant 21 : index
    %1298 = memref.load %arg4[%c3_695, %c21_696] : memref<4x36xf32, #tpu.memory_space<smem>>
    %1299 = vector.broadcast %1298 : f32 to vector<1x256xf32>
    %1300 = arith.mulf %1299, %1285 : vector<1x256xf32>
    %1301 = arith.addf %1282, %1300 : vector<1x256xf32>
    %c2_697 = arith.constant 2 : index
    %c128_698 = arith.constant 128 : index
    %1302 = vector.load %arg12[%c2_697, %c128_698] : memref<8x512xf32, #tpu.memory_space<vmem>>, vector<1x256xf32>
    %c0_699 = arith.constant 0 : index
    %c22_700 = arith.constant 22 : index
    %1303 = memref.load %arg4[%c0_699, %c22_700] : memref<4x36xf32, #tpu.memory_space<smem>>
    %1304 = vector.broadcast %1303 : f32 to vector<1x256xf32>
    %1305 = arith.mulf %1304, %1302 : vector<1x256xf32>
    %1306 = arith.addf %1289, %1305 : vector<1x256xf32>
    %c1_701 = arith.constant 1 : index
    %c22_702 = arith.constant 22 : index
    %1307 = memref.load %arg4[%c1_701, %c22_702] : memref<4x36xf32, #tpu.memory_space<smem>>
    %1308 = vector.broadcast %1307 : f32 to vector<1x256xf32>
    %1309 = arith.mulf %1308, %1302 : vector<1x256xf32>
    %1310 = arith.addf %1293, %1309 : vector<1x256xf32>
    %c2_703 = arith.constant 2 : index
    %c22_704 = arith.constant 22 : index
    %1311 = memref.load %arg4[%c2_703, %c22_704] : memref<4x36xf32, #tpu.memory_space<smem>>
    %1312 = vector.broadcast %1311 : f32 to vector<1x256xf32>
    %1313 = arith.mulf %1312, %1302 : vector<1x256xf32>
    %1314 = arith.addf %1297, %1313 : vector<1x256xf32>
    %c3_705 = arith.constant 3 : index
    %c22_706 = arith.constant 22 : index
    %1315 = memref.load %arg4[%c3_705, %c22_706] : memref<4x36xf32, #tpu.memory_space<smem>>
    %1316 = vector.broadcast %1315 : f32 to vector<1x256xf32>
    %1317 = arith.mulf %1316, %1302 : vector<1x256xf32>
    %1318 = arith.addf %1301, %1317 : vector<1x256xf32>
    %c2_707 = arith.constant 2 : index
    %c129_708 = arith.constant 129 : index
    %1319 = vector.load %arg12[%c2_707, %c129_708] : memref<8x512xf32, #tpu.memory_space<vmem>>, vector<1x256xf32>
    %cst_709 = arith.constant 0.000000e+00 : f32
    %1320 = vector.broadcast %cst_709 : f32 to vector<1x256xf32>
    %1321 = arith.select %20, %1319, %1320 : vector<1x256xi1>, vector<1x256xf32>
    %c0_710 = arith.constant 0 : index
    %c23_711 = arith.constant 23 : index
    %1322 = memref.load %arg4[%c0_710, %c23_711] : memref<4x36xf32, #tpu.memory_space<smem>>
    %1323 = vector.broadcast %1322 : f32 to vector<1x256xf32>
    %1324 = arith.mulf %1323, %1321 : vector<1x256xf32>
    %1325 = arith.addf %1306, %1324 : vector<1x256xf32>
    %c1_712 = arith.constant 1 : index
    %c23_713 = arith.constant 23 : index
    %1326 = memref.load %arg4[%c1_712, %c23_713] : memref<4x36xf32, #tpu.memory_space<smem>>
    %1327 = vector.broadcast %1326 : f32 to vector<1x256xf32>
    %1328 = arith.mulf %1327, %1321 : vector<1x256xf32>
    %1329 = arith.addf %1310, %1328 : vector<1x256xf32>
    %c2_714 = arith.constant 2 : index
    %c23_715 = arith.constant 23 : index
    %1330 = memref.load %arg4[%c2_714, %c23_715] : memref<4x36xf32, #tpu.memory_space<smem>>
    %1331 = vector.broadcast %1330 : f32 to vector<1x256xf32>
    %1332 = arith.mulf %1331, %1321 : vector<1x256xf32>
    %1333 = arith.addf %1314, %1332 : vector<1x256xf32>
    %c3_716 = arith.constant 3 : index
    %c23_717 = arith.constant 23 : index
    %1334 = memref.load %arg4[%c3_716, %c23_717] : memref<4x36xf32, #tpu.memory_space<smem>>
    %1335 = vector.broadcast %1334 : f32 to vector<1x256xf32>
    %1336 = arith.mulf %1335, %1321 : vector<1x256xf32>
    %1337 = arith.addf %1318, %1336 : vector<1x256xf32>
    %c2_718 = arith.constant 2 : index
    %c143_719 = arith.constant 143 : index
    %1338 = vector.load %arg12[%c2_718, %c143_719] : memref<8x512xf32, #tpu.memory_space<vmem>>, vector<1x256xf32>
    %cst_720 = arith.constant 0.000000e+00 : f32
    %1339 = vector.broadcast %cst_720 : f32 to vector<1x256xf32>
    %1340 = arith.select %18, %1338, %1339 : vector<1x256xi1>, vector<1x256xf32>
    %c0_721 = arith.constant 0 : index
    %c24_722 = arith.constant 24 : index
    %1341 = memref.load %arg4[%c0_721, %c24_722] : memref<4x36xf32, #tpu.memory_space<smem>>
    %1342 = vector.broadcast %1341 : f32 to vector<1x256xf32>
    %1343 = arith.mulf %1342, %1340 : vector<1x256xf32>
    %1344 = arith.addf %1325, %1343 : vector<1x256xf32>
    %c1_723 = arith.constant 1 : index
    %c24_724 = arith.constant 24 : index
    %1345 = memref.load %arg4[%c1_723, %c24_724] : memref<4x36xf32, #tpu.memory_space<smem>>
    %1346 = vector.broadcast %1345 : f32 to vector<1x256xf32>
    %1347 = arith.mulf %1346, %1340 : vector<1x256xf32>
    %1348 = arith.addf %1329, %1347 : vector<1x256xf32>
    %c2_725 = arith.constant 2 : index
    %c24_726 = arith.constant 24 : index
    %1349 = memref.load %arg4[%c2_725, %c24_726] : memref<4x36xf32, #tpu.memory_space<smem>>
    %1350 = vector.broadcast %1349 : f32 to vector<1x256xf32>
    %1351 = arith.mulf %1350, %1340 : vector<1x256xf32>
    %1352 = arith.addf %1333, %1351 : vector<1x256xf32>
    %c3_727 = arith.constant 3 : index
    %c24_728 = arith.constant 24 : index
    %1353 = memref.load %arg4[%c3_727, %c24_728] : memref<4x36xf32, #tpu.memory_space<smem>>
    %1354 = vector.broadcast %1353 : f32 to vector<1x256xf32>
    %1355 = arith.mulf %1354, %1340 : vector<1x256xf32>
    %1356 = arith.addf %1337, %1355 : vector<1x256xf32>
    %c2_729 = arith.constant 2 : index
    %c144_730 = arith.constant 144 : index
    %1357 = vector.load %arg12[%c2_729, %c144_730] : memref<8x512xf32, #tpu.memory_space<vmem>>, vector<1x256xf32>
    %c0_731 = arith.constant 0 : index
    %c25_732 = arith.constant 25 : index
    %1358 = memref.load %arg4[%c0_731, %c25_732] : memref<4x36xf32, #tpu.memory_space<smem>>
    %1359 = vector.broadcast %1358 : f32 to vector<1x256xf32>
    %1360 = arith.mulf %1359, %1357 : vector<1x256xf32>
    %1361 = arith.addf %1344, %1360 : vector<1x256xf32>
    %c1_733 = arith.constant 1 : index
    %c25_734 = arith.constant 25 : index
    %1362 = memref.load %arg4[%c1_733, %c25_734] : memref<4x36xf32, #tpu.memory_space<smem>>
    %1363 = vector.broadcast %1362 : f32 to vector<1x256xf32>
    %1364 = arith.mulf %1363, %1357 : vector<1x256xf32>
    %1365 = arith.addf %1348, %1364 : vector<1x256xf32>
    %c2_735 = arith.constant 2 : index
    %c25_736 = arith.constant 25 : index
    %1366 = memref.load %arg4[%c2_735, %c25_736] : memref<4x36xf32, #tpu.memory_space<smem>>
    %1367 = vector.broadcast %1366 : f32 to vector<1x256xf32>
    %1368 = arith.mulf %1367, %1357 : vector<1x256xf32>
    %1369 = arith.addf %1352, %1368 : vector<1x256xf32>
    %c3_737 = arith.constant 3 : index
    %c25_738 = arith.constant 25 : index
    %1370 = memref.load %arg4[%c3_737, %c25_738] : memref<4x36xf32, #tpu.memory_space<smem>>
    %1371 = vector.broadcast %1370 : f32 to vector<1x256xf32>
    %1372 = arith.mulf %1371, %1357 : vector<1x256xf32>
    %1373 = arith.addf %1356, %1372 : vector<1x256xf32>
    %c2_739 = arith.constant 2 : index
    %c145_740 = arith.constant 145 : index
    %1374 = vector.load %arg12[%c2_739, %c145_740] : memref<8x512xf32, #tpu.memory_space<vmem>>, vector<1x256xf32>
    %cst_741 = arith.constant 0.000000e+00 : f32
    %1375 = vector.broadcast %cst_741 : f32 to vector<1x256xf32>
    %1376 = arith.select %20, %1374, %1375 : vector<1x256xi1>, vector<1x256xf32>
    %c0_742 = arith.constant 0 : index
    %c26_743 = arith.constant 26 : index
    %1377 = memref.load %arg4[%c0_742, %c26_743] : memref<4x36xf32, #tpu.memory_space<smem>>
    %1378 = vector.broadcast %1377 : f32 to vector<1x256xf32>
    %1379 = arith.mulf %1378, %1376 : vector<1x256xf32>
    %1380 = arith.addf %1361, %1379 : vector<1x256xf32>
    %c1_744 = arith.constant 1 : index
    %c26_745 = arith.constant 26 : index
    %1381 = memref.load %arg4[%c1_744, %c26_745] : memref<4x36xf32, #tpu.memory_space<smem>>
    %1382 = vector.broadcast %1381 : f32 to vector<1x256xf32>
    %1383 = arith.mulf %1382, %1376 : vector<1x256xf32>
    %1384 = arith.addf %1365, %1383 : vector<1x256xf32>
    %c2_746 = arith.constant 2 : index
    %c26_747 = arith.constant 26 : index
    %1385 = memref.load %arg4[%c2_746, %c26_747] : memref<4x36xf32, #tpu.memory_space<smem>>
    %1386 = vector.broadcast %1385 : f32 to vector<1x256xf32>
    %1387 = arith.mulf %1386, %1376 : vector<1x256xf32>
    %1388 = arith.addf %1369, %1387 : vector<1x256xf32>
    %c3_748 = arith.constant 3 : index
    %c26_749 = arith.constant 26 : index
    %1389 = memref.load %arg4[%c3_748, %c26_749] : memref<4x36xf32, #tpu.memory_space<smem>>
    %1390 = vector.broadcast %1389 : f32 to vector<1x256xf32>
    %1391 = arith.mulf %1390, %1376 : vector<1x256xf32>
    %1392 = arith.addf %1373, %1391 : vector<1x256xf32>
    %c3_750 = arith.constant 3 : index
    %c111_751 = arith.constant 111 : index
    %1393 = vector.load %arg12[%c3_750, %c111_751] : memref<8x512xf32, #tpu.memory_space<vmem>>, vector<1x256xf32>
    %cst_752 = arith.constant 0.000000e+00 : f32
    %1394 = vector.broadcast %cst_752 : f32 to vector<1x256xf32>
    %1395 = arith.select %18, %1393, %1394 : vector<1x256xi1>, vector<1x256xf32>
    %c0_753 = arith.constant 0 : index
    %c27_754 = arith.constant 27 : index
    %1396 = memref.load %arg4[%c0_753, %c27_754] : memref<4x36xf32, #tpu.memory_space<smem>>
    %1397 = vector.broadcast %1396 : f32 to vector<1x256xf32>
    %1398 = arith.mulf %1397, %1395 : vector<1x256xf32>
    %1399 = arith.addf %1380, %1398 : vector<1x256xf32>
    %c1_755 = arith.constant 1 : index
    %c27_756 = arith.constant 27 : index
    %1400 = memref.load %arg4[%c1_755, %c27_756] : memref<4x36xf32, #tpu.memory_space<smem>>
    %1401 = vector.broadcast %1400 : f32 to vector<1x256xf32>
    %1402 = arith.mulf %1401, %1395 : vector<1x256xf32>
    %1403 = arith.addf %1384, %1402 : vector<1x256xf32>
    %c2_757 = arith.constant 2 : index
    %c27_758 = arith.constant 27 : index
    %1404 = memref.load %arg4[%c2_757, %c27_758] : memref<4x36xf32, #tpu.memory_space<smem>>
    %1405 = vector.broadcast %1404 : f32 to vector<1x256xf32>
    %1406 = arith.mulf %1405, %1395 : vector<1x256xf32>
    %1407 = arith.addf %1388, %1406 : vector<1x256xf32>
    %c3_759 = arith.constant 3 : index
    %c27_760 = arith.constant 27 : index
    %1408 = memref.load %arg4[%c3_759, %c27_760] : memref<4x36xf32, #tpu.memory_space<smem>>
    %1409 = vector.broadcast %1408 : f32 to vector<1x256xf32>
    %1410 = arith.mulf %1409, %1395 : vector<1x256xf32>
    %1411 = arith.addf %1392, %1410 : vector<1x256xf32>
    %c3_761 = arith.constant 3 : index
    %c112_762 = arith.constant 112 : index
    %1412 = vector.load %arg12[%c3_761, %c112_762] : memref<8x512xf32, #tpu.memory_space<vmem>>, vector<1x256xf32>
    %c0_763 = arith.constant 0 : index
    %c28_764 = arith.constant 28 : index
    %1413 = memref.load %arg4[%c0_763, %c28_764] : memref<4x36xf32, #tpu.memory_space<smem>>
    %1414 = vector.broadcast %1413 : f32 to vector<1x256xf32>
    %1415 = arith.mulf %1414, %1412 : vector<1x256xf32>
    %1416 = arith.addf %1399, %1415 : vector<1x256xf32>
    %c1_765 = arith.constant 1 : index
    %c28_766 = arith.constant 28 : index
    %1417 = memref.load %arg4[%c1_765, %c28_766] : memref<4x36xf32, #tpu.memory_space<smem>>
    %1418 = vector.broadcast %1417 : f32 to vector<1x256xf32>
    %1419 = arith.mulf %1418, %1412 : vector<1x256xf32>
    %1420 = arith.addf %1403, %1419 : vector<1x256xf32>
    %c2_767 = arith.constant 2 : index
    %c28_768 = arith.constant 28 : index
    %1421 = memref.load %arg4[%c2_767, %c28_768] : memref<4x36xf32, #tpu.memory_space<smem>>
    %1422 = vector.broadcast %1421 : f32 to vector<1x256xf32>
    %1423 = arith.mulf %1422, %1412 : vector<1x256xf32>
    %1424 = arith.addf %1407, %1423 : vector<1x256xf32>
    %c3_769 = arith.constant 3 : index
    %c28_770 = arith.constant 28 : index
    %1425 = memref.load %arg4[%c3_769, %c28_770] : memref<4x36xf32, #tpu.memory_space<smem>>
    %1426 = vector.broadcast %1425 : f32 to vector<1x256xf32>
    %1427 = arith.mulf %1426, %1412 : vector<1x256xf32>
    %1428 = arith.addf %1411, %1427 : vector<1x256xf32>
    %c3_771 = arith.constant 3 : index
    %c113_772 = arith.constant 113 : index
    %1429 = vector.load %arg12[%c3_771, %c113_772] : memref<8x512xf32, #tpu.memory_space<vmem>>, vector<1x256xf32>
    %cst_773 = arith.constant 0.000000e+00 : f32
    %1430 = vector.broadcast %cst_773 : f32 to vector<1x256xf32>
    %1431 = arith.select %20, %1429, %1430 : vector<1x256xi1>, vector<1x256xf32>
    %c0_774 = arith.constant 0 : index
    %c29_775 = arith.constant 29 : index
    %1432 = memref.load %arg4[%c0_774, %c29_775] : memref<4x36xf32, #tpu.memory_space<smem>>
    %1433 = vector.broadcast %1432 : f32 to vector<1x256xf32>
    %1434 = arith.mulf %1433, %1431 : vector<1x256xf32>
    %1435 = arith.addf %1416, %1434 : vector<1x256xf32>
    %c1_776 = arith.constant 1 : index
    %c29_777 = arith.constant 29 : index
    %1436 = memref.load %arg4[%c1_776, %c29_777] : memref<4x36xf32, #tpu.memory_space<smem>>
    %1437 = vector.broadcast %1436 : f32 to vector<1x256xf32>
    %1438 = arith.mulf %1437, %1431 : vector<1x256xf32>
    %1439 = arith.addf %1420, %1438 : vector<1x256xf32>
    %c2_778 = arith.constant 2 : index
    %c29_779 = arith.constant 29 : index
    %1440 = memref.load %arg4[%c2_778, %c29_779] : memref<4x36xf32, #tpu.memory_space<smem>>
    %1441 = vector.broadcast %1440 : f32 to vector<1x256xf32>
    %1442 = arith.mulf %1441, %1431 : vector<1x256xf32>
    %1443 = arith.addf %1424, %1442 : vector<1x256xf32>
    %c3_780 = arith.constant 3 : index
    %c29_781 = arith.constant 29 : index
    %1444 = memref.load %arg4[%c3_780, %c29_781] : memref<4x36xf32, #tpu.memory_space<smem>>
    %1445 = vector.broadcast %1444 : f32 to vector<1x256xf32>
    %1446 = arith.mulf %1445, %1431 : vector<1x256xf32>
    %1447 = arith.addf %1428, %1446 : vector<1x256xf32>
    %c3_782 = arith.constant 3 : index
    %c127_783 = arith.constant 127 : index
    %1448 = vector.load %arg12[%c3_782, %c127_783] : memref<8x512xf32, #tpu.memory_space<vmem>>, vector<1x256xf32>
    %cst_784 = arith.constant 0.000000e+00 : f32
    %1449 = vector.broadcast %cst_784 : f32 to vector<1x256xf32>
    %1450 = arith.select %18, %1448, %1449 : vector<1x256xi1>, vector<1x256xf32>
    %c0_785 = arith.constant 0 : index
    %c30_786 = arith.constant 30 : index
    %1451 = memref.load %arg4[%c0_785, %c30_786] : memref<4x36xf32, #tpu.memory_space<smem>>
    %1452 = vector.broadcast %1451 : f32 to vector<1x256xf32>
    %1453 = arith.mulf %1452, %1450 : vector<1x256xf32>
    %1454 = arith.addf %1435, %1453 : vector<1x256xf32>
    %c1_787 = arith.constant 1 : index
    %c30_788 = arith.constant 30 : index
    %1455 = memref.load %arg4[%c1_787, %c30_788] : memref<4x36xf32, #tpu.memory_space<smem>>
    %1456 = vector.broadcast %1455 : f32 to vector<1x256xf32>
    %1457 = arith.mulf %1456, %1450 : vector<1x256xf32>
    %1458 = arith.addf %1439, %1457 : vector<1x256xf32>
    %c2_789 = arith.constant 2 : index
    %c30_790 = arith.constant 30 : index
    %1459 = memref.load %arg4[%c2_789, %c30_790] : memref<4x36xf32, #tpu.memory_space<smem>>
    %1460 = vector.broadcast %1459 : f32 to vector<1x256xf32>
    %1461 = arith.mulf %1460, %1450 : vector<1x256xf32>
    %1462 = arith.addf %1443, %1461 : vector<1x256xf32>
    %c3_791 = arith.constant 3 : index
    %c30_792 = arith.constant 30 : index
    %1463 = memref.load %arg4[%c3_791, %c30_792] : memref<4x36xf32, #tpu.memory_space<smem>>
    %1464 = vector.broadcast %1463 : f32 to vector<1x256xf32>
    %1465 = arith.mulf %1464, %1450 : vector<1x256xf32>
    %1466 = arith.addf %1447, %1465 : vector<1x256xf32>
    %c3_793 = arith.constant 3 : index
    %c128_794 = arith.constant 128 : index
    %1467 = vector.load %arg12[%c3_793, %c128_794] : memref<8x512xf32, #tpu.memory_space<vmem>>, vector<1x256xf32>
    %c0_795 = arith.constant 0 : index
    %c31_796 = arith.constant 31 : index
    %1468 = memref.load %arg4[%c0_795, %c31_796] : memref<4x36xf32, #tpu.memory_space<smem>>
    %1469 = vector.broadcast %1468 : f32 to vector<1x256xf32>
    %1470 = arith.mulf %1469, %1467 : vector<1x256xf32>
    %1471 = arith.addf %1454, %1470 : vector<1x256xf32>
    %c1_797 = arith.constant 1 : index
    %c31_798 = arith.constant 31 : index
    %1472 = memref.load %arg4[%c1_797, %c31_798] : memref<4x36xf32, #tpu.memory_space<smem>>
    %1473 = vector.broadcast %1472 : f32 to vector<1x256xf32>
    %1474 = arith.mulf %1473, %1467 : vector<1x256xf32>
    %1475 = arith.addf %1458, %1474 : vector<1x256xf32>
    %c2_799 = arith.constant 2 : index
    %c31_800 = arith.constant 31 : index
    %1476 = memref.load %arg4[%c2_799, %c31_800] : memref<4x36xf32, #tpu.memory_space<smem>>
    %1477 = vector.broadcast %1476 : f32 to vector<1x256xf32>
    %1478 = arith.mulf %1477, %1467 : vector<1x256xf32>
    %1479 = arith.addf %1462, %1478 : vector<1x256xf32>
    %c3_801 = arith.constant 3 : index
    %c31_802 = arith.constant 31 : index
    %1480 = memref.load %arg4[%c3_801, %c31_802] : memref<4x36xf32, #tpu.memory_space<smem>>
    %1481 = vector.broadcast %1480 : f32 to vector<1x256xf32>
    %1482 = arith.mulf %1481, %1467 : vector<1x256xf32>
    %1483 = arith.addf %1466, %1482 : vector<1x256xf32>
    %c3_803 = arith.constant 3 : index
    %c129_804 = arith.constant 129 : index
    %1484 = vector.load %arg12[%c3_803, %c129_804] : memref<8x512xf32, #tpu.memory_space<vmem>>, vector<1x256xf32>
    %cst_805 = arith.constant 0.000000e+00 : f32
    %1485 = vector.broadcast %cst_805 : f32 to vector<1x256xf32>
    %1486 = arith.select %20, %1484, %1485 : vector<1x256xi1>, vector<1x256xf32>
    %c0_806 = arith.constant 0 : index
    %c32_807 = arith.constant 32 : index
    %1487 = memref.load %arg4[%c0_806, %c32_807] : memref<4x36xf32, #tpu.memory_space<smem>>
    %1488 = vector.broadcast %1487 : f32 to vector<1x256xf32>
    %1489 = arith.mulf %1488, %1486 : vector<1x256xf32>
    %1490 = arith.addf %1471, %1489 : vector<1x256xf32>
    %c1_808 = arith.constant 1 : index
    %c32_809 = arith.constant 32 : index
    %1491 = memref.load %arg4[%c1_808, %c32_809] : memref<4x36xf32, #tpu.memory_space<smem>>
    %1492 = vector.broadcast %1491 : f32 to vector<1x256xf32>
    %1493 = arith.mulf %1492, %1486 : vector<1x256xf32>
    %1494 = arith.addf %1475, %1493 : vector<1x256xf32>
    %c2_810 = arith.constant 2 : index
    %c32_811 = arith.constant 32 : index
    %1495 = memref.load %arg4[%c2_810, %c32_811] : memref<4x36xf32, #tpu.memory_space<smem>>
    %1496 = vector.broadcast %1495 : f32 to vector<1x256xf32>
    %1497 = arith.mulf %1496, %1486 : vector<1x256xf32>
    %1498 = arith.addf %1479, %1497 : vector<1x256xf32>
    %c3_812 = arith.constant 3 : index
    %c32_813 = arith.constant 32 : index
    %1499 = memref.load %arg4[%c3_812, %c32_813] : memref<4x36xf32, #tpu.memory_space<smem>>
    %1500 = vector.broadcast %1499 : f32 to vector<1x256xf32>
    %1501 = arith.mulf %1500, %1486 : vector<1x256xf32>
    %1502 = arith.addf %1483, %1501 : vector<1x256xf32>
    %c3_814 = arith.constant 3 : index
    %c143_815 = arith.constant 143 : index
    %1503 = vector.load %arg12[%c3_814, %c143_815] : memref<8x512xf32, #tpu.memory_space<vmem>>, vector<1x256xf32>
    %cst_816 = arith.constant 0.000000e+00 : f32
    %1504 = vector.broadcast %cst_816 : f32 to vector<1x256xf32>
    %1505 = arith.select %18, %1503, %1504 : vector<1x256xi1>, vector<1x256xf32>
    %c0_817 = arith.constant 0 : index
    %c33_818 = arith.constant 33 : index
    %1506 = memref.load %arg4[%c0_817, %c33_818] : memref<4x36xf32, #tpu.memory_space<smem>>
    %1507 = vector.broadcast %1506 : f32 to vector<1x256xf32>
    %1508 = arith.mulf %1507, %1505 : vector<1x256xf32>
    %1509 = arith.addf %1490, %1508 : vector<1x256xf32>
    %c1_819 = arith.constant 1 : index
    %c33_820 = arith.constant 33 : index
    %1510 = memref.load %arg4[%c1_819, %c33_820] : memref<4x36xf32, #tpu.memory_space<smem>>
    %1511 = vector.broadcast %1510 : f32 to vector<1x256xf32>
    %1512 = arith.mulf %1511, %1505 : vector<1x256xf32>
    %1513 = arith.addf %1494, %1512 : vector<1x256xf32>
    %c2_821 = arith.constant 2 : index
    %c33_822 = arith.constant 33 : index
    %1514 = memref.load %arg4[%c2_821, %c33_822] : memref<4x36xf32, #tpu.memory_space<smem>>
    %1515 = vector.broadcast %1514 : f32 to vector<1x256xf32>
    %1516 = arith.mulf %1515, %1505 : vector<1x256xf32>
    %1517 = arith.addf %1498, %1516 : vector<1x256xf32>
    %c3_823 = arith.constant 3 : index
    %c33_824 = arith.constant 33 : index
    %1518 = memref.load %arg4[%c3_823, %c33_824] : memref<4x36xf32, #tpu.memory_space<smem>>
    %1519 = vector.broadcast %1518 : f32 to vector<1x256xf32>
    %1520 = arith.mulf %1519, %1505 : vector<1x256xf32>
    %1521 = arith.addf %1502, %1520 : vector<1x256xf32>
    %c3_825 = arith.constant 3 : index
    %c144_826 = arith.constant 144 : index
    %1522 = vector.load %arg12[%c3_825, %c144_826] : memref<8x512xf32, #tpu.memory_space<vmem>>, vector<1x256xf32>
    %c0_827 = arith.constant 0 : index
    %c34_828 = arith.constant 34 : index
    %1523 = memref.load %arg4[%c0_827, %c34_828] : memref<4x36xf32, #tpu.memory_space<smem>>
    %1524 = vector.broadcast %1523 : f32 to vector<1x256xf32>
    %1525 = arith.mulf %1524, %1522 : vector<1x256xf32>
    %1526 = arith.addf %1509, %1525 : vector<1x256xf32>
    %c1_829 = arith.constant 1 : index
    %c34_830 = arith.constant 34 : index
    %1527 = memref.load %arg4[%c1_829, %c34_830] : memref<4x36xf32, #tpu.memory_space<smem>>
    %1528 = vector.broadcast %1527 : f32 to vector<1x256xf32>
    %1529 = arith.mulf %1528, %1522 : vector<1x256xf32>
    %1530 = arith.addf %1513, %1529 : vector<1x256xf32>
    %c2_831 = arith.constant 2 : index
    %c34_832 = arith.constant 34 : index
    %1531 = memref.load %arg4[%c2_831, %c34_832] : memref<4x36xf32, #tpu.memory_space<smem>>
    %1532 = vector.broadcast %1531 : f32 to vector<1x256xf32>
    %1533 = arith.mulf %1532, %1522 : vector<1x256xf32>
    %1534 = arith.addf %1517, %1533 : vector<1x256xf32>
    %c3_833 = arith.constant 3 : index
    %c34_834 = arith.constant 34 : index
    %1535 = memref.load %arg4[%c3_833, %c34_834] : memref<4x36xf32, #tpu.memory_space<smem>>
    %1536 = vector.broadcast %1535 : f32 to vector<1x256xf32>
    %1537 = arith.mulf %1536, %1522 : vector<1x256xf32>
    %1538 = arith.addf %1521, %1537 : vector<1x256xf32>
    %c3_835 = arith.constant 3 : index
    %c145_836 = arith.constant 145 : index
    %1539 = vector.load %arg12[%c3_835, %c145_836] : memref<8x512xf32, #tpu.memory_space<vmem>>, vector<1x256xf32>
    %cst_837 = arith.constant 0.000000e+00 : f32
    %1540 = vector.broadcast %cst_837 : f32 to vector<1x256xf32>
    %1541 = arith.select %20, %1539, %1540 : vector<1x256xi1>, vector<1x256xf32>
    %c0_838 = arith.constant 0 : index
    %c35_839 = arith.constant 35 : index
    %1542 = memref.load %arg4[%c0_838, %c35_839] : memref<4x36xf32, #tpu.memory_space<smem>>
    %1543 = vector.broadcast %1542 : f32 to vector<1x256xf32>
    %1544 = arith.mulf %1543, %1541 : vector<1x256xf32>
    %1545 = arith.addf %1526, %1544 : vector<1x256xf32>
    %c1_840 = arith.constant 1 : index
    %c35_841 = arith.constant 35 : index
    %1546 = memref.load %arg4[%c1_840, %c35_841] : memref<4x36xf32, #tpu.memory_space<smem>>
    %1547 = vector.broadcast %1546 : f32 to vector<1x256xf32>
    %1548 = arith.mulf %1547, %1541 : vector<1x256xf32>
    %1549 = arith.addf %1530, %1548 : vector<1x256xf32>
    %c2_842 = arith.constant 2 : index
    %c35_843 = arith.constant 35 : index
    %1550 = memref.load %arg4[%c2_842, %c35_843] : memref<4x36xf32, #tpu.memory_space<smem>>
    %1551 = vector.broadcast %1550 : f32 to vector<1x256xf32>
    %1552 = arith.mulf %1551, %1541 : vector<1x256xf32>
    %1553 = arith.addf %1534, %1552 : vector<1x256xf32>
    %c3_844 = arith.constant 3 : index
    %c35_845 = arith.constant 35 : index
    %1554 = memref.load %arg4[%c3_844, %c35_845] : memref<4x36xf32, #tpu.memory_space<smem>>
    %1555 = vector.broadcast %1554 : f32 to vector<1x256xf32>
    %1556 = arith.mulf %1555, %1541 : vector<1x256xf32>
    %1557 = arith.addf %1538, %1556 : vector<1x256xf32>
    %cst_846 = arith.constant 0.000000e+00 : f32
    %1558 = vector.broadcast %cst_846 : f32 to vector<1x256xf32>
    %1559 = arith.maximumf %1545, %1558 : vector<1x256xf32>
    %cst_847 = arith.constant 0.000000e+00 : f32
    %1560 = vector.broadcast %cst_847 : f32 to vector<1x256xf32>
    %1561 = arith.maximumf %1549, %1560 : vector<1x256xf32>
    %cst_848 = arith.constant 0.000000e+00 : f32
    %1562 = vector.broadcast %cst_848 : f32 to vector<1x256xf32>
    %1563 = arith.maximumf %1553, %1562 : vector<1x256xf32>
    %cst_849 = arith.constant 0.000000e+00 : f32
    %1564 = vector.broadcast %cst_849 : f32 to vector<1x256xf32>
    %1565 = arith.maximumf %1557, %1564 : vector<1x256xf32>
    %c0_850 = arith.constant 0 : index
    %c0_851 = arith.constant 0 : index
    %1566 = memref.load %arg5[%c0_850, %c0_851] : memref<4x4xf32, #tpu.memory_space<smem>>
    %1567 = vector.broadcast %1566 : f32 to vector<1x256xf32>
    %1568 = arith.mulf %1567, %1559 : vector<1x256xf32>
    %c0_852 = arith.constant 0 : index
    %c1_853 = arith.constant 1 : index
    %1569 = memref.load %arg5[%c0_852, %c1_853] : memref<4x4xf32, #tpu.memory_space<smem>>
    %1570 = vector.broadcast %1569 : f32 to vector<1x256xf32>
    %1571 = arith.mulf %1570, %1561 : vector<1x256xf32>
    %1572 = arith.addf %1568, %1571 : vector<1x256xf32>
    %c0_854 = arith.constant 0 : index
    %c2_855 = arith.constant 2 : index
    %1573 = memref.load %arg5[%c0_854, %c2_855] : memref<4x4xf32, #tpu.memory_space<smem>>
    %1574 = vector.broadcast %1573 : f32 to vector<1x256xf32>
    %1575 = arith.mulf %1574, %1563 : vector<1x256xf32>
    %1576 = arith.addf %1572, %1575 : vector<1x256xf32>
    %c0_856 = arith.constant 0 : index
    %c3_857 = arith.constant 3 : index
    %1577 = memref.load %arg5[%c0_856, %c3_857] : memref<4x4xf32, #tpu.memory_space<smem>>
    %1578 = vector.broadcast %1577 : f32 to vector<1x256xf32>
    %1579 = arith.mulf %1578, %1565 : vector<1x256xf32>
    %1580 = arith.addf %1576, %1579 : vector<1x256xf32>
    %c1_858 = arith.constant 1 : index
    %c0_859 = arith.constant 0 : index
    %1581 = memref.load %arg5[%c1_858, %c0_859] : memref<4x4xf32, #tpu.memory_space<smem>>
    %1582 = vector.broadcast %1581 : f32 to vector<1x256xf32>
    %1583 = arith.mulf %1582, %1559 : vector<1x256xf32>
    %c1_860 = arith.constant 1 : index
    %c1_861 = arith.constant 1 : index
    %1584 = memref.load %arg5[%c1_860, %c1_861] : memref<4x4xf32, #tpu.memory_space<smem>>
    %1585 = vector.broadcast %1584 : f32 to vector<1x256xf32>
    %1586 = arith.mulf %1585, %1561 : vector<1x256xf32>
    %1587 = arith.addf %1583, %1586 : vector<1x256xf32>
    %c1_862 = arith.constant 1 : index
    %c2_863 = arith.constant 2 : index
    %1588 = memref.load %arg5[%c1_862, %c2_863] : memref<4x4xf32, #tpu.memory_space<smem>>
    %1589 = vector.broadcast %1588 : f32 to vector<1x256xf32>
    %1590 = arith.mulf %1589, %1563 : vector<1x256xf32>
    %1591 = arith.addf %1587, %1590 : vector<1x256xf32>
    %c1_864 = arith.constant 1 : index
    %c3_865 = arith.constant 3 : index
    %1592 = memref.load %arg5[%c1_864, %c3_865] : memref<4x4xf32, #tpu.memory_space<smem>>
    %1593 = vector.broadcast %1592 : f32 to vector<1x256xf32>
    %1594 = arith.mulf %1593, %1565 : vector<1x256xf32>
    %1595 = arith.addf %1591, %1594 : vector<1x256xf32>
    %c2_866 = arith.constant 2 : index
    %c0_867 = arith.constant 0 : index
    %1596 = memref.load %arg5[%c2_866, %c0_867] : memref<4x4xf32, #tpu.memory_space<smem>>
    %1597 = vector.broadcast %1596 : f32 to vector<1x256xf32>
    %1598 = arith.mulf %1597, %1559 : vector<1x256xf32>
    %c2_868 = arith.constant 2 : index
    %c1_869 = arith.constant 1 : index
    %1599 = memref.load %arg5[%c2_868, %c1_869] : memref<4x4xf32, #tpu.memory_space<smem>>
    %1600 = vector.broadcast %1599 : f32 to vector<1x256xf32>
    %1601 = arith.mulf %1600, %1561 : vector<1x256xf32>
    %1602 = arith.addf %1598, %1601 : vector<1x256xf32>
    %c2_870 = arith.constant 2 : index
    %c2_871 = arith.constant 2 : index
    %1603 = memref.load %arg5[%c2_870, %c2_871] : memref<4x4xf32, #tpu.memory_space<smem>>
    %1604 = vector.broadcast %1603 : f32 to vector<1x256xf32>
    %1605 = arith.mulf %1604, %1563 : vector<1x256xf32>
    %1606 = arith.addf %1602, %1605 : vector<1x256xf32>
    %c2_872 = arith.constant 2 : index
    %c3_873 = arith.constant 3 : index
    %1607 = memref.load %arg5[%c2_872, %c3_873] : memref<4x4xf32, #tpu.memory_space<smem>>
    %1608 = vector.broadcast %1607 : f32 to vector<1x256xf32>
    %1609 = arith.mulf %1608, %1565 : vector<1x256xf32>
    %1610 = arith.addf %1606, %1609 : vector<1x256xf32>
    %c3_874 = arith.constant 3 : index
    %c0_875 = arith.constant 0 : index
    %1611 = memref.load %arg5[%c3_874, %c0_875] : memref<4x4xf32, #tpu.memory_space<smem>>
    %1612 = vector.broadcast %1611 : f32 to vector<1x256xf32>
    %1613 = arith.mulf %1612, %1559 : vector<1x256xf32>
    %c3_876 = arith.constant 3 : index
    %c1_877 = arith.constant 1 : index
    %1614 = memref.load %arg5[%c3_876, %c1_877] : memref<4x4xf32, #tpu.memory_space<smem>>
    %1615 = vector.broadcast %1614 : f32 to vector<1x256xf32>
    %1616 = arith.mulf %1615, %1561 : vector<1x256xf32>
    %1617 = arith.addf %1613, %1616 : vector<1x256xf32>
    %c3_878 = arith.constant 3 : index
    %c2_879 = arith.constant 2 : index
    %1618 = memref.load %arg5[%c3_878, %c2_879] : memref<4x4xf32, #tpu.memory_space<smem>>
    %1619 = vector.broadcast %1618 : f32 to vector<1x256xf32>
    %1620 = arith.mulf %1619, %1563 : vector<1x256xf32>
    %1621 = arith.addf %1617, %1620 : vector<1x256xf32>
    %c3_880 = arith.constant 3 : index
    %c3_881 = arith.constant 3 : index
    %1622 = memref.load %arg5[%c3_880, %c3_881] : memref<4x4xf32, #tpu.memory_space<smem>>
    %1623 = vector.broadcast %1622 : f32 to vector<1x256xf32>
    %1624 = arith.mulf %1623, %1565 : vector<1x256xf32>
    %1625 = arith.addf %1621, %1624 : vector<1x256xf32>
    %1626 = vector.broadcast %184 : vector<1x1xf32> to vector<1x256xf32>
    %1627 = arith.mulf %1626, %856 : vector<1x256xf32>
    %1628 = vector.broadcast %185 : vector<1x1xf32> to vector<1x256xf32>
    %1629 = arith.mulf %1628, %1580 : vector<1x256xf32>
    %1630 = arith.addf %1627, %1629 : vector<1x256xf32>
    %cst_882 = arith.constant 0.000000e+00 : f32
    %1631 = vector.broadcast %cst_882 : f32 to vector<1x256xf32>
    %1632 = arith.cmpf oge, %1630, %1631 : vector<1x256xf32>
    %cst_883 = arith.constant 2.000000e-01 : f32
    %1633 = vector.broadcast %cst_883 : f32 to vector<1x256xf32>
    %1634 = arith.mulf %1633, %1630 : vector<1x256xf32>
    %1635 = arith.select %1632, %1630, %1634 : vector<1x256xi1>, vector<1x256xf32>
    %1636 = vector.broadcast %184 : vector<1x1xf32> to vector<1x256xf32>
    %1637 = arith.mulf %1636, %871 : vector<1x256xf32>
    %1638 = vector.broadcast %185 : vector<1x1xf32> to vector<1x256xf32>
    %1639 = arith.mulf %1638, %1595 : vector<1x256xf32>
    %1640 = arith.addf %1637, %1639 : vector<1x256xf32>
    %cst_884 = arith.constant 0.000000e+00 : f32
    %1641 = vector.broadcast %cst_884 : f32 to vector<1x256xf32>
    %1642 = arith.cmpf oge, %1640, %1641 : vector<1x256xf32>
    %cst_885 = arith.constant 2.000000e-01 : f32
    %1643 = vector.broadcast %cst_885 : f32 to vector<1x256xf32>
    %1644 = arith.mulf %1643, %1640 : vector<1x256xf32>
    %1645 = arith.select %1642, %1640, %1644 : vector<1x256xi1>, vector<1x256xf32>
    %1646 = vector.broadcast %184 : vector<1x1xf32> to vector<1x256xf32>
    %1647 = arith.mulf %1646, %886 : vector<1x256xf32>
    %1648 = vector.broadcast %185 : vector<1x1xf32> to vector<1x256xf32>
    %1649 = arith.mulf %1648, %1610 : vector<1x256xf32>
    %1650 = arith.addf %1647, %1649 : vector<1x256xf32>
    %cst_886 = arith.constant 0.000000e+00 : f32
    %1651 = vector.broadcast %cst_886 : f32 to vector<1x256xf32>
    %1652 = arith.cmpf oge, %1650, %1651 : vector<1x256xf32>
    %cst_887 = arith.constant 2.000000e-01 : f32
    %1653 = vector.broadcast %cst_887 : f32 to vector<1x256xf32>
    %1654 = arith.mulf %1653, %1650 : vector<1x256xf32>
    %1655 = arith.select %1652, %1650, %1654 : vector<1x256xi1>, vector<1x256xf32>
    %1656 = vector.broadcast %184 : vector<1x1xf32> to vector<1x256xf32>
    %1657 = arith.mulf %1656, %901 : vector<1x256xf32>
    %1658 = vector.broadcast %185 : vector<1x1xf32> to vector<1x256xf32>
    %1659 = arith.mulf %1658, %1625 : vector<1x256xf32>
    %1660 = arith.addf %1657, %1659 : vector<1x256xf32>
    %cst_888 = arith.constant 0.000000e+00 : f32
    %1661 = vector.broadcast %cst_888 : f32 to vector<1x256xf32>
    %1662 = arith.cmpf oge, %1660, %1661 : vector<1x256xf32>
    %cst_889 = arith.constant 2.000000e-01 : f32
    %1663 = vector.broadcast %cst_889 : f32 to vector<1x256xf32>
    %1664 = arith.mulf %1663, %1660 : vector<1x256xf32>
    %1665 = arith.select %1662, %1660, %1664 : vector<1x256xi1>, vector<1x256xf32>
    %c0_890 = arith.constant 0 : index
    %c0_891 = arith.constant 0 : index
    %1666 = memref.load %arg6[%c0_890, %c0_891] : memref<4x4xf32, #tpu.memory_space<smem>>
    %1667 = vector.broadcast %1666 : f32 to vector<1x256xf32>
    %1668 = arith.mulf %1667, %1635 : vector<1x256xf32>
    %c0_892 = arith.constant 0 : index
    %c1_893 = arith.constant 1 : index
    %1669 = memref.load %arg6[%c0_892, %c1_893] : memref<4x4xf32, #tpu.memory_space<smem>>
    %1670 = vector.broadcast %1669 : f32 to vector<1x256xf32>
    %1671 = arith.mulf %1670, %1645 : vector<1x256xf32>
    %1672 = arith.addf %1668, %1671 : vector<1x256xf32>
    %c0_894 = arith.constant 0 : index
    %c2_895 = arith.constant 2 : index
    %1673 = memref.load %arg6[%c0_894, %c2_895] : memref<4x4xf32, #tpu.memory_space<smem>>
    %1674 = vector.broadcast %1673 : f32 to vector<1x256xf32>
    %1675 = arith.mulf %1674, %1655 : vector<1x256xf32>
    %1676 = arith.addf %1672, %1675 : vector<1x256xf32>
    %c0_896 = arith.constant 0 : index
    %c3_897 = arith.constant 3 : index
    %1677 = memref.load %arg6[%c0_896, %c3_897] : memref<4x4xf32, #tpu.memory_space<smem>>
    %1678 = vector.broadcast %1677 : f32 to vector<1x256xf32>
    %1679 = arith.mulf %1678, %1665 : vector<1x256xf32>
    %1680 = arith.addf %1676, %1679 : vector<1x256xf32>
    %c1_898 = arith.constant 1 : index
    %c0_899 = arith.constant 0 : index
    %1681 = memref.load %arg6[%c1_898, %c0_899] : memref<4x4xf32, #tpu.memory_space<smem>>
    %1682 = vector.broadcast %1681 : f32 to vector<1x256xf32>
    %1683 = arith.mulf %1682, %1635 : vector<1x256xf32>
    %c1_900 = arith.constant 1 : index
    %c1_901 = arith.constant 1 : index
    %1684 = memref.load %arg6[%c1_900, %c1_901] : memref<4x4xf32, #tpu.memory_space<smem>>
    %1685 = vector.broadcast %1684 : f32 to vector<1x256xf32>
    %1686 = arith.mulf %1685, %1645 : vector<1x256xf32>
    %1687 = arith.addf %1683, %1686 : vector<1x256xf32>
    %c1_902 = arith.constant 1 : index
    %c2_903 = arith.constant 2 : index
    %1688 = memref.load %arg6[%c1_902, %c2_903] : memref<4x4xf32, #tpu.memory_space<smem>>
    %1689 = vector.broadcast %1688 : f32 to vector<1x256xf32>
    %1690 = arith.mulf %1689, %1655 : vector<1x256xf32>
    %1691 = arith.addf %1687, %1690 : vector<1x256xf32>
    %c1_904 = arith.constant 1 : index
    %c3_905 = arith.constant 3 : index
    %1692 = memref.load %arg6[%c1_904, %c3_905] : memref<4x4xf32, #tpu.memory_space<smem>>
    %1693 = vector.broadcast %1692 : f32 to vector<1x256xf32>
    %1694 = arith.mulf %1693, %1665 : vector<1x256xf32>
    %1695 = arith.addf %1691, %1694 : vector<1x256xf32>
    %c2_906 = arith.constant 2 : index
    %c0_907 = arith.constant 0 : index
    %1696 = memref.load %arg6[%c2_906, %c0_907] : memref<4x4xf32, #tpu.memory_space<smem>>
    %1697 = vector.broadcast %1696 : f32 to vector<1x256xf32>
    %1698 = arith.mulf %1697, %1635 : vector<1x256xf32>
    %c2_908 = arith.constant 2 : index
    %c1_909 = arith.constant 1 : index
    %1699 = memref.load %arg6[%c2_908, %c1_909] : memref<4x4xf32, #tpu.memory_space<smem>>
    %1700 = vector.broadcast %1699 : f32 to vector<1x256xf32>
    %1701 = arith.mulf %1700, %1645 : vector<1x256xf32>
    %1702 = arith.addf %1698, %1701 : vector<1x256xf32>
    %c2_910 = arith.constant 2 : index
    %c2_911 = arith.constant 2 : index
    %1703 = memref.load %arg6[%c2_910, %c2_911] : memref<4x4xf32, #tpu.memory_space<smem>>
    %1704 = vector.broadcast %1703 : f32 to vector<1x256xf32>
    %1705 = arith.mulf %1704, %1655 : vector<1x256xf32>
    %1706 = arith.addf %1702, %1705 : vector<1x256xf32>
    %c2_912 = arith.constant 2 : index
    %c3_913 = arith.constant 3 : index
    %1707 = memref.load %arg6[%c2_912, %c3_913] : memref<4x4xf32, #tpu.memory_space<smem>>
    %1708 = vector.broadcast %1707 : f32 to vector<1x256xf32>
    %1709 = arith.mulf %1708, %1665 : vector<1x256xf32>
    %1710 = arith.addf %1706, %1709 : vector<1x256xf32>
    %c3_914 = arith.constant 3 : index
    %c0_915 = arith.constant 0 : index
    %1711 = memref.load %arg6[%c3_914, %c0_915] : memref<4x4xf32, #tpu.memory_space<smem>>
    %1712 = vector.broadcast %1711 : f32 to vector<1x256xf32>
    %1713 = arith.mulf %1712, %1635 : vector<1x256xf32>
    %c3_916 = arith.constant 3 : index
    %c1_917 = arith.constant 1 : index
    %1714 = memref.load %arg6[%c3_916, %c1_917] : memref<4x4xf32, #tpu.memory_space<smem>>
    %1715 = vector.broadcast %1714 : f32 to vector<1x256xf32>
    %1716 = arith.mulf %1715, %1645 : vector<1x256xf32>
    %1717 = arith.addf %1713, %1716 : vector<1x256xf32>
    %c3_918 = arith.constant 3 : index
    %c2_919 = arith.constant 2 : index
    %1718 = memref.load %arg6[%c3_918, %c2_919] : memref<4x4xf32, #tpu.memory_space<smem>>
    %1719 = vector.broadcast %1718 : f32 to vector<1x256xf32>
    %1720 = arith.mulf %1719, %1655 : vector<1x256xf32>
    %1721 = arith.addf %1717, %1720 : vector<1x256xf32>
    %c3_920 = arith.constant 3 : index
    %c3_921 = arith.constant 3 : index
    %1722 = memref.load %arg6[%c3_920, %c3_921] : memref<4x4xf32, #tpu.memory_space<smem>>
    %1723 = vector.broadcast %1722 : f32 to vector<1x256xf32>
    %1724 = arith.mulf %1723, %1665 : vector<1x256xf32>
    %1725 = arith.addf %1721, %1724 : vector<1x256xf32>
    %1726 = tpu.concatenate %1680, %1695, %1710, %1725 in 0 : vector<1x256xf32>, vector<1x256xf32>, vector<1x256xf32>, vector<1x256xf32> -> vector<4x256xf32>
    %1727 = arith.addf %1726, %24 : vector<4x256xf32>
    %c0_922 = arith.constant 0 : index
    %c0_923 = arith.constant 0 : index
    %c0_924 = arith.constant 0 : index
    %1728 = vector.load %arg11[%c0_922, %c0_923, %c0_924] : memref<1x4x256xf32, #tpu.memory_space<vmem>>, vector<1x4x256xf32>
    %1729 = vector.shape_cast %1728 : vector<1x4x256xf32> to vector<4x256xf32>
    %1730 = vector.shape_cast %1727 : vector<4x256xf32> to vector<1x4x256xf32>
    tpu.vector_store %arg11[%c0_922, %c0_923, %c0_924], %1730 {strides = array<i32>} : memref<1x4x256xf32, #tpu.memory_space<vmem>>, vector<1x4x256xf32>,
    return
  }
  func.func @transform_0(%arg0: i32) -> (i32, i32) {
    %c0_i32 = arith.constant 0 : i32
    %c0_i32_0 = arith.constant 0 : i32
    %c0_i32_1 = arith.constant 0 : i32
    return %c0_i32, %c0_i32_0 : i32, i32
  }
  func.func @transform_1(%arg0: i32) -> (i32, i32) {
    %c0_i32 = arith.constant 0 : i32
    %c0_i32_0 = arith.constant 0 : i32
    %c0_i32_1 = arith.constant 0 : i32
    return %c0_i32, %c0_i32_0 : i32, i32
  }
  func.func @transform_2(%arg0: i32) -> (i32, i32) {
    %c0_i32 = arith.constant 0 : i32
    %c0_i32_0 = arith.constant 0 : i32
    %c0_i32_1 = arith.constant 0 : i32
    return %c0_i32, %c0_i32_0 : i32, i32
  }
  func.func @transform_3(%arg0: i32) -> (i32, i32) {
    %c0_i32 = arith.constant 0 : i32
    %c0_i32_0 = arith.constant 0 : i32
    %c0_i32_1 = arith.constant 0 : i32
    return %c0_i32, %c0_i32_0 : i32, i32
  }
  func.func @transform_4(%arg0: i32) -> (i32, i32) {
    %c0_i32 = arith.constant 0 : i32
    %c0_i32_0 = arith.constant 0 : i32
    %c0_i32_1 = arith.constant 0 : i32
    return %c0_i32, %c0_i32_0 : i32, i32
  }
  func.func @transform_5(%arg0: i32) -> (i32, i32) {
    %c0_i32 = arith.constant 0 : i32
    %c0_i32_0 = arith.constant 0 : i32
    %c0_i32_1 = arith.constant 0 : i32
    return %c0_i32, %c0_i32_0 : i32, i32
  }
  func.func @transform_6(%arg0: i32) -> (i32, i32) {
    %c0_i32 = arith.constant 0 : i32
    %c0_i32_0 = arith.constant 0 : i32
    %c0_i32_1 = arith.constant 0 : i32
    return %c0_i32, %c0_i32_0 : i32, i32
  }
  func.func @transform_7(%arg0: i32) -> (i32, i32) {
    %c0_i32 = arith.constant 0 : i32
    %c0_i32_0 = arith.constant 0 : i32
    %c0_i32_1 = arith.constant 0 : i32
    return %c0_i32, %c0_i32_0 : i32, i32
  }
  func.func @transform_8(%arg0: i32) -> (i32, i32, i32) {
    %c0_i32 = arith.constant 0 : i32
    %c0_i32_0 = arith.constant 0 : i32
    %c0_i32_1 = arith.constant 0 : i32
    return %arg0, %c0_i32, %c0_i32_0 : i32, i32, i32
  }
  func.func @transform_9(%arg0: i32) -> (i32, i32, i32) {
    %c0_i32 = arith.constant 0 : i32
    %c0_i32_0 = arith.constant 0 : i32
    %c0_i32_1 = arith.constant 0 : i32
    return %arg0, %c0_i32, %c0_i32_0 : i32, i32, i32
  }
  func.func @transform_10(%arg0: i32) -> (i32, i32, i32) {
    %c0_i32 = arith.constant 0 : i32
    %c0_i32_0 = arith.constant 0 : i32
    %c0_i32_1 = arith.constant 0 : i32
    return %arg0, %c0_i32, %c0_i32_0 : i32, i32, i32
  }
}

</mosaic_0001>

<llo_original>
// kernel: tpu_custom_call.1
$region0: #{tpu_custom_call.1}
  #allocation0 [shape = 'u32[]', space=smem, size = 0x4, offset = 0x4, fixed_abs, tag = 'smem constant byte address 0x4 - core index']
  #allocation1 [shape = 'u32[144,128]{1,0:T(1,128)}', space=vmem, size = 0x12000, scoped, tag = 'internal scratch']
  #allocation2 [shape = 'f32[8,512]{1,0:T(8,128)}', space=vmem, size = 0x4000, scoped, tag = 'scratch operand']
  %s0 = inlined_call_operand.hbm [shape: f32[4,4], index: 0, kind: input, shape index: {}]
  %s1 = inlined_call_operand.hbm [shape: f32[4,36], index: 1, kind: input, shape index: {}]
  %s2 = inlined_call_operand.hbm [shape: f32[4,4], index: 2, kind: input, shape index: {}]
  %s3 = inlined_call_operand.hbm [shape: f32[4,36], index: 3, kind: input, shape index: {}]
  %s4 = inlined_call_operand.hbm [shape: f32[4,4], index: 4, kind: input, shape index: {}]
  %s5 = inlined_call_operand.hbm [shape: f32[4,4], index: 5, kind: input, shape index: {}]
  %s6 = inlined_call_operand.vmem [shape: f32[1,4], index: 6, kind: input, shape index: {}]
  %s7 = inlined_call_operand.vmem [shape: f32[2,1], index: 7, kind: input, shape index: {}]
  %s8 = inlined_call_operand.vmem [shape: f32[2,4,256], index: 8, kind: input, shape index: {}]
  %s9 = inlined_call_operand.vmem [shape: f32[2,4,256], index: 9, kind: input, shape index: {}]
  %s10 = inlined_call_operand.hbm [shape: f32[2,4,256], index: 10, kind: output, shape index: {}]
  %s11 = sld [smem:[#allocation0]]
  $region105: #{tpu_custom_call.1} parent=0
    _
  %s13 = ssub.s32 1, %s11
  %s14 = scalar_select 0, %s13, %s11
  $region1: #{tpu_custom_call.1} parent=0
    #allocation3 [shape = 'u8[2048]{0}', space=smem, size = 0x800, scoped, tag = 'input window, operand 0, single buffered']
    #allocation4 [shape = 's32[2]{0}', space=sflag, size = 0x8, scoped, tag = 'scoped memory for tpu_custom_call.1']
    #allocation5 [shape = 's32[2]{0}', space=sflag, size = 0x8, scoped, tag = 'scoped memory for tpu_custom_call.1']
    #allocation6 [shape = 's32[2]{0}', space=sflag, size = 0x8, scoped, tag = 'scoped memory for tpu_custom_call.1']
    #allocation7 [shape = 'u8[2048]{0}', space=smem, size = 0x800, scoped, tag = 'input window, operand 1, single buffered']
    #allocation8 [shape = 's32[1]{0}', space=sflag, size = 0x4, scoped, tag = 'scoped memory for tpu_custom_call.1']
    #allocation9 [shape = 'u8[2048]{0}', space=smem, size = 0x800, scoped, tag = 'input window, operand 2, single buffered']
    #allocation10 [shape = 'u8[2048]{0}', space=smem, size = 0x800, scoped, tag = 'input window, operand 3, single buffered']
    #allocation11 [shape = 's32[1]{0}', space=sflag, size = 0x4, scoped, tag = 'scoped memory for tpu_custom_call.1']
    #allocation12 [shape = 'u8[2048]{0}', space=smem, size = 0x800, scoped, tag = 'input window, operand 4, single buffered']
    #allocation13 [shape = 'u8[2048]{0}', space=smem, size = 0x800, scoped, tag = 'input window, operand 5, single buffered']
    #allocation14 [shape = 's32[1]{0}', space=sflag, size = 0x4, scoped, tag = 'scoped memory for tpu_custom_call.1']
    #allocation15 [shape = 'u8[512]{0}', space=smem, size = 0x200, scoped, tag = 'input window, operand 6, single buffered']
    #allocation16 [shape = 'u8[1024]{0}', space=smem, size = 0x400, scoped, tag = 'input window, operand 7, single buffered']
    #allocation17 [shape = 's32[1]{0}', space=sflag, size = 0x4, scoped, tag = 'scoped memory for tpu_custom_call.1']
    #allocation18 [shape = 'u8[8192]{0}', space=vmem, size = 0x2000, scoped, tag = 'output window, operand 0']
    %15 = vsyncpa [#allocation5], 0
    %16 = vsyncpa [#allocation8], 0
    %17 = vsyncpa [#allocation11], 0
    %18 = vsyncpa [#allocation14], 0
    %19 = vsyncpa [#allocation6], 0
    %20 = vsyncpa [#allocation17], 0
    %21 = vsyncpa [#allocation4], 0
    %s22 = scalar_lea.sflag [#allocation4], 1
    %23 = vsyncpa %s22, 0
    loop: start=0, step=1, limit=4
    $region2: #{tpu_custom_call.1} parent=1 // loop_pre_header
      _
    $region3: #{tpu_custom_call.1} parent=1 // loop_header
      %s25 = sphi 0, %s29
      %p26 = scmp.ge.s32.totalorder %s25, 4
      %s33 = sphi 0, %s33
      %s35 = sphi 0, %s33
      %s36 = sphi 0, %s35
      %s50 = sphi 0, %s36
      %s54 = sphi 0, %s54
      %s56 = sphi 0, %s54
      %s57 = sphi 0, %s56
      %s71 = sphi 0, %s57
      %s75 = sphi 0, %s75
      %s77 = sphi 0, %s75
      %s78 = sphi 0, %s77
      %s92 = sphi 0, %s78
      %s96 = sphi 0, %s96
      %s98 = sphi 0, %s96
      %s99 = sphi 0, %s98
      %s113 = sphi 0, %s99
      %s117 = sphi 0, %s117
      %s119 = sphi 0, %s117
      %s120 = sphi 0, %s119
      %s134 = sphi 0, %s120
      %s138 = sphi 0, %s138
      %s140 = sphi 0, %s138
      %s141 = sphi 0, %s140
      %s155 = sphi 0, %s141
      %s159 = sphi 0, %s159
      %s161 = sphi 0, %s159
      %s162 = sphi 0, %s161
      %s176 = sphi 0, %s162
      %s180 = sphi 0, %s180
      %s182 = sphi 0, %s180
      %s183 = sphi 0, %s182
      %s197 = sphi 0, %s183
      %s203 = sphi 0, %s205
      %s206 = sphi 0, %s203
      %s207 = sphi 0, %s206
      %s223 = sphi 0, %s207
      %s229 = sphi 0, %s231
      %s232 = sphi 0, %s229
      %s233 = sphi 0, %s232
      %s249 = sphi 0, %s233
      %s255 = sphi 0, %s257
      %s258 = sphi 0, %s255
      %s259 = sphi 0, %s258
      %s275 = sphi 0, %s259
    $region4: #{tpu_custom_call.1} parent=1 // loop_header_branch
      %28 = sbr.rel (%p26) target = $region8
    $region5: #{tpu_custom_call.1} parent=1 // loop_body
      %s30 = ssub.s32 %s25, 1
      %s31 = ssub.s32 %s25, 2
      %s32 = sadd.s32 %s25, 1
      %s34 = sadd.s32 %s33, 1
      %p37 = scmp.eq.s32.totalorder %s25, 1
      %p38 = scmp.ne.s32.totalorder %s33, %s35
      %p39 = scmp.eq.s32.totalorder %s25, 0
      %p40 = por %p38, %p39
      %p41 = scmp.ne.s32.totalorder %s33, %s35
      %p42 = scmp.eq.s32.totalorder %s30, 1
      %p43 = por %p41, %p42
      %p44 = scmp.ne.s32.totalorder %s35, %s36
      %p45 = scmp.eq.s32.totalorder %s30, 0
      %p46 = por %p44, %p45
      %p47 = scmp.ne.s32.totalorder %s35, %s36
      %p48 = scmp.eq.s32.totalorder %s31, 1
      %p49 = por %p47, %p48
      %p51 = scmp.ne.s32.totalorder %s36, %s50
      %p52 = scmp.eq.s32.totalorder %s31, 0
      %p53 = por %p51, %p52
      %s55 = sadd.s32 %s54, 1
      %p58 = scmp.eq.s32.totalorder %s25, 1
      %p59 = scmp.ne.s32.totalorder %s54, %s56
      %p60 = scmp.eq.s32.totalorder %s25, 0
      %p61 = por %p59, %p60
      %p62 = scmp.ne.s32.totalorder %s54, %s56
      %p63 = scmp.eq.s32.totalorder %s30, 1
      %p64 = por %p62, %p63
      %p65 = scmp.ne.s32.totalorder %s56, %s57
      %p66 = scmp.eq.s32.totalorder %s30, 0
      %p67 = por %p65, %p66
      %p68 = scmp.ne.s32.totalorder %s56, %s57
      %p69 = scmp.eq.s32.totalorder %s31, 1
      %p70 = por %p68, %p69
      %p72 = scmp.ne.s32.totalorder %s57, %s71
      %p73 = scmp.eq.s32.totalorder %s31, 0
      %p74 = por %p72, %p73
      %s76 = sadd.s32 %s75, 1
      %p79 = scmp.eq.s32.totalorder %s25, 1
      %p80 = scmp.ne.s32.totalorder %s75, %s77
      %p81 = scmp.eq.s32.totalorder %s25, 0
      %p82 = por %p80, %p81
      %p83 = scmp.ne.s32.totalorder %s75, %s77
      %p84 = scmp.eq.s32.totalorder %s30, 1
      %p85 = por %p83, %p84
      %p86 = scmp.ne.s32.totalorder %s77, %s78
      %p87 = scmp.eq.s32.totalorder %s30, 0
      %p88 = por %p86, %p87
      %p89 = scmp.ne.s32.totalorder %s77, %s78
      %p90 = scmp.eq.s32.totalorder %s31, 1
      %p91 = por %p89, %p90
      %p93 = scmp.ne.s32.totalorder %s78, %s92
      %p94 = scmp.eq.s32.totalorder %s31, 0
      %p95 = por %p93, %p94
      %s97 = sadd.s32 %s96, 1
      %p100 = scmp.eq.s32.totalorder %s25, 1
      %p101 = scmp.ne.s32.totalorder %s96, %s98
      %p102 = scmp.eq.s32.totalorder %s25, 0
      %p103 = por %p101, %p102
      %p104 = scmp.ne.s32.totalorder %s96, %s98
      %p105 = scmp.eq.s32.totalorder %s30, 1
      %p106 = por %p104, %p105
      %p107 = scmp.ne.s32.totalorder %s98, %s99
      %p108 = scmp.eq.s32.totalorder %s30, 0
      %p109 = por %p107, %p108
      %p110 = scmp.ne.s32.totalorder %s98, %s99
      %p111 = scmp.eq.s32.totalorder %s31, 1
      %p112 = por %p110, %p111
      %p114 = scmp.ne.s32.totalorder %s99, %s113
      %p115 = scmp.eq.s32.totalorder %s31, 0
      %p116 = por %p114, %p115
      %s118 = sadd.s32 %s117, 1
      %p121 = scmp.eq.s32.totalorder %s25, 1
      %p122 = scmp.ne.s32.totalorder %s117, %s119
      %p123 = scmp.eq.s32.totalorder %s25, 0
      %p124 = por %p122, %p123
      %p125 = scmp.ne.s32.totalorder %s117, %s119
      %p126 = scmp.eq.s32.totalorder %s30, 1
      %p127 = por %p125, %p126
      %p128 = scmp.ne.s32.totalorder %s119, %s120
      %p129 = scmp.eq.s32.totalorder %s30, 0
      %p130 = por %p128, %p129
      %p131 = scmp.ne.s32.totalorder %s119, %s120
      %p132 = scmp.eq.s32.totalorder %s31, 1
      %p133 = por %p131, %p132
      %p135 = scmp.ne.s32.totalorder %s120, %s134
      %p136 = scmp.eq.s32.totalorder %s31, 0
      %p137 = por %p135, %p136
      %s139 = sadd.s32 %s138, 1
      %p142 = scmp.eq.s32.totalorder %s25, 1
      %p143 = scmp.ne.s32.totalorder %s138, %s140
      %p144 = scmp.eq.s32.totalorder %s25, 0
      %p145 = por %p143, %p144
      %p146 = scmp.ne.s32.totalorder %s138, %s140
      %p147 = scmp.eq.s32.totalorder %s30, 1
      %p148 = por %p146, %p147
      %p149 = scmp.ne.s32.totalorder %s140, %s141
      %p150 = scmp.eq.s32.totalorder %s30, 0
      %p151 = por %p149, %p150
      %p152 = scmp.ne.s32.totalorder %s140, %s141
      %p153 = scmp.eq.s32.totalorder %s31, 1
      %p154 = por %p152, %p153
      %p156 = scmp.ne.s32.totalorder %s141, %s155
      %p157 = scmp.eq.s32.totalorder %s31, 0
      %p158 = por %p156, %p157
      %s160 = sadd.s32 %s159, 1
      %p163 = scmp.eq.s32.totalorder %s25, 1
      %p164 = scmp.ne.s32.totalorder %s159, %s161
      %p165 = scmp.eq.s32.totalorder %s25, 0
      %p166 = por %p164, %p165
      %p167 = scmp.ne.s32.totalorder %s159, %s161
      %p168 = scmp.eq.s32.totalorder %s30, 1
      %p169 = por %p167, %p168
      %p170 = scmp.ne.s32.totalorder %s161, %s162
      %p171 = scmp.eq.s32.totalorder %s30, 0
      %p172 = por %p170, %p171
      %p173 = scmp.ne.s32.totalorder %s161, %s162
      %p174 = scmp.eq.s32.totalorder %s31, 1
      %p175 = por %p173, %p174
      %p177 = scmp.ne.s32.totalorder %s162, %s176
      %p178 = scmp.eq.s32.totalorder %s31, 0
      %p179 = por %p177, %p178
      %s181 = sadd.s32 %s180, 1
      %p184 = scmp.eq.s32.totalorder %s25, 1
      %p185 = scmp.ne.s32.totalorder %s180, %s182
      %p186 = scmp.eq.s32.totalorder %s25, 0
      %p187 = por %p185, %p186
      %p188 = scmp.ne.s32.totalorder %s180, %s182
      %p189 = scmp.eq.s32.totalorder %s30, 1
      %p190 = por %p188, %p189
      %p191 = scmp.ne.s32.totalorder %s182, %s183
      %p192 = scmp.eq.s32.totalorder %s30, 0
      %p193 = por %p191, %p192
      %p194 = scmp.ne.s32.totalorder %s182, %s183
      %p195 = scmp.eq.s32.totalorder %s31, 1
      %p196 = por %p194, %p195
      %p198 = scmp.ne.s32.totalorder %s183, %s197
      %p199 = scmp.eq.s32.totalorder %s31, 0
      %p200 = por %p198, %p199
      %s201 = ssub.s32 %s25, %s32
      %p202 = scmp.eq.s32.totalorder %s201, 0
      %s204 = sadd.s32 %s203, 1
      %s205 = scalar_select %p202, %s203, %s204
      %p208 = pneg %p202
      %p209 = scmp.eq.s32.totalorder %s25, 1
      %p210 = por %p208, %p209
      %p211 = scmp.ne.s32.totalorder %s203, %s206
      %p212 = scmp.eq.s32.totalorder %s25, 0
      %p213 = por %p211, %p212
      %p214 = scmp.ne.s32.totalorder %s203, %s206
      %p215 = scmp.eq.s32.totalorder %s30, 1
      %p216 = por %p214, %p215
      %p217 = scmp.ne.s32.totalorder %s206, %s207
      %p218 = scmp.eq.s32.totalorder %s30, 0
      %p219 = por %p217, %p218
      %p220 = scmp.ne.s32.totalorder %s206, %s207
      %p221 = scmp.eq.s32.totalorder %s31, 1
      %p222 = por %p220, %p221
      %p224 = scmp.ne.s32.totalorder %s207, %s223
      %p225 = scmp.eq.s32.totalorder %s31, 0
      %p226 = por %p224, %p225
      %s227 = ssub.s32 %s25, %s32
      %p228 = scmp.eq.s32.totalorder %s227, 0
      %s230 = sadd.s32 %s229, 1
      %s231 = scalar_select %p228, %s229, %s230
      %p234 = pneg %p228
      %p235 = scmp.eq.s32.totalorder %s25, 1
      %p236 = por %p234, %p235
      %p237 = scmp.ne.s32.totalorder %s229, %s232
      %p238 = scmp.eq.s32.totalorder %s25, 0
      %p239 = por %p237, %p238
      %p240 = scmp.ne.s32.totalorder %s229, %s232
      %p241 = scmp.eq.s32.totalorder %s30, 1
      %p242 = por %p240, %p241
      %p243 = scmp.ne.s32.totalorder %s232, %s233
      %p244 = scmp.eq.s32.totalorder %s30, 0
      %p245 = por %p243, %p244
      %p246 = scmp.ne.s32.totalorder %s232, %s233
      %p247 = scmp.eq.s32.totalorder %s31, 1
      %p248 = por %p246, %p247
      %p250 = scmp.ne.s32.totalorder %s233, %s249
      %p251 = scmp.eq.s32.totalorder %s31, 0
      %p252 = por %p250, %p251
      %s253 = ssub.s32 %s25, %s32
      %p254 = scmp.eq.s32.totalorder %s253, 0
      %s256 = sadd.s32 %s255, 1
      %s257 = scalar_select %p254, %s255, %s256
      %p260 = pneg %p254
      %p261 = scmp.eq.s32.totalorder %s25, 1
      %p262 = por %p260, %p261
      %p263 = scmp.ne.s32.totalorder %s255, %s258
      %p264 = scmp.eq.s32.totalorder %s25, 0
      %p265 = por %p263, %p264
      %p266 = scmp.ne.s32.totalorder %s255, %s258
      %p267 = scmp.eq.s32.totalorder %s30, 1
      %p268 = por %p266, %p267
      %p269 = scmp.ne.s32.totalorder %s258, %s259
      %p270 = scmp.eq.s32.totalorder %s30, 0
      %p271 = por %p269, %p270
      %p272 = scmp.ne.s32.totalorder %s258, %s259
      %p273 = scmp.eq.s32.totalorder %s31, 1
      %p274 = por %p272, %p273
      %p276 = scmp.ne.s32.totalorder %s259, %s275
      %p277 = scmp.eq.s32.totalorder %s31, 0
      %p278 = por %p276, %p277
      %p279 = scmp.le.s32.totalorder 1, %s25
      %p280 = scmp.lt.s32.totalorder %s25, 3
      %p281 = pnand %p279, %p280
      %p282 = pneg %p281
      // Predicated region
      $region9: #{tpu_custom_call.1} parent=5 // pred_check
        _
      $region10: #{tpu_custom_call.1} parent=5 // pred_check_branch
        %284 = sbr.rel (%p281) target = $region12
      $region11: #{tpu_custom_call.1} parent=5 // pred_region
        %s285 = ssub.s32 %s25, 1
        // Predicated region
        $region13: #{tpu_custom_call.1} parent=11 // pred_check
          %p286 = pneg %p46
        $region14: #{tpu_custom_call.1} parent=11 // pred_check_branch
          %288 = sbr.rel (%p286) target = $region16
        $region15: #{tpu_custom_call.1} parent=11 // pred_region
          %s290 = ssub.s32 64, 64
          %291 = vsyncadd [#allocation5], %s290
          %294 = dma.hbm_to_smem %s0, 64, [#allocation3], [#allocation5]
        $region16: #{tpu_custom_call.1} parent=11 // pred_fallthru
          _
        // Predicated region
        $region17: #{tpu_custom_call.1} parent=11 // pred_check
          %p295 = pneg %p67
        $region18: #{tpu_custom_call.1} parent=11 // pred_check_branch
          %297 = sbr.rel (%p295) target = $region20
        $region19: #{tpu_custom_call.1} parent=11 // pred_region
          %s299 = ssub.s32 64, 64
          %300 = vsyncadd [#allocation8], %s299
          %303 = dma.hbm_to_smem %s1, 64, [#allocation7], [#allocation8]
        $region20: #{tpu_custom_call.1} parent=11 // pred_fallthru
          _
        // Predicated region
        $region21: #{tpu_custom_call.1} parent=11 // pred_check
          %p304 = pneg %p88
        $region22: #{tpu_custom_call.1} parent=11 // pred_check_branch
          %306 = sbr.rel (%p304) target = $region24
        $region23: #{tpu_custom_call.1} parent=11 // pred_region
          %s308 = ssub.s32 64, 64
          %309 = vsyncadd [#allocation8], %s308
          %312 = dma.hbm_to_smem %s2, 64, [#allocation9], [#allocation8]
        $region24: #{tpu_custom_call.1} parent=11 // pred_fallthru
          _
        // Predicated region
        $region25: #{tpu_custom_call.1} parent=11 // pred_check
          %p313 = pneg %p109
        $region26: #{tpu_custom_call.1} parent=11 // pred_check_branch
          %315 = sbr.rel (%p313) target = $region28
        $region27: #{tpu_custom_call.1} parent=11 // pred_region
          %s317 = ssub.s32 64, 64
          %318 = vsyncadd [#allocation11], %s317
          %321 = dma.hbm_to_smem %s3, 64, [#allocation10], [#allocation11]
        $region28: #{tpu_custom_call.1} parent=11 // pred_fallthru
          _
        // Predicated region
        $region29: #{tpu_custom_call.1} parent=11 // pred_check
          %p322 = pneg %p130
        $region30: #{tpu_custom_call.1} parent=11 // pred_check_branch
          %324 = sbr.rel (%p322) target = $region32
        $region31: #{tpu_custom_call.1} parent=11 // pred_region
          %s326 = ssub.s32 64, 64
          %327 = vsyncadd [#allocation11], %s326
          %330 = dma.hbm_to_smem %s4, 64, [#allocation12], [#allocation11]
        $region32: #{tpu_custom_call.1} parent=11 // pred_fallthru
          _
        // Predicated region
        $region33: #{tpu_custom_call.1} parent=11 // pred_check
          %p331 = pneg %p151
        $region34: #{tpu_custom_call.1} parent=11 // pred_check_branch
          %333 = sbr.rel (%p331) target = $region36
        $region35: #{tpu_custom_call.1} parent=11 // pred_region
          %s335 = ssub.s32 64, 64
          %336 = vsyncadd [#allocation14], %s335
          %339 = dma.hbm_to_smem %s5, 64, [#allocation13], [#allocation14]
        $region36: #{tpu_custom_call.1} parent=11 // pred_fallthru
          _
        // Predicated region
        $region37: #{tpu_custom_call.1} parent=11 // pred_check
          %p340 = pneg %p172
        $region38: #{tpu_custom_call.1} parent=11 // pred_check_branch
          %342 = sbr.rel (%p340) target = $region40
        $region39: #{tpu_custom_call.1} parent=11 // pred_region
          %s344 = ssub.s32 16, 16
          %345 = vsyncadd [#allocation6], %s344
          %s347 = sshll.u32 %s6, 4
          %s348 = int_to_ptr.vmem [resolvable:$true] %s347
          %350 = dma.vmem_to_smem %s348, 16, [#allocation15], [#allocation6]
        $region40: #{tpu_custom_call.1} parent=11 // pred_fallthru
          _
        // Predicated region
        $region41: #{tpu_custom_call.1} parent=11 // pred_check
          %p351 = pneg %p193
        $region42: #{tpu_custom_call.1} parent=11 // pred_check_branch
          %353 = sbr.rel (%p351) target = $region44
        $region43: #{tpu_custom_call.1} parent=11 // pred_region
          %s355 = ssub.s32 32, 32
          %356 = vsyncadd [#allocation17], %s355
          %s358 = sshll.u32 %s7, 4
          %s359 = int_to_ptr.vmem [resolvable:$true] %s358
          %361 = dma.vmem_to_smem %s359, 32, [#allocation16], [#allocation17]
        $region44: #{tpu_custom_call.1} parent=11 // pred_fallthru
          _
      $region12: #{tpu_custom_call.1} parent=5 // pred_fallthru
        _
      %p362 = scmp.lt.s32.totalorder %s25, 2
      // Predicated region
      $region45: #{tpu_custom_call.1} parent=5 // pred_check
        %p363 = pneg %p362
      $region46: #{tpu_custom_call.1} parent=5 // pred_check_branch
        %365 = sbr.rel (%p363) target = $region48
      $region47: #{tpu_custom_call.1} parent=5 // pred_region
        // Predicated region
        $region49: #{tpu_custom_call.1} parent=47 // pred_check
          %p366 = pneg %p213
        $region50: #{tpu_custom_call.1} parent=47 // pred_check_branch
          %368 = sbr.rel (%p366) target = $region52
        $region51: #{tpu_custom_call.1} parent=47 // pred_region
          %p369 = scmp.lt.s32.totalorder %s25, 1
          %s370 = scalar_select %p369, %s25, 1
          %s371 = smul.addr %s370, 2
          %s372 = smul.addr %s371, 4
          %s373 = scalar_lea.vmem %s8, %s372
        $region52: #{tpu_custom_call.1} parent=47 // pred_fallthru
          _
        // Predicated region
        $region53: #{tpu_custom_call.1} parent=47 // pred_check
          %p374 = pneg %p239
        $region54: #{tpu_custom_call.1} parent=47 // pred_check_branch
          %376 = sbr.rel (%p374) target = $region56
        $region55: #{tpu_custom_call.1} parent=47 // pred_region
          %p377 = scmp.lt.s32.totalorder %s25, 1
          %s378 = scalar_select %p377, %s25, 1
          %s379 = smul.addr %s378, 2
          %s380 = smul.addr %s379, 4
          %s381 = scalar_lea.vmem %s9, %s380
        $region56: #{tpu_custom_call.1} parent=47 // pred_fallthru
          _
      $region48: #{tpu_custom_call.1} parent=5 // pred_fallthru
        _
      %p382 = scmp.le.s32.totalorder 1, %s25
      %p383 = scmp.lt.s32.totalorder %s25, 3
      %p384 = pnand %p382, %p383
      %p385 = pneg %p384
      // Predicated region
      $region57: #{tpu_custom_call.1} parent=5 // pred_check
        _
      $region58: #{tpu_custom_call.1} parent=5 // pred_check_branch
        %387 = sbr.rel (%p384) target = $region60
      $region59: #{tpu_custom_call.1} parent=5 // pred_region
        %s388 = ssub.s32 %s25, 1
        // Predicated region
        $region61: #{tpu_custom_call.1} parent=59 // pred_check
          %p389 = pneg %p46
        $region62: #{tpu_custom_call.1} parent=59 // pred_check_branch
          %391 = sbr.rel (%p389) target = $region64
        $region63: #{tpu_custom_call.1} parent=59 // pred_region
          %392 = dma.done [#allocation5], 64
        $region64: #{tpu_custom_call.1} parent=59 // pred_fallthru
          _
        // Predicated region
        $region65: #{tpu_custom_call.1} parent=59 // pred_check
          %p393 = pneg %p67
        $region66: #{tpu_custom_call.1} parent=59 // pred_check_branch
          %395 = sbr.rel (%p393) target = $region68
        $region67: #{tpu_custom_call.1} parent=59 // pred_region
          %396 = dma.done [#allocation8], 64
        $region68: #{tpu_custom_call.1} parent=59 // pred_fallthru
          _
        // Predicated region
        $region69: #{tpu_custom_call.1} parent=59 // pred_check
          %p397 = pneg %p88
        $region70: #{tpu_custom_call.1} parent=59 // pred_check_branch
          %399 = sbr.rel (%p397) target = $region72
        $region71: #{tpu_custom_call.1} parent=59 // pred_region
          %400 = dma.done [#allocation8], 64
        $region72: #{tpu_custom_call.1} parent=59 // pred_fallthru
          _
        // Predicated region
        $region73: #{tpu_custom_call.1} parent=59 // pred_check
          %p401 = pneg %p109
        $region74: #{tpu_custom_call.1} parent=59 // pred_check_branch
          %403 = sbr.rel (%p401) target = $region76
        $region75: #{tpu_custom_call.1} parent=59 // pred_region
          %404 = dma.done [#allocation11], 64
        $region76: #{tpu_custom_call.1} parent=59 // pred_fallthru
          _
        // Predicated region
        $region77: #{tpu_custom_call.1} parent=59 // pred_check
          %p405 = pneg %p130
        $region78: #{tpu_custom_call.1} parent=59 // pred_check_branch
          %407 = sbr.rel (%p405) target = $region80
        $region79: #{tpu_custom_call.1} parent=59 // pred_region
          %408 = dma.done [#allocation11], 64
        $region80: #{tpu_custom_call.1} parent=59 // pred_fallthru
          _
        // Predicated region
        $region81: #{tpu_custom_call.1} parent=59 // pred_check
          %p409 = pneg %p151
        $region82: #{tpu_custom_call.1} parent=59 // pred_check_branch
          %411 = sbr.rel (%p409) target = $region84
        $region83: #{tpu_custom_call.1} parent=59 // pred_region
          %412 = dma.done [#allocation14], 64
        $region84: #{tpu_custom_call.1} parent=59 // pred_fallthru
          _
        // Predicated region
        $region85: #{tpu_custom_call.1} parent=59 // pred_check
          %p413 = pneg %p172
        $region86: #{tpu_custom_call.1} parent=59 // pred_check_branch
          %415 = sbr.rel (%p413) target = $region88
        $region87: #{tpu_custom_call.1} parent=59 // pred_region
          %416 = dma.done [#allocation6], 16
        $region88: #{tpu_custom_call.1} parent=59 // pred_fallthru
          _
        // Predicated region
        $region89: #{tpu_custom_call.1} parent=59 // pred_check
          %p417 = pneg %p193
        $region90: #{tpu_custom_call.1} parent=59 // pred_check_branch
          %419 = sbr.rel (%p417) target = $region92
        $region91: #{tpu_custom_call.1} parent=59 // pred_region
          %420 = dma.done [#allocation17], 32
        $region92: #{tpu_custom_call.1} parent=59 // pred_fallthru
          _
        %421 = sfence
        %p422 = pneg %p46
        %p423 = pneg %p43
        %p424 = pneg %p67
        %p425 = pneg %p64
        %p426 = pneg %p88
        %p427 = pneg %p85
        %p428 = pneg %p109
        %p429 = pneg %p106
        %p430 = pneg %p130
        %p431 = pneg %p127
        %p432 = pneg %p151
        %p433 = pneg %p148
        %p434 = pneg %p172
        %p435 = pneg %p169
        %p436 = pneg %p193
        %p437 = pneg %p190
        %p438 = scmp.lt.s32.totalorder %s30, 1
        %s439 = scalar_select %p438, %s30, 1
        %s440 = smul.addr %s439, 2
        %s441 = smul.addr %s440, 4
        %s442 = scalar_lea.vmem %s8, %s441
        %p443 = pneg %p219
        %p444 = pneg %p216
        %p445 = scmp.lt.s32.totalorder %s30, 1
        %s446 = scalar_select %p445, %s30, 1
        %s447 = smul.addr %s446, 2
        %s448 = smul.addr %s447, 4
        %s449 = scalar_lea.vmem %s9, %s448
        %p450 = pneg %p245
        %p451 = pneg %p242
        %p452 = pneg %p271
        %p453 = pneg %p268
        %s454 = sand.u32 %s258, 1
        %s455 = scalar_lea.sflag [#allocation4], %s454
        %s456 = sand.u32 %s258, 1
        %s457 = smul.addr %s456, 8
        %s458 = scalar_lea.vmem [#allocation18], %s457
        %p459 = scmp.lt.s32.totalorder %s30, 1
        %s460 = scalar_select %p459, %s30, 1
        %s461 = smul.addr %s460, 2
        %s462 = smul.addr %s461, 4
        %s463 = scalar_lea.vmem %s8, %s462
        %p464 = scmp.lt.s32.totalorder %s30, 1
        %s465 = scalar_select %p464, %s30, 1
        %s466 = smul.addr %s465, 2
        %s467 = smul.addr %s466, 4
        %s468 = scalar_lea.vmem %s9, %s467
        %v469 = vlaneseq
        %v470 = vand.u32 %v469, 127
        %v471 = vadd.s32 %v470, 128
        %vm472 = vcmp.lt.s32.totalorder %v470, 0
        %v473 = vsub.s32 0, %v470
        %v474 = vsel %vm472, %v473, %v470
        %v475 = vshrl.u32 %v474, 4
        %v476 = vand.u32 %v474, 15
        %v477 = vsub.s32 0, %v476
        %v478 = vsel %vm472, %v477, %v476
        %vm479 = vcmp.lt.s32.totalorder %v471, 0
        %v480 = vsub.s32 0, %v471
        %v481 = vsel %vm479, %v480, %v471
        %v482 = vshrl.u32 %v481, 4
        %v483 = vand.u32 %v481, 15
        %v484 = vsub.s32 0, %v483
        %v485 = vsel %vm479, %v484, %v483
        %vm486 = vcmp.ne.s32.totalorder %v478, 0
        %vm487 = vcmp.ne.s32.totalorder %v485, 0
        %vm488 = vcmp.lt.s32.totalorder %v478, 0
        %vm489 = vcmp.lt.s32.totalorder %v485, 0
        %vm490 = vmand %vm488, %vm486
        %vm491 = vmand %vm489, %vm487
        %v492 = vadd.s32 %v478, 16
        %v493 = vadd.s32 %v485, 16
        %v494 = vsel %vm490, %v492, %v478
        %v495 = vsel %vm491, %v493, %v485
        %vm496 = vcmp.gt.s32.totalorder %v494, 0
        %vm497 = vcmp.gt.s32.totalorder %v495, 0
        %vm498 = vcmp.lt.s32.totalorder %v494, 15
        %vm499 = vcmp.lt.s32.totalorder %v495, 15
        %500 = vst [vmem:[#allocation2] sm:$0xff] 0.0
        %501 = vst [vmem:[#allocation2 + $0x8] sm:$0xff] 0.0
        %502 = vst [vmem:[#allocation2 + $0x10] sm:$0xff] 0.0
        %503 = vst [vmem:[#allocation2 + $0x18] sm:$0xff] 0.0
        %v504 = vld [vmem:[%s463] sm:$0xff]
        %v505 = vld [vmem:[%s468] sm:$0xff]
        %s506 = sld [smem:[#allocation3]]
        %v507 = vstv %s506
        %v508 = vmul.f32 %v507, %v504
        %s509 = sld [smem:[#allocation3 + $0x1]]
        %v510 = vstv %s509
        %v511 = vmul.f32 %v510, %v504
        %v513 = vrot.slane %v511, 5
        %v514 = vrot.slane %v513, 4
        %v516 = vadd.f32 %v508, %v514
        %s517 = sld [smem:[#allocation3 + $0x2]]
        %v518 = vstv %s517
        %v519 = vmul.f32 %v518, %v504
        %v521 = vrot.slane %v519, 6
        %v522 = vrot.slane %v521, 4
        %v524 = vadd.f32 %v516, %v522
        %s525 = sld [smem:[#allocation3 + $0x3]]
        %v526 = vstv %s525
        %v527 = vmul.f32 %v526, %v504
        %v529 = vrot.slane %v527, 7
        %v530 = vrot.slane %v529, 4
        %v532 = vadd.f32 %v524, %v530
        %vm533 = vcmp.ge.f32.partialorder %v532, 0.0
        %v534 = vmul.f32 %v532, 0.2
        %v535 = vsel %vm533, %v532, %v534
        %v538 = vunpack.c.l.s4 1966171168
        %v539 = vunpack.c.0.s8 %v538
        %v540 = vlaneseq
        %v541 = vshrl.u32 %v540, 7
        %v542 = vsub.s32 %v539, %v541
        %v543 = vrot.slane %v535, %v542
        %v545 = vunpack.c.l.s4 1966171168
        %v546 = vunpack.c.0.s8 %v545
        %v547 = vlaneseq
        %v548 = vshrl.u32 %v547, 7
        %v549 = vsub.s32 %v546, %v548
        %v550 = vrot.slane %v543, %v549
        %v552 = vlaneseq
        %vm553 = vcmp.ge.s32.totalorder %v552, 0
        %vm554 = vcmp.lt.s32.totalorder %v552, 256
        %vm555 = vmand %vm553, %vm554
        %s556 = scalar_lea.vmem [#allocation2], 8
        %557 = vst.msk [vmem:[%s556] ss:$8 sm:$0x3] %vm555, %v550
        %558 = vst.msk [vmem:[%s556] ss:$8 sm:$0x0] %vm555, %v550
        %v559 = vlaneseq
        %v560 = vshrl.u32 %v559, 7
        %v561 = vsub.s32 0, %v560
        %v562 = vrot.slane %v535, %v561
        %v563 = vlaneseq
        %v564 = vshrl.u32 %v563, 7
        %v565 = vsub.s32 4, %v564
        %v566 = vrot.slane %v535, %v565
        %vm569 = vcmask 1040384
        %v570 = vsel %vm569, %v562, 0.0
        %v571 = vsel %vm569, %v566, 0.0
        %v572 = vadd.f32 %v570, %v571
        %573 = vadd.xlane.f32.xlu0 %v572
        %v574 = vpop.xlane.xlu0 %573
        %v575 = vmul.f32 %v574, 0.00390625
        %s576 = sld [smem:[#allocation3 + $0x80]]
        %v577 = vstv %s576
        %v578 = vmul.f32 %v577, %v504
        %s579 = sld [smem:[#allocation3 + $0x81]]
        %v580 = vstv %s579
        %v581 = vmul.f32 %v580, %v504
        %v583 = vrot.slane %v581, 5
        %v584 = vrot.slane %v583, 4
        %v586 = vadd.f32 %v578, %v584
        %s587 = sld [smem:[#allocation3 + $0x82]]
        %v588 = vstv %s587
        %v589 = vmul.f32 %v588, %v504
        %v591 = vrot.slane %v589, 6
        %v592 = vrot.slane %v591, 4
        %v594 = vadd.f32 %v586, %v592
        %s595 = sld [smem:[#allocation3 + $0x83]]
        %v596 = vstv %s595
        %v597 = vmul.f32 %v596, %v504
        %v599 = vrot.slane %v597, 7
        %v600 = vrot.slane %v599, 4
        %v602 = vadd.f32 %v594, %v600
        %vm603 = vcmp.ge.f32.partialorder %v602, 0.0
        %v604 = vmul.f32 %v602, 0.2
        %v605 = vsel %vm603, %v602, %v604
        %v608 = vunpack.c.l.s4 1966171168
        %v609 = vunpack.c.0.s8 %v608
        %v610 = vlaneseq
        %v611 = vshrl.u32 %v610, 7
        %v612 = vsub.s32 %v609, %v611
        %v613 = vrot.slane %v605, %v612
        %v615 = vunpack.c.l.s4 1966171168
        %v616 = vunpack.c.0.s8 %v615
        %v617 = vlaneseq
        %v618 = vshrl.u32 %v617, 7
        %v619 = vsub.s32 %v616, %v618
        %v620 = vrot.slane %v613, %v619
        %s622 = scalar_lea.vmem [#allocation2], 9
        %623 = vst.msk [vmem:[%s622] ss:$8 sm:$0x3] %vm555, %v620
        %624 = vst.msk [vmem:[%s622] ss:$8 sm:$0x0] %vm555, %v620
        %v625 = vlaneseq
        %v626 = vshrl.u32 %v625, 7
        %v627 = vsub.s32 0, %v626
        %v628 = vrot.slane %v605, %v627
        %v629 = vlaneseq
        %v630 = vshrl.u32 %v629, 7
        %v631 = vsub.s32 4, %v630
        %v632 = vrot.slane %v605, %v631
        %v635 = vsel %vm569, %v628, 0.0
        %v636 = vsel %vm569, %v632, 0.0
        %v637 = vadd.f32 %v635, %v636
        %638 = vadd.xlane.f32.xlu0 %v637
        %v639 = vpop.xlane.xlu0 %638
        %v640 = vmul.f32 %v639, 0.00390625
        %s641 = sld [smem:[#allocation3 + $0x100]]
        %v642 = vstv %s641
        %v643 = vmul.f32 %v642, %v504
        %s644 = sld [smem:[#allocation3 + $0x101]]
        %v645 = vstv %s644
        %v646 = vmul.f32 %v645, %v504
        %v648 = vrot.slane %v646, 5
        %v649 = vrot.slane %v648, 4
        %v651 = vadd.f32 %v643, %v649
        %s652 = sld [smem:[#allocation3 + $0x102]]
        %v653 = vstv %s652
        %v654 = vmul.f32 %v653, %v504
        %v656 = vrot.slane %v654, 6
        %v657 = vrot.slane %v656, 4
        %v659 = vadd.f32 %v651, %v657
        %s660 = sld [smem:[#allocation3 + $0x103]]
        %v661 = vstv %s660
        %v662 = vmul.f32 %v661, %v504
        %v664 = vrot.slane %v662, 7
        %v665 = vrot.slane %v664, 4
        %v667 = vadd.f32 %v659, %v665
        %vm668 = vcmp.ge.f32.partialorder %v667, 0.0
        %v669 = vmul.f32 %v667, 0.2
        %v670 = vsel %vm668, %v667, %v669
        %v673 = vunpack.c.l.s4 1966171168
        %v674 = vunpack.c.0.s8 %v673
        %v675 = vlaneseq
        %v676 = vshrl.u32 %v675, 7
        %v677 = vsub.s32 %v674, %v676
        %v678 = vrot.slane %v670, %v677
        %v680 = vunpack.c.l.s4 1966171168
        %v681 = vunpack.c.0.s8 %v680
        %v682 = vlaneseq
        %v683 = vshrl.u32 %v682, 7
        %v684 = vsub.s32 %v681, %v683
        %v685 = vrot.slane %v678, %v684
        %s687 = scalar_lea.vmem [#allocation2], 10
        %688 = vst.msk [vmem:[%s687] ss:$8 sm:$0x3] %vm555, %v685
        %689 = vst.msk [vmem:[%s687] ss:$8 sm:$0x0] %vm555, %v685
        %v690 = vlaneseq
        %v691 = vshrl.u32 %v690, 7
        %v692 = vsub.s32 0, %v691
        %v693 = vrot.slane %v670, %v692
        %v694 = vlaneseq
        %v695 = vshrl.u32 %v694, 7
        %v696 = vsub.s32 4, %v695
        %v697 = vrot.slane %v670, %v696
        %v700 = vsel %vm569, %v693, 0.0
        %v701 = vsel %vm569, %v697, 0.0
        %v702 = vadd.f32 %v700, %v701
        %703 = vadd.xlane.f32.xlu0 %v702
        %v704 = vpop.xlane.xlu0 %703
        %v705 = vmul.f32 %v704, 0.00390625
        %s706 = sld [smem:[#allocation3 + $0x180]]
        %v707 = vstv %s706
        %v708 = vmul.f32 %v707, %v504
        %s709 = sld [smem:[#allocation3 + $0x181]]
        %v710 = vstv %s709
        %v711 = vmul.f32 %v710, %v504
        %v713 = vrot.slane %v711, 5
        %v714 = vrot.slane %v713, 4
        %v716 = vadd.f32 %v708, %v714
        %s717 = sld [smem:[#allocation3 + $0x182]]
        %v718 = vstv %s717
        %v719 = vmul.f32 %v718, %v504
        %v721 = vrot.slane %v719, 6
        %v722 = vrot.slane %v721, 4
        %v724 = vadd.f32 %v716, %v722
        %s725 = sld [smem:[#allocation3 + $0x183]]
        %v726 = vstv %s725
        %v727 = vmul.f32 %v726, %v504
        %v729 = vrot.slane %v727, 7
        %v730 = vrot.slane %v729, 4
        %v732 = vadd.f32 %v724, %v730
        %vm733 = vcmp.ge.f32.partialorder %v732, 0.0
        %v734 = vmul.f32 %v732, 0.2
        %v735 = vsel %vm733, %v732, %v734
        %v738 = vunpack.c.l.s4 1966171168
        %v739 = vunpack.c.0.s8 %v738
        %v740 = vlaneseq
        %v741 = vshrl.u32 %v740, 7
        %v742 = vsub.s32 %v739, %v741
        %v743 = vrot.slane %v735, %v742
        %v745 = vunpack.c.l.s4 1966171168
        %v746 = vunpack.c.0.s8 %v745
        %v747 = vlaneseq
        %v748 = vshrl.u32 %v747, 7
        %v749 = vsub.s32 %v746, %v748
        %v750 = vrot.slane %v743, %v749
        %s752 = scalar_lea.vmem [#allocation2], 11
        %753 = vst.msk [vmem:[%s752] ss:$8 sm:$0x3] %vm555, %v750
        %754 = vst.msk [vmem:[%s752] ss:$8 sm:$0x0] %vm555, %v750
        %v755 = vlaneseq
        %v756 = vshrl.u32 %v755, 7
        %v757 = vsub.s32 0, %v756
        %v758 = vrot.slane %v735, %v757
        %v759 = vlaneseq
        %v760 = vshrl.u32 %v759, 7
        %v761 = vsub.s32 4, %v760
        %v762 = vrot.slane %v735, %v761
        %v765 = vsel %vm569, %v758, 0.0
        %v766 = vsel %vm569, %v762, 0.0
        %v767 = vadd.f32 %v765, %v766
        %768 = vadd.xlane.f32.xlu0 %v767
        %v769 = vpop.xlane.xlu0 %768
        %v770 = vmul.f32 %v769, 0.00390625
        %v773 = vunpack.c.l.s4 1966171168
        %v774 = vunpack.c.0.s8 %v773
        %v775 = vlaneseq
        %v776 = vshrl.u32 %v775, 7
        %v777 = vsub.s32 %v774, %v776
        %v778 = vrot.slane %v505, %v777
        %v780 = vunpack.c.l.s4 1966171168
        %v781 = vunpack.c.0.s8 %v780
        %v782 = vlaneseq
        %v783 = vshrl.u32 %v782, 7
        %v784 = vsub.s32 %v781, %v783
        %v785 = vrot.slane %v778, %v784
        %s787 = scalar_lea.vmem [#allocation2], 12
        %788 = vst.msk [vmem:[%s787] ss:$8 sm:$0x3] %vm555, %v785
        %789 = vst.msk [vmem:[%s787] ss:$8 sm:$0x0] %vm555, %v785
        %v790 = vcombine.high %v778, %v778
        %v792 = vunpack.c.l.s4 1966171168
        %v793 = vunpack.c.0.s8 %v792
        %v794 = vlaneseq
        %v795 = vshrl.u32 %v794, 7
        %v796 = vsub.s32 %v793, %v795
        %v797 = vrot.slane %v790, %v796
        %s799 = scalar_lea.vmem [#allocation2], 13
        %800 = vst.msk [vmem:[%s799] ss:$8 sm:$0x3] %vm555, %v797
        %801 = vst.msk [vmem:[%s799] ss:$8 sm:$0x0] %vm555, %v797
        %v802 = vcombine.high %v785, %v785
        %s804 = scalar_lea.vmem [#allocation2], 14
        %805 = vst.msk [vmem:[%s804] ss:$8 sm:$0x3] %vm555, %v802
        %806 = vst.msk [vmem:[%s804] ss:$8 sm:$0x0] %vm555, %v802
        %v807 = vcombine.high %v797, %v797
        %s809 = scalar_lea.vmem [#allocation2], 15
        %810 = vst.msk [vmem:[%s809] ss:$8 sm:$0x3] %vm555, %v807
        %811 = vst.msk [vmem:[%s809] ss:$8 sm:$0x0] %vm555, %v807
        %s812 = sld [smem:[#allocation15]]
        %v813 = vstv %s812
        %v814 = vmul.f32 %v813, %v575
        %s815 = sld [smem:[#allocation15 + $0x1]]
        %v816 = vstv %s815
        %v817 = vmul.f32 %v816, %v640
        %v818 = vadd.f32 %v814, %v817
        %s819 = sld [smem:[#allocation15 + $0x2]]
        %v820 = vstv %s819
        %v821 = vmul.f32 %v820, %v705
        %v822 = vadd.f32 %v818, %v821
        %s823 = sld [smem:[#allocation15 + $0x3]]
        %v824 = vstv %s823
        %v825 = vmul.f32 %v824, %v770
        %v826 = vadd.f32 %v822, %v825
        %v827 = vmax.f32 %v826, 0.0
        %s828 = sld [smem:[#allocation16]]
        %v829 = vstv %s828
        %v830 = vmul.f32 %v829, %v827
        %v831 = vmul.f32 %v830, 0.033333335
        %s832 = sld [smem:[#allocation16 + $0x80]]
        %v833 = vstv %s832
        %v834 = vmul.f32 %v833, %v827
        %v835 = vmul.f32 %v834, 0.033333335
        %v836 = vmax.f32 %v831, %v835
        %v837 = vsub.f32 %v831, %v836
        %v838 = vmul.f32 %v837, 1.442695
        %v839 = vpow.pop %v838
        %v840 = vsub.f32 %v835, %v836
        %v841 = vmul.f32 %v840, 1.442695
        %v842 = vpow.pop %v841
        %v843 = vadd.f32 %v839, %v842
        %v844 = vrcp.pop %v843
        %v845 = vmul.f32 %v839, %v844
        %v846 = vmul.f32 %v842, %v844
        %s847 = scalar_lea.vmem [#allocation2], 4
        %v848 = vld [vmem:[%s847] ss:$8 sm:$0x7]
        %v850 = vlaneseq
        %v851 = vshrl.u32 %v850, 7
        %v852 = vsub.s32 0, %v851
        %v853 = vrot.slane %v848, %v852
        %v854 = vlaneseq
        %v855 = vshrl.u32 %v854, 7
        %v856 = vsub.s32 1, %v855
        %v857 = vrot.slane %v848, %v856
        %v858 = vlaneseq
        %v859 = vshrl.u32 %v858, 7
        %v860 = vsub.s32 2, %v859
        %v861 = vrot.slane %v848, %v860
        %862 = vrot.lane.b32.xlu0 %v853, 17
        %v863 = vpop.permute.xlu0 %862
        %864 = vrot.lane.b32.xlu0 %v857, 17
        %v865 = vpop.permute.xlu0 %864
        %866 = vrot.lane.b32.xlu0 %v861, 17
        %v867 = vpop.permute.xlu0 %866
        %vm868 = vcmask 138240
        %v869 = vsel %vm868, %v863, %v865
        %v870 = vsel %vm868, %v865, %v867
        %v873 = vsel %vm496, %v869, 0.0
        %v874 = vsel %vm497, %v870, 0.0
        %s875 = sld [smem:[#allocation7]]
        %v876 = vstv %s875
        %v877 = vmul.f32 %v876, %v873
        %v878 = vmul.f32 %v876, %v874
        %s879 = sld [smem:[#allocation7 + $0x80]]
        %v880 = vstv %s879
        %v881 = vmul.f32 %v880, %v873
        %v882 = vmul.f32 %v880, %v874
        %s883 = sld [smem:[#allocation7 + $0x100]]
        %v884 = vstv %s883
        %v885 = vmul.f32 %v884, %v873
        %v886 = vmul.f32 %v884, %v874
        %s887 = sld [smem:[#allocation7 + $0x180]]
        %v888 = vstv %s887
        %v889 = vmul.f32 %v888, %v873
        %v890 = vmul.f32 %v888, %v874
        %s891 = sld [smem:[#allocation7 + $0x1]]
        %v892 = vstv %s891
        %v893 = vmul.f32 %v892, %v848
        %v895 = vlaneseq
        %v896 = vshrl.u32 %v895, 7
        %v897 = vsub.s32 0, %v896
        %v898 = vrot.slane %v893, %v897
        %v899 = vlaneseq
        %v900 = vshrl.u32 %v899, 7
        %v901 = vsub.s32 1, %v900
        %v902 = vrot.slane %v893, %v901
        %v903 = vlaneseq
        %v904 = vshrl.u32 %v903, 7
        %v905 = vsub.s32 2, %v904
        %v906 = vrot.slane %v893, %v905
        %907 = vrot.lane.b32.xlu0 %v898, 16
        %v908 = vpop.permute.xlu0 %907
        %909 = vrot.lane.b32.xlu0 %v902, 16
        %v910 = vpop.permute.xlu0 %909
        %911 = vrot.lane.b32.xlu0 %v906, 16
        %v912 = vpop.permute.xlu0 %911
        %vm913 = vcmask 130048
        %v914 = vsel %vm913, %v908, %v910
        %v915 = vsel %vm913, %v910, %v912
        %v918 = vadd.f32 %v877, %v914
        %v919 = vadd.f32 %v878, %v915
        %s920 = sld [smem:[#allocation7 + $0x81]]
        %v921 = vstv %s920
        %v922 = vmul.f32 %v921, %v848
        %v924 = vlaneseq
        %v925 = vshrl.u32 %v924, 7
        %v926 = vsub.s32 0, %v925
        %v927 = vrot.slane %v922, %v926
        %v928 = vlaneseq
        %v929 = vshrl.u32 %v928, 7
        %v930 = vsub.s32 1, %v929
        %v931 = vrot.slane %v922, %v930
        %v932 = vlaneseq
        %v933 = vshrl.u32 %v932, 7
        %v934 = vsub.s32 2, %v933
        %v935 = vrot.slane %v922, %v934
        %936 = vrot.lane.b32.xlu0 %v927, 16
        %v937 = vpop.permute.xlu0 %936
        %938 = vrot.lane.b32.xlu0 %v931, 16
        %v939 = vpop.permute.xlu0 %938
        %940 = vrot.lane.b32.xlu0 %v935, 16
        %v941 = vpop.permute.xlu0 %940
        %v942 = vsel %vm913, %v937, %v939
        %v943 = vsel %vm913, %v939, %v941
        %v946 = vadd.f32 %v881, %v942
        %v947 = vadd.f32 %v882, %v943
        %s948 = sld [smem:[#allocation7 + $0x101]]
        %v949 = vstv %s948
        %v950 = vmul.f32 %v949, %v848
        %v952 = vlaneseq
        %v953 = vshrl.u32 %v952, 7
        %v954 = vsub.s32 0, %v953
        %v955 = vrot.slane %v950, %v954
        %v956 = vlaneseq
        %v957 = vshrl.u32 %v956, 7
        %v958 = vsub.s32 1, %v957
        %v959 = vrot.slane %v950, %v958
        %v960 = vlaneseq
        %v961 = vshrl.u32 %v960, 7
        %v962 = vsub.s32 2, %v961
        %v963 = vrot.slane %v950, %v962
        %964 = vrot.lane.b32.xlu0 %v955, 16
        %v965 = vpop.permute.xlu0 %964
        %966 = vrot.lane.b32.xlu0 %v959, 16
        %v967 = vpop.permute.xlu0 %966
        %968 = vrot.lane.b32.xlu0 %v963, 16
        %v969 = vpop.permute.xlu0 %968
        %v970 = vsel %vm913, %v965, %v967
        %v971 = vsel %vm913, %v967, %v969
        %v974 = vadd.f32 %v885, %v970
        %v975 = vadd.f32 %v886, %v971
        %s976 = sld [smem:[#allocation7 + $0x181]]
        %v977 = vstv %s976
        %v978 = vmul.f32 %v977, %v848
        %v980 = vlaneseq
        %v981 = vshrl.u32 %v980, 7
        %v982 = vsub.s32 0, %v981
        %v983 = vrot.slane %v978, %v982
        %v984 = vlaneseq
        %v985 = vshrl.u32 %v984, 7
        %v986 = vsub.s32 1, %v985
        %v987 = vrot.slane %v978, %v986
        %v988 = vlaneseq
        %v989 = vshrl.u32 %v988, 7
        %v990 = vsub.s32 2, %v989
        %v991 = vrot.slane %v978, %v990
        %992 = vrot.lane.b32.xlu0 %v983, 16
        %v993 = vpop.permute.xlu0 %992
        %994 = vrot.lane.b32.xlu0 %v987, 16
        %v995 = vpop.permute.xlu0 %994
        %996 = vrot.lane.b32.xlu0 %v991, 16
        %v997 = vpop.permute.xlu0 %996
        %v998 = vsel %vm913, %v993, %v995
        %v999 = vsel %vm913, %v995, %v997
        %v1002 = vadd.f32 %v889, %v998
        %v1003 = vadd.f32 %v890, %v999
        %1004 = vrot.lane.b32.xlu0 %v853, 15
        %v1005 = vpop.permute.xlu0 %1004
        %1006 = vrot.lane.b32.xlu0 %v857, 15
        %v1007 = vpop.permute.xlu0 %1006
        %1008 = vrot.lane.b32.xlu0 %v861, 15
        %v1009 = vpop.permute.xlu0 %1008
        %vm1010 = vcmask 121856
        %v1011 = vsel %vm1010, %v1005, %v1007
        %v1012 = vsel %vm1010, %v1007, %v1009
        %v1015 = vsel %vm498, %v1011, 0.0
        %v1016 = vsel %vm499, %v1012, 0.0
        %s1017 = sld [smem:[#allocation7 + $0x2]]
        %v1018 = vstv %s1017
        %v1019 = vmul.f32 %v1018, %v1015
        %v1020 = vmul.f32 %v1018, %v1016
        %v1021 = vadd.f32 %v918, %v1019
        %v1022 = vadd.f32 %v919, %v1020
        %s1023 = sld [smem:[#allocation7 + $0x82]]
        %v1024 = vstv %s1023
        %v1025 = vmul.f32 %v1024, %v1015
        %v1026 = vmul.f32 %v1024, %v1016
        %v1027 = vadd.f32 %v946, %v1025
        %v1028 = vadd.f32 %v947, %v1026
        %s1029 = sld [smem:[#allocation7 + $0x102]]
        %v1030 = vstv %s1029
        %v1031 = vmul.f32 %v1030, %v1015
        %v1032 = vmul.f32 %v1030, %v1016
        %v1033 = vadd.f32 %v974, %v1031
        %v1034 = vadd.f32 %v975, %v1032
        %s1035 = sld [smem:[#allocation7 + $0x182]]
        %v1036 = vstv %s1035
        %v1037 = vmul.f32 %v1036, %v1015
        %v1038 = vmul.f32 %v1036, %v1016
        %v1039 = vadd.f32 %v1002, %v1037
        %v1040 = vadd.f32 %v1003, %v1038
        %1041 = vrot.lane.b32.xlu0 %v853, 1
        %v1042 = vpop.permute.xlu0 %1041
        %1043 = vrot.lane.b32.xlu0 %v857, 1
        %v1044 = vpop.permute.xlu0 %1043
        %1045 = vrot.lane.b32.xlu0 %v861, 1
        %v1046 = vpop.permute.xlu0 %1045
        %vm1047 = vcmask 7168
        %v1048 = vsel %vm1047, %v1042, %v1044
        %v1049 = vsel %vm1047, %v1044, %v1046
        %v1052 = vsel %vm496, %v1048, 0.0
        %v1053 = vsel %vm497, %v1049, 0.0
        %s1054 = sld [smem:[#allocation7 + $0x3]]
        %v1055 = vstv %s1054
        %v1056 = vmul.f32 %v1055, %v1052
        %v1057 = vmul.f32 %v1055, %v1053
        %v1058 = vadd.f32 %v1021, %v1056
        %v1059 = vadd.f32 %v1022, %v1057
        %s1060 = sld [smem:[#allocation7 + $0x83]]
        %v1061 = vstv %s1060
        %v1062 = vmul.f32 %v1061, %v1052
        %v1063 = vmul.f32 %v1061, %v1053
        %v1064 = vadd.f32 %v1027, %v1062
        %v1065 = vadd.f32 %v1028, %v1063
        %s1066 = sld [smem:[#allocation7 + $0x103]]
        %v1067 = vstv %s1066
        %v1068 = vmul.f32 %v1067, %v1052
        %v1069 = vmul.f32 %v1067, %v1053
        %v1070 = vadd.f32 %v1033, %v1068
        %v1071 = vadd.f32 %v1034, %v1069
        %s1072 = sld [smem:[#allocation7 + $0x183]]
        %v1073 = vstv %s1072
        %v1074 = vmul.f32 %v1073, %v1052
        %v1075 = vmul.f32 %v1073, %v1053
        %v1076 = vadd.f32 %v1039, %v1074
        %v1077 = vadd.f32 %v1040, %v1075
        %v1078 = vld [vmem:[%s787] ss:$8 sm:$0x3]
        %s1079 = sld [smem:[#allocation7 + $0x4]]
        %v1080 = vstv %s1079
        %v1081 = vmul.f32 %v1080, %v1078
        %v1083 = vlaneseq
        %v1084 = vshrl.u32 %v1083, 7
        %v1085 = vsub.s32 0, %v1084
        %v1086 = vrot.slane %v1081, %v1085
        %v1087 = vlaneseq
        %v1088 = vshrl.u32 %v1087, 7
        %v1089 = vsub.s32 1, %v1088
        %v1090 = vrot.slane %v1081, %v1089
        %v1093 = vadd.f32 %v1058, %v1086
        %v1094 = vadd.f32 %v1059, %v1090
        %s1095 = sld [smem:[#allocation7 + $0x84]]
        %v1096 = vstv %s1095
        %v1097 = vmul.f32 %v1096, %v1078
        %v1099 = vlaneseq
        %v1100 = vshrl.u32 %v1099, 7
        %v1101 = vsub.s32 0, %v1100
        %v1102 = vrot.slane %v1097, %v1101
        %v1103 = vlaneseq
        %v1104 = vshrl.u32 %v1103, 7
        %v1105 = vsub.s32 1, %v1104
        %v1106 = vrot.slane %v1097, %v1105
        %v1109 = vadd.f32 %v1064, %v1102
        %v1110 = vadd.f32 %v1065, %v1106
        %s1111 = sld [smem:[#allocation7 + $0x104]]
        %v1112 = vstv %s1111
        %v1113 = vmul.f32 %v1112, %v1078
        %v1115 = vlaneseq
        %v1116 = vshrl.u32 %v1115, 7
        %v1117 = vsub.s32 0, %v1116
        %v1118 = vrot.slane %v1113, %v1117
        %v1119 = vlaneseq
        %v1120 = vshrl.u32 %v1119, 7
        %v1121 = vsub.s32 1, %v1120
        %v1122 = vrot.slane %v1113, %v1121
        %v1125 = vadd.f32 %v1070, %v1118
        %v1126 = vadd.f32 %v1071, %v1122
        %s1127 = sld [smem:[#allocation7 + $0x184]]
        %v1128 = vstv %s1127
        %v1129 = vmul.f32 %v1128, %v1078
        %v1131 = vlaneseq
        %v1132 = vshrl.u32 %v1131, 7
        %v1133 = vsub.s32 0, %v1132
        %v1134 = vrot.slane %v1129, %v1133
        %v1135 = vlaneseq
        %v1136 = vshrl.u32 %v1135, 7
        %v1137 = vsub.s32 1, %v1136
        %v1138 = vrot.slane %v1129, %v1137
        %v1141 = vadd.f32 %v1076, %v1134
        %v1142 = vadd.f32 %v1077, %v1138
        %s1143 = scalar_lea.vmem [#allocation2], 12
        %v1144 = vld [vmem:[%s1143] ss:$8 sm:$0x7]
        %v1146 = vlaneseq
        %v1147 = vshrl.u32 %v1146, 7
        %v1148 = vsub.s32 0, %v1147
        %v1149 = vrot.slane %v1144, %v1148
        %v1150 = vlaneseq
        %v1151 = vshrl.u32 %v1150, 7
        %v1152 = vsub.s32 1, %v1151
        %v1153 = vrot.slane %v1144, %v1152
        %v1154 = vlaneseq
        %v1155 = vshrl.u32 %v1154, 7
        %v1156 = vsub.s32 2, %v1155
        %v1157 = vrot.slane %v1144, %v1156
        %1158 = vrot.lane.b32.xlu0 %v1149, 127
        %v1159 = vpop.permute.xlu0 %1158
        %1160 = vrot.lane.b32.xlu0 %v1153, 127
        %v1161 = vpop.permute.xlu0 %1160
        %1162 = vrot.lane.b32.xlu0 %v1157, 127
        %v1163 = vpop.permute.xlu0 %1162
        %vm1164 = vcmask 1039360
        %v1165 = vsel %vm1164, %v1159, %v1161
        %v1166 = vsel %vm1164, %v1161, %v1163
        %v1169 = vsel %vm498, %v1165, 0.0
        %v1170 = vsel %vm499, %v1166, 0.0
        %s1171 = sld [smem:[#allocation7 + $0x5]]
        %v1172 = vstv %s1171
        %v1173 = vmul.f32 %v1172, %v1169
        %v1174 = vmul.f32 %v1172, %v1170
        %v1175 = vadd.f32 %v1093, %v1173
        %v1176 = vadd.f32 %v1094, %v1174
        %s1177 = sld [smem:[#allocation7 + $0x85]]
        %v1178 = vstv %s1177
        %v1179 = vmul.f32 %v1178, %v1169
        %v1180 = vmul.f32 %v1178, %v1170
        %v1181 = vadd.f32 %v1109, %v1179
        %v1182 = vadd.f32 %v1110, %v1180
        %s1183 = sld [smem:[#allocation7 + $0x105]]
        %v1184 = vstv %s1183
        %v1185 = vmul.f32 %v1184, %v1169
        %v1186 = vmul.f32 %v1184, %v1170
        %v1187 = vadd.f32 %v1125, %v1185
        %v1188 = vadd.f32 %v1126, %v1186
        %s1189 = sld [smem:[#allocation7 + $0x185]]
        %v1190 = vstv %s1189
        %v1191 = vmul.f32 %v1190, %v1169
        %v1192 = vmul.f32 %v1190, %v1170
        %v1193 = vadd.f32 %v1141, %v1191
        %v1194 = vadd.f32 %v1142, %v1192
        %1195 = vrot.lane.b32.xlu0 %v1149, 113
        %v1196 = vpop.permute.xlu0 %1195
        %1197 = vrot.lane.b32.xlu0 %v1153, 113
        %v1198 = vpop.permute.xlu0 %1197
        %1199 = vrot.lane.b32.xlu0 %v1157, 113
        %v1200 = vpop.permute.xlu0 %1199
        %vm1201 = vcmask 924672
        %v1202 = vsel %vm1201, %v1196, %v1198
        %v1203 = vsel %vm1201, %v1198, %v1200
        %v1206 = vsel %vm496, %v1202, 0.0
        %v1207 = vsel %vm497, %v1203, 0.0
        %s1208 = sld [smem:[#allocation7 + $0x6]]
        %v1209 = vstv %s1208
        %v1210 = vmul.f32 %v1209, %v1206
        %v1211 = vmul.f32 %v1209, %v1207
        %v1212 = vadd.f32 %v1175, %v1210
        %v1213 = vadd.f32 %v1176, %v1211
        %s1214 = sld [smem:[#allocation7 + $0x86]]
        %v1215 = vstv %s1214
        %v1216 = vmul.f32 %v1215, %v1206
        %v1217 = vmul.f32 %v1215, %v1207
        %v1218 = vadd.f32 %v1181, %v1216
        %v1219 = vadd.f32 %v1182, %v1217
        %s1220 = sld [smem:[#allocation7 + $0x106]]
        %v1221 = vstv %s1220
        %v1222 = vmul.f32 %v1221, %v1206
        %v1223 = vmul.f32 %v1221, %v1207
        %v1224 = vadd.f32 %v1187, %v1222
        %v1225 = vadd.f32 %v1188, %v1223
        %s1226 = sld [smem:[#allocation7 + $0x186]]
        %v1227 = vstv %s1226
        %v1228 = vmul.f32 %v1227, %v1206
        %v1229 = vmul.f32 %v1227, %v1207
        %v1230 = vadd.f32 %v1193, %v1228
        %v1231 = vadd.f32 %v1194, %v1229
        %s1232 = sld [smem:[#allocation7 + $0x7]]
        %v1233 = vstv %s1232
        %v1234 = vmul.f32 %v1233, %v1144
        %v1236 = vlaneseq
        %v1237 = vshrl.u32 %v1236, 7
        %v1238 = vsub.s32 0, %v1237
        %v1239 = vrot.slane %v1234, %v1238
        %v1240 = vlaneseq
        %v1241 = vshrl.u32 %v1240, 7
        %v1242 = vsub.s32 1, %v1241
        %v1243 = vrot.slane %v1234, %v1242
        %v1244 = vlaneseq
        %v1245 = vshrl.u32 %v1244, 7
        %v1246 = vsub.s32 2, %v1245
        %v1247 = vrot.slane %v1234, %v1246
        %1248 = vrot.lane.b32.xlu0 %v1239, 112
        %v1249 = vpop.permute.xlu0 %1248
        %1250 = vrot.lane.b32.xlu0 %v1243, 112
        %v1251 = vpop.permute.xlu0 %1250
        %1252 = vrot.lane.b32.xlu0 %v1247, 112
        %v1253 = vpop.permute.xlu0 %1252
        %vm1254 = vcmask 916480
        %v1255 = vsel %vm1254, %v1249, %v1251
        %v1256 = vsel %vm1254, %v1251, %v1253
        %v1259 = vadd.f32 %v1212, %v1255
        %v1260 = vadd.f32 %v1213, %v1256
        %s1261 = sld [smem:[#allocation7 + $0x87]]
        %v1262 = vstv %s1261
        %v1263 = vmul.f32 %v1262, %v1144
        %v1265 = vlaneseq
        %v1266 = vshrl.u32 %v1265, 7
        %v1267 = vsub.s32 0, %v1266
        %v1268 = vrot.slane %v1263, %v1267
        %v1269 = vlaneseq
        %v1270 = vshrl.u32 %v1269, 7
        %v1271 = vsub.s32 1, %v1270
        %v1272 = vrot.slane %v1263, %v1271
        %v1273 = vlaneseq
        %v1274 = vshrl.u32 %v1273, 7
        %v1275 = vsub.s32 2, %v1274
        %v1276 = vrot.slane %v1263, %v1275
        %1277 = vrot.lane.b32.xlu0 %v1268, 112
        %v1278 = vpop.permute.xlu0 %1277
        %1279 = vrot.lane.b32.xlu0 %v1272, 112
        %v1280 = vpop.permute.xlu0 %1279
        %1281 = vrot.lane.b32.xlu0 %v1276, 112
        %v1282 = vpop.permute.xlu0 %1281
        %v1283 = vsel %vm1254, %v1278, %v1280
        %v1284 = vsel %vm1254, %v1280, %v1282
        %v1287 = vadd.f32 %v1218, %v1283
        %v1288 = vadd.f32 %v1219, %v1284
        %s1289 = sld [smem:[#allocation7 + $0x107]]
        %v1290 = vstv %s1289
        %v1291 = vmul.f32 %v1290, %v1144
        %v1293 = vlaneseq
        %v1294 = vshrl.u32 %v1293, 7
        %v1295 = vsub.s32 0, %v1294
        %v1296 = vrot.slane %v1291, %v1295
        %v1297 = vlaneseq
        %v1298 = vshrl.u32 %v1297, 7
        %v1299 = vsub.s32 1, %v1298
        %v1300 = vrot.slane %v1291, %v1299
        %v1301 = vlaneseq
        %v1302 = vshrl.u32 %v1301, 7
        %v1303 = vsub.s32 2, %v1302
        %v1304 = vrot.slane %v1291, %v1303
        %1305 = vrot.lane.b32.xlu0 %v1296, 112
        %v1306 = vpop.permute.xlu0 %1305
        %1307 = vrot.lane.b32.xlu0 %v1300, 112
        %v1308 = vpop.permute.xlu0 %1307
        %1309 = vrot.lane.b32.xlu0 %v1304, 112
        %v1310 = vpop.permute.xlu0 %1309
        %v1311 = vsel %vm1254, %v1306, %v1308
        %v1312 = vsel %vm1254, %v1308, %v1310
        %v1315 = vadd.f32 %v1224, %v1311
        %v1316 = vadd.f32 %v1225, %v1312
        %s1317 = sld [smem:[#allocation7 + $0x187]]
        %v1318 = vstv %s1317
        %v1319 = vmul.f32 %v1318, %v1144
        %v1321 = vlaneseq
        %v1322 = vshrl.u32 %v1321, 7
        %v1323 = vsub.s32 0, %v1322
        %v1324 = vrot.slane %v1319, %v1323
        %v1325 = vlaneseq
        %v1326 = vshrl.u32 %v1325, 7
        %v1327 = vsub.s32 1, %v1326
        %v1328 = vrot.slane %v1319, %v1327
        %v1329 = vlaneseq
        %v1330 = vshrl.u32 %v1329, 7
        %v1331 = vsub.s32 2, %v1330
        %v1332 = vrot.slane %v1319, %v1331
        %1333 = vrot.lane.b32.xlu0 %v1324, 112
        %v1334 = vpop.permute.xlu0 %1333
        %1335 = vrot.lane.b32.xlu0 %v1328, 112
        %v1336 = vpop.permute.xlu0 %1335
        %1337 = vrot.lane.b32.xlu0 %v1332, 112
        %v1338 = vpop.permute.xlu0 %1337
        %v1339 = vsel %vm1254, %v1334, %v1336
        %v1340 = vsel %vm1254, %v1336, %v1338
        %v1343 = vadd.f32 %v1230, %v1339
        %v1344 = vadd.f32 %v1231, %v1340
        %1345 = vrot.lane.b32.xlu0 %v1149, 111
        %v1346 = vpop.permute.xlu0 %1345
        %1347 = vrot.lane.b32.xlu0 %v1153, 111
        %v1348 = vpop.permute.xlu0 %1347
        %1349 = vrot.lane.b32.xlu0 %v1157, 111
        %v1350 = vpop.permute.xlu0 %1349
        %vm1351 = vcmask 908288
        %v1352 = vsel %vm1351, %v1346, %v1348
        %v1353 = vsel %vm1351, %v1348, %v1350
        %v1356 = vsel %vm498, %v1352, 0.0
        %v1357 = vsel %vm499, %v1353, 0.0
        %s1358 = sld [smem:[#allocation7 + $0x8]]
        %v1359 = vstv %s1358
        %v1360 = vmul.f32 %v1359, %v1356
        %v1361 = vmul.f32 %v1359, %v1357
        %v1362 = vadd.f32 %v1259, %v1360
        %v1363 = vadd.f32 %v1260, %v1361
        %s1364 = sld [smem:[#allocation7 + $0x88]]
        %v1365 = vstv %s1364
        %v1366 = vmul.f32 %v1365, %v1356
        %v1367 = vmul.f32 %v1365, %v1357
        %v1368 = vadd.f32 %v1287, %v1366
        %v1369 = vadd.f32 %v1288, %v1367
        %s1370 = sld [smem:[#allocation7 + $0x108]]
        %v1371 = vstv %s1370
        %v1372 = vmul.f32 %v1371, %v1356
        %v1373 = vmul.f32 %v1371, %v1357
        %v1374 = vadd.f32 %v1315, %v1372
        %v1375 = vadd.f32 %v1316, %v1373
        %s1376 = sld [smem:[#allocation7 + $0x188]]
        %v1377 = vstv %s1376
        %v1378 = vmul.f32 %v1377, %v1356
        %v1379 = vmul.f32 %v1377, %v1357
        %v1380 = vadd.f32 %v1343, %v1378
        %v1381 = vadd.f32 %v1344, %v1379
        %s1382 = scalar_lea.vmem [#allocation2], 5
        %v1383 = vld [vmem:[%s1382] ss:$8 sm:$0x7]
        %v1385 = vlaneseq
        %v1386 = vshrl.u32 %v1385, 7
        %v1387 = vsub.s32 0, %v1386
        %v1388 = vrot.slane %v1383, %v1387
        %v1389 = vlaneseq
        %v1390 = vshrl.u32 %v1389, 7
        %v1391 = vsub.s32 1, %v1390
        %v1392 = vrot.slane %v1383, %v1391
        %v1393 = vlaneseq
        %v1394 = vshrl.u32 %v1393, 7
        %v1395 = vsub.s32 2, %v1394
        %v1396 = vrot.slane %v1383, %v1395
        %1397 = vrot.lane.b32.xlu0 %v1388, 17
        %v1398 = vpop.permute.xlu0 %1397
        %1399 = vrot.lane.b32.xlu0 %v1392, 17
        %v1400 = vpop.permute.xlu0 %1399
        %1401 = vrot.lane.b32.xlu0 %v1396, 17
        %v1402 = vpop.permute.xlu0 %1401
        %v1403 = vsel %vm868, %v1398, %v1400
        %v1404 = vsel %vm868, %v1400, %v1402
        %v1407 = vsel %vm496, %v1403, 0.0
        %v1408 = vsel %vm497, %v1404, 0.0
        %s1409 = sld [smem:[#allocation7 + $0x9]]
        %v1410 = vstv %s1409
        %v1411 = vmul.f32 %v1410, %v1407
        %v1412 = vmul.f32 %v1410, %v1408
        %v1413 = vadd.f32 %v1362, %v1411
        %v1414 = vadd.f32 %v1363, %v1412
        %s1415 = sld [smem:[#allocation7 + $0x89]]
        %v1416 = vstv %s1415
        %v1417 = vmul.f32 %v1416, %v1407
        %v1418 = vmul.f32 %v1416, %v1408
        %v1419 = vadd.f32 %v1368, %v1417
        %v1420 = vadd.f32 %v1369, %v1418
        %s1421 = sld [smem:[#allocation7 + $0x109]]
        %v1422 = vstv %s1421
        %v1423 = vmul.f32 %v1422, %v1407
        %v1424 = vmul.f32 %v1422, %v1408
        %v1425 = vadd.f32 %v1374, %v1423
        %v1426 = vadd.f32 %v1375, %v1424
        %s1427 = sld [smem:[#allocation7 + $0x189]]
        %v1428 = vstv %s1427
        %v1429 = vmul.f32 %v1428, %v1407
        %v1430 = vmul.f32 %v1428, %v1408
        %v1431 = vadd.f32 %v1380, %v1429
        %v1432 = vadd.f32 %v1381, %v1430
        %s1433 = sld [smem:[#allocation7 + $0xa]]
        %v1434 = vstv %s1433
        %v1435 = vmul.f32 %v1434, %v1383
        %v1437 = vlaneseq
        %v1438 = vshrl.u32 %v1437, 7
        %v1439 = vsub.s32 0, %v1438
        %v1440 = vrot.slane %v1435, %v1439
        %v1441 = vlaneseq
        %v1442 = vshrl.u32 %v1441, 7
        %v1443 = vsub.s32 1, %v1442
        %v1444 = vrot.slane %v1435, %v1443
        %v1445 = vlaneseq
        %v1446 = vshrl.u32 %v1445, 7
        %v1447 = vsub.s32 2, %v1446
        %v1448 = vrot.slane %v1435, %v1447
        %1449 = vrot.lane.b32.xlu0 %v1440, 16
        %v1450 = vpop.permute.xlu0 %1449
        %1451 = vrot.lane.b32.xlu0 %v1444, 16
        %v1452 = vpop.permute.xlu0 %1451
        %1453 = vrot.lane.b32.xlu0 %v1448, 16
        %v1454 = vpop.permute.xlu0 %1453
        %v1455 = vsel %vm913, %v1450, %v1452
        %v1456 = vsel %vm913, %v1452, %v1454
        %v1459 = vadd.f32 %v1413, %v1455
        %v1460 = vadd.f32 %v1414, %v1456
        %s1461 = sld [smem:[#allocation7 + $0x8a]]
        %v1462 = vstv %s1461
        %v1463 = vmul.f32 %v1462, %v1383
        %v1465 = vlaneseq
        %v1466 = vshrl.u32 %v1465, 7
        %v1467 = vsub.s32 0, %v1466
        %v1468 = vrot.slane %v1463, %v1467
        %v1469 = vlaneseq
        %v1470 = vshrl.u32 %v1469, 7
        %v1471 = vsub.s32 1, %v1470
        %v1472 = vrot.slane %v1463, %v1471
        %v1473 = vlaneseq
        %v1474 = vshrl.u32 %v1473, 7
        %v1475 = vsub.s32 2, %v1474
        %v1476 = vrot.slane %v1463, %v1475
        %1477 = vrot.lane.b32.xlu0 %v1468, 16
        %v1478 = vpop.permute.xlu0 %1477
        %1479 = vrot.lane.b32.xlu0 %v1472, 16
        %v1480 = vpop.permute.xlu0 %1479
        %1481 = vrot.lane.b32.xlu0 %v1476, 16
        %v1482 = vpop.permute.xlu0 %1481
        %v1483 = vsel %vm913, %v1478, %v1480
        %v1484 = vsel %vm913, %v1480, %v1482
        %v1487 = vadd.f32 %v1419, %v1483
        %v1488 = vadd.f32 %v1420, %v1484
        %s1489 = sld [smem:[#allocation7 + $0x10a]]
        %v1490 = vstv %s1489
        %v1491 = vmul.f32 %v1490, %v1383
        %v1493 = vlaneseq
        %v1494 = vshrl.u32 %v1493, 7
        %v1495 = vsub.s32 0, %v1494
        %v1496 = vrot.slane %v1491, %v1495
        %v1497 = vlaneseq
        %v1498 = vshrl.u32 %v1497, 7
        %v1499 = vsub.s32 1, %v1498
        %v1500 = vrot.slane %v1491, %v1499
        %v1501 = vlaneseq
        %v1502 = vshrl.u32 %v1501, 7
        %v1503 = vsub.s32 2, %v1502
        %v1504 = vrot.slane %v1491, %v1503
        %1505 = vrot.lane.b32.xlu0 %v1496, 16
        %v1506 = vpop.permute.xlu0 %1505
        %1507 = vrot.lane.b32.xlu0 %v1500, 16
        %v1508 = vpop.permute.xlu0 %1507
        %1509 = vrot.lane.b32.xlu0 %v1504, 16
        %v1510 = vpop.permute.xlu0 %1509
        %v1511 = vsel %vm913, %v1506, %v1508
        %v1512 = vsel %vm913, %v1508, %v1510
        %v1515 = vadd.f32 %v1425, %v1511
        %v1516 = vadd.f32 %v1426, %v1512
        %s1517 = sld [smem:[#allocation7 + $0x18a]]
        %v1518 = vstv %s1517
        %v1519 = vmul.f32 %v1518, %v1383
        %v1521 = vlaneseq
        %v1522 = vshrl.u32 %v1521, 7
        %v1523 = vsub.s32 0, %v1522
        %v1524 = vrot.slane %v1519, %v1523
        %v1525 = vlaneseq
        %v1526 = vshrl.u32 %v1525, 7
        %v1527 = vsub.s32 1, %v1526
        %v1528 = vrot.slane %v1519, %v1527
        %v1529 = vlaneseq
        %v1530 = vshrl.u32 %v1529, 7
        %v1531 = vsub.s32 2, %v1530
        %v1532 = vrot.slane %v1519, %v1531
        %1533 = vrot.lane.b32.xlu0 %v1524, 16
        %v1534 = vpop.permute.xlu0 %1533
        %1535 = vrot.lane.b32.xlu0 %v1528, 16
        %v1536 = vpop.permute.xlu0 %1535
        %1537 = vrot.lane.b32.xlu0 %v1532, 16
        %v1538 = vpop.permute.xlu0 %1537
        %v1539 = vsel %vm913, %v1534, %v1536
        %v1540 = vsel %vm913, %v1536, %v1538
        %v1543 = vadd.f32 %v1431, %v1539
        %v1544 = vadd.f32 %v1432, %v1540
        %1545 = vrot.lane.b32.xlu0 %v1388, 15
        %v1546 = vpop.permute.xlu0 %1545
        %1547 = vrot.lane.b32.xlu0 %v1392, 15
        %v1548 = vpop.permute.xlu0 %1547
        %1549 = vrot.lane.b32.xlu0 %v1396, 15
        %v1550 = vpop.permute.xlu0 %1549
        %v1551 = vsel %vm1010, %v1546, %v1548
        %v1552 = vsel %vm1010, %v1548, %v1550
        %v1555 = vsel %vm498, %v1551, 0.0
        %v1556 = vsel %vm499, %v1552, 0.0
        %s1557 = sld [smem:[#allocation7 + $0xb]]
        %v1558 = vstv %s1557
        %v1559 = vmul.f32 %v1558, %v1555
        %v1560 = vmul.f32 %v1558, %v1556
        %v1561 = vadd.f32 %v1459, %v1559
        %v1562 = vadd.f32 %v1460, %v1560
        %s1563 = sld [smem:[#allocation7 + $0x8b]]
        %v1564 = vstv %s1563
        %v1565 = vmul.f32 %v1564, %v1555
        %v1566 = vmul.f32 %v1564, %v1556
        %v1567 = vadd.f32 %v1487, %v1565
        %v1568 = vadd.f32 %v1488, %v1566
        %s1569 = sld [smem:[#allocation7 + $0x10b]]
        %v1570 = vstv %s1569
        %v1571 = vmul.f32 %v1570, %v1555
        %v1572 = vmul.f32 %v1570, %v1556
        %v1573 = vadd.f32 %v1515, %v1571
        %v1574 = vadd.f32 %v1516, %v1572
        %s1575 = sld [smem:[#allocation7 + $0x18b]]
        %v1576 = vstv %s1575
        %v1577 = vmul.f32 %v1576, %v1555
        %v1578 = vmul.f32 %v1576, %v1556
        %v1579 = vadd.f32 %v1543, %v1577
        %v1580 = vadd.f32 %v1544, %v1578
        %1581 = vrot.lane.b32.xlu0 %v1388, 1
        %v1582 = vpop.permute.xlu0 %1581
        %1583 = vrot.lane.b32.xlu0 %v1392, 1
        %v1584 = vpop.permute.xlu0 %1583
        %1585 = vrot.lane.b32.xlu0 %v1396, 1
        %v1586 = vpop.permute.xlu0 %1585
        %v1587 = vsel %vm1047, %v1582, %v1584
        %v1588 = vsel %vm1047, %v1584, %v1586
        %v1591 = vsel %vm496, %v1587, 0.0
        %v1592 = vsel %vm497, %v1588, 0.0
        %s1593 = sld [smem:[#allocation7 + $0xc]]
        %v1594 = vstv %s1593
        %v1595 = vmul.f32 %v1594, %v1591
        %v1596 = vmul.f32 %v1594, %v1592
        %v1597 = vadd.f32 %v1561, %v1595
        %v1598 = vadd.f32 %v1562, %v1596
        %s1599 = sld [smem:[#allocation7 + $0x8c]]
        %v1600 = vstv %s1599
        %v1601 = vmul.f32 %v1600, %v1591
        %v1602 = vmul.f32 %v1600, %v1592
        %v1603 = vadd.f32 %v1567, %v1601
        %v1604 = vadd.f32 %v1568, %v1602
        %s1605 = sld [smem:[#allocation7 + $0x10c]]
        %v1606 = vstv %s1605
        %v1607 = vmul.f32 %v1606, %v1591
        %v1608 = vmul.f32 %v1606, %v1592
        %v1609 = vadd.f32 %v1573, %v1607
        %v1610 = vadd.f32 %v1574, %v1608
        %s1611 = sld [smem:[#allocation7 + $0x18c]]
        %v1612 = vstv %s1611
        %v1613 = vmul.f32 %v1612, %v1591
        %v1614 = vmul.f32 %v1612, %v1592
        %v1615 = vadd.f32 %v1579, %v1613
        %v1616 = vadd.f32 %v1580, %v1614
        %v1617 = vld [vmem:[%s799] ss:$8 sm:$0x3]
        %s1618 = sld [smem:[#allocation7 + $0xd]]
        %v1619 = vstv %s1618
        %v1620 = vmul.f32 %v1619, %v1617
        %v1622 = vlaneseq
        %v1623 = vshrl.u32 %v1622, 7
        %v1624 = vsub.s32 0, %v1623
        %v1625 = vrot.slane %v1620, %v1624
        %v1626 = vlaneseq
        %v1627 = vshrl.u32 %v1626, 7
        %v1628 = vsub.s32 1, %v1627
        %v1629 = vrot.slane %v1620, %v1628
        %v1632 = vadd.f32 %v1597, %v1625
        %v1633 = vadd.f32 %v1598, %v1629
        %s1634 = sld [smem:[#allocation7 + $0x8d]]
        %v1635 = vstv %s1634
        %v1636 = vmul.f32 %v1635, %v1617
        %v1638 = vlaneseq
        %v1639 = vshrl.u32 %v1638, 7
        %v1640 = vsub.s32 0, %v1639
        %v1641 = vrot.slane %v1636, %v1640
        %v1642 = vlaneseq
        %v1643 = vshrl.u32 %v1642, 7
        %v1644 = vsub.s32 1, %v1643
        %v1645 = vrot.slane %v1636, %v1644
        %v1648 = vadd.f32 %v1603, %v1641
        %v1649 = vadd.f32 %v1604, %v1645
        %s1650 = sld [smem:[#allocation7 + $0x10d]]
        %v1651 = vstv %s1650
        %v1652 = vmul.f32 %v1651, %v1617
        %v1654 = vlaneseq
        %v1655 = vshrl.u32 %v1654, 7
        %v1656 = vsub.s32 0, %v1655
        %v1657 = vrot.slane %v1652, %v1656
        %v1658 = vlaneseq
        %v1659 = vshrl.u32 %v1658, 7
        %v1660 = vsub.s32 1, %v1659
        %v1661 = vrot.slane %v1652, %v1660
        %v1664 = vadd.f32 %v1609, %v1657
        %v1665 = vadd.f32 %v1610, %v1661
        %s1666 = sld [smem:[#allocation7 + $0x18d]]
        %v1667 = vstv %s1666
        %v1668 = vmul.f32 %v1667, %v1617
        %v1670 = vlaneseq
        %v1671 = vshrl.u32 %v1670, 7
        %v1672 = vsub.s32 0, %v1671
        %v1673 = vrot.slane %v1668, %v1672
        %v1674 = vlaneseq
        %v1675 = vshrl.u32 %v1674, 7
        %v1676 = vsub.s32 1, %v1675
        %v1677 = vrot.slane %v1668, %v1676
        %v1680 = vadd.f32 %v1615, %v1673
        %v1681 = vadd.f32 %v1616, %v1677
        %s1682 = scalar_lea.vmem [#allocation2], 13
        %v1683 = vld [vmem:[%s1682] ss:$8 sm:$0x7]
        %v1685 = vlaneseq
        %v1686 = vshrl.u32 %v1685, 7
        %v1687 = vsub.s32 0, %v1686
        %v1688 = vrot.slane %v1683, %v1687
        %v1689 = vlaneseq
        %v1690 = vshrl.u32 %v1689, 7
        %v1691 = vsub.s32 1, %v1690
        %v1692 = vrot.slane %v1683, %v1691
        %v1693 = vlaneseq
        %v1694 = vshrl.u32 %v1693, 7
        %v1695 = vsub.s32 2, %v1694
        %v1696 = vrot.slane %v1683, %v1695
        %1697 = vrot.lane.b32.xlu0 %v1688, 127
        %v1698 = vpop.permute.xlu0 %1697
        %1699 = vrot.lane.b32.xlu0 %v1692, 127
        %v1700 = vpop.permute.xlu0 %1699
        %1701 = vrot.lane.b32.xlu0 %v1696, 127
        %v1702 = vpop.permute.xlu0 %1701
        %v1703 = vsel %vm1164, %v1698, %v1700
        %v1704 = vsel %vm1164, %v1700, %v1702
        %v1707 = vsel %vm498, %v1703, 0.0
        %v1708 = vsel %vm499, %v1704, 0.0
        %s1709 = sld [smem:[#allocation7 + $0xe]]
        %v1710 = vstv %s1709
        %v1711 = vmul.f32 %v1710, %v1707
        %v1712 = vmul.f32 %v1710, %v1708
        %v1713 = vadd.f32 %v1632, %v1711
        %v1714 = vadd.f32 %v1633, %v1712
        %s1715 = sld [smem:[#allocation7 + $0x8e]]
        %v1716 = vstv %s1715
        %v1717 = vmul.f32 %v1716, %v1707
        %v1718 = vmul.f32 %v1716, %v1708
        %v1719 = vadd.f32 %v1648, %v1717
        %v1720 = vadd.f32 %v1649, %v1718
        %s1721 = sld [smem:[#allocation7 + $0x10e]]
        %v1722 = vstv %s1721
        %v1723 = vmul.f32 %v1722, %v1707
        %v1724 = vmul.f32 %v1722, %v1708
        %v1725 = vadd.f32 %v1664, %v1723
        %v1726 = vadd.f32 %v1665, %v1724
        %s1727 = sld [smem:[#allocation7 + $0x18e]]
        %v1728 = vstv %s1727
        %v1729 = vmul.f32 %v1728, %v1707
        %v1730 = vmul.f32 %v1728, %v1708
        %v1731 = vadd.f32 %v1680, %v1729
        %v1732 = vadd.f32 %v1681, %v1730
        %1733 = vrot.lane.b32.xlu0 %v1688, 113
        %v1734 = vpop.permute.xlu0 %1733
        %1735 = vrot.lane.b32.xlu0 %v1692, 113
        %v1736 = vpop.permute.xlu0 %1735
        %1737 = vrot.lane.b32.xlu0 %v1696, 113
        %v1738 = vpop.permute.xlu0 %1737
        %v1739 = vsel %vm1201, %v1734, %v1736
        %v1740 = vsel %vm1201, %v1736, %v1738
        %v1743 = vsel %vm496, %v1739, 0.0
        %v1744 = vsel %vm497, %v1740, 0.0
        %s1745 = sld [smem:[#allocation7 + $0xf]]
        %v1746 = vstv %s1745
        %v1747 = vmul.f32 %v1746, %v1743
        %v1748 = vmul.f32 %v1746, %v1744
        %v1749 = vadd.f32 %v1713, %v1747
        %v1750 = vadd.f32 %v1714, %v1748
        %s1751 = sld [smem:[#allocation7 + $0x8f]]
        %v1752 = vstv %s1751
        %v1753 = vmul.f32 %v1752, %v1743
        %v1754 = vmul.f32 %v1752, %v1744
        %v1755 = vadd.f32 %v1719, %v1753
        %v1756 = vadd.f32 %v1720, %v1754
        %s1757 = sld [smem:[#allocation7 + $0x10f]]
        %v1758 = vstv %s1757
        %v1759 = vmul.f32 %v1758, %v1743
        %v1760 = vmul.f32 %v1758, %v1744
        %v1761 = vadd.f32 %v1725, %v1759
        %v1762 = vadd.f32 %v1726, %v1760
        %s1763 = sld [smem:[#allocation7 + $0x18f]]
        %v1764 = vstv %s1763
        %v1765 = vmul.f32 %v1764, %v1743
        %v1766 = vmul.f32 %v1764, %v1744
        %v1767 = vadd.f32 %v1731, %v1765
        %v1768 = vadd.f32 %v1732, %v1766
        %s1769 = sld [smem:[#allocation7 + $0x10]]
        %v1770 = vstv %s1769
        %v1771 = vmul.f32 %v1770, %v1683
        %v1773 = vlaneseq
        %v1774 = vshrl.u32 %v1773, 7
        %v1775 = vsub.s32 0, %v1774
        %v1776 = vrot.slane %v1771, %v1775
        %v1777 = vlaneseq
        %v1778 = vshrl.u32 %v1777, 7
        %v1779 = vsub.s32 1, %v1778
        %v1780 = vrot.slane %v1771, %v1779
        %v1781 = vlaneseq
        %v1782 = vshrl.u32 %v1781, 7
        %v1783 = vsub.s32 2, %v1782
        %v1784 = vrot.slane %v1771, %v1783
        %1785 = vrot.lane.b32.xlu0 %v1776, 112
        %v1786 = vpop.permute.xlu0 %1785
        %1787 = vrot.lane.b32.xlu0 %v1780, 112
        %v1788 = vpop.permute.xlu0 %1787
        %1789 = vrot.lane.b32.xlu0 %v1784, 112
        %v1790 = vpop.permute.xlu0 %1789
        %v1791 = vsel %vm1254, %v1786, %v1788
        %v1792 = vsel %vm1254, %v1788, %v1790
        %v1795 = vadd.f32 %v1749, %v1791
        %v1796 = vadd.f32 %v1750, %v1792
        %s1797 = sld [smem:[#allocation7 + $0x90]]
        %v1798 = vstv %s1797
        %v1799 = vmul.f32 %v1798, %v1683
        %v1801 = vlaneseq
        %v1802 = vshrl.u32 %v1801, 7
        %v1803 = vsub.s32 0, %v1802
        %v1804 = vrot.slane %v1799, %v1803
        %v1805 = vlaneseq
        %v1806 = vshrl.u32 %v1805, 7
        %v1807 = vsub.s32 1, %v1806
        %v1808 = vrot.slane %v1799, %v1807
        %v1809 = vlaneseq
        %v1810 = vshrl.u32 %v1809, 7
        %v1811 = vsub.s32 2, %v1810
        %v1812 = vrot.slane %v1799, %v1811
        %1813 = vrot.lane.b32.xlu0 %v1804, 112
        %v1814 = vpop.permute.xlu0 %1813
        %1815 = vrot.lane.b32.xlu0 %v1808, 112
        %v1816 = vpop.permute.xlu0 %1815
        %1817 = vrot.lane.b32.xlu0 %v1812, 112
        %v1818 = vpop.permute.xlu0 %1817
        %v1819 = vsel %vm1254, %v1814, %v1816
        %v1820 = vsel %vm1254, %v1816, %v1818
        %v1823 = vadd.f32 %v1755, %v1819
        %v1824 = vadd.f32 %v1756, %v1820
        %s1825 = sld [smem:[#allocation7 + $0x110]]
        %v1826 = vstv %s1825
        %v1827 = vmul.f32 %v1826, %v1683
        %v1829 = vlaneseq
        %v1830 = vshrl.u32 %v1829, 7
        %v1831 = vsub.s32 0, %v1830
        %v1832 = vrot.slane %v1827, %v1831
        %v1833 = vlaneseq
        %v1834 = vshrl.u32 %v1833, 7
        %v1835 = vsub.s32 1, %v1834
        %v1836 = vrot.slane %v1827, %v1835
        %v1837 = vlaneseq
        %v1838 = vshrl.u32 %v1837, 7
        %v1839 = vsub.s32 2, %v1838
        %v1840 = vrot.slane %v1827, %v1839
        %1841 = vrot.lane.b32.xlu0 %v1832, 112
        %v1842 = vpop.permute.xlu0 %1841
        %1843 = vrot.lane.b32.xlu0 %v1836, 112
        %v1844 = vpop.permute.xlu0 %1843
        %1845 = vrot.lane.b32.xlu0 %v1840, 112
        %v1846 = vpop.permute.xlu0 %1845
        %v1847 = vsel %vm1254, %v1842, %v1844
        %v1848 = vsel %vm1254, %v1844, %v1846
        %v1851 = vadd.f32 %v1761, %v1847
        %v1852 = vadd.f32 %v1762, %v1848
        %s1853 = sld [smem:[#allocation7 + $0x190]]
        %v1854 = vstv %s1853
        %v1855 = vmul.f32 %v1854, %v1683
        %v1857 = vlaneseq
        %v1858 = vshrl.u32 %v1857, 7
        %v1859 = vsub.s32 0, %v1858
        %v1860 = vrot.slane %v1855, %v1859
        %v1861 = vlaneseq
        %v1862 = vshrl.u32 %v1861, 7
        %v1863 = vsub.s32 1, %v1862
        %v1864 = vrot.slane %v1855, %v1863
        %v1865 = vlaneseq
        %v1866 = vshrl.u32 %v1865, 7
        %v1867 = vsub.s32 2, %v1866
        %v1868 = vrot.slane %v1855, %v1867
        %1869 = vrot.lane.b32.xlu0 %v1860, 112
        %v1870 = vpop.permute.xlu0 %1869
        %1871 = vrot.lane.b32.xlu0 %v1864, 112
        %v1872 = vpop.permute.xlu0 %1871
        %1873 = vrot.lane.b32.xlu0 %v1868, 112
        %v1874 = vpop.permute.xlu0 %1873
        %v1875 = vsel %vm1254, %v1870, %v1872
        %v1876 = vsel %vm1254, %v1872, %v1874
        %v1879 = vadd.f32 %v1767, %v1875
        %v1880 = vadd.f32 %v1768, %v1876
        %1881 = vrot.lane.b32.xlu0 %v1688, 111
        %v1882 = vpop.permute.xlu0 %1881
        %1883 = vrot.lane.b32.xlu0 %v1692, 111
        %v1884 = vpop.permute.xlu0 %1883
        %1885 = vrot.lane.b32.xlu0 %v1696, 111
        %v1886 = vpop.permute.xlu0 %1885
        %v1887 = vsel %vm1351, %v1882, %v1884
        %v1888 = vsel %vm1351, %v1884, %v1886
        %v1891 = vsel %vm498, %v1887, 0.0
        %v1892 = vsel %vm499, %v1888, 0.0
        %s1893 = sld [smem:[#allocation7 + $0x11]]
        %v1894 = vstv %s1893
        %v1895 = vmul.f32 %v1894, %v1891
        %v1896 = vmul.f32 %v1894, %v1892
        %v1897 = vadd.f32 %v1795, %v1895
        %v1898 = vadd.f32 %v1796, %v1896
        %s1899 = sld [smem:[#allocation7 + $0x91]]
        %v1900 = vstv %s1899
        %v1901 = vmul.f32 %v1900, %v1891
        %v1902 = vmul.f32 %v1900, %v1892
        %v1903 = vadd.f32 %v1823, %v1901
        %v1904 = vadd.f32 %v1824, %v1902
        %s1905 = sld [smem:[#allocation7 + $0x111]]
        %v1906 = vstv %s1905
        %v1907 = vmul.f32 %v1906, %v1891
        %v1908 = vmul.f32 %v1906, %v1892
        %v1909 = vadd.f32 %v1851, %v1907
        %v1910 = vadd.f32 %v1852, %v1908
        %s1911 = sld [smem:[#allocation7 + $0x191]]
        %v1912 = vstv %s1911
        %v1913 = vmul.f32 %v1912, %v1891
        %v1914 = vmul.f32 %v1912, %v1892
        %v1915 = vadd.f32 %v1879, %v1913
        %v1916 = vadd.f32 %v1880, %v1914
        %s1917 = scalar_lea.vmem [#allocation2], 6
        %v1918 = vld [vmem:[%s1917] ss:$8 sm:$0x7]
        %v1920 = vlaneseq
        %v1921 = vshrl.u32 %v1920, 7
        %v1922 = vsub.s32 0, %v1921
        %v1923 = vrot.slane %v1918, %v1922
        %v1924 = vlaneseq
        %v1925 = vshrl.u32 %v1924, 7
        %v1926 = vsub.s32 1, %v1925
        %v1927 = vrot.slane %v1918, %v1926
        %v1928 = vlaneseq
        %v1929 = vshrl.u32 %v1928, 7
        %v1930 = vsub.s32 2, %v1929
        %v1931 = vrot.slane %v1918, %v1930
        %1932 = vrot.lane.b32.xlu0 %v1923, 17
        %v1933 = vpop.permute.xlu0 %1932
        %1934 = vrot.lane.b32.xlu0 %v1927, 17
        %v1935 = vpop.permute.xlu0 %1934
        %1936 = vrot.lane.b32.xlu0 %v1931, 17
        %v1937 = vpop.permute.xlu0 %1936
        %v1938 = vsel %vm868, %v1933, %v1935
        %v1939 = vsel %vm868, %v1935, %v1937
        %v1942 = vsel %vm496, %v1938, 0.0
        %v1943 = vsel %vm497, %v1939, 0.0
        %s1944 = sld [smem:[#allocation7 + $0x12]]
        %v1945 = vstv %s1944
        %v1946 = vmul.f32 %v1945, %v1942
        %v1947 = vmul.f32 %v1945, %v1943
        %v1948 = vadd.f32 %v1897, %v1946
        %v1949 = vadd.f32 %v1898, %v1947
        %s1950 = sld [smem:[#allocation7 + $0x92]]
        %v1951 = vstv %s1950
        %v1952 = vmul.f32 %v1951, %v1942
        %v1953 = vmul.f32 %v1951, %v1943
        %v1954 = vadd.f32 %v1903, %v1952
        %v1955 = vadd.f32 %v1904, %v1953
        %s1956 = sld [smem:[#allocation7 + $0x112]]
        %v1957 = vstv %s1956
        %v1958 = vmul.f32 %v1957, %v1942
        %v1959 = vmul.f32 %v1957, %v1943
        %v1960 = vadd.f32 %v1909, %v1958
        %v1961 = vadd.f32 %v1910, %v1959
        %s1962 = sld [smem:[#allocation7 + $0x192]]
        %v1963 = vstv %s1962
        %v1964 = vmul.f32 %v1963, %v1942
        %v1965 = vmul.f32 %v1963, %v1943
        %v1966 = vadd.f32 %v1915, %v1964
        %v1967 = vadd.f32 %v1916, %v1965
        %s1968 = sld [smem:[#allocation7 + $0x13]]
        %v1969 = vstv %s1968
        %v1970 = vmul.f32 %v1969, %v1918
        %v1972 = vlaneseq
        %v1973 = vshrl.u32 %v1972, 7
        %v1974 = vsub.s32 0, %v1973
        %v1975 = vrot.slane %v1970, %v1974
        %v1976 = vlaneseq
        %v1977 = vshrl.u32 %v1976, 7
        %v1978 = vsub.s32 1, %v1977
        %v1979 = vrot.slane %v1970, %v1978
        %v1980 = vlaneseq
        %v1981 = vshrl.u32 %v1980, 7
        %v1982 = vsub.s32 2, %v1981
        %v1983 = vrot.slane %v1970, %v1982
        %1984 = vrot.lane.b32.xlu0 %v1975, 16
        %v1985 = vpop.permute.xlu0 %1984
        %1986 = vrot.lane.b32.xlu0 %v1979, 16
        %v1987 = vpop.permute.xlu0 %1986
        %1988 = vrot.lane.b32.xlu0 %v1983, 16
        %v1989 = vpop.permute.xlu0 %1988
        %v1990 = vsel %vm913, %v1985, %v1987
        %v1991 = vsel %vm913, %v1987, %v1989
        %v1994 = vadd.f32 %v1948, %v1990
        %v1995 = vadd.f32 %v1949, %v1991
        %s1996 = sld [smem:[#allocation7 + $0x93]]
        %v1997 = vstv %s1996
        %v1998 = vmul.f32 %v1997, %v1918
        %v2000 = vlaneseq
        %v2001 = vshrl.u32 %v2000, 7
        %v2002 = vsub.s32 0, %v2001
        %v2003 = vrot.slane %v1998, %v2002
        %v2004 = vlaneseq
        %v2005 = vshrl.u32 %v2004, 7
        %v2006 = vsub.s32 1, %v2005
        %v2007 = vrot.slane %v1998, %v2006
        %v2008 = vlaneseq
        %v2009 = vshrl.u32 %v2008, 7
        %v2010 = vsub.s32 2, %v2009
        %v2011 = vrot.slane %v1998, %v2010
        %2012 = vrot.lane.b32.xlu0 %v2003, 16
        %v2013 = vpop.permute.xlu0 %2012
        %2014 = vrot.lane.b32.xlu0 %v2007, 16
        %v2015 = vpop.permute.xlu0 %2014
        %2016 = vrot.lane.b32.xlu0 %v2011, 16
        %v2017 = vpop.permute.xlu0 %2016
        %v2018 = vsel %vm913, %v2013, %v2015
        %v2019 = vsel %vm913, %v2015, %v2017
        %v2022 = vadd.f32 %v1954, %v2018
        %v2023 = vadd.f32 %v1955, %v2019
        %s2024 = sld [smem:[#allocation7 + $0x113]]
        %v2025 = vstv %s2024
        %v2026 = vmul.f32 %v2025, %v1918
        %v2028 = vlaneseq
        %v2029 = vshrl.u32 %v2028, 7
        %v2030 = vsub.s32 0, %v2029
        %v2031 = vrot.slane %v2026, %v2030
        %v2032 = vlaneseq
        %v2033 = vshrl.u32 %v2032, 7
        %v2034 = vsub.s32 1, %v2033
        %v2035 = vrot.slane %v2026, %v2034
        %v2036 = vlaneseq
        %v2037 = vshrl.u32 %v2036, 7
        %v2038 = vsub.s32 2, %v2037
        %v2039 = vrot.slane %v2026, %v2038
        %2040 = vrot.lane.b32.xlu0 %v2031, 16
        %v2041 = vpop.permute.xlu0 %2040
        %2042 = vrot.lane.b32.xlu0 %v2035, 16
        %v2043 = vpop.permute.xlu0 %2042
        %2044 = vrot.lane.b32.xlu0 %v2039, 16
        %v2045 = vpop.permute.xlu0 %2044
        %v2046 = vsel %vm913, %v2041, %v2043
        %v2047 = vsel %vm913, %v2043, %v2045
        %v2050 = vadd.f32 %v1960, %v2046
        %v2051 = vadd.f32 %v1961, %v2047
        %s2052 = sld [smem:[#allocation7 + $0x193]]
        %v2053 = vstv %s2052
        %v2054 = vmul.f32 %v2053, %v1918
        %v2056 = vlaneseq
        %v2057 = vshrl.u32 %v2056, 7
        %v2058 = vsub.s32 0, %v2057
        %v2059 = vrot.slane %v2054, %v2058
        %v2060 = vlaneseq
        %v2061 = vshrl.u32 %v2060, 7
        %v2062 = vsub.s32 1, %v2061
        %v2063 = vrot.slane %v2054, %v2062
        %v2064 = vlaneseq
        %v2065 = vshrl.u32 %v2064, 7
        %v2066 = vsub.s32 2, %v2065
        %v2067 = vrot.slane %v2054, %v2066
        %2068 = vrot.lane.b32.xlu0 %v2059, 16
        %v2069 = vpop.permute.xlu0 %2068
        %2070 = vrot.lane.b32.xlu0 %v2063, 16
        %v2071 = vpop.permute.xlu0 %2070
        %2072 = vrot.lane.b32.xlu0 %v2067, 16
        %v2073 = vpop.permute.xlu0 %2072
        %v2074 = vsel %vm913, %v2069, %v2071
        %v2075 = vsel %vm913, %v2071, %v2073
        %v2078 = vadd.f32 %v1966, %v2074
        %v2079 = vadd.f32 %v1967, %v2075
        %2080 = vrot.lane.b32.xlu0 %v1923, 15
        %v2081 = vpop.permute.xlu0 %2080
        %2082 = vrot.lane.b32.xlu0 %v1927, 15
        %v2083 = vpop.permute.xlu0 %2082
        %2084 = vrot.lane.b32.xlu0 %v1931, 15
        %v2085 = vpop.permute.xlu0 %2084
        %v2086 = vsel %vm1010, %v2081, %v2083
        %v2087 = vsel %vm1010, %v2083, %v2085
        %v2090 = vsel %vm498, %v2086, 0.0
        %v2091 = vsel %vm499, %v2087, 0.0
        %s2092 = sld [smem:[#allocation7 + $0x14]]
        %v2093 = vstv %s2092
        %v2094 = vmul.f32 %v2093, %v2090
        %v2095 = vmul.f32 %v2093, %v2091
        %v2096 = vadd.f32 %v1994, %v2094
        %v2097 = vadd.f32 %v1995, %v2095
        %s2098 = sld [smem:[#allocation7 + $0x94]]
        %v2099 = vstv %s2098
        %v2100 = vmul.f32 %v2099, %v2090
        %v2101 = vmul.f32 %v2099, %v2091
        %v2102 = vadd.f32 %v2022, %v2100
        %v2103 = vadd.f32 %v2023, %v2101
        %s2104 = sld [smem:[#allocation7 + $0x114]]
        %v2105 = vstv %s2104
        %v2106 = vmul.f32 %v2105, %v2090
        %v2107 = vmul.f32 %v2105, %v2091
        %v2108 = vadd.f32 %v2050, %v2106
        %v2109 = vadd.f32 %v2051, %v2107
        %s2110 = sld [smem:[#allocation7 + $0x194]]
        %v2111 = vstv %s2110
        %v2112 = vmul.f32 %v2111, %v2090
        %v2113 = vmul.f32 %v2111, %v2091
        %v2114 = vadd.f32 %v2078, %v2112
        %v2115 = vadd.f32 %v2079, %v2113
        %2116 = vrot.lane.b32.xlu0 %v1923, 1
        %v2117 = vpop.permute.xlu0 %2116
        %2118 = vrot.lane.b32.xlu0 %v1927, 1
        %v2119 = vpop.permute.xlu0 %2118
        %2120 = vrot.lane.b32.xlu0 %v1931, 1
        %v2121 = vpop.permute.xlu0 %2120
        %v2122 = vsel %vm1047, %v2117, %v2119
        %v2123 = vsel %vm1047, %v2119, %v2121
        %v2126 = vsel %vm496, %v2122, 0.0
        %v2127 = vsel %vm497, %v2123, 0.0
        %s2128 = sld [smem:[#allocation7 + $0x15]]
        %v2129 = vstv %s2128
        %v2130 = vmul.f32 %v2129, %v2126
        %v2131 = vmul.f32 %v2129, %v2127
        %v2132 = vadd.f32 %v2096, %v2130
        %v2133 = vadd.f32 %v2097, %v2131
        %s2134 = sld [smem:[#allocation7 + $0x95]]
        %v2135 = vstv %s2134
        %v2136 = vmul.f32 %v2135, %v2126
        %v2137 = vmul.f32 %v2135, %v2127
        %v2138 = vadd.f32 %v2102, %v2136
        %v2139 = vadd.f32 %v2103, %v2137
        %s2140 = sld [smem:[#allocation7 + $0x115]]
        %v2141 = vstv %s2140
        %v2142 = vmul.f32 %v2141, %v2126
        %v2143 = vmul.f32 %v2141, %v2127
        %v2144 = vadd.f32 %v2108, %v2142
        %v2145 = vadd.f32 %v2109, %v2143
        %s2146 = sld [smem:[#allocation7 + $0x195]]
        %v2147 = vstv %s2146
        %v2148 = vmul.f32 %v2147, %v2126
        %v2149 = vmul.f32 %v2147, %v2127
        %v2150 = vadd.f32 %v2114, %v2148
        %v2151 = vadd.f32 %v2115, %v2149
        %v2152 = vld [vmem:[%s804] ss:$8 sm:$0x3]
        %s2153 = sld [smem:[#allocation7 + $0x16]]
        %v2154 = vstv %s2153
        %v2155 = vmul.f32 %v2154, %v2152
        %v2157 = vlaneseq
        %v2158 = vshrl.u32 %v2157, 7
        %v2159 = vsub.s32 0, %v2158
        %v2160 = vrot.slane %v2155, %v2159
        %v2161 = vlaneseq
        %v2162 = vshrl.u32 %v2161, 7
        %v2163 = vsub.s32 1, %v2162
        %v2164 = vrot.slane %v2155, %v2163
        %v2167 = vadd.f32 %v2132, %v2160
        %v2168 = vadd.f32 %v2133, %v2164
        %s2169 = sld [smem:[#allocation7 + $0x96]]
        %v2170 = vstv %s2169
        %v2171 = vmul.f32 %v2170, %v2152
        %v2173 = vlaneseq
        %v2174 = vshrl.u32 %v2173, 7
        %v2175 = vsub.s32 0, %v2174
        %v2176 = vrot.slane %v2171, %v2175
        %v2177 = vlaneseq
        %v2178 = vshrl.u32 %v2177, 7
        %v2179 = vsub.s32 1, %v2178
        %v2180 = vrot.slane %v2171, %v2179
        %v2183 = vadd.f32 %v2138, %v2176
        %v2184 = vadd.f32 %v2139, %v2180
        %s2185 = sld [smem:[#allocation7 + $0x116]]
        %v2186 = vstv %s2185
        %v2187 = vmul.f32 %v2186, %v2152
        %v2189 = vlaneseq
        %v2190 = vshrl.u32 %v2189, 7
        %v2191 = vsub.s32 0, %v2190
        %v2192 = vrot.slane %v2187, %v2191
        %v2193 = vlaneseq
        %v2194 = vshrl.u32 %v2193, 7
        %v2195 = vsub.s32 1, %v2194
        %v2196 = vrot.slane %v2187, %v2195
        %v2199 = vadd.f32 %v2144, %v2192
        %v2200 = vadd.f32 %v2145, %v2196
        %s2201 = sld [smem:[#allocation7 + $0x196]]
        %v2202 = vstv %s2201
        %v2203 = vmul.f32 %v2202, %v2152
        %v2205 = vlaneseq
        %v2206 = vshrl.u32 %v2205, 7
        %v2207 = vsub.s32 0, %v2206
        %v2208 = vrot.slane %v2203, %v2207
        %v2209 = vlaneseq
        %v2210 = vshrl.u32 %v2209, 7
        %v2211 = vsub.s32 1, %v2210
        %v2212 = vrot.slane %v2203, %v2211
        %v2215 = vadd.f32 %v2150, %v2208
        %v2216 = vadd.f32 %v2151, %v2212
        %s2217 = scalar_lea.vmem [#allocation2], 14
        %v2218 = vld [vmem:[%s2217] ss:$8 sm:$0x7]
        %v2220 = vlaneseq
        %v2221 = vshrl.u32 %v2220, 7
        %v2222 = vsub.s32 0, %v2221
        %v2223 = vrot.slane %v2218, %v2222
        %v2224 = vlaneseq
        %v2225 = vshrl.u32 %v2224, 7
        %v2226 = vsub.s32 1, %v2225
        %v2227 = vrot.slane %v2218, %v2226
        %v2228 = vlaneseq
        %v2229 = vshrl.u32 %v2228, 7
        %v2230 = vsub.s32 2, %v2229
        %v2231 = vrot.slane %v2218, %v2230
        %2232 = vrot.lane.b32.xlu0 %v2223, 127
        %v2233 = vpop.permute.xlu0 %2232
        %2234 = vrot.lane.b32.xlu0 %v2227, 127
        %v2235 = vpop.permute.xlu0 %2234
        %2236 = vrot.lane.b32.xlu0 %v2231, 127
        %v2237 = vpop.permute.xlu0 %2236
        %v2238 = vsel %vm1164, %v2233, %v2235
        %v2239 = vsel %vm1164, %v2235, %v2237
        %v2242 = vsel %vm498, %v2238, 0.0
        %v2243 = vsel %vm499, %v2239, 0.0
        %s2244 = sld [smem:[#allocation7 + $0x17]]
        %v2245 = vstv %s2244
        %v2246 = vmul.f32 %v2245, %v2242
        %v2247 = vmul.f32 %v2245, %v2243
        %v2248 = vadd.f32 %v2167, %v2246
        %v2249 = vadd.f32 %v2168, %v2247
        %s2250 = sld [smem:[#allocation7 + $0x97]]
        %v2251 = vstv %s2250
        %v2252 = vmul.f32 %v2251, %v2242
        %v2253 = vmul.f32 %v2251, %v2243
        %v2254 = vadd.f32 %v2183, %v2252
        %v2255 = vadd.f32 %v2184, %v2253
        %s2256 = sld [smem:[#allocation7 + $0x117]]
        %v2257 = vstv %s2256
        %v2258 = vmul.f32 %v2257, %v2242
        %v2259 = vmul.f32 %v2257, %v2243
        %v2260 = vadd.f32 %v2199, %v2258
        %v2261 = vadd.f32 %v2200, %v2259
        %s2262 = sld [smem:[#allocation7 + $0x197]]
        %v2263 = vstv %s2262
        %v2264 = vmul.f32 %v2263, %v2242
        %v2265 = vmul.f32 %v2263, %v2243
        %v2266 = vadd.f32 %v2215, %v2264
        %v2267 = vadd.f32 %v2216, %v2265
        %2268 = vrot.lane.b32.xlu0 %v2223, 113
        %v2269 = vpop.permute.xlu0 %2268
        %2270 = vrot.lane.b32.xlu0 %v2227, 113
        %v2271 = vpop.permute.xlu0 %2270
        %2272 = vrot.lane.b32.xlu0 %v2231, 113
        %v2273 = vpop.permute.xlu0 %2272
        %v2274 = vsel %vm1201, %v2269, %v2271
        %v2275 = vsel %vm1201, %v2271, %v2273
        %v2278 = vsel %vm496, %v2274, 0.0
        %v2279 = vsel %vm497, %v2275, 0.0
        %s2280 = sld [smem:[#allocation7 + $0x18]]
        %v2281 = vstv %s2280
        %v2282 = vmul.f32 %v2281, %v2278
        %v2283 = vmul.f32 %v2281, %v2279
        %v2284 = vadd.f32 %v2248, %v2282
        %v2285 = vadd.f32 %v2249, %v2283
        %s2286 = sld [smem:[#allocation7 + $0x98]]
        %v2287 = vstv %s2286
        %v2288 = vmul.f32 %v2287, %v2278
        %v2289 = vmul.f32 %v2287, %v2279
        %v2290 = vadd.f32 %v2254, %v2288
        %v2291 = vadd.f32 %v2255, %v2289
        %s2292 = sld [smem:[#allocation7 + $0x118]]
        %v2293 = vstv %s2292
        %v2294 = vmul.f32 %v2293, %v2278
        %v2295 = vmul.f32 %v2293, %v2279
        %v2296 = vadd.f32 %v2260, %v2294
        %v2297 = vadd.f32 %v2261, %v2295
        %s2298 = sld [smem:[#allocation7 + $0x198]]
        %v2299 = vstv %s2298
        %v2300 = vmul.f32 %v2299, %v2278
        %v2301 = vmul.f32 %v2299, %v2279
        %v2302 = vadd.f32 %v2266, %v2300
        %v2303 = vadd.f32 %v2267, %v2301
        %s2304 = sld [smem:[#allocation7 + $0x19]]
        %v2305 = vstv %s2304
        %v2306 = vmul.f32 %v2305, %v2218
        %v2308 = vlaneseq
        %v2309 = vshrl.u32 %v2308, 7
        %v2310 = vsub.s32 0, %v2309
        %v2311 = vrot.slane %v2306, %v2310
        %v2312 = vlaneseq
        %v2313 = vshrl.u32 %v2312, 7
        %v2314 = vsub.s32 1, %v2313
        %v2315 = vrot.slane %v2306, %v2314
        %v2316 = vlaneseq
        %v2317 = vshrl.u32 %v2316, 7
        %v2318 = vsub.s32 2, %v2317
        %v2319 = vrot.slane %v2306, %v2318
        %2320 = vrot.lane.b32.xlu0 %v2311, 112
        %v2321 = vpop.permute.xlu0 %2320
        %2322 = vrot.lane.b32.xlu0 %v2315, 112
        %v2323 = vpop.permute.xlu0 %2322
        %2324 = vrot.lane.b32.xlu0 %v2319, 112
        %v2325 = vpop.permute.xlu0 %2324
        %v2326 = vsel %vm1254, %v2321, %v2323
        %v2327 = vsel %vm1254, %v2323, %v2325
        %v2330 = vadd.f32 %v2284, %v2326
        %v2331 = vadd.f32 %v2285, %v2327
        %s2332 = sld [smem:[#allocation7 + $0x99]]
        %v2333 = vstv %s2332
        %v2334 = vmul.f32 %v2333, %v2218
        %v2336 = vlaneseq
        %v2337 = vshrl.u32 %v2336, 7
        %v2338 = vsub.s32 0, %v2337
        %v2339 = vrot.slane %v2334, %v2338
        %v2340 = vlaneseq
        %v2341 = vshrl.u32 %v2340, 7
        %v2342 = vsub.s32 1, %v2341
        %v2343 = vrot.slane %v2334, %v2342
        %v2344 = vlaneseq
        %v2345 = vshrl.u32 %v2344, 7
        %v2346 = vsub.s32 2, %v2345
        %v2347 = vrot.slane %v2334, %v2346
        %2348 = vrot.lane.b32.xlu0 %v2339, 112
        %v2349 = vpop.permute.xlu0 %2348
        %2350 = vrot.lane.b32.xlu0 %v2343, 112
        %v2351 = vpop.permute.xlu0 %2350
        %2352 = vrot.lane.b32.xlu0 %v2347, 112
        %v2353 = vpop.permute.xlu0 %2352
        %v2354 = vsel %vm1254, %v2349, %v2351
        %v2355 = vsel %vm1254, %v2351, %v2353
        %v2358 = vadd.f32 %v2290, %v2354
        %v2359 = vadd.f32 %v2291, %v2355
        %s2360 = sld [smem:[#allocation7 + $0x119]]
        %v2361 = vstv %s2360
        %v2362 = vmul.f32 %v2361, %v2218
        %v2364 = vlaneseq
        %v2365 = vshrl.u32 %v2364, 7
        %v2366 = vsub.s32 0, %v2365
        %v2367 = vrot.slane %v2362, %v2366
        %v2368 = vlaneseq
        %v2369 = vshrl.u32 %v2368, 7
        %v2370 = vsub.s32 1, %v2369
        %v2371 = vrot.slane %v2362, %v2370
        %v2372 = vlaneseq
        %v2373 = vshrl.u32 %v2372, 7
        %v2374 = vsub.s32 2, %v2373
        %v2375 = vrot.slane %v2362, %v2374
        %2376 = vrot.lane.b32.xlu0 %v2367, 112
        %v2377 = vpop.permute.xlu0 %2376
        %2378 = vrot.lane.b32.xlu0 %v2371, 112
        %v2379 = vpop.permute.xlu0 %2378
        %2380 = vrot.lane.b32.xlu0 %v2375, 112
        %v2381 = vpop.permute.xlu0 %2380
        %v2382 = vsel %vm1254, %v2377, %v2379
        %v2383 = vsel %vm1254, %v2379, %v2381
        %v2386 = vadd.f32 %v2296, %v2382
        %v2387 = vadd.f32 %v2297, %v2383
        %s2388 = sld [smem:[#allocation7 + $0x199]]
        %v2389 = vstv %s2388
        %v2390 = vmul.f32 %v2389, %v2218
        %v2392 = vlaneseq
        %v2393 = vshrl.u32 %v2392, 7
        %v2394 = vsub.s32 0, %v2393
        %v2395 = vrot.slane %v2390, %v2394
        %v2396 = vlaneseq
        %v2397 = vshrl.u32 %v2396, 7
        %v2398 = vsub.s32 1, %v2397
        %v2399 = vrot.slane %v2390, %v2398
        %v2400 = vlaneseq
        %v2401 = vshrl.u32 %v2400, 7
        %v2402 = vsub.s32 2, %v2401
        %v2403 = vrot.slane %v2390, %v2402
        %2404 = vrot.lane.b32.xlu0 %v2395, 112
        %v2405 = vpop.permute.xlu0 %2404
        %2406 = vrot.lane.b32.xlu0 %v2399, 112
        %v2407 = vpop.permute.xlu0 %2406
        %2408 = vrot.lane.b32.xlu0 %v2403, 112
        %v2409 = vpop.permute.xlu0 %2408
        %v2410 = vsel %vm1254, %v2405, %v2407
        %v2411 = vsel %vm1254, %v2407, %v2409
        %v2414 = vadd.f32 %v2302, %v2410
        %v2415 = vadd.f32 %v2303, %v2411
        %2416 = vrot.lane.b32.xlu0 %v2223, 111
        %v2417 = vpop.permute.xlu0 %2416
        %2418 = vrot.lane.b32.xlu0 %v2227, 111
        %v2419 = vpop.permute.xlu0 %2418
        %2420 = vrot.lane.b32.xlu0 %v2231, 111
        %v2421 = vpop.permute.xlu0 %2420
        %v2422 = vsel %vm1351, %v2417, %v2419
        %v2423 = vsel %vm1351, %v2419, %v2421
        %v2426 = vsel %vm498, %v2422, 0.0
        %v2427 = vsel %vm499, %v2423, 0.0
        %s2428 = sld [smem:[#allocation7 + $0x1a]]
        %v2429 = vstv %s2428
        %v2430 = vmul.f32 %v2429, %v2426
        %v2431 = vmul.f32 %v2429, %v2427
        %v2432 = vadd.f32 %v2330, %v2430
        %v2433 = vadd.f32 %v2331, %v2431
        %s2434 = sld [smem:[#allocation7 + $0x9a]]
        %v2435 = vstv %s2434
        %v2436 = vmul.f32 %v2435, %v2426
        %v2437 = vmul.f32 %v2435, %v2427
        %v2438 = vadd.f32 %v2358, %v2436
        %v2439 = vadd.f32 %v2359, %v2437
        %s2440 = sld [smem:[#allocation7 + $0x11a]]
        %v2441 = vstv %s2440
        %v2442 = vmul.f32 %v2441, %v2426
        %v2443 = vmul.f32 %v2441, %v2427
        %v2444 = vadd.f32 %v2386, %v2442
        %v2445 = vadd.f32 %v2387, %v2443
        %s2446 = sld [smem:[#allocation7 + $0x19a]]
        %v2447 = vstv %s2446
        %v2448 = vmul.f32 %v2447, %v2426
        %v2449 = vmul.f32 %v2447, %v2427
        %v2450 = vadd.f32 %v2414, %v2448
        %v2451 = vadd.f32 %v2415, %v2449
        %s2452 = scalar_lea.vmem [#allocation2], 7
        %v2453 = vld [vmem:[%s2452] ss:$8 sm:$0x7]
        %v2455 = vlaneseq
        %v2456 = vshrl.u32 %v2455, 7
        %v2457 = vsub.s32 0, %v2456
        %v2458 = vrot.slane %v2453, %v2457
        %v2459 = vlaneseq
        %v2460 = vshrl.u32 %v2459, 7
        %v2461 = vsub.s32 1, %v2460
        %v2462 = vrot.slane %v2453, %v2461
        %v2463 = vlaneseq
        %v2464 = vshrl.u32 %v2463, 7
        %v2465 = vsub.s32 2, %v2464
        %v2466 = vrot.slane %v2453, %v2465
        %2467 = vrot.lane.b32.xlu0 %v2458, 17
        %v2468 = vpop.permute.xlu0 %2467
        %2469 = vrot.lane.b32.xlu0 %v2462, 17
        %v2470 = vpop.permute.xlu0 %2469
        %2471 = vrot.lane.b32.xlu0 %v2466, 17
        %v2472 = vpop.permute.xlu0 %2471
        %v2473 = vsel %vm868, %v2468, %v2470
        %v2474 = vsel %vm868, %v2470, %v2472
        %v2477 = vsel %vm496, %v2473, 0.0
        %v2478 = vsel %vm497, %v2474, 0.0
        %s2479 = sld [smem:[#allocation7 + $0x1b]]
        %v2480 = vstv %s2479
        %v2481 = vmul.f32 %v2480, %v2477
        %v2482 = vmul.f32 %v2480, %v2478
        %v2483 = vadd.f32 %v2432, %v2481
        %v2484 = vadd.f32 %v2433, %v2482
        %s2485 = sld [smem:[#allocation7 + $0x9b]]
        %v2486 = vstv %s2485
        %v2487 = vmul.f32 %v2486, %v2477
        %v2488 = vmul.f32 %v2486, %v2478
        %v2489 = vadd.f32 %v2438, %v2487
        %v2490 = vadd.f32 %v2439, %v2488
        %s2491 = sld [smem:[#allocation7 + $0x11b]]
        %v2492 = vstv %s2491
        %v2493 = vmul.f32 %v2492, %v2477
        %v2494 = vmul.f32 %v2492, %v2478
        %v2495 = vadd.f32 %v2444, %v2493
        %v2496 = vadd.f32 %v2445, %v2494
        %s2497 = sld [smem:[#allocation7 + $0x19b]]
        %v2498 = vstv %s2497
        %v2499 = vmul.f32 %v2498, %v2477
        %v2500 = vmul.f32 %v2498, %v2478
        %v2501 = vadd.f32 %v2450, %v2499
        %v2502 = vadd.f32 %v2451, %v2500
        %s2503 = sld [smem:[#allocation7 + $0x1c]]
        %v2504 = vstv %s2503
        %v2505 = vmul.f32 %v2504, %v2453
        %v2507 = vlaneseq
        %v2508 = vshrl.u32 %v2507, 7
        %v2509 = vsub.s32 0, %v2508
        %v2510 = vrot.slane %v2505, %v2509
        %v2511 = vlaneseq
        %v2512 = vshrl.u32 %v2511, 7
        %v2513 = vsub.s32 1, %v2512
        %v2514 = vrot.slane %v2505, %v2513
        %v2515 = vlaneseq
        %v2516 = vshrl.u32 %v2515, 7
        %v2517 = vsub.s32 2, %v2516
        %v2518 = vrot.slane %v2505, %v2517
        %2519 = vrot.lane.b32.xlu0 %v2510, 16
        %v2520 = vpop.permute.xlu0 %2519
        %2521 = vrot.lane.b32.xlu0 %v2514, 16
        %v2522 = vpop.permute.xlu0 %2521
        %2523 = vrot.lane.b32.xlu0 %v2518, 16
        %v2524 = vpop.permute.xlu0 %2523
        %v2525 = vsel %vm913, %v2520, %v2522
        %v2526 = vsel %vm913, %v2522, %v2524
        %v2529 = vadd.f32 %v2483, %v2525
        %v2530 = vadd.f32 %v2484, %v2526
        %s2531 = sld [smem:[#allocation7 + $0x9c]]
        %v2532 = vstv %s2531
        %v2533 = vmul.f32 %v2532, %v2453
        %v2535 = vlaneseq
        %v2536 = vshrl.u32 %v2535, 7
        %v2537 = vsub.s32 0, %v2536
        %v2538 = vrot.slane %v2533, %v2537
        %v2539 = vlaneseq
        %v2540 = vshrl.u32 %v2539, 7
        %v2541 = vsub.s32 1, %v2540
        %v2542 = vrot.slane %v2533, %v2541
        %v2543 = vlaneseq
        %v2544 = vshrl.u32 %v2543, 7
        %v2545 = vsub.s32 2, %v2544
        %v2546 = vrot.slane %v2533, %v2545
        %2547 = vrot.lane.b32.xlu0 %v2538, 16
        %v2548 = vpop.permute.xlu0 %2547
        %2549 = vrot.lane.b32.xlu0 %v2542, 16
        %v2550 = vpop.permute.xlu0 %2549
        %2551 = vrot.lane.b32.xlu0 %v2546, 16
        %v2552 = vpop.permute.xlu0 %2551
        %v2553 = vsel %vm913, %v2548, %v2550
        %v2554 = vsel %vm913, %v2550, %v2552
        %v2557 = vadd.f32 %v2489, %v2553
        %v2558 = vadd.f32 %v2490, %v2554
        %s2559 = sld [smem:[#allocation7 + $0x11c]]
        %v2560 = vstv %s2559
        %v2561 = vmul.f32 %v2560, %v2453
        %v2563 = vlaneseq
        %v2564 = vshrl.u32 %v2563, 7
        %v2565 = vsub.s32 0, %v2564
        %v2566 = vrot.slane %v2561, %v2565
        %v2567 = vlaneseq
        %v2568 = vshrl.u32 %v2567, 7
        %v2569 = vsub.s32 1, %v2568
        %v2570 = vrot.slane %v2561, %v2569
        %v2571 = vlaneseq
        %v2572 = vshrl.u32 %v2571, 7
        %v2573 = vsub.s32 2, %v2572
        %v2574 = vrot.slane %v2561, %v2573
        %2575 = vrot.lane.b32.xlu0 %v2566, 16
        %v2576 = vpop.permute.xlu0 %2575
        %2577 = vrot.lane.b32.xlu0 %v2570, 16
        %v2578 = vpop.permute.xlu0 %2577
        %2579 = vrot.lane.b32.xlu0 %v2574, 16
        %v2580 = vpop.permute.xlu0 %2579
        %v2581 = vsel %vm913, %v2576, %v2578
        %v2582 = vsel %vm913, %v2578, %v2580
        %v2585 = vadd.f32 %v2495, %v2581
        %v2586 = vadd.f32 %v2496, %v2582
        %s2587 = sld [smem:[#allocation7 + $0x19c]]
        %v2588 = vstv %s2587
        %v2589 = vmul.f32 %v2588, %v2453
        %v2591 = vlaneseq
        %v2592 = vshrl.u32 %v2591, 7
        %v2593 = vsub.s32 0, %v2592
        %v2594 = vrot.slane %v2589, %v2593
        %v2595 = vlaneseq
        %v2596 = vshrl.u32 %v2595, 7
        %v2597 = vsub.s32 1, %v2596
        %v2598 = vrot.slane %v2589, %v2597
        %v2599 = vlaneseq
        %v2600 = vshrl.u32 %v2599, 7
        %v2601 = vsub.s32 2, %v2600
        %v2602 = vrot.slane %v2589, %v2601
        %2603 = vrot.lane.b32.xlu0 %v2594, 16
        %v2604 = vpop.permute.xlu0 %2603
        %2605 = vrot.lane.b32.xlu0 %v2598, 16
        %v2606 = vpop.permute.xlu0 %2605
        %2607 = vrot.lane.b32.xlu0 %v2602, 16
        %v2608 = vpop.permute.xlu0 %2607
        %v2609 = vsel %vm913, %v2604, %v2606
        %v2610 = vsel %vm913, %v2606, %v2608
        %v2613 = vadd.f32 %v2501, %v2609
        %v2614 = vadd.f32 %v2502, %v2610
        %2615 = vrot.lane.b32.xlu0 %v2458, 15
        %v2616 = vpop.permute.xlu0 %2615
        %2617 = vrot.lane.b32.xlu0 %v2462, 15
        %v2618 = vpop.permute.xlu0 %2617
        %2619 = vrot.lane.b32.xlu0 %v2466, 15
        %v2620 = vpop.permute.xlu0 %2619
        %v2621 = vsel %vm1010, %v2616, %v2618
        %v2622 = vsel %vm1010, %v2618, %v2620
        %v2625 = vsel %vm498, %v2621, 0.0
        %v2626 = vsel %vm499, %v2622, 0.0
        %s2627 = sld [smem:[#allocation7 + $0x1d]]
        %v2628 = vstv %s2627
        %v2629 = vmul.f32 %v2628, %v2625
        %v2630 = vmul.f32 %v2628, %v2626
        %v2631 = vadd.f32 %v2529, %v2629
        %v2632 = vadd.f32 %v2530, %v2630
        %s2633 = sld [smem:[#allocation7 + $0x9d]]
        %v2634 = vstv %s2633
        %v2635 = vmul.f32 %v2634, %v2625
        %v2636 = vmul.f32 %v2634, %v2626
        %v2637 = vadd.f32 %v2557, %v2635
        %v2638 = vadd.f32 %v2558, %v2636
        %s2639 = sld [smem:[#allocation7 + $0x11d]]
        %v2640 = vstv %s2639
        %v2641 = vmul.f32 %v2640, %v2625
        %v2642 = vmul.f32 %v2640, %v2626
        %v2643 = vadd.f32 %v2585, %v2641
        %v2644 = vadd.f32 %v2586, %v2642
        %s2645 = sld [smem:[#allocation7 + $0x19d]]
        %v2646 = vstv %s2645
        %v2647 = vmul.f32 %v2646, %v2625
        %v2648 = vmul.f32 %v2646, %v2626
        %v2649 = vadd.f32 %v2613, %v2647
        %v2650 = vadd.f32 %v2614, %v2648
        %2651 = vrot.lane.b32.xlu0 %v2458, 1
        %v2652 = vpop.permute.xlu0 %2651
        %2653 = vrot.lane.b32.xlu0 %v2462, 1
        %v2654 = vpop.permute.xlu0 %2653
        %2655 = vrot.lane.b32.xlu0 %v2466, 1
        %v2656 = vpop.permute.xlu0 %2655
        %v2657 = vsel %vm1047, %v2652, %v2654
        %v2658 = vsel %vm1047, %v2654, %v2656
        %v2661 = vsel %vm496, %v2657, 0.0
        %v2662 = vsel %vm497, %v2658, 0.0
        %s2663 = sld [smem:[#allocation7 + $0x1e]]
        %v2664 = vstv %s2663
        %v2665 = vmul.f32 %v2664, %v2661
        %v2666 = vmul.f32 %v2664, %v2662
        %v2667 = vadd.f32 %v2631, %v2665
        %v2668 = vadd.f32 %v2632, %v2666
        %s2669 = sld [smem:[#allocation7 + $0x9e]]
        %v2670 = vstv %s2669
        %v2671 = vmul.f32 %v2670, %v2661
        %v2672 = vmul.f32 %v2670, %v2662
        %v2673 = vadd.f32 %v2637, %v2671
        %v2674 = vadd.f32 %v2638, %v2672
        %s2675 = sld [smem:[#allocation7 + $0x11e]]
        %v2676 = vstv %s2675
        %v2677 = vmul.f32 %v2676, %v2661
        %v2678 = vmul.f32 %v2676, %v2662
        %v2679 = vadd.f32 %v2643, %v2677
        %v2680 = vadd.f32 %v2644, %v2678
        %s2681 = sld [smem:[#allocation7 + $0x19e]]
        %v2682 = vstv %s2681
        %v2683 = vmul.f32 %v2682, %v2661
        %v2684 = vmul.f32 %v2682, %v2662
        %v2685 = vadd.f32 %v2649, %v2683
        %v2686 = vadd.f32 %v2650, %v2684
        %v2687 = vld [vmem:[%s809] ss:$8 sm:$0x3]
        %s2688 = sld [smem:[#allocation7 + $0x1f]]
        %v2689 = vstv %s2688
        %v2690 = vmul.f32 %v2689, %v2687
        %v2692 = vlaneseq
        %v2693 = vshrl.u32 %v2692, 7
        %v2694 = vsub.s32 0, %v2693
        %v2695 = vrot.slane %v2690, %v2694
        %v2696 = vlaneseq
        %v2697 = vshrl.u32 %v2696, 7
        %v2698 = vsub.s32 1, %v2697
        %v2699 = vrot.slane %v2690, %v2698
        %v2702 = vadd.f32 %v2667, %v2695
        %v2703 = vadd.f32 %v2668, %v2699
        %s2704 = sld [smem:[#allocation7 + $0x9f]]
        %v2705 = vstv %s2704
        %v2706 = vmul.f32 %v2705, %v2687
        %v2708 = vlaneseq
        %v2709 = vshrl.u32 %v2708, 7
        %v2710 = vsub.s32 0, %v2709
        %v2711 = vrot.slane %v2706, %v2710
        %v2712 = vlaneseq
        %v2713 = vshrl.u32 %v2712, 7
        %v2714 = vsub.s32 1, %v2713
        %v2715 = vrot.slane %v2706, %v2714
        %v2718 = vadd.f32 %v2673, %v2711
        %v2719 = vadd.f32 %v2674, %v2715
        %s2720 = sld [smem:[#allocation7 + $0x11f]]
        %v2721 = vstv %s2720
        %v2722 = vmul.f32 %v2721, %v2687
        %v2724 = vlaneseq
        %v2725 = vshrl.u32 %v2724, 7
        %v2726 = vsub.s32 0, %v2725
        %v2727 = vrot.slane %v2722, %v2726
        %v2728 = vlaneseq
        %v2729 = vshrl.u32 %v2728, 7
        %v2730 = vsub.s32 1, %v2729
        %v2731 = vrot.slane %v2722, %v2730
        %v2734 = vadd.f32 %v2679, %v2727
        %v2735 = vadd.f32 %v2680, %v2731
        %s2736 = sld [smem:[#allocation7 + $0x19f]]
        %v2737 = vstv %s2736
        %v2738 = vmul.f32 %v2737, %v2687
        %v2740 = vlaneseq
        %v2741 = vshrl.u32 %v2740, 7
        %v2742 = vsub.s32 0, %v2741
        %v2743 = vrot.slane %v2738, %v2742
        %v2744 = vlaneseq
        %v2745 = vshrl.u32 %v2744, 7
        %v2746 = vsub.s32 1, %v2745
        %v2747 = vrot.slane %v2738, %v2746
        %v2750 = vadd.f32 %v2685, %v2743
        %v2751 = vadd.f32 %v2686, %v2747
        %s2752 = scalar_lea.vmem [#allocation2], 15
        %v2753 = vld [vmem:[%s2752] ss:$8 sm:$0x7]
        %v2755 = vlaneseq
        %v2756 = vshrl.u32 %v2755, 7
        %v2757 = vsub.s32 0, %v2756
        %v2758 = vrot.slane %v2753, %v2757
        %v2759 = vlaneseq
        %v2760 = vshrl.u32 %v2759, 7
        %v2761 = vsub.s32 1, %v2760
        %v2762 = vrot.slane %v2753, %v2761
        %v2763 = vlaneseq
        %v2764 = vshrl.u32 %v2763, 7
        %v2765 = vsub.s32 2, %v2764
        %v2766 = vrot.slane %v2753, %v2765
        %2767 = vrot.lane.b32.xlu0 %v2758, 127
        %v2768 = vpop.permute.xlu0 %2767
        %2769 = vrot.lane.b32.xlu0 %v2762, 127
        %v2770 = vpop.permute.xlu0 %2769
        %2771 = vrot.lane.b32.xlu0 %v2766, 127
        %v2772 = vpop.permute.xlu0 %2771
        %v2773 = vsel %vm1164, %v2768, %v2770
        %v2774 = vsel %vm1164, %v2770, %v2772
        %v2777 = vsel %vm498, %v2773, 0.0
        %v2778 = vsel %vm499, %v2774, 0.0
        %s2779 = sld [smem:[#allocation7 + $0x20]]
        %v2780 = vstv %s2779
        %v2781 = vmul.f32 %v2780, %v2777
        %v2782 = vmul.f32 %v2780, %v2778
        %v2783 = vadd.f32 %v2702, %v2781
        %v2784 = vadd.f32 %v2703, %v2782
        %s2785 = sld [smem:[#allocation7 + $0xa0]]
        %v2786 = vstv %s2785
        %v2787 = vmul.f32 %v2786, %v2777
        %v2788 = vmul.f32 %v2786, %v2778
        %v2789 = vadd.f32 %v2718, %v2787
        %v2790 = vadd.f32 %v2719, %v2788
        %s2791 = sld [smem:[#allocation7 + $0x120]]
        %v2792 = vstv %s2791
        %v2793 = vmul.f32 %v2792, %v2777
        %v2794 = vmul.f32 %v2792, %v2778
        %v2795 = vadd.f32 %v2734, %v2793
        %v2796 = vadd.f32 %v2735, %v2794
        %s2797 = sld [smem:[#allocation7 + $0x1a0]]
        %v2798 = vstv %s2797
        %v2799 = vmul.f32 %v2798, %v2777
        %v2800 = vmul.f32 %v2798, %v2778
        %v2801 = vadd.f32 %v2750, %v2799
        %v2802 = vadd.f32 %v2751, %v2800
        %2803 = vrot.lane.b32.xlu0 %v2758, 113
        %v2804 = vpop.permute.xlu0 %2803
        %2805 = vrot.lane.b32.xlu0 %v2762, 113
        %v2806 = vpop.permute.xlu0 %2805
        %2807 = vrot.lane.b32.xlu0 %v2766, 113
        %v2808 = vpop.permute.xlu0 %2807
        %v2809 = vsel %vm1201, %v2804, %v2806
        %v2810 = vsel %vm1201, %v2806, %v2808
        %v2813 = vsel %vm496, %v2809, 0.0
        %v2814 = vsel %vm497, %v2810, 0.0
        %s2815 = sld [smem:[#allocation7 + $0x21]]
        %v2816 = vstv %s2815
        %v2817 = vmul.f32 %v2816, %v2813
        %v2818 = vmul.f32 %v2816, %v2814
        %v2819 = vadd.f32 %v2783, %v2817
        %v2820 = vadd.f32 %v2784, %v2818
        %s2821 = sld [smem:[#allocation7 + $0xa1]]
        %v2822 = vstv %s2821
        %v2823 = vmul.f32 %v2822, %v2813
        %v2824 = vmul.f32 %v2822, %v2814
        %v2825 = vadd.f32 %v2789, %v2823
        %v2826 = vadd.f32 %v2790, %v2824
        %s2827 = sld [smem:[#allocation7 + $0x121]]
        %v2828 = vstv %s2827
        %v2829 = vmul.f32 %v2828, %v2813
        %v2830 = vmul.f32 %v2828, %v2814
        %v2831 = vadd.f32 %v2795, %v2829
        %v2832 = vadd.f32 %v2796, %v2830
        %s2833 = sld [smem:[#allocation7 + $0x1a1]]
        %v2834 = vstv %s2833
        %v2835 = vmul.f32 %v2834, %v2813
        %v2836 = vmul.f32 %v2834, %v2814
        %v2837 = vadd.f32 %v2801, %v2835
        %v2838 = vadd.f32 %v2802, %v2836
        %s2839 = sld [smem:[#allocation7 + $0x22]]
        %v2840 = vstv %s2839
        %v2841 = vmul.f32 %v2840, %v2753
        %v2843 = vlaneseq
        %v2844 = vshrl.u32 %v2843, 7
        %v2845 = vsub.s32 0, %v2844
        %v2846 = vrot.slane %v2841, %v2845
        %v2847 = vlaneseq
        %v2848 = vshrl.u32 %v2847, 7
        %v2849 = vsub.s32 1, %v2848
        %v2850 = vrot.slane %v2841, %v2849
        %v2851 = vlaneseq
        %v2852 = vshrl.u32 %v2851, 7
        %v2853 = vsub.s32 2, %v2852
        %v2854 = vrot.slane %v2841, %v2853
        %2855 = vrot.lane.b32.xlu0 %v2846, 112
        %v2856 = vpop.permute.xlu0 %2855
        %2857 = vrot.lane.b32.xlu0 %v2850, 112
        %v2858 = vpop.permute.xlu0 %2857
        %2859 = vrot.lane.b32.xlu0 %v2854, 112
        %v2860 = vpop.permute.xlu0 %2859
        %v2861 = vsel %vm1254, %v2856, %v2858
        %v2862 = vsel %vm1254, %v2858, %v2860
        %v2865 = vadd.f32 %v2819, %v2861
        %v2866 = vadd.f32 %v2820, %v2862
        %s2867 = sld [smem:[#allocation7 + $0xa2]]
        %v2868 = vstv %s2867
        %v2869 = vmul.f32 %v2868, %v2753
        %v2871 = vlaneseq
        %v2872 = vshrl.u32 %v2871, 7
        %v2873 = vsub.s32 0, %v2872
        %v2874 = vrot.slane %v2869, %v2873
        %v2875 = vlaneseq
        %v2876 = vshrl.u32 %v2875, 7
        %v2877 = vsub.s32 1, %v2876
        %v2878 = vrot.slane %v2869, %v2877
        %v2879 = vlaneseq
        %v2880 = vshrl.u32 %v2879, 7
        %v2881 = vsub.s32 2, %v2880
        %v2882 = vrot.slane %v2869, %v2881
        %2883 = vrot.lane.b32.xlu0 %v2874, 112
        %v2884 = vpop.permute.xlu0 %2883
        %2885 = vrot.lane.b32.xlu0 %v2878, 112
        %v2886 = vpop.permute.xlu0 %2885
        %2887 = vrot.lane.b32.xlu0 %v2882, 112
        %v2888 = vpop.permute.xlu0 %2887
        %v2889 = vsel %vm1254, %v2884, %v2886
        %v2890 = vsel %vm1254, %v2886, %v2888
        %v2893 = vadd.f32 %v2825, %v2889
        %v2894 = vadd.f32 %v2826, %v2890
        %s2895 = sld [smem:[#allocation7 + $0x122]]
        %v2896 = vstv %s2895
        %v2897 = vmul.f32 %v2896, %v2753
        %v2899 = vlaneseq
        %v2900 = vshrl.u32 %v2899, 7
        %v2901 = vsub.s32 0, %v2900
        %v2902 = vrot.slane %v2897, %v2901
        %v2903 = vlaneseq
        %v2904 = vshrl.u32 %v2903, 7
        %v2905 = vsub.s32 1, %v2904
        %v2906 = vrot.slane %v2897, %v2905
        %v2907 = vlaneseq
        %v2908 = vshrl.u32 %v2907, 7
        %v2909 = vsub.s32 2, %v2908
        %v2910 = vrot.slane %v2897, %v2909
        %2911 = vrot.lane.b32.xlu0 %v2902, 112
        %v2912 = vpop.permute.xlu0 %2911
        %2913 = vrot.lane.b32.xlu0 %v2906, 112
        %v2914 = vpop.permute.xlu0 %2913
        %2915 = vrot.lane.b32.xlu0 %v2910, 112
        %v2916 = vpop.permute.xlu0 %2915
        %v2917 = vsel %vm1254, %v2912, %v2914
        %v2918 = vsel %vm1254, %v2914, %v2916
        %v2921 = vadd.f32 %v2831, %v2917
        %v2922 = vadd.f32 %v2832, %v2918
        %s2923 = sld [smem:[#allocation7 + $0x1a2]]
        %v2924 = vstv %s2923
        %v2925 = vmul.f32 %v2924, %v2753
        %v2927 = vlaneseq
        %v2928 = vshrl.u32 %v2927, 7
        %v2929 = vsub.s32 0, %v2928
        %v2930 = vrot.slane %v2925, %v2929
        %v2931 = vlaneseq
        %v2932 = vshrl.u32 %v2931, 7
        %v2933 = vsub.s32 1, %v2932
        %v2934 = vrot.slane %v2925, %v2933
        %v2935 = vlaneseq
        %v2936 = vshrl.u32 %v2935, 7
        %v2937 = vsub.s32 2, %v2936
        %v2938 = vrot.slane %v2925, %v2937
        %2939 = vrot.lane.b32.xlu0 %v2930, 112
        %v2940 = vpop.permute.xlu0 %2939
        %2941 = vrot.lane.b32.xlu0 %v2934, 112
        %v2942 = vpop.permute.xlu0 %2941
        %2943 = vrot.lane.b32.xlu0 %v2938, 112
        %v2944 = vpop.permute.xlu0 %2943
        %v2945 = vsel %vm1254, %v2940, %v2942
        %v2946 = vsel %vm1254, %v2942, %v2944
        %v2949 = vadd.f32 %v2837, %v2945
        %v2950 = vadd.f32 %v2838, %v2946
        %2951 = vrot.lane.b32.xlu0 %v2758, 111
        %v2952 = vpop.permute.xlu0 %2951
        %2953 = vrot.lane.b32.xlu0 %v2762, 111
        %v2954 = vpop.permute.xlu0 %2953
        %2955 = vrot.lane.b32.xlu0 %v2766, 111
        %v2956 = vpop.permute.xlu0 %2955
        %v2957 = vsel %vm1351, %v2952, %v2954
        %v2958 = vsel %vm1351, %v2954, %v2956
        %v2961 = vsel %vm498, %v2957, 0.0
        %v2962 = vsel %vm499, %v2958, 0.0
        %s2963 = sld [smem:[#allocation7 + $0x23]]
        %v2964 = vstv %s2963
        %v2965 = vmul.f32 %v2964, %v2961
        %v2966 = vmul.f32 %v2964, %v2962
        %v2967 = vadd.f32 %v2865, %v2965
        %v2968 = vadd.f32 %v2866, %v2966
        %s2969 = sld [smem:[#allocation7 + $0xa3]]
        %v2970 = vstv %s2969
        %v2971 = vmul.f32 %v2970, %v2961
        %v2972 = vmul.f32 %v2970, %v2962
        %v2973 = vadd.f32 %v2893, %v2971
        %v2974 = vadd.f32 %v2894, %v2972
        %s2975 = sld [smem:[#allocation7 + $0x123]]
        %v2976 = vstv %s2975
        %v2977 = vmul.f32 %v2976, %v2961
        %v2978 = vmul.f32 %v2976, %v2962
        %v2979 = vadd.f32 %v2921, %v2977
        %v2980 = vadd.f32 %v2922, %v2978
        %s2981 = sld [smem:[#allocation7 + $0x1a3]]
        %v2982 = vstv %s2981
        %v2983 = vmul.f32 %v2982, %v2961
        %v2984 = vmul.f32 %v2982, %v2962
        %v2985 = vadd.f32 %v2949, %v2983
        %v2986 = vadd.f32 %v2950, %v2984
        %s2987 = sld [smem:[#allocation9]]
        %v2988 = vstv %s2987
        %v2989 = vmul.f32 %v2988, %v2967
        %v2990 = vmul.f32 %v2988, %v2968
        %s2991 = sld [smem:[#allocation9 + $0x1]]
        %v2992 = vstv %s2991
        %v2993 = vmul.f32 %v2992, %v2973
        %v2994 = vmul.f32 %v2992, %v2974
        %v2995 = vadd.f32 %v2989, %v2993
        %v2996 = vadd.f32 %v2990, %v2994
        %s2997 = sld [smem:[#allocation9 + $0x2]]
        %v2998 = vstv %s2997
        %v2999 = vmul.f32 %v2998, %v2979
        %v3000 = vmul.f32 %v2998, %v2980
        %v3001 = vadd.f32 %v2995, %v2999
        %v3002 = vadd.f32 %v2996, %v3000
        %s3003 = sld [smem:[#allocation9 + $0x3]]
        %v3004 = vstv %s3003
        %v3005 = vmul.f32 %v3004, %v2985
        %v3006 = vmul.f32 %v3004, %v2986
        %v3007 = vadd.f32 %v3001, %v3005
        %v3008 = vadd.f32 %v3002, %v3006
        %s3009 = sld [smem:[#allocation9 + $0x80]]
        %v3010 = vstv %s3009
        %v3011 = vmul.f32 %v3010, %v2967
        %v3012 = vmul.f32 %v3010, %v2968
        %s3013 = sld [smem:[#allocation9 + $0x81]]
        %v3014 = vstv %s3013
        %v3015 = vmul.f32 %v3014, %v2973
        %v3016 = vmul.f32 %v3014, %v2974
        %v3017 = vadd.f32 %v3011, %v3015
        %v3018 = vadd.f32 %v3012, %v3016
        %s3019 = sld [smem:[#allocation9 + $0x82]]
        %v3020 = vstv %s3019
        %v3021 = vmul.f32 %v3020, %v2979
        %v3022 = vmul.f32 %v3020, %v2980
        %v3023 = vadd.f32 %v3017, %v3021
        %v3024 = vadd.f32 %v3018, %v3022
        %s3025 = sld [smem:[#allocation9 + $0x83]]
        %v3026 = vstv %s3025
        %v3027 = vmul.f32 %v3026, %v2985
        %v3028 = vmul.f32 %v3026, %v2986
        %v3029 = vadd.f32 %v3023, %v3027
        %v3030 = vadd.f32 %v3024, %v3028
        %s3031 = sld [smem:[#allocation9 + $0x100]]
        %v3032 = vstv %s3031
        %v3033 = vmul.f32 %v3032, %v2967
        %v3034 = vmul.f32 %v3032, %v2968
        %s3035 = sld [smem:[#allocation9 + $0x101]]
        %v3036 = vstv %s3035
        %v3037 = vmul.f32 %v3036, %v2973
        %v3038 = vmul.f32 %v3036, %v2974
        %v3039 = vadd.f32 %v3033, %v3037
        %v3040 = vadd.f32 %v3034, %v3038
        %s3041 = sld [smem:[#allocation9 + $0x102]]
        %v3042 = vstv %s3041
        %v3043 = vmul.f32 %v3042, %v2979
        %v3044 = vmul.f32 %v3042, %v2980
        %v3045 = vadd.f32 %v3039, %v3043
        %v3046 = vadd.f32 %v3040, %v3044
        %s3047 = sld [smem:[#allocation9 + $0x103]]
        %v3048 = vstv %s3047
        %v3049 = vmul.f32 %v3048, %v2985
        %v3050 = vmul.f32 %v3048, %v2986
        %v3051 = vadd.f32 %v3045, %v3049
        %v3052 = vadd.f32 %v3046, %v3050
        %s3053 = sld [smem:[#allocation9 + $0x180]]
        %v3054 = vstv %s3053
        %v3055 = vmul.f32 %v3054, %v2967
        %v3056 = vmul.f32 %v3054, %v2968
        %s3057 = sld [smem:[#allocation9 + $0x181]]
        %v3058 = vstv %s3057
        %v3059 = vmul.f32 %v3058, %v2973
        %v3060 = vmul.f32 %v3058, %v2974
        %v3061 = vadd.f32 %v3055, %v3059
        %v3062 = vadd.f32 %v3056, %v3060
        %s3063 = sld [smem:[#allocation9 + $0x182]]
        %v3064 = vstv %s3063
        %v3065 = vmul.f32 %v3064, %v2979
        %v3066 = vmul.f32 %v3064, %v2980
        %v3067 = vadd.f32 %v3061, %v3065
        %v3068 = vadd.f32 %v3062, %v3066
        %s3069 = sld [smem:[#allocation9 + $0x183]]
        %v3070 = vstv %s3069
        %v3071 = vmul.f32 %v3070, %v2985
        %v3072 = vmul.f32 %v3070, %v2986
        %v3073 = vadd.f32 %v3067, %v3071
        %v3074 = vadd.f32 %v3068, %v3072
        %v3075 = vld [vmem:[#allocation2] ss:$8 sm:$0x7]
        %v3077 = vlaneseq
        %v3078 = vshrl.u32 %v3077, 7
        %v3079 = vsub.s32 0, %v3078
        %v3080 = vrot.slane %v3075, %v3079
        %v3081 = vlaneseq
        %v3082 = vshrl.u32 %v3081, 7
        %v3083 = vsub.s32 1, %v3082
        %v3084 = vrot.slane %v3075, %v3083
        %v3085 = vlaneseq
        %v3086 = vshrl.u32 %v3085, 7
        %v3087 = vsub.s32 2, %v3086
        %v3088 = vrot.slane %v3075, %v3087
        %3089 = vrot.lane.b32.xlu0 %v3080, 17
        %v3090 = vpop.permute.xlu0 %3089
        %3091 = vrot.lane.b32.xlu0 %v3084, 17
        %v3092 = vpop.permute.xlu0 %3091
        %3093 = vrot.lane.b32.xlu0 %v3088, 17
        %v3094 = vpop.permute.xlu0 %3093
        %v3095 = vsel %vm868, %v3090, %v3092
        %v3096 = vsel %vm868, %v3092, %v3094
        %v3099 = vsel %vm496, %v3095, 0.0
        %v3100 = vsel %vm497, %v3096, 0.0
        %s3101 = sld [smem:[#allocation10]]
        %v3102 = vstv %s3101
        %v3103 = vmul.f32 %v3102, %v3099
        %v3104 = vmul.f32 %v3102, %v3100
        %s3105 = sld [smem:[#allocation10 + $0x80]]
        %v3106 = vstv %s3105
        %v3107 = vmul.f32 %v3106, %v3099
        %v3108 = vmul.f32 %v3106, %v3100
        %s3109 = sld [smem:[#allocation10 + $0x100]]
        %v3110 = vstv %s3109
        %v3111 = vmul.f32 %v3110, %v3099
        %v3112 = vmul.f32 %v3110, %v3100
        %s3113 = sld [smem:[#allocation10 + $0x180]]
        %v3114 = vstv %s3113
        %v3115 = vmul.f32 %v3114, %v3099
        %v3116 = vmul.f32 %v3114, %v3100
        %s3117 = sld [smem:[#allocation10 + $0x1]]
        %v3118 = vstv %s3117
        %v3119 = vmul.f32 %v3118, %v3075
        %v3121 = vlaneseq
        %v3122 = vshrl.u32 %v3121, 7
        %v3123 = vsub.s32 0, %v3122
        %v3124 = vrot.slane %v3119, %v3123
        %v3125 = vlaneseq
        %v3126 = vshrl.u32 %v3125, 7
        %v3127 = vsub.s32 1, %v3126
        %v3128 = vrot.slane %v3119, %v3127
        %v3129 = vlaneseq
        %v3130 = vshrl.u32 %v3129, 7
        %v3131 = vsub.s32 2, %v3130
        %v3132 = vrot.slane %v3119, %v3131
        %3133 = vrot.lane.b32.xlu0 %v3124, 16
        %v3134 = vpop.permute.xlu0 %3133
        %3135 = vrot.lane.b32.xlu0 %v3128, 16
        %v3136 = vpop.permute.xlu0 %3135
        %3137 = vrot.lane.b32.xlu0 %v3132, 16
        %v3138 = vpop.permute.xlu0 %3137
        %v3139 = vsel %vm913, %v3134, %v3136
        %v3140 = vsel %vm913, %v3136, %v3138
        %v3143 = vadd.f32 %v3103, %v3139
        %v3144 = vadd.f32 %v3104, %v3140
        %s3145 = sld [smem:[#allocation10 + $0x81]]
        %v3146 = vstv %s3145
        %v3147 = vmul.f32 %v3146, %v3075
        %v3149 = vlaneseq
        %v3150 = vshrl.u32 %v3149, 7
        %v3151 = vsub.s32 0, %v3150
        %v3152 = vrot.slane %v3147, %v3151
        %v3153 = vlaneseq
        %v3154 = vshrl.u32 %v3153, 7
        %v3155 = vsub.s32 1, %v3154
        %v3156 = vrot.slane %v3147, %v3155
        %v3157 = vlaneseq
        %v3158 = vshrl.u32 %v3157, 7
        %v3159 = vsub.s32 2, %v3158
        %v3160 = vrot.slane %v3147, %v3159
        %3161 = vrot.lane.b32.xlu0 %v3152, 16
        %v3162 = vpop.permute.xlu0 %3161
        %3163 = vrot.lane.b32.xlu0 %v3156, 16
        %v3164 = vpop.permute.xlu0 %3163
        %3165 = vrot.lane.b32.xlu0 %v3160, 16
        %v3166 = vpop.permute.xlu0 %3165
        %v3167 = vsel %vm913, %v3162, %v3164
        %v3168 = vsel %vm913, %v3164, %v3166
        %v3171 = vadd.f32 %v3107, %v3167
        %v3172 = vadd.f32 %v3108, %v3168
        %s3173 = sld [smem:[#allocation10 + $0x101]]
        %v3174 = vstv %s3173
        %v3175 = vmul.f32 %v3174, %v3075
        %v3177 = vlaneseq
        %v3178 = vshrl.u32 %v3177, 7
        %v3179 = vsub.s32 0, %v3178
        %v3180 = vrot.slane %v3175, %v3179
        %v3181 = vlaneseq
        %v3182 = vshrl.u32 %v3181, 7
        %v3183 = vsub.s32 1, %v3182
        %v3184 = vrot.slane %v3175, %v3183
        %v3185 = vlaneseq
        %v3186 = vshrl.u32 %v3185, 7
        %v3187 = vsub.s32 2, %v3186
        %v3188 = vrot.slane %v3175, %v3187
        %3189 = vrot.lane.b32.xlu0 %v3180, 16
        %v3190 = vpop.permute.xlu0 %3189
        %3191 = vrot.lane.b32.xlu0 %v3184, 16
        %v3192 = vpop.permute.xlu0 %3191
        %3193 = vrot.lane.b32.xlu0 %v3188, 16
        %v3194 = vpop.permute.xlu0 %3193
        %v3195 = vsel %vm913, %v3190, %v3192
        %v3196 = vsel %vm913, %v3192, %v3194
        %v3199 = vadd.f32 %v3111, %v3195
        %v3200 = vadd.f32 %v3112, %v3196
        %s3201 = sld [smem:[#allocation10 + $0x181]]
        %v3202 = vstv %s3201
        %v3203 = vmul.f32 %v3202, %v3075
        %v3205 = vlaneseq
        %v3206 = vshrl.u32 %v3205, 7
        %v3207 = vsub.s32 0, %v3206
        %v3208 = vrot.slane %v3203, %v3207
        %v3209 = vlaneseq
        %v3210 = vshrl.u32 %v3209, 7
        %v3211 = vsub.s32 1, %v3210
        %v3212 = vrot.slane %v3203, %v3211
        %v3213 = vlaneseq
        %v3214 = vshrl.u32 %v3213, 7
        %v3215 = vsub.s32 2, %v3214
        %v3216 = vrot.slane %v3203, %v3215
        %3217 = vrot.lane.b32.xlu0 %v3208, 16
        %v3218 = vpop.permute.xlu0 %3217
        %3219 = vrot.lane.b32.xlu0 %v3212, 16
        %v3220 = vpop.permute.xlu0 %3219
        %3221 = vrot.lane.b32.xlu0 %v3216, 16
        %v3222 = vpop.permute.xlu0 %3221
        %v3223 = vsel %vm913, %v3218, %v3220
        %v3224 = vsel %vm913, %v3220, %v3222
        %v3227 = vadd.f32 %v3115, %v3223
        %v3228 = vadd.f32 %v3116, %v3224
        %3229 = vrot.lane.b32.xlu0 %v3080, 15
        %v3230 = vpop.permute.xlu0 %3229
        %3231 = vrot.lane.b32.xlu0 %v3084, 15
        %v3232 = vpop.permute.xlu0 %3231
        %3233 = vrot.lane.b32.xlu0 %v3088, 15
        %v3234 = vpop.permute.xlu0 %3233
        %v3235 = vsel %vm1010, %v3230, %v3232
        %v3236 = vsel %vm1010, %v3232, %v3234
        %v3239 = vsel %vm498, %v3235, 0.0
        %v3240 = vsel %vm499, %v3236, 0.0
        %s3241 = sld [smem:[#allocation10 + $0x2]]
        %v3242 = vstv %s3241
        %v3243 = vmul.f32 %v3242, %v3239
        %v3244 = vmul.f32 %v3242, %v3240
        %v3245 = vadd.f32 %v3143, %v3243
        %v3246 = vadd.f32 %v3144, %v3244
        %s3247 = sld [smem:[#allocation10 + $0x82]]
        %v3248 = vstv %s3247
        %v3249 = vmul.f32 %v3248, %v3239
        %v3250 = vmul.f32 %v3248, %v3240
        %v3251 = vadd.f32 %v3171, %v3249
        %v3252 = vadd.f32 %v3172, %v3250
        %s3253 = sld [smem:[#allocation10 + $0x102]]
        %v3254 = vstv %s3253
        %v3255 = vmul.f32 %v3254, %v3239
        %v3256 = vmul.f32 %v3254, %v3240
        %v3257 = vadd.f32 %v3199, %v3255
        %v3258 = vadd.f32 %v3200, %v3256
        %s3259 = sld [smem:[#allocation10 + $0x182]]
        %v3260 = vstv %s3259
        %v3261 = vmul.f32 %v3260, %v3239
        %v3262 = vmul.f32 %v3260, %v3240
        %v3263 = vadd.f32 %v3227, %v3261
        %v3264 = vadd.f32 %v3228, %v3262
        %3265 = vrot.lane.b32.xlu0 %v3080, 1
        %v3266 = vpop.permute.xlu0 %3265
        %3267 = vrot.lane.b32.xlu0 %v3084, 1
        %v3268 = vpop.permute.xlu0 %3267
        %3269 = vrot.lane.b32.xlu0 %v3088, 1
        %v3270 = vpop.permute.xlu0 %3269
        %v3271 = vsel %vm1047, %v3266, %v3268
        %v3272 = vsel %vm1047, %v3268, %v3270
        %v3275 = vsel %vm496, %v3271, 0.0
        %v3276 = vsel %vm497, %v3272, 0.0
        %s3277 = sld [smem:[#allocation10 + $0x3]]
        %v3278 = vstv %s3277
        %v3279 = vmul.f32 %v3278, %v3275
        %v3280 = vmul.f32 %v3278, %v3276
        %v3281 = vadd.f32 %v3245, %v3279
        %v3282 = vadd.f32 %v3246, %v3280
        %s3283 = sld [smem:[#allocation10 + $0x83]]
        %v3284 = vstv %s3283
        %v3285 = vmul.f32 %v3284, %v3275
        %v3286 = vmul.f32 %v3284, %v3276
        %v3287 = vadd.f32 %v3251, %v3285
        %v3288 = vadd.f32 %v3252, %v3286
        %s3289 = sld [smem:[#allocation10 + $0x103]]
        %v3290 = vstv %s3289
        %v3291 = vmul.f32 %v3290, %v3275
        %v3292 = vmul.f32 %v3290, %v3276
        %v3293 = vadd.f32 %v3257, %v3291
        %v3294 = vadd.f32 %v3258, %v3292
        %s3295 = sld [smem:[#allocation10 + $0x183]]
        %v3296 = vstv %s3295
        %v3297 = vmul.f32 %v3296, %v3275
        %v3298 = vmul.f32 %v3296, %v3276
        %v3299 = vadd.f32 %v3263, %v3297
        %v3300 = vadd.f32 %v3264, %v3298
        %v3301 = vld [vmem:[%s556] ss:$8 sm:$0x3]
        %s3302 = sld [smem:[#allocation10 + $0x4]]
        %v3303 = vstv %s3302
        %v3304 = vmul.f32 %v3303, %v3301
        %v3306 = vlaneseq
        %v3307 = vshrl.u32 %v3306, 7
        %v3308 = vsub.s32 0, %v3307
        %v3309 = vrot.slane %v3304, %v3308
        %v3310 = vlaneseq
        %v3311 = vshrl.u32 %v3310, 7
        %v3312 = vsub.s32 1, %v3311
        %v3313 = vrot.slane %v3304, %v3312
        %v3316 = vadd.f32 %v3281, %v3309
        %v3317 = vadd.f32 %v3282, %v3313
        %s3318 = sld [smem:[#allocation10 + $0x84]]
        %v3319 = vstv %s3318
        %v3320 = vmul.f32 %v3319, %v3301
        %v3322 = vlaneseq
        %v3323 = vshrl.u32 %v3322, 7
        %v3324 = vsub.s32 0, %v3323
        %v3325 = vrot.slane %v3320, %v3324
        %v3326 = vlaneseq
        %v3327 = vshrl.u32 %v3326, 7
        %v3328 = vsub.s32 1, %v3327
        %v3329 = vrot.slane %v3320, %v3328
        %v3332 = vadd.f32 %v3287, %v3325
        %v3333 = vadd.f32 %v3288, %v3329
        %s3334 = sld [smem:[#allocation10 + $0x104]]
        %v3335 = vstv %s3334
        %v3336 = vmul.f32 %v3335, %v3301
        %v3338 = vlaneseq
        %v3339 = vshrl.u32 %v3338, 7
        %v3340 = vsub.s32 0, %v3339
        %v3341 = vrot.slane %v3336, %v3340
        %v3342 = vlaneseq
        %v3343 = vshrl.u32 %v3342, 7
        %v3344 = vsub.s32 1, %v3343
        %v3345 = vrot.slane %v3336, %v3344
        %v3348 = vadd.f32 %v3293, %v3341
        %v3349 = vadd.f32 %v3294, %v3345
        %s3350 = sld [smem:[#allocation10 + $0x184]]
        %v3351 = vstv %s3350
        %v3352 = vmul.f32 %v3351, %v3301
        %v3354 = vlaneseq
        %v3355 = vshrl.u32 %v3354, 7
        %v3356 = vsub.s32 0, %v3355
        %v3357 = vrot.slane %v3352, %v3356
        %v3358 = vlaneseq
        %v3359 = vshrl.u32 %v3358, 7
        %v3360 = vsub.s32 1, %v3359
        %v3361 = vrot.slane %v3352, %v3360
        %v3364 = vadd.f32 %v3299, %v3357
        %v3365 = vadd.f32 %v3300, %v3361
        %s3366 = scalar_lea.vmem [#allocation2], 8
        %v3367 = vld [vmem:[%s3366] ss:$8 sm:$0x7]
        %v3369 = vlaneseq
        %v3370 = vshrl.u32 %v3369, 7
        %v3371 = vsub.s32 0, %v3370
        %v3372 = vrot.slane %v3367, %v3371
        %v3373 = vlaneseq
        %v3374 = vshrl.u32 %v3373, 7
        %v3375 = vsub.s32 1, %v3374
        %v3376 = vrot.slane %v3367, %v3375
        %v3377 = vlaneseq
        %v3378 = vshrl.u32 %v3377, 7
        %v3379 = vsub.s32 2, %v3378
        %v3380 = vrot.slane %v3367, %v3379
        %3381 = vrot.lane.b32.xlu0 %v3372, 127
        %v3382 = vpop.permute.xlu0 %3381
        %3383 = vrot.lane.b32.xlu0 %v3376, 127
        %v3384 = vpop.permute.xlu0 %3383
        %3385 = vrot.lane.b32.xlu0 %v3380, 127
        %v3386 = vpop.permute.xlu0 %3385
        %v3387 = vsel %vm1164, %v3382, %v3384
        %v3388 = vsel %vm1164, %v3384, %v3386
        %v3391 = vsel %vm498, %v3387, 0.0
        %v3392 = vsel %vm499, %v3388, 0.0
        %s3393 = sld [smem:[#allocation10 + $0x5]]
        %v3394 = vstv %s3393
        %v3395 = vmul.f32 %v3394, %v3391
        %v3396 = vmul.f32 %v3394, %v3392
        %v3397 = vadd.f32 %v3316, %v3395
        %v3398 = vadd.f32 %v3317, %v3396
        %s3399 = sld [smem:[#allocation10 + $0x85]]
        %v3400 = vstv %s3399
        %v3401 = vmul.f32 %v3400, %v3391
        %v3402 = vmul.f32 %v3400, %v3392
        %v3403 = vadd.f32 %v3332, %v3401
        %v3404 = vadd.f32 %v3333, %v3402
        %s3405 = sld [smem:[#allocation10 + $0x105]]
        %v3406 = vstv %s3405
        %v3407 = vmul.f32 %v3406, %v3391
        %v3408 = vmul.f32 %v3406, %v3392
        %v3409 = vadd.f32 %v3348, %v3407
        %v3410 = vadd.f32 %v3349, %v3408
        %s3411 = sld [smem:[#allocation10 + $0x185]]
        %v3412 = vstv %s3411
        %v3413 = vmul.f32 %v3412, %v3391
        %v3414 = vmul.f32 %v3412, %v3392
        %v3415 = vadd.f32 %v3364, %v3413
        %v3416 = vadd.f32 %v3365, %v3414
        %3417 = vrot.lane.b32.xlu0 %v3372, 113
        %v3418 = vpop.permute.xlu0 %3417
        %3419 = vrot.lane.b32.xlu0 %v3376, 113
        %v3420 = vpop.permute.xlu0 %3419
        %3421 = vrot.lane.b32.xlu0 %v3380, 113
        %v3422 = vpop.permute.xlu0 %3421
        %v3423 = vsel %vm1201, %v3418, %v3420
        %v3424 = vsel %vm1201, %v3420, %v3422
        %v3427 = vsel %vm496, %v3423, 0.0
        %v3428 = vsel %vm497, %v3424, 0.0
        %s3429 = sld [smem:[#allocation10 + $0x6]]
        %v3430 = vstv %s3429
        %v3431 = vmul.f32 %v3430, %v3427
        %v3432 = vmul.f32 %v3430, %v3428
        %v3433 = vadd.f32 %v3397, %v3431
        %v3434 = vadd.f32 %v3398, %v3432
        %s3435 = sld [smem:[#allocation10 + $0x86]]
        %v3436 = vstv %s3435
        %v3437 = vmul.f32 %v3436, %v3427
        %v3438 = vmul.f32 %v3436, %v3428
        %v3439 = vadd.f32 %v3403, %v3437
        %v3440 = vadd.f32 %v3404, %v3438
        %s3441 = sld [smem:[#allocation10 + $0x106]]
        %v3442 = vstv %s3441
        %v3443 = vmul.f32 %v3442, %v3427
        %v3444 = vmul.f32 %v3442, %v3428
        %v3445 = vadd.f32 %v3409, %v3443
        %v3446 = vadd.f32 %v3410, %v3444
        %s3447 = sld [smem:[#allocation10 + $0x186]]
        %v3448 = vstv %s3447
        %v3449 = vmul.f32 %v3448, %v3427
        %v3450 = vmul.f32 %v3448, %v3428
        %v3451 = vadd.f32 %v3415, %v3449
        %v3452 = vadd.f32 %v3416, %v3450
        %s3453 = sld [smem:[#allocation10 + $0x7]]
        %v3454 = vstv %s3453
        %v3455 = vmul.f32 %v3454, %v3367
        %v3457 = vlaneseq
        %v3458 = vshrl.u32 %v3457, 7
        %v3459 = vsub.s32 0, %v3458
        %v3460 = vrot.slane %v3455, %v3459
        %v3461 = vlaneseq
        %v3462 = vshrl.u32 %v3461, 7
        %v3463 = vsub.s32 1, %v3462
        %v3464 = vrot.slane %v3455, %v3463
        %v3465 = vlaneseq
        %v3466 = vshrl.u32 %v3465, 7
        %v3467 = vsub.s32 2, %v3466
        %v3468 = vrot.slane %v3455, %v3467
        %3469 = vrot.lane.b32.xlu0 %v3460, 112
        %v3470 = vpop.permute.xlu0 %3469
        %3471 = vrot.lane.b32.xlu0 %v3464, 112
        %v3472 = vpop.permute.xlu0 %3471
        %3473 = vrot.lane.b32.xlu0 %v3468, 112
        %v3474 = vpop.permute.xlu0 %3473
        %v3475 = vsel %vm1254, %v3470, %v3472
        %v3476 = vsel %vm1254, %v3472, %v3474
        %v3479 = vadd.f32 %v3433, %v3475
        %v3480 = vadd.f32 %v3434, %v3476
        %s3481 = sld [smem:[#allocation10 + $0x87]]
        %v3482 = vstv %s3481
        %v3483 = vmul.f32 %v3482, %v3367
        %v3485 = vlaneseq
        %v3486 = vshrl.u32 %v3485, 7
        %v3487 = vsub.s32 0, %v3486
        %v3488 = vrot.slane %v3483, %v3487
        %v3489 = vlaneseq
        %v3490 = vshrl.u32 %v3489, 7
        %v3491 = vsub.s32 1, %v3490
        %v3492 = vrot.slane %v3483, %v3491
        %v3493 = vlaneseq
        %v3494 = vshrl.u32 %v3493, 7
        %v3495 = vsub.s32 2, %v3494
        %v3496 = vrot.slane %v3483, %v3495
        %3497 = vrot.lane.b32.xlu0 %v3488, 112
        %v3498 = vpop.permute.xlu0 %3497
        %3499 = vrot.lane.b32.xlu0 %v3492, 112
        %v3500 = vpop.permute.xlu0 %3499
        %3501 = vrot.lane.b32.xlu0 %v3496, 112
        %v3502 = vpop.permute.xlu0 %3501
        %v3503 = vsel %vm1254, %v3498, %v3500
        %v3504 = vsel %vm1254, %v3500, %v3502
        %v3507 = vadd.f32 %v3439, %v3503
        %v3508 = vadd.f32 %v3440, %v3504
        %s3509 = sld [smem:[#allocation10 + $0x107]]
        %v3510 = vstv %s3509
        %v3511 = vmul.f32 %v3510, %v3367
        %v3513 = vlaneseq
        %v3514 = vshrl.u32 %v3513, 7
        %v3515 = vsub.s32 0, %v3514
        %v3516 = vrot.slane %v3511, %v3515
        %v3517 = vlaneseq
        %v3518 = vshrl.u32 %v3517, 7
        %v3519 = vsub.s32 1, %v3518
        %v3520 = vrot.slane %v3511, %v3519
        %v3521 = vlaneseq
        %v3522 = vshrl.u32 %v3521, 7
        %v3523 = vsub.s32 2, %v3522
        %v3524 = vrot.slane %v3511, %v3523
        %3525 = vrot.lane.b32.xlu0 %v3516, 112
        %v3526 = vpop.permute.xlu0 %3525
        %3527 = vrot.lane.b32.xlu0 %v3520, 112
        %v3528 = vpop.permute.xlu0 %3527
        %3529 = vrot.lane.b32.xlu0 %v3524, 112
        %v3530 = vpop.permute.xlu0 %3529
        %v3531 = vsel %vm1254, %v3526, %v3528
        %v3532 = vsel %vm1254, %v3528, %v3530
        %v3535 = vadd.f32 %v3445, %v3531
        %v3536 = vadd.f32 %v3446, %v3532
        %s3537 = sld [smem:[#allocation10 + $0x187]]
        %v3538 = vstv %s3537
        %v3539 = vmul.f32 %v3538, %v3367
        %v3541 = vlaneseq
        %v3542 = vshrl.u32 %v3541, 7
        %v3543 = vsub.s32 0, %v3542
        %v3544 = vrot.slane %v3539, %v3543
        %v3545 = vlaneseq
        %v3546 = vshrl.u32 %v3545, 7
        %v3547 = vsub.s32 1, %v3546
        %v3548 = vrot.slane %v3539, %v3547
        %v3549 = vlaneseq
        %v3550 = vshrl.u32 %v3549, 7
        %v3551 = vsub.s32 2, %v3550
        %v3552 = vrot.slane %v3539, %v3551
        %3553 = vrot.lane.b32.xlu0 %v3544, 112
        %v3554 = vpop.permute.xlu0 %3553
        %3555 = vrot.lane.b32.xlu0 %v3548, 112
        %v3556 = vpop.permute.xlu0 %3555
        %3557 = vrot.lane.b32.xlu0 %v3552, 112
        %v3558 = vpop.permute.xlu0 %3557
        %v3559 = vsel %vm1254, %v3554, %v3556
        %v3560 = vsel %vm1254, %v3556, %v3558
        %v3563 = vadd.f32 %v3451, %v3559
        %v3564 = vadd.f32 %v3452, %v3560
        %3565 = vrot.lane.b32.xlu0 %v3372, 111
        %v3566 = vpop.permute.xlu0 %3565
        %3567 = vrot.lane.b32.xlu0 %v3376, 111
        %v3568 = vpop.permute.xlu0 %3567
        %3569 = vrot.lane.b32.xlu0 %v3380, 111
        %v3570 = vpop.permute.xlu0 %3569
        %v3571 = vsel %vm1351, %v3566, %v3568
        %v3572 = vsel %vm1351, %v3568, %v3570
        %v3575 = vsel %vm498, %v3571, 0.0
        %v3576 = vsel %vm499, %v3572, 0.0
        %s3577 = sld [smem:[#allocation10 + $0x8]]
        %v3578 = vstv %s3577
        %v3579 = vmul.f32 %v3578, %v3575
        %v3580 = vmul.f32 %v3578, %v3576
        %v3581 = vadd.f32 %v3479, %v3579
        %v3582 = vadd.f32 %v3480, %v3580
        %s3583 = sld [smem:[#allocation10 + $0x88]]
        %v3584 = vstv %s3583
        %v3585 = vmul.f32 %v3584, %v3575
        %v3586 = vmul.f32 %v3584, %v3576
        %v3587 = vadd.f32 %v3507, %v3585
        %v3588 = vadd.f32 %v3508, %v3586
        %s3589 = sld [smem:[#allocation10 + $0x108]]
        %v3590 = vstv %s3589
        %v3591 = vmul.f32 %v3590, %v3575
        %v3592 = vmul.f32 %v3590, %v3576
        %v3593 = vadd.f32 %v3535, %v3591
        %v3594 = vadd.f32 %v3536, %v3592
        %s3595 = sld [smem:[#allocation10 + $0x188]]
        %v3596 = vstv %s3595
        %v3597 = vmul.f32 %v3596, %v3575
        %v3598 = vmul.f32 %v3596, %v3576
        %v3599 = vadd.f32 %v3563, %v3597
        %v3600 = vadd.f32 %v3564, %v3598
        %s3601 = scalar_lea.vmem [#allocation2], 1
        %v3602 = vld [vmem:[%s3601] ss:$8 sm:$0x7]
        %v3604 = vlaneseq
        %v3605 = vshrl.u32 %v3604, 7
        %v3606 = vsub.s32 0, %v3605
        %v3607 = vrot.slane %v3602, %v3606
        %v3608 = vlaneseq
        %v3609 = vshrl.u32 %v3608, 7
        %v3610 = vsub.s32 1, %v3609
        %v3611 = vrot.slane %v3602, %v3610
        %v3612 = vlaneseq
        %v3613 = vshrl.u32 %v3612, 7
        %v3614 = vsub.s32 2, %v3613
        %v3615 = vrot.slane %v3602, %v3614
        %3616 = vrot.lane.b32.xlu0 %v3607, 17
        %v3617 = vpop.permute.xlu0 %3616
        %3618 = vrot.lane.b32.xlu0 %v3611, 17
        %v3619 = vpop.permute.xlu0 %3618
        %3620 = vrot.lane.b32.xlu0 %v3615, 17
        %v3621 = vpop.permute.xlu0 %3620
        %v3622 = vsel %vm868, %v3617, %v3619
        %v3623 = vsel %vm868, %v3619, %v3621
        %v3626 = vsel %vm496, %v3622, 0.0
        %v3627 = vsel %vm497, %v3623, 0.0
        %s3628 = sld [smem:[#allocation10 + $0x9]]
        %v3629 = vstv %s3628
        %v3630 = vmul.f32 %v3629, %v3626
        %v3631 = vmul.f32 %v3629, %v3627
        %v3632 = vadd.f32 %v3581, %v3630
        %v3633 = vadd.f32 %v3582, %v3631
        %s3634 = sld [smem:[#allocation10 + $0x89]]
        %v3635 = vstv %s3634
        %v3636 = vmul.f32 %v3635, %v3626
        %v3637 = vmul.f32 %v3635, %v3627
        %v3638 = vadd.f32 %v3587, %v3636
        %v3639 = vadd.f32 %v3588, %v3637
        %s3640 = sld [smem:[#allocation10 + $0x109]]
        %v3641 = vstv %s3640
        %v3642 = vmul.f32 %v3641, %v3626
        %v3643 = vmul.f32 %v3641, %v3627
        %v3644 = vadd.f32 %v3593, %v3642
        %v3645 = vadd.f32 %v3594, %v3643
        %s3646 = sld [smem:[#allocation10 + $0x189]]
        %v3647 = vstv %s3646
        %v3648 = vmul.f32 %v3647, %v3626
        %v3649 = vmul.f32 %v3647, %v3627
        %v3650 = vadd.f32 %v3599, %v3648
        %v3651 = vadd.f32 %v3600, %v3649
        %s3652 = sld [smem:[#allocation10 + $0xa]]
        %v3653 = vstv %s3652
        %v3654 = vmul.f32 %v3653, %v3602
        %v3656 = vlaneseq
        %v3657 = vshrl.u32 %v3656, 7
        %v3658 = vsub.s32 0, %v3657
        %v3659 = vrot.slane %v3654, %v3658
        %v3660 = vlaneseq
        %v3661 = vshrl.u32 %v3660, 7
        %v3662 = vsub.s32 1, %v3661
        %v3663 = vrot.slane %v3654, %v3662
        %v3664 = vlaneseq
        %v3665 = vshrl.u32 %v3664, 7
        %v3666 = vsub.s32 2, %v3665
        %v3667 = vrot.slane %v3654, %v3666
        %3668 = vrot.lane.b32.xlu0 %v3659, 16
        %v3669 = vpop.permute.xlu0 %3668
        %3670 = vrot.lane.b32.xlu0 %v3663, 16
        %v3671 = vpop.permute.xlu0 %3670
        %3672 = vrot.lane.b32.xlu0 %v3667, 16
        %v3673 = vpop.permute.xlu0 %3672
        %v3674 = vsel %vm913, %v3669, %v3671
        %v3675 = vsel %vm913, %v3671, %v3673
        %v3678 = vadd.f32 %v3632, %v3674
        %v3679 = vadd.f32 %v3633, %v3675
        %s3680 = sld [smem:[#allocation10 + $0x8a]]
        %v3681 = vstv %s3680
        %v3682 = vmul.f32 %v3681, %v3602
        %v3684 = vlaneseq
        %v3685 = vshrl.u32 %v3684, 7
        %v3686 = vsub.s32 0, %v3685
        %v3687 = vrot.slane %v3682, %v3686
        %v3688 = vlaneseq
        %v3689 = vshrl.u32 %v3688, 7
        %v3690 = vsub.s32 1, %v3689
        %v3691 = vrot.slane %v3682, %v3690
        %v3692 = vlaneseq
        %v3693 = vshrl.u32 %v3692, 7
        %v3694 = vsub.s32 2, %v3693
        %v3695 = vrot.slane %v3682, %v3694
        %3696 = vrot.lane.b32.xlu0 %v3687, 16
        %v3697 = vpop.permute.xlu0 %3696
        %3698 = vrot.lane.b32.xlu0 %v3691, 16
        %v3699 = vpop.permute.xlu0 %3698
        %3700 = vrot.lane.b32.xlu0 %v3695, 16
        %v3701 = vpop.permute.xlu0 %3700
        %v3702 = vsel %vm913, %v3697, %v3699
        %v3703 = vsel %vm913, %v3699, %v3701
        %v3706 = vadd.f32 %v3638, %v3702
        %v3707 = vadd.f32 %v3639, %v3703
        %s3708 = sld [smem:[#allocation10 + $0x10a]]
        %v3709 = vstv %s3708
        %v3710 = vmul.f32 %v3709, %v3602
        %v3712 = vlaneseq
        %v3713 = vshrl.u32 %v3712, 7
        %v3714 = vsub.s32 0, %v3713
        %v3715 = vrot.slane %v3710, %v3714
        %v3716 = vlaneseq
        %v3717 = vshrl.u32 %v3716, 7
        %v3718 = vsub.s32 1, %v3717
        %v3719 = vrot.slane %v3710, %v3718
        %v3720 = vlaneseq
        %v3721 = vshrl.u32 %v3720, 7
        %v3722 = vsub.s32 2, %v3721
        %v3723 = vrot.slane %v3710, %v3722
        %3724 = vrot.lane.b32.xlu0 %v3715, 16
        %v3725 = vpop.permute.xlu0 %3724
        %3726 = vrot.lane.b32.xlu0 %v3719, 16
        %v3727 = vpop.permute.xlu0 %3726
        %3728 = vrot.lane.b32.xlu0 %v3723, 16
        %v3729 = vpop.permute.xlu0 %3728
        %v3730 = vsel %vm913, %v3725, %v3727
        %v3731 = vsel %vm913, %v3727, %v3729
        %v3734 = vadd.f32 %v3644, %v3730
        %v3735 = vadd.f32 %v3645, %v3731
        %s3736 = sld [smem:[#allocation10 + $0x18a]]
        %v3737 = vstv %s3736
        %v3738 = vmul.f32 %v3737, %v3602
        %v3740 = vlaneseq
        %v3741 = vshrl.u32 %v3740, 7
        %v3742 = vsub.s32 0, %v3741
        %v3743 = vrot.slane %v3738, %v3742
        %v3744 = vlaneseq
        %v3745 = vshrl.u32 %v3744, 7
        %v3746 = vsub.s32 1, %v3745
        %v3747 = vrot.slane %v3738, %v3746
        %v3748 = vlaneseq
        %v3749 = vshrl.u32 %v3748, 7
        %v3750 = vsub.s32 2, %v3749
        %v3751 = vrot.slane %v3738, %v3750
        %3752 = vrot.lane.b32.xlu0 %v3743, 16
        %v3753 = vpop.permute.xlu0 %3752
        %3754 = vrot.lane.b32.xlu0 %v3747, 16
        %v3755 = vpop.permute.xlu0 %3754
        %3756 = vrot.lane.b32.xlu0 %v3751, 16
        %v3757 = vpop.permute.xlu0 %3756
        %v3758 = vsel %vm913, %v3753, %v3755
        %v3759 = vsel %vm913, %v3755, %v3757
        %v3762 = vadd.f32 %v3650, %v3758
        %v3763 = vadd.f32 %v3651, %v3759
        %3764 = vrot.lane.b32.xlu0 %v3607, 15
        %v3765 = vpop.permute.xlu0 %3764
        %3766 = vrot.lane.b32.xlu0 %v3611, 15
        %v3767 = vpop.permute.xlu0 %3766
        %3768 = vrot.lane.b32.xlu0 %v3615, 15
        %v3769 = vpop.permute.xlu0 %3768
        %v3770 = vsel %vm1010, %v3765, %v3767
        %v3771 = vsel %vm1010, %v3767, %v3769
        %v3774 = vsel %vm498, %v3770, 0.0
        %v3775 = vsel %vm499, %v3771, 0.0
        %s3776 = sld [smem:[#allocation10 + $0xb]]
        %v3777 = vstv %s3776
        %v3778 = vmul.f32 %v3777, %v3774
        %v3779 = vmul.f32 %v3777, %v3775
        %v3780 = vadd.f32 %v3678, %v3778
        %v3781 = vadd.f32 %v3679, %v3779
        %s3782 = sld [smem:[#allocation10 + $0x8b]]
        %v3783 = vstv %s3782
        %v3784 = vmul.f32 %v3783, %v3774
        %v3785 = vmul.f32 %v3783, %v3775
        %v3786 = vadd.f32 %v3706, %v3784
        %v3787 = vadd.f32 %v3707, %v3785
        %s3788 = sld [smem:[#allocation10 + $0x10b]]
        %v3789 = vstv %s3788
        %v3790 = vmul.f32 %v3789, %v3774
        %v3791 = vmul.f32 %v3789, %v3775
        %v3792 = vadd.f32 %v3734, %v3790
        %v3793 = vadd.f32 %v3735, %v3791
        %s3794 = sld [smem:[#allocation10 + $0x18b]]
        %v3795 = vstv %s3794
        %v3796 = vmul.f32 %v3795, %v3774
        %v3797 = vmul.f32 %v3795, %v3775
        %v3798 = vadd.f32 %v3762, %v3796
        %v3799 = vadd.f32 %v3763, %v3797
        %3800 = vrot.lane.b32.xlu0 %v3607, 1
        %v3801 = vpop.permute.xlu0 %3800
        %3802 = vrot.lane.b32.xlu0 %v3611, 1
        %v3803 = vpop.permute.xlu0 %3802
        %3804 = vrot.lane.b32.xlu0 %v3615, 1
        %v3805 = vpop.permute.xlu0 %3804
        %v3806 = vsel %vm1047, %v3801, %v3803
        %v3807 = vsel %vm1047, %v3803, %v3805
        %v3810 = vsel %vm496, %v3806, 0.0
        %v3811 = vsel %vm497, %v3807, 0.0
        %s3812 = sld [smem:[#allocation10 + $0xc]]
        %v3813 = vstv %s3812
        %v3814 = vmul.f32 %v3813, %v3810
        %v3815 = vmul.f32 %v3813, %v3811
        %v3816 = vadd.f32 %v3780, %v3814
        %v3817 = vadd.f32 %v3781, %v3815
        %s3818 = sld [smem:[#allocation10 + $0x8c]]
        %v3819 = vstv %s3818
        %v3820 = vmul.f32 %v3819, %v3810
        %v3821 = vmul.f32 %v3819, %v3811
        %v3822 = vadd.f32 %v3786, %v3820
        %v3823 = vadd.f32 %v3787, %v3821
        %s3824 = sld [smem:[#allocation10 + $0x10c]]
        %v3825 = vstv %s3824
        %v3826 = vmul.f32 %v3825, %v3810
        %v3827 = vmul.f32 %v3825, %v3811
        %v3828 = vadd.f32 %v3792, %v3826
        %v3829 = vadd.f32 %v3793, %v3827
        %s3830 = sld [smem:[#allocation10 + $0x18c]]
        %v3831 = vstv %s3830
        %v3832 = vmul.f32 %v3831, %v3810
        %v3833 = vmul.f32 %v3831, %v3811
        %v3834 = vadd.f32 %v3798, %v3832
        %v3835 = vadd.f32 %v3799, %v3833
        %v3836 = vld [vmem:[%s622] ss:$8 sm:$0x3]
        %s3837 = sld [smem:[#allocation10 + $0xd]]
        %v3838 = vstv %s3837
        %v3839 = vmul.f32 %v3838, %v3836
        %v3841 = vlaneseq
        %v3842 = vshrl.u32 %v3841, 7
        %v3843 = vsub.s32 0, %v3842
        %v3844 = vrot.slane %v3839, %v3843
        %v3845 = vlaneseq
        %v3846 = vshrl.u32 %v3845, 7
        %v3847 = vsub.s32 1, %v3846
        %v3848 = vrot.slane %v3839, %v3847
        %v3851 = vadd.f32 %v3816, %v3844
        %v3852 = vadd.f32 %v3817, %v3848
        %s3853 = sld [smem:[#allocation10 + $0x8d]]
        %v3854 = vstv %s3853
        %v3855 = vmul.f32 %v3854, %v3836
        %v3857 = vlaneseq
        %v3858 = vshrl.u32 %v3857, 7
        %v3859 = vsub.s32 0, %v3858
        %v3860 = vrot.slane %v3855, %v3859
        %v3861 = vlaneseq
        %v3862 = vshrl.u32 %v3861, 7
        %v3863 = vsub.s32 1, %v3862
        %v3864 = vrot.slane %v3855, %v3863
        %v3867 = vadd.f32 %v3822, %v3860
        %v3868 = vadd.f32 %v3823, %v3864
        %s3869 = sld [smem:[#allocation10 + $0x10d]]
        %v3870 = vstv %s3869
        %v3871 = vmul.f32 %v3870, %v3836
        %v3873 = vlaneseq
        %v3874 = vshrl.u32 %v3873, 7
        %v3875 = vsub.s32 0, %v3874
        %v3876 = vrot.slane %v3871, %v3875
        %v3877 = vlaneseq
        %v3878 = vshrl.u32 %v3877, 7
        %v3879 = vsub.s32 1, %v3878
        %v3880 = vrot.slane %v3871, %v3879
        %v3883 = vadd.f32 %v3828, %v3876
        %v3884 = vadd.f32 %v3829, %v3880
        %s3885 = sld [smem:[#allocation10 + $0x18d]]
        %v3886 = vstv %s3885
        %v3887 = vmul.f32 %v3886, %v3836
        %v3889 = vlaneseq
        %v3890 = vshrl.u32 %v3889, 7
        %v3891 = vsub.s32 0, %v3890
        %v3892 = vrot.slane %v3887, %v3891
        %v3893 = vlaneseq
        %v3894 = vshrl.u32 %v3893, 7
        %v3895 = vsub.s32 1, %v3894
        %v3896 = vrot.slane %v3887, %v3895
        %v3899 = vadd.f32 %v3834, %v3892
        %v3900 = vadd.f32 %v3835, %v3896
        %s3901 = scalar_lea.vmem [#allocation2], 9
        %v3902 = vld [vmem:[%s3901] ss:$8 sm:$0x7]
        %v3904 = vlaneseq
        %v3905 = vshrl.u32 %v3904, 7
        %v3906 = vsub.s32 0, %v3905
        %v3907 = vrot.slane %v3902, %v3906
        %v3908 = vlaneseq
        %v3909 = vshrl.u32 %v3908, 7
        %v3910 = vsub.s32 1, %v3909
        %v3911 = vrot.slane %v3902, %v3910
        %v3912 = vlaneseq
        %v3913 = vshrl.u32 %v3912, 7
        %v3914 = vsub.s32 2, %v3913
        %v3915 = vrot.slane %v3902, %v3914
        %3916 = vrot.lane.b32.xlu0 %v3907, 127
        %v3917 = vpop.permute.xlu0 %3916
        %3918 = vrot.lane.b32.xlu0 %v3911, 127
        %v3919 = vpop.permute.xlu0 %3918
        %3920 = vrot.lane.b32.xlu0 %v3915, 127
        %v3921 = vpop.permute.xlu0 %3920
        %v3922 = vsel %vm1164, %v3917, %v3919
        %v3923 = vsel %vm1164, %v3919, %v3921
        %v3926 = vsel %vm498, %v3922, 0.0
        %v3927 = vsel %vm499, %v3923, 0.0
        %s3928 = sld [smem:[#allocation10 + $0xe]]
        %v3929 = vstv %s3928
        %v3930 = vmul.f32 %v3929, %v3926
        %v3931 = vmul.f32 %v3929, %v3927
        %v3932 = vadd.f32 %v3851, %v3930
        %v3933 = vadd.f32 %v3852, %v3931
        %s3934 = sld [smem:[#allocation10 + $0x8e]]
        %v3935 = vstv %s3934
        %v3936 = vmul.f32 %v3935, %v3926
        %v3937 = vmul.f32 %v3935, %v3927
        %v3938 = vadd.f32 %v3867, %v3936
        %v3939 = vadd.f32 %v3868, %v3937
        %s3940 = sld [smem:[#allocation10 + $0x10e]]
        %v3941 = vstv %s3940
        %v3942 = vmul.f32 %v3941, %v3926
        %v3943 = vmul.f32 %v3941, %v3927
        %v3944 = vadd.f32 %v3883, %v3942
        %v3945 = vadd.f32 %v3884, %v3943
        %s3946 = sld [smem:[#allocation10 + $0x18e]]
        %v3947 = vstv %s3946
        %v3948 = vmul.f32 %v3947, %v3926
        %v3949 = vmul.f32 %v3947, %v3927
        %v3950 = vadd.f32 %v3899, %v3948
        %v3951 = vadd.f32 %v3900, %v3949
        %3952 = vrot.lane.b32.xlu0 %v3907, 113
        %v3953 = vpop.permute.xlu0 %3952
        %3954 = vrot.lane.b32.xlu0 %v3911, 113
        %v3955 = vpop.permute.xlu0 %3954
        %3956 = vrot.lane.b32.xlu0 %v3915, 113
        %v3957 = vpop.permute.xlu0 %3956
        %v3958 = vsel %vm1201, %v3953, %v3955
        %v3959 = vsel %vm1201, %v3955, %v3957
        %v3962 = vsel %vm496, %v3958, 0.0
        %v3963 = vsel %vm497, %v3959, 0.0
        %s3964 = sld [smem:[#allocation10 + $0xf]]
        %v3965 = vstv %s3964
        %v3966 = vmul.f32 %v3965, %v3962
        %v3967 = vmul.f32 %v3965, %v3963
        %v3968 = vadd.f32 %v3932, %v3966
        %v3969 = vadd.f32 %v3933, %v3967
        %s3970 = sld [smem:[#allocation10 + $0x8f]]
        %v3971 = vstv %s3970
        %v3972 = vmul.f32 %v3971, %v3962
        %v3973 = vmul.f32 %v3971, %v3963
        %v3974 = vadd.f32 %v3938, %v3972
        %v3975 = vadd.f32 %v3939, %v3973
        %s3976 = sld [smem:[#allocation10 + $0x10f]]
        %v3977 = vstv %s3976
        %v3978 = vmul.f32 %v3977, %v3962
        %v3979 = vmul.f32 %v3977, %v3963
        %v3980 = vadd.f32 %v3944, %v3978
        %v3981 = vadd.f32 %v3945, %v3979
        %s3982 = sld [smem:[#allocation10 + $0x18f]]
        %v3983 = vstv %s3982
        %v3984 = vmul.f32 %v3983, %v3962
        %v3985 = vmul.f32 %v3983, %v3963
        %v3986 = vadd.f32 %v3950, %v3984
        %v3987 = vadd.f32 %v3951, %v3985
        %s3988 = sld [smem:[#allocation10 + $0x10]]
        %v3989 = vstv %s3988
        %v3990 = vmul.f32 %v3989, %v3902
        %v3992 = vlaneseq
        %v3993 = vshrl.u32 %v3992, 7
        %v3994 = vsub.s32 0, %v3993
        %v3995 = vrot.slane %v3990, %v3994
        %v3996 = vlaneseq
        %v3997 = vshrl.u32 %v3996, 7
        %v3998 = vsub.s32 1, %v3997
        %v3999 = vrot.slane %v3990, %v3998
        %v4000 = vlaneseq
        %v4001 = vshrl.u32 %v4000, 7
        %v4002 = vsub.s32 2, %v4001
        %v4003 = vrot.slane %v3990, %v4002
        %4004 = vrot.lane.b32.xlu0 %v3995, 112
        %v4005 = vpop.permute.xlu0 %4004
        %4006 = vrot.lane.b32.xlu0 %v3999, 112
        %v4007 = vpop.permute.xlu0 %4006
        %4008 = vrot.lane.b32.xlu0 %v4003, 112
        %v4009 = vpop.permute.xlu0 %4008
        %v4010 = vsel %vm1254, %v4005, %v4007
        %v4011 = vsel %vm1254, %v4007, %v4009
        %v4014 = vadd.f32 %v3968, %v4010
        %v4015 = vadd.f32 %v3969, %v4011
        %s4016 = sld [smem:[#allocation10 + $0x90]]
        %v4017 = vstv %s4016
        %v4018 = vmul.f32 %v4017, %v3902
        %v4020 = vlaneseq
        %v4021 = vshrl.u32 %v4020, 7
        %v4022 = vsub.s32 0, %v4021
        %v4023 = vrot.slane %v4018, %v4022
        %v4024 = vlaneseq
        %v4025 = vshrl.u32 %v4024, 7
        %v4026 = vsub.s32 1, %v4025
        %v4027 = vrot.slane %v4018, %v4026
        %v4028 = vlaneseq
        %v4029 = vshrl.u32 %v4028, 7
        %v4030 = vsub.s32 2, %v4029
        %v4031 = vrot.slane %v4018, %v4030
        %4032 = vrot.lane.b32.xlu0 %v4023, 112
        %v4033 = vpop.permute.xlu0 %4032
        %4034 = vrot.lane.b32.xlu0 %v4027, 112
        %v4035 = vpop.permute.xlu0 %4034
        %4036 = vrot.lane.b32.xlu0 %v4031, 112
        %v4037 = vpop.permute.xlu0 %4036
        %v4038 = vsel %vm1254, %v4033, %v4035
        %v4039 = vsel %vm1254, %v4035, %v4037
        %v4042 = vadd.f32 %v3974, %v4038
        %v4043 = vadd.f32 %v3975, %v4039
        %s4044 = sld [smem:[#allocation10 + $0x110]]
        %v4045 = vstv %s4044
        %v4046 = vmul.f32 %v4045, %v3902
        %v4048 = vlaneseq
        %v4049 = vshrl.u32 %v4048, 7
        %v4050 = vsub.s32 0, %v4049
        %v4051 = vrot.slane %v4046, %v4050
        %v4052 = vlaneseq
        %v4053 = vshrl.u32 %v4052, 7
        %v4054 = vsub.s32 1, %v4053
        %v4055 = vrot.slane %v4046, %v4054
        %v4056 = vlaneseq
        %v4057 = vshrl.u32 %v4056, 7
        %v4058 = vsub.s32 2, %v4057
        %v4059 = vrot.slane %v4046, %v4058
        %4060 = vrot.lane.b32.xlu0 %v4051, 112
        %v4061 = vpop.permute.xlu0 %4060
        %4062 = vrot.lane.b32.xlu0 %v4055, 112
        %v4063 = vpop.permute.xlu0 %4062
        %4064 = vrot.lane.b32.xlu0 %v4059, 112
        %v4065 = vpop.permute.xlu0 %4064
        %v4066 = vsel %vm1254, %v4061, %v4063
        %v4067 = vsel %vm1254, %v4063, %v4065
        %v4070 = vadd.f32 %v3980, %v4066
        %v4071 = vadd.f32 %v3981, %v4067
        %s4072 = sld [smem:[#allocation10 + $0x190]]
        %v4073 = vstv %s4072
        %v4074 = vmul.f32 %v4073, %v3902
        %v4076 = vlaneseq
        %v4077 = vshrl.u32 %v4076, 7
        %v4078 = vsub.s32 0, %v4077
        %v4079 = vrot.slane %v4074, %v4078
        %v4080 = vlaneseq
        %v4081 = vshrl.u32 %v4080, 7
        %v4082 = vsub.s32 1, %v4081
        %v4083 = vrot.slane %v4074, %v4082
        %v4084 = vlaneseq
        %v4085 = vshrl.u32 %v4084, 7
        %v4086 = vsub.s32 2, %v4085
        %v4087 = vrot.slane %v4074, %v4086
        %4088 = vrot.lane.b32.xlu0 %v4079, 112
        %v4089 = vpop.permute.xlu0 %4088
        %4090 = vrot.lane.b32.xlu0 %v4083, 112
        %v4091 = vpop.permute.xlu0 %4090
        %4092 = vrot.lane.b32.xlu0 %v4087, 112
        %v4093 = vpop.permute.xlu0 %4092
        %v4094 = vsel %vm1254, %v4089, %v4091
        %v4095 = vsel %vm1254, %v4091, %v4093
        %v4098 = vadd.f32 %v3986, %v4094
        %v4099 = vadd.f32 %v3987, %v4095
        %4100 = vrot.lane.b32.xlu0 %v3907, 111
        %v4101 = vpop.permute.xlu0 %4100
        %4102 = vrot.lane.b32.xlu0 %v3911, 111
        %v4103 = vpop.permute.xlu0 %4102
        %4104 = vrot.lane.b32.xlu0 %v3915, 111
        %v4105 = vpop.permute.xlu0 %4104
        %v4106 = vsel %vm1351, %v4101, %v4103
        %v4107 = vsel %vm1351, %v4103, %v4105
        %v4110 = vsel %vm498, %v4106, 0.0
        %v4111 = vsel %vm499, %v4107, 0.0
        %s4112 = sld [smem:[#allocation10 + $0x11]]
        %v4113 = vstv %s4112
        %v4114 = vmul.f32 %v4113, %v4110
        %v4115 = vmul.f32 %v4113, %v4111
        %v4116 = vadd.f32 %v4014, %v4114
        %v4117 = vadd.f32 %v4015, %v4115
        %s4118 = sld [smem:[#allocation10 + $0x91]]
        %v4119 = vstv %s4118
        %v4120 = vmul.f32 %v4119, %v4110
        %v4121 = vmul.f32 %v4119, %v4111
        %v4122 = vadd.f32 %v4042, %v4120
        %v4123 = vadd.f32 %v4043, %v4121
        %s4124 = sld [smem:[#allocation10 + $0x111]]
        %v4125 = vstv %s4124
        %v4126 = vmul.f32 %v4125, %v4110
        %v4127 = vmul.f32 %v4125, %v4111
        %v4128 = vadd.f32 %v4070, %v4126
        %v4129 = vadd.f32 %v4071, %v4127
        %s4130 = sld [smem:[#allocation10 + $0x191]]
        %v4131 = vstv %s4130
        %v4132 = vmul.f32 %v4131, %v4110
        %v4133 = vmul.f32 %v4131, %v4111
        %v4134 = vadd.f32 %v4098, %v4132
        %v4135 = vadd.f32 %v4099, %v4133
        %s4136 = scalar_lea.vmem [#allocation2], 2
        %v4137 = vld [vmem:[%s4136] ss:$8 sm:$0x7]
        %v4139 = vlaneseq
        %v4140 = vshrl.u32 %v4139, 7
        %v4141 = vsub.s32 0, %v4140
        %v4142 = vrot.slane %v4137, %v4141
        %v4143 = vlaneseq
        %v4144 = vshrl.u32 %v4143, 7
        %v4145 = vsub.s32 1, %v4144
        %v4146 = vrot.slane %v4137, %v4145
        %v4147 = vlaneseq
        %v4148 = vshrl.u32 %v4147, 7
        %v4149 = vsub.s32 2, %v4148
        %v4150 = vrot.slane %v4137, %v4149
        %4151 = vrot.lane.b32.xlu0 %v4142, 17
        %v4152 = vpop.permute.xlu0 %4151
        %4153 = vrot.lane.b32.xlu0 %v4146, 17
        %v4154 = vpop.permute.xlu0 %4153
        %4155 = vrot.lane.b32.xlu0 %v4150, 17
        %v4156 = vpop.permute.xlu0 %4155
        %v4157 = vsel %vm868, %v4152, %v4154
        %v4158 = vsel %vm868, %v4154, %v4156
        %v4161 = vsel %vm496, %v4157, 0.0
        %v4162 = vsel %vm497, %v4158, 0.0
        %s4163 = sld [smem:[#allocation10 + $0x12]]
        %v4164 = vstv %s4163
        %v4165 = vmul.f32 %v4164, %v4161
        %v4166 = vmul.f32 %v4164, %v4162
        %v4167 = vadd.f32 %v4116, %v4165
        %v4168 = vadd.f32 %v4117, %v4166
        %s4169 = sld [smem:[#allocation10 + $0x92]]
        %v4170 = vstv %s4169
        %v4171 = vmul.f32 %v4170, %v4161
        %v4172 = vmul.f32 %v4170, %v4162
        %v4173 = vadd.f32 %v4122, %v4171
        %v4174 = vadd.f32 %v4123, %v4172
        %s4175 = sld [smem:[#allocation10 + $0x112]]
        %v4176 = vstv %s4175
        %v4177 = vmul.f32 %v4176, %v4161
        %v4178 = vmul.f32 %v4176, %v4162
        %v4179 = vadd.f32 %v4128, %v4177
        %v4180 = vadd.f32 %v4129, %v4178
        %s4181 = sld [smem:[#allocation10 + $0x192]]
        %v4182 = vstv %s4181
        %v4183 = vmul.f32 %v4182, %v4161
        %v4184 = vmul.f32 %v4182, %v4162
        %v4185 = vadd.f32 %v4134, %v4183
        %v4186 = vadd.f32 %v4135, %v4184
        %s4187 = sld [smem:[#allocation10 + $0x13]]
        %v4188 = vstv %s4187
        %v4189 = vmul.f32 %v4188, %v4137
        %v4191 = vlaneseq
        %v4192 = vshrl.u32 %v4191, 7
        %v4193 = vsub.s32 0, %v4192
        %v4194 = vrot.slane %v4189, %v4193
        %v4195 = vlaneseq
        %v4196 = vshrl.u32 %v4195, 7
        %v4197 = vsub.s32 1, %v4196
        %v4198 = vrot.slane %v4189, %v4197
        %v4199 = vlaneseq
        %v4200 = vshrl.u32 %v4199, 7
        %v4201 = vsub.s32 2, %v4200
        %v4202 = vrot.slane %v4189, %v4201
        %4203 = vrot.lane.b32.xlu0 %v4194, 16
        %v4204 = vpop.permute.xlu0 %4203
        %4205 = vrot.lane.b32.xlu0 %v4198, 16
        %v4206 = vpop.permute.xlu0 %4205
        %4207 = vrot.lane.b32.xlu0 %v4202, 16
        %v4208 = vpop.permute.xlu0 %4207
        %v4209 = vsel %vm913, %v4204, %v4206
        %v4210 = vsel %vm913, %v4206, %v4208
        %v4213 = vadd.f32 %v4167, %v4209
        %v4214 = vadd.f32 %v4168, %v4210
        %s4215 = sld [smem:[#allocation10 + $0x93]]
        %v4216 = vstv %s4215
        %v4217 = vmul.f32 %v4216, %v4137
        %v4219 = vlaneseq
        %v4220 = vshrl.u32 %v4219, 7
        %v4221 = vsub.s32 0, %v4220
        %v4222 = vrot.slane %v4217, %v4221
        %v4223 = vlaneseq
        %v4224 = vshrl.u32 %v4223, 7
        %v4225 = vsub.s32 1, %v4224
        %v4226 = vrot.slane %v4217, %v4225
        %v4227 = vlaneseq
        %v4228 = vshrl.u32 %v4227, 7
        %v4229 = vsub.s32 2, %v4228
        %v4230 = vrot.slane %v4217, %v4229
        %4231 = vrot.lane.b32.xlu0 %v4222, 16
        %v4232 = vpop.permute.xlu0 %4231
        %4233 = vrot.lane.b32.xlu0 %v4226, 16
        %v4234 = vpop.permute.xlu0 %4233
        %4235 = vrot.lane.b32.xlu0 %v4230, 16
        %v4236 = vpop.permute.xlu0 %4235
        %v4237 = vsel %vm913, %v4232, %v4234
        %v4238 = vsel %vm913, %v4234, %v4236
        %v4241 = vadd.f32 %v4173, %v4237
        %v4242 = vadd.f32 %v4174, %v4238
        %s4243 = sld [smem:[#allocation10 + $0x113]]
        %v4244 = vstv %s4243
        %v4245 = vmul.f32 %v4244, %v4137
        %v4247 = vlaneseq
        %v4248 = vshrl.u32 %v4247, 7
        %v4249 = vsub.s32 0, %v4248
        %v4250 = vrot.slane %v4245, %v4249
        %v4251 = vlaneseq
        %v4252 = vshrl.u32 %v4251, 7
        %v4253 = vsub.s32 1, %v4252
        %v4254 = vrot.slane %v4245, %v4253
        %v4255 = vlaneseq
        %v4256 = vshrl.u32 %v4255, 7
        %v4257 = vsub.s32 2, %v4256
        %v4258 = vrot.slane %v4245, %v4257
        %4259 = vrot.lane.b32.xlu0 %v4250, 16
        %v4260 = vpop.permute.xlu0 %4259
        %4261 = vrot.lane.b32.xlu0 %v4254, 16
        %v4262 = vpop.permute.xlu0 %4261
        %4263 = vrot.lane.b32.xlu0 %v4258, 16
        %v4264 = vpop.permute.xlu0 %4263
        %v4265 = vsel %vm913, %v4260, %v4262
        %v4266 = vsel %vm913, %v4262, %v4264
        %v4269 = vadd.f32 %v4179, %v4265
        %v4270 = vadd.f32 %v4180, %v4266
        %s4271 = sld [smem:[#allocation10 + $0x193]]
        %v4272 = vstv %s4271
        %v4273 = vmul.f32 %v4272, %v4137
        %v4275 = vlaneseq
        %v4276 = vshrl.u32 %v4275, 7
        %v4277 = vsub.s32 0, %v4276
        %v4278 = vrot.slane %v4273, %v4277
        %v4279 = vlaneseq
        %v4280 = vshrl.u32 %v4279, 7
        %v4281 = vsub.s32 1, %v4280
        %v4282 = vrot.slane %v4273, %v4281
        %v4283 = vlaneseq
        %v4284 = vshrl.u32 %v4283, 7
        %v4285 = vsub.s32 2, %v4284
        %v4286 = vrot.slane %v4273, %v4285
        %4287 = vrot.lane.b32.xlu0 %v4278, 16
        %v4288 = vpop.permute.xlu0 %4287
        %4289 = vrot.lane.b32.xlu0 %v4282, 16
        %v4290 = vpop.permute.xlu0 %4289
        %4291 = vrot.lane.b32.xlu0 %v4286, 16
        %v4292 = vpop.permute.xlu0 %4291
        %v4293 = vsel %vm913, %v4288, %v4290
        %v4294 = vsel %vm913, %v4290, %v4292
        %v4297 = vadd.f32 %v4185, %v4293
        %v4298 = vadd.f32 %v4186, %v4294
        %4299 = vrot.lane.b32.xlu0 %v4142, 15
        %v4300 = vpop.permute.xlu0 %4299
        %4301 = vrot.lane.b32.xlu0 %v4146, 15
        %v4302 = vpop.permute.xlu0 %4301
        %4303 = vrot.lane.b32.xlu0 %v4150, 15
        %v4304 = vpop.permute.xlu0 %4303
        %v4305 = vsel %vm1010, %v4300, %v4302
        %v4306 = vsel %vm1010, %v4302, %v4304
        %v4309 = vsel %vm498, %v4305, 0.0
        %v4310 = vsel %vm499, %v4306, 0.0
        %s4311 = sld [smem:[#allocation10 + $0x14]]
        %v4312 = vstv %s4311
        %v4313 = vmul.f32 %v4312, %v4309
        %v4314 = vmul.f32 %v4312, %v4310
        %v4315 = vadd.f32 %v4213, %v4313
        %v4316 = vadd.f32 %v4214, %v4314
        %s4317 = sld [smem:[#allocation10 + $0x94]]
        %v4318 = vstv %s4317
        %v4319 = vmul.f32 %v4318, %v4309
        %v4320 = vmul.f32 %v4318, %v4310
        %v4321 = vadd.f32 %v4241, %v4319
        %v4322 = vadd.f32 %v4242, %v4320
        %s4323 = sld [smem:[#allocation10 + $0x114]]
        %v4324 = vstv %s4323
        %v4325 = vmul.f32 %v4324, %v4309
        %v4326 = vmul.f32 %v4324, %v4310
        %v4327 = vadd.f32 %v4269, %v4325
        %v4328 = vadd.f32 %v4270, %v4326
        %s4329 = sld [smem:[#allocation10 + $0x194]]
        %v4330 = vstv %s4329
        %v4331 = vmul.f32 %v4330, %v4309
        %v4332 = vmul.f32 %v4330, %v4310
        %v4333 = vadd.f32 %v4297, %v4331
        %v4334 = vadd.f32 %v4298, %v4332
        %4335 = vrot.lane.b32.xlu0 %v4142, 1
        %v4336 = vpop.permute.xlu0 %4335
        %4337 = vrot.lane.b32.xlu0 %v4146, 1
        %v4338 = vpop.permute.xlu0 %4337
        %4339 = vrot.lane.b32.xlu0 %v4150, 1
        %v4340 = vpop.permute.xlu0 %4339
        %v4341 = vsel %vm1047, %v4336, %v4338
        %v4342 = vsel %vm1047, %v4338, %v4340
        %v4345 = vsel %vm496, %v4341, 0.0
        %v4346 = vsel %vm497, %v4342, 0.0
        %s4347 = sld [smem:[#allocation10 + $0x15]]
        %v4348 = vstv %s4347
        %v4349 = vmul.f32 %v4348, %v4345
        %v4350 = vmul.f32 %v4348, %v4346
        %v4351 = vadd.f32 %v4315, %v4349
        %v4352 = vadd.f32 %v4316, %v4350
        %s4353 = sld [smem:[#allocation10 + $0x95]]
        %v4354 = vstv %s4353
        %v4355 = vmul.f32 %v4354, %v4345
        %v4356 = vmul.f32 %v4354, %v4346
        %v4357 = vadd.f32 %v4321, %v4355
        %v4358 = vadd.f32 %v4322, %v4356
        %s4359 = sld [smem:[#allocation10 + $0x115]]
        %v4360 = vstv %s4359
        %v4361 = vmul.f32 %v4360, %v4345
        %v4362 = vmul.f32 %v4360, %v4346
        %v4363 = vadd.f32 %v4327, %v4361
        %v4364 = vadd.f32 %v4328, %v4362
        %s4365 = sld [smem:[#allocation10 + $0x195]]
        %v4366 = vstv %s4365
        %v4367 = vmul.f32 %v4366, %v4345
        %v4368 = vmul.f32 %v4366, %v4346
        %v4369 = vadd.f32 %v4333, %v4367
        %v4370 = vadd.f32 %v4334, %v4368
        %v4371 = vld [vmem:[%s687] ss:$8 sm:$0x3]
        %s4372 = sld [smem:[#allocation10 + $0x16]]
        %v4373 = vstv %s4372
        %v4374 = vmul.f32 %v4373, %v4371
        %v4376 = vlaneseq
        %v4377 = vshrl.u32 %v4376, 7
        %v4378 = vsub.s32 0, %v4377
        %v4379 = vrot.slane %v4374, %v4378
        %v4380 = vlaneseq
        %v4381 = vshrl.u32 %v4380, 7
        %v4382 = vsub.s32 1, %v4381
        %v4383 = vrot.slane %v4374, %v4382
        %v4386 = vadd.f32 %v4351, %v4379
        %v4387 = vadd.f32 %v4352, %v4383
        %s4388 = sld [smem:[#allocation10 + $0x96]]
        %v4389 = vstv %s4388
        %v4390 = vmul.f32 %v4389, %v4371
        %v4392 = vlaneseq
        %v4393 = vshrl.u32 %v4392, 7
        %v4394 = vsub.s32 0, %v4393
        %v4395 = vrot.slane %v4390, %v4394
        %v4396 = vlaneseq
        %v4397 = vshrl.u32 %v4396, 7
        %v4398 = vsub.s32 1, %v4397
        %v4399 = vrot.slane %v4390, %v4398
        %v4402 = vadd.f32 %v4357, %v4395
        %v4403 = vadd.f32 %v4358, %v4399
        %s4404 = sld [smem:[#allocation10 + $0x116]]
        %v4405 = vstv %s4404
        %v4406 = vmul.f32 %v4405, %v4371
        %v4408 = vlaneseq
        %v4409 = vshrl.u32 %v4408, 7
        %v4410 = vsub.s32 0, %v4409
        %v4411 = vrot.slane %v4406, %v4410
        %v4412 = vlaneseq
        %v4413 = vshrl.u32 %v4412, 7
        %v4414 = vsub.s32 1, %v4413
        %v4415 = vrot.slane %v4406, %v4414
        %v4418 = vadd.f32 %v4363, %v4411
        %v4419 = vadd.f32 %v4364, %v4415
        %s4420 = sld [smem:[#allocation10 + $0x196]]
        %v4421 = vstv %s4420
        %v4422 = vmul.f32 %v4421, %v4371
        %v4424 = vlaneseq
        %v4425 = vshrl.u32 %v4424, 7
        %v4426 = vsub.s32 0, %v4425
        %v4427 = vrot.slane %v4422, %v4426
        %v4428 = vlaneseq
        %v4429 = vshrl.u32 %v4428, 7
        %v4430 = vsub.s32 1, %v4429
        %v4431 = vrot.slane %v4422, %v4430
        %v4434 = vadd.f32 %v4369, %v4427
        %v4435 = vadd.f32 %v4370, %v4431
        %s4436 = scalar_lea.vmem [#allocation2], 10
        %v4437 = vld [vmem:[%s4436] ss:$8 sm:$0x7]
        %v4439 = vlaneseq
        %v4440 = vshrl.u32 %v4439, 7
        %v4441 = vsub.s32 0, %v4440
        %v4442 = vrot.slane %v4437, %v4441
        %v4443 = vlaneseq
        %v4444 = vshrl.u32 %v4443, 7
        %v4445 = vsub.s32 1, %v4444
        %v4446 = vrot.slane %v4437, %v4445
        %v4447 = vlaneseq
        %v4448 = vshrl.u32 %v4447, 7
        %v4449 = vsub.s32 2, %v4448
        %v4450 = vrot.slane %v4437, %v4449
        %4451 = vrot.lane.b32.xlu0 %v4442, 127
        %v4452 = vpop.permute.xlu0 %4451
        %4453 = vrot.lane.b32.xlu0 %v4446, 127
        %v4454 = vpop.permute.xlu0 %4453
        %4455 = vrot.lane.b32.xlu0 %v4450, 127
        %v4456 = vpop.permute.xlu0 %4455
        %v4457 = vsel %vm1164, %v4452, %v4454
        %v4458 = vsel %vm1164, %v4454, %v4456
        %v4461 = vsel %vm498, %v4457, 0.0
        %v4462 = vsel %vm499, %v4458, 0.0
        %s4463 = sld [smem:[#allocation10 + $0x17]]
        %v4464 = vstv %s4463
        %v4465 = vmul.f32 %v4464, %v4461
        %v4466 = vmul.f32 %v4464, %v4462
        %v4467 = vadd.f32 %v4386, %v4465
        %v4468 = vadd.f32 %v4387, %v4466
        %s4469 = sld [smem:[#allocation10 + $0x97]]
        %v4470 = vstv %s4469
        %v4471 = vmul.f32 %v4470, %v4461
        %v4472 = vmul.f32 %v4470, %v4462
        %v4473 = vadd.f32 %v4402, %v4471
        %v4474 = vadd.f32 %v4403, %v4472
        %s4475 = sld [smem:[#allocation10 + $0x117]]
        %v4476 = vstv %s4475
        %v4477 = vmul.f32 %v4476, %v4461
        %v4478 = vmul.f32 %v4476, %v4462
        %v4479 = vadd.f32 %v4418, %v4477
        %v4480 = vadd.f32 %v4419, %v4478
        %s4481 = sld [smem:[#allocation10 + $0x197]]
        %v4482 = vstv %s4481
        %v4483 = vmul.f32 %v4482, %v4461
        %v4484 = vmul.f32 %v4482, %v4462
        %v4485 = vadd.f32 %v4434, %v4483
        %v4486 = vadd.f32 %v4435, %v4484
        %4487 = vrot.lane.b32.xlu0 %v4442, 113
        %v4488 = vpop.permute.xlu0 %4487
        %4489 = vrot.lane.b32.xlu0 %v4446, 113
        %v4490 = vpop.permute.xlu0 %4489
        %4491 = vrot.lane.b32.xlu0 %v4450, 113
        %v4492 = vpop.permute.xlu0 %4491
        %v4493 = vsel %vm1201, %v4488, %v4490
        %v4494 = vsel %vm1201, %v4490, %v4492
        %v4497 = vsel %vm496, %v4493, 0.0
        %v4498 = vsel %vm497, %v4494, 0.0
        %s4499 = sld [smem:[#allocation10 + $0x18]]
        %v4500 = vstv %s4499
        %v4501 = vmul.f32 %v4500, %v4497
        %v4502 = vmul.f32 %v4500, %v4498
        %v4503 = vadd.f32 %v4467, %v4501
        %v4504 = vadd.f32 %v4468, %v4502
        %s4505 = sld [smem:[#allocation10 + $0x98]]
        %v4506 = vstv %s4505
        %v4507 = vmul.f32 %v4506, %v4497
        %v4508 = vmul.f32 %v4506, %v4498
        %v4509 = vadd.f32 %v4473, %v4507
        %v4510 = vadd.f32 %v4474, %v4508
        %s4511 = sld [smem:[#allocation10 + $0x118]]
        %v4512 = vstv %s4511
        %v4513 = vmul.f32 %v4512, %v4497
        %v4514 = vmul.f32 %v4512, %v4498
        %v4515 = vadd.f32 %v4479, %v4513
        %v4516 = vadd.f32 %v4480, %v4514
        %s4517 = sld [smem:[#allocation10 + $0x198]]
        %v4518 = vstv %s4517
        %v4519 = vmul.f32 %v4518, %v4497
        %v4520 = vmul.f32 %v4518, %v4498
        %v4521 = vadd.f32 %v4485, %v4519
        %v4522 = vadd.f32 %v4486, %v4520
        %s4523 = sld [smem:[#allocation10 + $0x19]]
        %v4524 = vstv %s4523
        %v4525 = vmul.f32 %v4524, %v4437
        %v4527 = vlaneseq
        %v4528 = vshrl.u32 %v4527, 7
        %v4529 = vsub.s32 0, %v4528
        %v4530 = vrot.slane %v4525, %v4529
        %v4531 = vlaneseq
        %v4532 = vshrl.u32 %v4531, 7
        %v4533 = vsub.s32 1, %v4532
        %v4534 = vrot.slane %v4525, %v4533
        %v4535 = vlaneseq
        %v4536 = vshrl.u32 %v4535, 7
        %v4537 = vsub.s32 2, %v4536
        %v4538 = vrot.slane %v4525, %v4537
        %4539 = vrot.lane.b32.xlu0 %v4530, 112
        %v4540 = vpop.permute.xlu0 %4539
        %4541 = vrot.lane.b32.xlu0 %v4534, 112
        %v4542 = vpop.permute.xlu0 %4541
        %4543 = vrot.lane.b32.xlu0 %v4538, 112
        %v4544 = vpop.permute.xlu0 %4543
        %v4545 = vsel %vm1254, %v4540, %v4542
        %v4546 = vsel %vm1254, %v4542, %v4544
        %v4549 = vadd.f32 %v4503, %v4545
        %v4550 = vadd.f32 %v4504, %v4546
        %s4551 = sld [smem:[#allocation10 + $0x99]]
        %v4552 = vstv %s4551
        %v4553 = vmul.f32 %v4552, %v4437
        %v4555 = vlaneseq
        %v4556 = vshrl.u32 %v4555, 7
        %v4557 = vsub.s32 0, %v4556
        %v4558 = vrot.slane %v4553, %v4557
        %v4559 = vlaneseq
        %v4560 = vshrl.u32 %v4559, 7
        %v4561 = vsub.s32 1, %v4560
        %v4562 = vrot.slane %v4553, %v4561
        %v4563 = vlaneseq
        %v4564 = vshrl.u32 %v4563, 7
        %v4565 = vsub.s32 2, %v4564
        %v4566 = vrot.slane %v4553, %v4565
        %4567 = vrot.lane.b32.xlu0 %v4558, 112
        %v4568 = vpop.permute.xlu0 %4567
        %4569 = vrot.lane.b32.xlu0 %v4562, 112
        %v4570 = vpop.permute.xlu0 %4569
        %4571 = vrot.lane.b32.xlu0 %v4566, 112
        %v4572 = vpop.permute.xlu0 %4571
        %v4573 = vsel %vm1254, %v4568, %v4570
        %v4574 = vsel %vm1254, %v4570, %v4572
        %v4577 = vadd.f32 %v4509, %v4573
        %v4578 = vadd.f32 %v4510, %v4574
        %s4579 = sld [smem:[#allocation10 + $0x119]]
        %v4580 = vstv %s4579
        %v4581 = vmul.f32 %v4580, %v4437
        %v4583 = vlaneseq
        %v4584 = vshrl.u32 %v4583, 7
        %v4585 = vsub.s32 0, %v4584
        %v4586 = vrot.slane %v4581, %v4585
        %v4587 = vlaneseq
        %v4588 = vshrl.u32 %v4587, 7
        %v4589 = vsub.s32 1, %v4588
        %v4590 = vrot.slane %v4581, %v4589
        %v4591 = vlaneseq
        %v4592 = vshrl.u32 %v4591, 7
        %v4593 = vsub.s32 2, %v4592
        %v4594 = vrot.slane %v4581, %v4593
        %4595 = vrot.lane.b32.xlu0 %v4586, 112
        %v4596 = vpop.permute.xlu0 %4595
        %4597 = vrot.lane.b32.xlu0 %v4590, 112
        %v4598 = vpop.permute.xlu0 %4597
        %4599 = vrot.lane.b32.xlu0 %v4594, 112
        %v4600 = vpop.permute.xlu0 %4599
        %v4601 = vsel %vm1254, %v4596, %v4598
        %v4602 = vsel %vm1254, %v4598, %v4600
        %v4605 = vadd.f32 %v4515, %v4601
        %v4606 = vadd.f32 %v4516, %v4602
        %s4607 = sld [smem:[#allocation10 + $0x199]]
        %v4608 = vstv %s4607
        %v4609 = vmul.f32 %v4608, %v4437
        %v4611 = vlaneseq
        %v4612 = vshrl.u32 %v4611, 7
        %v4613 = vsub.s32 0, %v4612
        %v4614 = vrot.slane %v4609, %v4613
        %v4615 = vlaneseq
        %v4616 = vshrl.u32 %v4615, 7
        %v4617 = vsub.s32 1, %v4616
        %v4618 = vrot.slane %v4609, %v4617
        %v4619 = vlaneseq
        %v4620 = vshrl.u32 %v4619, 7
        %v4621 = vsub.s32 2, %v4620
        %v4622 = vrot.slane %v4609, %v4621
        %4623 = vrot.lane.b32.xlu0 %v4614, 112
        %v4624 = vpop.permute.xlu0 %4623
        %4625 = vrot.lane.b32.xlu0 %v4618, 112
        %v4626 = vpop.permute.xlu0 %4625
        %4627 = vrot.lane.b32.xlu0 %v4622, 112
        %v4628 = vpop.permute.xlu0 %4627
        %v4629 = vsel %vm1254, %v4624, %v4626
        %v4630 = vsel %vm1254, %v4626, %v4628
        %v4633 = vadd.f32 %v4521, %v4629
        %v4634 = vadd.f32 %v4522, %v4630
        %4635 = vrot.lane.b32.xlu0 %v4442, 111
        %v4636 = vpop.permute.xlu0 %4635
        %4637 = vrot.lane.b32.xlu0 %v4446, 111
        %v4638 = vpop.permute.xlu0 %4637
        %4639 = vrot.lane.b32.xlu0 %v4450, 111
        %v4640 = vpop.permute.xlu0 %4639
        %v4641 = vsel %vm1351, %v4636, %v4638
        %v4642 = vsel %vm1351, %v4638, %v4640
        %v4645 = vsel %vm498, %v4641, 0.0
        %v4646 = vsel %vm499, %v4642, 0.0
        %s4647 = sld [smem:[#allocation10 + $0x1a]]
        %v4648 = vstv %s4647
        %v4649 = vmul.f32 %v4648, %v4645
        %v4650 = vmul.f32 %v4648, %v4646
        %v4651 = vadd.f32 %v4549, %v4649
        %v4652 = vadd.f32 %v4550, %v4650
        %s4653 = sld [smem:[#allocation10 + $0x9a]]
        %v4654 = vstv %s4653
        %v4655 = vmul.f32 %v4654, %v4645
        %v4656 = vmul.f32 %v4654, %v4646
        %v4657 = vadd.f32 %v4577, %v4655
        %v4658 = vadd.f32 %v4578, %v4656
        %s4659 = sld [smem:[#allocation10 + $0x11a]]
        %v4660 = vstv %s4659
        %v4661 = vmul.f32 %v4660, %v4645
        %v4662 = vmul.f32 %v4660, %v4646
        %v4663 = vadd.f32 %v4605, %v4661
        %v4664 = vadd.f32 %v4606, %v4662
        %s4665 = sld [smem:[#allocation10 + $0x19a]]
        %v4666 = vstv %s4665
        %v4667 = vmul.f32 %v4666, %v4645
        %v4668 = vmul.f32 %v4666, %v4646
        %v4669 = vadd.f32 %v4633, %v4667
        %v4670 = vadd.f32 %v4634, %v4668
        %s4671 = scalar_lea.vmem [#allocation2], 3
        %v4672 = vld [vmem:[%s4671] ss:$8 sm:$0x7]
        %v4674 = vlaneseq
        %v4675 = vshrl.u32 %v4674, 7
        %v4676 = vsub.s32 0, %v4675
        %v4677 = vrot.slane %v4672, %v4676
        %v4678 = vlaneseq
        %v4679 = vshrl.u32 %v4678, 7
        %v4680 = vsub.s32 1, %v4679
        %v4681 = vrot.slane %v4672, %v4680
        %v4682 = vlaneseq
        %v4683 = vshrl.u32 %v4682, 7
        %v4684 = vsub.s32 2, %v4683
        %v4685 = vrot.slane %v4672, %v4684
        %4686 = vrot.lane.b32.xlu0 %v4677, 17
        %v4687 = vpop.permute.xlu0 %4686
        %4688 = vrot.lane.b32.xlu0 %v4681, 17
        %v4689 = vpop.permute.xlu0 %4688
        %4690 = vrot.lane.b32.xlu0 %v4685, 17
        %v4691 = vpop.permute.xlu0 %4690
        %v4692 = vsel %vm868, %v4687, %v4689
        %v4693 = vsel %vm868, %v4689, %v4691
        %v4696 = vsel %vm496, %v4692, 0.0
        %v4697 = vsel %vm497, %v4693, 0.0
        %s4698 = sld [smem:[#allocation10 + $0x1b]]
        %v4699 = vstv %s4698
        %v4700 = vmul.f32 %v4699, %v4696
        %v4701 = vmul.f32 %v4699, %v4697
        %v4702 = vadd.f32 %v4651, %v4700
        %v4703 = vadd.f32 %v4652, %v4701
        %s4704 = sld [smem:[#allocation10 + $0x9b]]
        %v4705 = vstv %s4704
        %v4706 = vmul.f32 %v4705, %v4696
        %v4707 = vmul.f32 %v4705, %v4697
        %v4708 = vadd.f32 %v4657, %v4706
        %v4709 = vadd.f32 %v4658, %v4707
        %s4710 = sld [smem:[#allocation10 + $0x11b]]
        %v4711 = vstv %s4710
        %v4712 = vmul.f32 %v4711, %v4696
        %v4713 = vmul.f32 %v4711, %v4697
        %v4714 = vadd.f32 %v4663, %v4712
        %v4715 = vadd.f32 %v4664, %v4713
        %s4716 = sld [smem:[#allocation10 + $0x19b]]
        %v4717 = vstv %s4716
        %v4718 = vmul.f32 %v4717, %v4696
        %v4719 = vmul.f32 %v4717, %v4697
        %v4720 = vadd.f32 %v4669, %v4718
        %v4721 = vadd.f32 %v4670, %v4719
        %s4722 = sld [smem:[#allocation10 + $0x1c]]
        %v4723 = vstv %s4722
        %v4724 = vmul.f32 %v4723, %v4672
        %v4726 = vlaneseq
        %v4727 = vshrl.u32 %v4726, 7
        %v4728 = vsub.s32 0, %v4727
        %v4729 = vrot.slane %v4724, %v4728
        %v4730 = vlaneseq
        %v4731 = vshrl.u32 %v4730, 7
        %v4732 = vsub.s32 1, %v4731
        %v4733 = vrot.slane %v4724, %v4732
        %v4734 = vlaneseq
        %v4735 = vshrl.u32 %v4734, 7
        %v4736 = vsub.s32 2, %v4735
        %v4737 = vrot.slane %v4724, %v4736
        %4738 = vrot.lane.b32.xlu0 %v4729, 16
        %v4739 = vpop.permute.xlu0 %4738
        %4740 = vrot.lane.b32.xlu0 %v4733, 16
        %v4741 = vpop.permute.xlu0 %4740
        %4742 = vrot.lane.b32.xlu0 %v4737, 16
        %v4743 = vpop.permute.xlu0 %4742
        %v4744 = vsel %vm913, %v4739, %v4741
        %v4745 = vsel %vm913, %v4741, %v4743
        %v4748 = vadd.f32 %v4702, %v4744
        %v4749 = vadd.f32 %v4703, %v4745
        %s4750 = sld [smem:[#allocation10 + $0x9c]]
        %v4751 = vstv %s4750
        %v4752 = vmul.f32 %v4751, %v4672
        %v4754 = vlaneseq
        %v4755 = vshrl.u32 %v4754, 7
        %v4756 = vsub.s32 0, %v4755
        %v4757 = vrot.slane %v4752, %v4756
        %v4758 = vlaneseq
        %v4759 = vshrl.u32 %v4758, 7
        %v4760 = vsub.s32 1, %v4759
        %v4761 = vrot.slane %v4752, %v4760
        %v4762 = vlaneseq
        %v4763 = vshrl.u32 %v4762, 7
        %v4764 = vsub.s32 2, %v4763
        %v4765 = vrot.slane %v4752, %v4764
        %4766 = vrot.lane.b32.xlu0 %v4757, 16
        %v4767 = vpop.permute.xlu0 %4766
        %4768 = vrot.lane.b32.xlu0 %v4761, 16
        %v4769 = vpop.permute.xlu0 %4768
        %4770 = vrot.lane.b32.xlu0 %v4765, 16
        %v4771 = vpop.permute.xlu0 %4770
        %v4772 = vsel %vm913, %v4767, %v4769
        %v4773 = vsel %vm913, %v4769, %v4771
        %v4776 = vadd.f32 %v4708, %v4772
        %v4777 = vadd.f32 %v4709, %v4773
        %s4778 = sld [smem:[#allocation10 + $0x11c]]
        %v4779 = vstv %s4778
        %v4780 = vmul.f32 %v4779, %v4672
        %v4782 = vlaneseq
        %v4783 = vshrl.u32 %v4782, 7
        %v4784 = vsub.s32 0, %v4783
        %v4785 = vrot.slane %v4780, %v4784
        %v4786 = vlaneseq
        %v4787 = vshrl.u32 %v4786, 7
        %v4788 = vsub.s32 1, %v4787
        %v4789 = vrot.slane %v4780, %v4788
        %v4790 = vlaneseq
        %v4791 = vshrl.u32 %v4790, 7
        %v4792 = vsub.s32 2, %v4791
        %v4793 = vrot.slane %v4780, %v4792
        %4794 = vrot.lane.b32.xlu0 %v4785, 16
        %v4795 = vpop.permute.xlu0 %4794
        %4796 = vrot.lane.b32.xlu0 %v4789, 16
        %v4797 = vpop.permute.xlu0 %4796
        %4798 = vrot.lane.b32.xlu0 %v4793, 16
        %v4799 = vpop.permute.xlu0 %4798
        %v4800 = vsel %vm913, %v4795, %v4797
        %v4801 = vsel %vm913, %v4797, %v4799
        %v4804 = vadd.f32 %v4714, %v4800
        %v4805 = vadd.f32 %v4715, %v4801
        %s4806 = sld [smem:[#allocation10 + $0x19c]]
        %v4807 = vstv %s4806
        %v4808 = vmul.f32 %v4807, %v4672
        %v4810 = vlaneseq
        %v4811 = vshrl.u32 %v4810, 7
        %v4812 = vsub.s32 0, %v4811
        %v4813 = vrot.slane %v4808, %v4812
        %v4814 = vlaneseq
        %v4815 = vshrl.u32 %v4814, 7
        %v4816 = vsub.s32 1, %v4815
        %v4817 = vrot.slane %v4808, %v4816
        %v4818 = vlaneseq
        %v4819 = vshrl.u32 %v4818, 7
        %v4820 = vsub.s32 2, %v4819
        %v4821 = vrot.slane %v4808, %v4820
        %4822 = vrot.lane.b32.xlu0 %v4813, 16
        %v4823 = vpop.permute.xlu0 %4822
        %4824 = vrot.lane.b32.xlu0 %v4817, 16
        %v4825 = vpop.permute.xlu0 %4824
        %4826 = vrot.lane.b32.xlu0 %v4821, 16
        %v4827 = vpop.permute.xlu0 %4826
        %v4828 = vsel %vm913, %v4823, %v4825
        %v4829 = vsel %vm913, %v4825, %v4827
        %v4832 = vadd.f32 %v4720, %v4828
        %v4833 = vadd.f32 %v4721, %v4829
        %4834 = vrot.lane.b32.xlu0 %v4677, 15
        %v4835 = vpop.permute.xlu0 %4834
        %4836 = vrot.lane.b32.xlu0 %v4681, 15
        %v4837 = vpop.permute.xlu0 %4836
        %4838 = vrot.lane.b32.xlu0 %v4685, 15
        %v4839 = vpop.permute.xlu0 %4838
        %v4840 = vsel %vm1010, %v4835, %v4837
        %v4841 = vsel %vm1010, %v4837, %v4839
        %v4844 = vsel %vm498, %v4840, 0.0
        %v4845 = vsel %vm499, %v4841, 0.0
        %s4846 = sld [smem:[#allocation10 + $0x1d]]
        %v4847 = vstv %s4846
        %v4848 = vmul.f32 %v4847, %v4844
        %v4849 = vmul.f32 %v4847, %v4845
        %v4850 = vadd.f32 %v4748, %v4848
        %v4851 = vadd.f32 %v4749, %v4849
        %s4852 = sld [smem:[#allocation10 + $0x9d]]
        %v4853 = vstv %s4852
        %v4854 = vmul.f32 %v4853, %v4844
        %v4855 = vmul.f32 %v4853, %v4845
        %v4856 = vadd.f32 %v4776, %v4854
        %v4857 = vadd.f32 %v4777, %v4855
        %s4858 = sld [smem:[#allocation10 + $0x11d]]
        %v4859 = vstv %s4858
        %v4860 = vmul.f32 %v4859, %v4844
        %v4861 = vmul.f32 %v4859, %v4845
        %v4862 = vadd.f32 %v4804, %v4860
        %v4863 = vadd.f32 %v4805, %v4861
        %s4864 = sld [smem:[#allocation10 + $0x19d]]
        %v4865 = vstv %s4864
        %v4866 = vmul.f32 %v4865, %v4844
        %v4867 = vmul.f32 %v4865, %v4845
        %v4868 = vadd.f32 %v4832, %v4866
        %v4869 = vadd.f32 %v4833, %v4867
        %4870 = vrot.lane.b32.xlu0 %v4677, 1
        %v4871 = vpop.permute.xlu0 %4870
        %4872 = vrot.lane.b32.xlu0 %v4681, 1
        %v4873 = vpop.permute.xlu0 %4872
        %4874 = vrot.lane.b32.xlu0 %v4685, 1
        %v4875 = vpop.permute.xlu0 %4874
        %v4876 = vsel %vm1047, %v4871, %v4873
        %v4877 = vsel %vm1047, %v4873, %v4875
        %v4880 = vsel %vm496, %v4876, 0.0
        %v4881 = vsel %vm497, %v4877, 0.0
        %s4882 = sld [smem:[#allocation10 + $0x1e]]
        %v4883 = vstv %s4882
        %v4884 = vmul.f32 %v4883, %v4880
        %v4885 = vmul.f32 %v4883, %v4881
        %v4886 = vadd.f32 %v4850, %v4884
        %v4887 = vadd.f32 %v4851, %v4885
        %s4888 = sld [smem:[#allocation10 + $0x9e]]
        %v4889 = vstv %s4888
        %v4890 = vmul.f32 %v4889, %v4880
        %v4891 = vmul.f32 %v4889, %v4881
        %v4892 = vadd.f32 %v4856, %v4890
        %v4893 = vadd.f32 %v4857, %v4891
        %s4894 = sld [smem:[#allocation10 + $0x11e]]
        %v4895 = vstv %s4894
        %v4896 = vmul.f32 %v4895, %v4880
        %v4897 = vmul.f32 %v4895, %v4881
        %v4898 = vadd.f32 %v4862, %v4896
        %v4899 = vadd.f32 %v4863, %v4897
        %s4900 = sld [smem:[#allocation10 + $0x19e]]
        %v4901 = vstv %s4900
        %v4902 = vmul.f32 %v4901, %v4880
        %v4903 = vmul.f32 %v4901, %v4881
        %v4904 = vadd.f32 %v4868, %v4902
        %v4905 = vadd.f32 %v4869, %v4903
        %v4906 = vld [vmem:[%s752] ss:$8 sm:$0x3]
        %s4907 = sld [smem:[#allocation10 + $0x1f]]
        %v4908 = vstv %s4907
        %v4909 = vmul.f32 %v4908, %v4906
        %v4911 = vlaneseq
        %v4912 = vshrl.u32 %v4911, 7
        %v4913 = vsub.s32 0, %v4912
        %v4914 = vrot.slane %v4909, %v4913
        %v4915 = vlaneseq
        %v4916 = vshrl.u32 %v4915, 7
        %v4917 = vsub.s32 1, %v4916
        %v4918 = vrot.slane %v4909, %v4917
        %v4921 = vadd.f32 %v4886, %v4914
        %v4922 = vadd.f32 %v4887, %v4918
        %s4923 = sld [smem:[#allocation10 + $0x9f]]
        %v4924 = vstv %s4923
        %v4925 = vmul.f32 %v4924, %v4906
        %v4927 = vlaneseq
        %v4928 = vshrl.u32 %v4927, 7
        %v4929 = vsub.s32 0, %v4928
        %v4930 = vrot.slane %v4925, %v4929
        %v4931 = vlaneseq
        %v4932 = vshrl.u32 %v4931, 7
        %v4933 = vsub.s32 1, %v4932
        %v4934 = vrot.slane %v4925, %v4933
        %v4937 = vadd.f32 %v4892, %v4930
        %v4938 = vadd.f32 %v4893, %v4934
        %s4939 = sld [smem:[#allocation10 + $0x11f]]
        %v4940 = vstv %s4939
        %v4941 = vmul.f32 %v4940, %v4906
        %v4943 = vlaneseq
        %v4944 = vshrl.u32 %v4943, 7
        %v4945 = vsub.s32 0, %v4944
        %v4946 = vrot.slane %v4941, %v4945
        %v4947 = vlaneseq
        %v4948 = vshrl.u32 %v4947, 7
        %v4949 = vsub.s32 1, %v4948
        %v4950 = vrot.slane %v4941, %v4949
        %v4953 = vadd.f32 %v4898, %v4946
        %v4954 = vadd.f32 %v4899, %v4950
        %s4955 = sld [smem:[#allocation10 + $0x19f]]
        %v4956 = vstv %s4955
        %v4957 = vmul.f32 %v4956, %v4906
        %v4959 = vlaneseq
        %v4960 = vshrl.u32 %v4959, 7
        %v4961 = vsub.s32 0, %v4960
        %v4962 = vrot.slane %v4957, %v4961
        %v4963 = vlaneseq
        %v4964 = vshrl.u32 %v4963, 7
        %v4965 = vsub.s32 1, %v4964
        %v4966 = vrot.slane %v4957, %v4965
        %v4969 = vadd.f32 %v4904, %v4962
        %v4970 = vadd.f32 %v4905, %v4966
        %s4971 = scalar_lea.vmem [#allocation2], 11
        %v4972 = vld [vmem:[%s4971] ss:$8 sm:$0x7]
        %v4974 = vlaneseq
        %v4975 = vshrl.u32 %v4974, 7
        %v4976 = vsub.s32 0, %v4975
        %v4977 = vrot.slane %v4972, %v4976
        %v4978 = vlaneseq
        %v4979 = vshrl.u32 %v4978, 7
        %v4980 = vsub.s32 1, %v4979
        %v4981 = vrot.slane %v4972, %v4980
        %v4982 = vlaneseq
        %v4983 = vshrl.u32 %v4982, 7
        %v4984 = vsub.s32 2, %v4983
        %v4985 = vrot.slane %v4972, %v4984
        %4986 = vrot.lane.b32.xlu0 %v4977, 127
        %v4987 = vpop.permute.xlu0 %4986
        %4988 = vrot.lane.b32.xlu0 %v4981, 127
        %v4989 = vpop.permute.xlu0 %4988
        %4990 = vrot.lane.b32.xlu0 %v4985, 127
        %v4991 = vpop.permute.xlu0 %4990
        %v4992 = vsel %vm1164, %v4987, %v4989
        %v4993 = vsel %vm1164, %v4989, %v4991
        %v4996 = vsel %vm498, %v4992, 0.0
        %v4997 = vsel %vm499, %v4993, 0.0
        %s4998 = sld [smem:[#allocation10 + $0x20]]
        %v4999 = vstv %s4998
        %v5000 = vmul.f32 %v4999, %v4996
        %v5001 = vmul.f32 %v4999, %v4997
        %v5002 = vadd.f32 %v4921, %v5000
        %v5003 = vadd.f32 %v4922, %v5001
        %s5004 = sld [smem:[#allocation10 + $0xa0]]
        %v5005 = vstv %s5004
        %v5006 = vmul.f32 %v5005, %v4996
        %v5007 = vmul.f32 %v5005, %v4997
        %v5008 = vadd.f32 %v4937, %v5006
        %v5009 = vadd.f32 %v4938, %v5007
        %s5010 = sld [smem:[#allocation10 + $0x120]]
        %v5011 = vstv %s5010
        %v5012 = vmul.f32 %v5011, %v4996
        %v5013 = vmul.f32 %v5011, %v4997
        %v5014 = vadd.f32 %v4953, %v5012
        %v5015 = vadd.f32 %v4954, %v5013
        %s5016 = sld [smem:[#allocation10 + $0x1a0]]
        %v5017 = vstv %s5016
        %v5018 = vmul.f32 %v5017, %v4996
        %v5019 = vmul.f32 %v5017, %v4997
        %v5020 = vadd.f32 %v4969, %v5018
        %v5021 = vadd.f32 %v4970, %v5019
        %5022 = vrot.lane.b32.xlu0 %v4977, 113
        %v5023 = vpop.permute.xlu0 %5022
        %5024 = vrot.lane.b32.xlu0 %v4981, 113
        %v5025 = vpop.permute.xlu0 %5024
        %5026 = vrot.lane.b32.xlu0 %v4985, 113
        %v5027 = vpop.permute.xlu0 %5026
        %v5028 = vsel %vm1201, %v5023, %v5025
        %v5029 = vsel %vm1201, %v5025, %v5027
        %v5032 = vsel %vm496, %v5028, 0.0
        %v5033 = vsel %vm497, %v5029, 0.0
        %s5034 = sld [smem:[#allocation10 + $0x21]]
        %v5035 = vstv %s5034
        %v5036 = vmul.f32 %v5035, %v5032
        %v5037 = vmul.f32 %v5035, %v5033
        %v5038 = vadd.f32 %v5002, %v5036
        %v5039 = vadd.f32 %v5003, %v5037
        %s5040 = sld [smem:[#allocation10 + $0xa1]]
        %v5041 = vstv %s5040
        %v5042 = vmul.f32 %v5041, %v5032
        %v5043 = vmul.f32 %v5041, %v5033
        %v5044 = vadd.f32 %v5008, %v5042
        %v5045 = vadd.f32 %v5009, %v5043
        %s5046 = sld [smem:[#allocation10 + $0x121]]
        %v5047 = vstv %s5046
        %v5048 = vmul.f32 %v5047, %v5032
        %v5049 = vmul.f32 %v5047, %v5033
        %v5050 = vadd.f32 %v5014, %v5048
        %v5051 = vadd.f32 %v5015, %v5049
        %s5052 = sld [smem:[#allocation10 + $0x1a1]]
        %v5053 = vstv %s5052
        %v5054 = vmul.f32 %v5053, %v5032
        %v5055 = vmul.f32 %v5053, %v5033
        %v5056 = vadd.f32 %v5020, %v5054
        %v5057 = vadd.f32 %v5021, %v5055
        %s5058 = sld [smem:[#allocation10 + $0x22]]
        %v5059 = vstv %s5058
        %v5060 = vmul.f32 %v5059, %v4972
        %v5062 = vlaneseq
        %v5063 = vshrl.u32 %v5062, 7
        %v5064 = vsub.s32 0, %v5063
        %v5065 = vrot.slane %v5060, %v5064
        %v5066 = vlaneseq
        %v5067 = vshrl.u32 %v5066, 7
        %v5068 = vsub.s32 1, %v5067
        %v5069 = vrot.slane %v5060, %v5068
        %v5070 = vlaneseq
        %v5071 = vshrl.u32 %v5070, 7
        %v5072 = vsub.s32 2, %v5071
        %v5073 = vrot.slane %v5060, %v5072
        %5074 = vrot.lane.b32.xlu0 %v5065, 112
        %v5075 = vpop.permute.xlu0 %5074
        %5076 = vrot.lane.b32.xlu0 %v5069, 112
        %v5077 = vpop.permute.xlu0 %5076
        %5078 = vrot.lane.b32.xlu0 %v5073, 112
        %v5079 = vpop.permute.xlu0 %5078
        %v5080 = vsel %vm1254, %v5075, %v5077
        %v5081 = vsel %vm1254, %v5077, %v5079
        %v5084 = vadd.f32 %v5038, %v5080
        %v5085 = vadd.f32 %v5039, %v5081
        %s5086 = sld [smem:[#allocation10 + $0xa2]]
        %v5087 = vstv %s5086
        %v5088 = vmul.f32 %v5087, %v4972
        %v5090 = vlaneseq
        %v5091 = vshrl.u32 %v5090, 7
        %v5092 = vsub.s32 0, %v5091
        %v5093 = vrot.slane %v5088, %v5092
        %v5094 = vlaneseq
        %v5095 = vshrl.u32 %v5094, 7
        %v5096 = vsub.s32 1, %v5095
        %v5097 = vrot.slane %v5088, %v5096
        %v5098 = vlaneseq
        %v5099 = vshrl.u32 %v5098, 7
        %v5100 = vsub.s32 2, %v5099
        %v5101 = vrot.slane %v5088, %v5100
        %5102 = vrot.lane.b32.xlu0 %v5093, 112
        %v5103 = vpop.permute.xlu0 %5102
        %5104 = vrot.lane.b32.xlu0 %v5097, 112
        %v5105 = vpop.permute.xlu0 %5104
        %5106 = vrot.lane.b32.xlu0 %v5101, 112
        %v5107 = vpop.permute.xlu0 %5106
        %v5108 = vsel %vm1254, %v5103, %v5105
        %v5109 = vsel %vm1254, %v5105, %v5107
        %v5112 = vadd.f32 %v5044, %v5108
        %v5113 = vadd.f32 %v5045, %v5109
        %s5114 = sld [smem:[#allocation10 + $0x122]]
        %v5115 = vstv %s5114
        %v5116 = vmul.f32 %v5115, %v4972
        %v5118 = vlaneseq
        %v5119 = vshrl.u32 %v5118, 7
        %v5120 = vsub.s32 0, %v5119
        %v5121 = vrot.slane %v5116, %v5120
        %v5122 = vlaneseq
        %v5123 = vshrl.u32 %v5122, 7
        %v5124 = vsub.s32 1, %v5123
        %v5125 = vrot.slane %v5116, %v5124
        %v5126 = vlaneseq
        %v5127 = vshrl.u32 %v5126, 7
        %v5128 = vsub.s32 2, %v5127
        %v5129 = vrot.slane %v5116, %v5128
        %5130 = vrot.lane.b32.xlu0 %v5121, 112
        %v5131 = vpop.permute.xlu0 %5130
        %5132 = vrot.lane.b32.xlu0 %v5125, 112
        %v5133 = vpop.permute.xlu0 %5132
        %5134 = vrot.lane.b32.xlu0 %v5129, 112
        %v5135 = vpop.permute.xlu0 %5134
        %v5136 = vsel %vm1254, %v5131, %v5133
        %v5137 = vsel %vm1254, %v5133, %v5135
        %v5140 = vadd.f32 %v5050, %v5136
        %v5141 = vadd.f32 %v5051, %v5137
        %s5142 = sld [smem:[#allocation10 + $0x1a2]]
        %v5143 = vstv %s5142
        %v5144 = vmul.f32 %v5143, %v4972
        %v5146 = vlaneseq
        %v5147 = vshrl.u32 %v5146, 7
        %v5148 = vsub.s32 0, %v5147
        %v5149 = vrot.slane %v5144, %v5148
        %v5150 = vlaneseq
        %v5151 = vshrl.u32 %v5150, 7
        %v5152 = vsub.s32 1, %v5151
        %v5153 = vrot.slane %v5144, %v5152
        %v5154 = vlaneseq
        %v5155 = vshrl.u32 %v5154, 7
        %v5156 = vsub.s32 2, %v5155
        %v5157 = vrot.slane %v5144, %v5156
        %5158 = vrot.lane.b32.xlu0 %v5149, 112
        %v5159 = vpop.permute.xlu0 %5158
        %5160 = vrot.lane.b32.xlu0 %v5153, 112
        %v5161 = vpop.permute.xlu0 %5160
        %5162 = vrot.lane.b32.xlu0 %v5157, 112
        %v5163 = vpop.permute.xlu0 %5162
        %v5164 = vsel %vm1254, %v5159, %v5161
        %v5165 = vsel %vm1254, %v5161, %v5163
        %v5168 = vadd.f32 %v5056, %v5164
        %v5169 = vadd.f32 %v5057, %v5165
        %5170 = vrot.lane.b32.xlu0 %v4977, 111
        %v5171 = vpop.permute.xlu0 %5170
        %5172 = vrot.lane.b32.xlu0 %v4981, 111
        %v5173 = vpop.permute.xlu0 %5172
        %5174 = vrot.lane.b32.xlu0 %v4985, 111
        %v5175 = vpop.permute.xlu0 %5174
        %v5176 = vsel %vm1351, %v5171, %v5173
        %v5177 = vsel %vm1351, %v5173, %v5175
        %v5180 = vsel %vm498, %v5176, 0.0
        %v5181 = vsel %vm499, %v5177, 0.0
        %s5182 = sld [smem:[#allocation10 + $0x23]]
        %v5183 = vstv %s5182
        %v5184 = vmul.f32 %v5183, %v5180
        %v5185 = vmul.f32 %v5183, %v5181
        %v5186 = vadd.f32 %v5084, %v5184
        %v5187 = vadd.f32 %v5085, %v5185
        %s5188 = sld [smem:[#allocation10 + $0xa3]]
        %v5189 = vstv %s5188
        %v5190 = vmul.f32 %v5189, %v5180
        %v5191 = vmul.f32 %v5189, %v5181
        %v5192 = vadd.f32 %v5112, %v5190
        %v5193 = vadd.f32 %v5113, %v5191
        %s5194 = sld [smem:[#allocation10 + $0x123]]
        %v5195 = vstv %s5194
        %v5196 = vmul.f32 %v5195, %v5180
        %v5197 = vmul.f32 %v5195, %v5181
        %v5198 = vadd.f32 %v5140, %v5196
        %v5199 = vadd.f32 %v5141, %v5197
        %s5200 = sld [smem:[#allocation10 + $0x1a3]]
        %v5201 = vstv %s5200
        %v5202 = vmul.f32 %v5201, %v5180
        %v5203 = vmul.f32 %v5201, %v5181
        %v5204 = vadd.f32 %v5168, %v5202
        %v5205 = vadd.f32 %v5169, %v5203
        %v5206 = vmax.f32 %v5186, 0.0
        %v5207 = vmax.f32 %v5187, 0.0
        %v5208 = vmax.f32 %v5192, 0.0
        %v5209 = vmax.f32 %v5193, 0.0
        %v5210 = vmax.f32 %v5198, 0.0
        %v5211 = vmax.f32 %v5199, 0.0
        %v5212 = vmax.f32 %v5204, 0.0
        %v5213 = vmax.f32 %v5205, 0.0
        %s5214 = sld [smem:[#allocation12]]
        %v5215 = vstv %s5214
        %v5216 = vmul.f32 %v5215, %v5206
        %v5217 = vmul.f32 %v5215, %v5207
        %s5218 = sld [smem:[#allocation12 + $0x1]]
        %v5219 = vstv %s5218
        %v5220 = vmul.f32 %v5219, %v5208
        %v5221 = vmul.f32 %v5219, %v5209
        %v5222 = vadd.f32 %v5216, %v5220
        %v5223 = vadd.f32 %v5217, %v5221
        %s5224 = sld [smem:[#allocation12 + $0x2]]
        %v5225 = vstv %s5224
        %v5226 = vmul.f32 %v5225, %v5210
        %v5227 = vmul.f32 %v5225, %v5211
        %v5228 = vadd.f32 %v5222, %v5226
        %v5229 = vadd.f32 %v5223, %v5227
        %s5230 = sld [smem:[#allocation12 + $0x3]]
        %v5231 = vstv %s5230
        %v5232 = vmul.f32 %v5231, %v5212
        %v5233 = vmul.f32 %v5231, %v5213
        %v5234 = vadd.f32 %v5228, %v5232
        %v5235 = vadd.f32 %v5229, %v5233
        %s5236 = sld [smem:[#allocation12 + $0x80]]
        %v5237 = vstv %s5236
        %v5238 = vmul.f32 %v5237, %v5206
        %v5239 = vmul.f32 %v5237, %v5207
        %s5240 = sld [smem:[#allocation12 + $0x81]]
        %v5241 = vstv %s5240
        %v5242 = vmul.f32 %v5241, %v5208
        %v5243 = vmul.f32 %v5241, %v5209
        %v5244 = vadd.f32 %v5238, %v5242
        %v5245 = vadd.f32 %v5239, %v5243
        %s5246 = sld [smem:[#allocation12 + $0x82]]
        %v5247 = vstv %s5246
        %v5248 = vmul.f32 %v5247, %v5210
        %v5249 = vmul.f32 %v5247, %v5211
        %v5250 = vadd.f32 %v5244, %v5248
        %v5251 = vadd.f32 %v5245, %v5249
        %s5252 = sld [smem:[#allocation12 + $0x83]]
        %v5253 = vstv %s5252
        %v5254 = vmul.f32 %v5253, %v5212
        %v5255 = vmul.f32 %v5253, %v5213
        %v5256 = vadd.f32 %v5250, %v5254
        %v5257 = vadd.f32 %v5251, %v5255
        %s5258 = sld [smem:[#allocation12 + $0x100]]
        %v5259 = vstv %s5258
        %v5260 = vmul.f32 %v5259, %v5206
        %v5261 = vmul.f32 %v5259, %v5207
        %s5262 = sld [smem:[#allocation12 + $0x101]]
        %v5263 = vstv %s5262
        %v5264 = vmul.f32 %v5263, %v5208
        %v5265 = vmul.f32 %v5263, %v5209
        %v5266 = vadd.f32 %v5260, %v5264
        %v5267 = vadd.f32 %v5261, %v5265
        %s5268 = sld [smem:[#allocation12 + $0x102]]
        %v5269 = vstv %s5268
        %v5270 = vmul.f32 %v5269, %v5210
        %v5271 = vmul.f32 %v5269, %v5211
        %v5272 = vadd.f32 %v5266, %v5270
        %v5273 = vadd.f32 %v5267, %v5271
        %s5274 = sld [smem:[#allocation12 + $0x103]]
        %v5275 = vstv %s5274
        %v5276 = vmul.f32 %v5275, %v5212
        %v5277 = vmul.f32 %v5275, %v5213
        %v5278 = vadd.f32 %v5272, %v5276
        %v5279 = vadd.f32 %v5273, %v5277
        %s5280 = sld [smem:[#allocation12 + $0x180]]
        %v5281 = vstv %s5280
        %v5282 = vmul.f32 %v5281, %v5206
        %v5283 = vmul.f32 %v5281, %v5207
        %s5284 = sld [smem:[#allocation12 + $0x181]]
        %v5285 = vstv %s5284
        %v5286 = vmul.f32 %v5285, %v5208
        %v5287 = vmul.f32 %v5285, %v5209
        %v5288 = vadd.f32 %v5282, %v5286
        %v5289 = vadd.f32 %v5283, %v5287
        %s5290 = sld [smem:[#allocation12 + $0x182]]
        %v5291 = vstv %s5290
        %v5292 = vmul.f32 %v5291, %v5210
        %v5293 = vmul.f32 %v5291, %v5211
        %v5294 = vadd.f32 %v5288, %v5292
        %v5295 = vadd.f32 %v5289, %v5293
        %s5296 = sld [smem:[#allocation12 + $0x183]]
        %v5297 = vstv %s5296
        %v5298 = vmul.f32 %v5297, %v5212
        %v5299 = vmul.f32 %v5297, %v5213
        %v5300 = vadd.f32 %v5294, %v5298
        %v5301 = vadd.f32 %v5295, %v5299
        %v5302 = vmul.f32 %v845, %v3007
        %v5303 = vmul.f32 %v845, %v3008
        %v5304 = vmul.f32 %v846, %v5234
        %v5305 = vmul.f32 %v846, %v5235
        %v5306 = vadd.f32 %v5302, %v5304
        %v5307 = vadd.f32 %v5303, %v5305
        %vm5308 = vcmp.ge.f32.partialorder %v5306, 0.0
        %vm5309 = vcmp.ge.f32.partialorder %v5307, 0.0
        %v5310 = vmul.f32 %v5306, 0.2
        %v5311 = vmul.f32 %v5307, 0.2
        %v5312 = vsel %vm5308, %v5306, %v5310
        %v5313 = vsel %vm5309, %v5307, %v5311
        %v5314 = vmul.f32 %v845, %v3029
        %v5315 = vmul.f32 %v845, %v3030
        %v5316 = vmul.f32 %v846, %v5256
        %v5317 = vmul.f32 %v846, %v5257
        %v5318 = vadd.f32 %v5314, %v5316
        %v5319 = vadd.f32 %v5315, %v5317
        %vm5320 = vcmp.ge.f32.partialorder %v5318, 0.0
        %vm5321 = vcmp.ge.f32.partialorder %v5319, 0.0
        %v5322 = vmul.f32 %v5318, 0.2
        %v5323 = vmul.f32 %v5319, 0.2
        %v5324 = vsel %vm5320, %v5318, %v5322
        %v5325 = vsel %vm5321, %v5319, %v5323
        %v5326 = vmul.f32 %v845, %v3051
        %v5327 = vmul.f32 %v845, %v3052
        %v5328 = vmul.f32 %v846, %v5278
        %v5329 = vmul.f32 %v846, %v5279
        %v5330 = vadd.f32 %v5326, %v5328
        %v5331 = vadd.f32 %v5327, %v5329
        %vm5332 = vcmp.ge.f32.partialorder %v5330, 0.0
        %vm5333 = vcmp.ge.f32.partialorder %v5331, 0.0
        %v5334 = vmul.f32 %v5330, 0.2
        %v5335 = vmul.f32 %v5331, 0.2
        %v5336 = vsel %vm5332, %v5330, %v5334
        %v5337 = vsel %vm5333, %v5331, %v5335
        %v5338 = vmul.f32 %v845, %v3073
        %v5339 = vmul.f32 %v845, %v3074
        %v5340 = vmul.f32 %v846, %v5300
        %v5341 = vmul.f32 %v846, %v5301
        %v5342 = vadd.f32 %v5338, %v5340
        %v5343 = vadd.f32 %v5339, %v5341
        %vm5344 = vcmp.ge.f32.partialorder %v5342, 0.0
        %vm5345 = vcmp.ge.f32.partialorder %v5343, 0.0
        %v5346 = vmul.f32 %v5342, 0.2
        %v5347 = vmul.f32 %v5343, 0.2
        %v5348 = vsel %vm5344, %v5342, %v5346
        %v5349 = vsel %vm5345, %v5343, %v5347
        %s5350 = sld [smem:[#allocation13]]
        %v5351 = vstv %s5350
        %v5352 = vmul.f32 %v5351, %v5312
        %v5353 = vmul.f32 %v5351, %v5313
        %s5354 = sld [smem:[#allocation13 + $0x1]]
        %v5355 = vstv %s5354
        %v5356 = vmul.f32 %v5355, %v5324
        %v5357 = vmul.f32 %v5355, %v5325
        %v5358 = vadd.f32 %v5352, %v5356
        %v5359 = vadd.f32 %v5353, %v5357
        %s5360 = sld [smem:[#allocation13 + $0x2]]
        %v5361 = vstv %s5360
        %v5362 = vmul.f32 %v5361, %v5336
        %v5363 = vmul.f32 %v5361, %v5337
        %v5364 = vadd.f32 %v5358, %v5362
        %v5365 = vadd.f32 %v5359, %v5363
        %s5366 = sld [smem:[#allocation13 + $0x3]]
        %v5367 = vstv %s5366
        %v5368 = vmul.f32 %v5367, %v5348
        %v5369 = vmul.f32 %v5367, %v5349
        %v5370 = vadd.f32 %v5364, %v5368
        %v5371 = vadd.f32 %v5365, %v5369
        %s5372 = sld [smem:[#allocation13 + $0x80]]
        %v5373 = vstv %s5372
        %v5374 = vmul.f32 %v5373, %v5312
        %v5375 = vmul.f32 %v5373, %v5313
        %s5376 = sld [smem:[#allocation13 + $0x81]]
        %v5377 = vstv %s5376
        %v5378 = vmul.f32 %v5377, %v5324
        %v5379 = vmul.f32 %v5377, %v5325
        %v5380 = vadd.f32 %v5374, %v5378
        %v5381 = vadd.f32 %v5375, %v5379
        %s5382 = sld [smem:[#allocation13 + $0x82]]
        %v5383 = vstv %s5382
        %v5384 = vmul.f32 %v5383, %v5336
        %v5385 = vmul.f32 %v5383, %v5337
        %v5386 = vadd.f32 %v5380, %v5384
        %v5387 = vadd.f32 %v5381, %v5385
        %s5388 = sld [smem:[#allocation13 + $0x83]]
        %v5389 = vstv %s5388
        %v5390 = vmul.f32 %v5389, %v5348
        %v5391 = vmul.f32 %v5389, %v5349
        %v5392 = vadd.f32 %v5386, %v5390
        %v5393 = vadd.f32 %v5387, %v5391
        %s5394 = sld [smem:[#allocation13 + $0x100]]
        %v5395 = vstv %s5394
        %v5396 = vmul.f32 %v5395, %v5312
        %v5397 = vmul.f32 %v5395, %v5313
        %s5398 = sld [smem:[#allocation13 + $0x101]]
        %v5399 = vstv %s5398
        %v5400 = vmul.f32 %v5399, %v5324
        %v5401 = vmul.f32 %v5399, %v5325
        %v5402 = vadd.f32 %v5396, %v5400
        %v5403 = vadd.f32 %v5397, %v5401
        %s5404 = sld [smem:[#allocation13 + $0x102]]
        %v5405 = vstv %s5404
        %v5406 = vmul.f32 %v5405, %v5336
        %v5407 = vmul.f32 %v5405, %v5337
        %v5408 = vadd.f32 %v5402, %v5406
        %v5409 = vadd.f32 %v5403, %v5407
        %s5410 = sld [smem:[#allocation13 + $0x103]]
        %v5411 = vstv %s5410
        %v5412 = vmul.f32 %v5411, %v5348
        %v5413 = vmul.f32 %v5411, %v5349
        %v5414 = vadd.f32 %v5408, %v5412
        %v5415 = vadd.f32 %v5409, %v5413
        %s5416 = sld [smem:[#allocation13 + $0x180]]
        %v5417 = vstv %s5416
        %v5418 = vmul.f32 %v5417, %v5312
        %v5419 = vmul.f32 %v5417, %v5313
        %s5420 = sld [smem:[#allocation13 + $0x181]]
        %v5421 = vstv %s5420
        %v5422 = vmul.f32 %v5421, %v5324
        %v5423 = vmul.f32 %v5421, %v5325
        %v5424 = vadd.f32 %v5418, %v5422
        %v5425 = vadd.f32 %v5419, %v5423
        %s5426 = sld [smem:[#allocation13 + $0x182]]
        %v5427 = vstv %s5426
        %v5428 = vmul.f32 %v5427, %v5336
        %v5429 = vmul.f32 %v5427, %v5337
        %v5430 = vadd.f32 %v5424, %v5428
        %v5431 = vadd.f32 %v5425, %v5429
        %s5432 = sld [smem:[#allocation13 + $0x183]]
        %v5433 = vstv %s5432
        %v5434 = vmul.f32 %v5433, %v5348
        %v5435 = vmul.f32 %v5433, %v5349
        %v5436 = vadd.f32 %v5430, %v5434
        %v5437 = vadd.f32 %v5431, %v5435
        %v5440 = vrot.slane %v5392, 7
        %v5441 = vrot.slane %v5393, 7
        %v5446 = vrot.slane %v5414, 6
        %v5447 = vrot.slane %v5415, 6
        %v5452 = vrot.slane %v5436, 5
        %v5453 = vrot.slane %v5437, 5
        %v5456 = vsel %vm569, %v5370, %v5440
        %v5457 = vsel %vm569, %v5371, %v5441
        %vm5458 = vcmask 1041408
        %v5459 = vsel %vm5458, %v5456, %v5446
        %v5460 = vsel %vm5458, %v5457, %v5447
        %vm5461 = vcmask 1042432
        %v5462 = vsel %vm5461, %v5459, %v5452
        %v5463 = vsel %vm5461, %v5460, %v5453
        %v5465 = vcombine.high %v504, %v504
        %v5467 = vadd.f32 %v5462, %v504
        %v5468 = vadd.f32 %v5463, %v5465
        %v5471 = vcombine.low %v5467, %v5468
        %5473 = vst [vmem:[%s458] sm:$0xff] %v5471
        %s5474 = sand.u32 %s258, 1
        %s5475 = scalar_lea.sflag [#allocation4], %s5474
        %s5476 = sand.u32 %s258, 1
        %s5477 = smul.addr %s5476, 8
        %s5478 = scalar_lea.vmem [#allocation18], %s5477
        // Predicated region
        $region93: #{tpu_custom_call.1} parent=59 // pred_check
          %p5479 = pneg %p268
        $region94: #{tpu_custom_call.1} parent=59 // pred_check_branch
          %5481 = sbr.rel (%p5479) target = $region96
        $region95: #{tpu_custom_call.1} parent=59 // pred_region
          %s5483 = ssub.s32 128, 128
          %5484 = vsyncadd %s5475, %s5483
          %s5485 = smul.addr %s30, 2
          %s5486 = smul.addr %s5485, 64
          %s5487 = scalar_lea.hbm %s10, %s5486
          %s5489 = sshll.u32 %s5478, 4
          %s5490 = int_to_ptr.vmem [resolvable:$true] %s5489
          %5492 = dma.vmem_to_hbm [thread:$0]  %s5490, 128, %s5487, %s5475
        $region96: #{tpu_custom_call.1} parent=59 // pred_fallthru
          _
      $region60: #{tpu_custom_call.1} parent=5 // pred_fallthru
        _
      %p5493 = scmp.le.s32.totalorder 2, %s25
      // Predicated region
      $region97: #{tpu_custom_call.1} parent=5 // pred_check
        %p5494 = pneg %p5493
      $region98: #{tpu_custom_call.1} parent=5 // pred_check_branch
        %5496 = sbr.rel (%p5494) target = $region100
      $region99: #{tpu_custom_call.1} parent=5 // pred_region
        %s5497 = ssub.s32 %s25, 2
        // Predicated region
        $region101: #{tpu_custom_call.1} parent=99 // pred_check
          %p5498 = pneg %p274
        $region102: #{tpu_custom_call.1} parent=99 // pred_check_branch
          %5500 = sbr.rel (%p5498) target = $region104
        $region103: #{tpu_custom_call.1} parent=99 // pred_region
          %s5501 = sand.u32 %s259, 1
          %s5502 = scalar_lea.sflag [#allocation4], %s5501
          %s5503 = sand.u32 %s259, 1
          %s5504 = smul.addr %s5503, 8
          %s5505 = scalar_lea.vmem [#allocation18], %s5504
          %5506 = dma.done %s5502, 128
        $region104: #{tpu_custom_call.1} parent=99 // pred_fallthru
          _
      $region100: #{tpu_custom_call.1} parent=5 // pred_fallthru
        _
    $region6: #{tpu_custom_call.1} parent=1 // loop_footer
      %s29 = sadd.s32 1, %s25
    $region7: #{tpu_custom_call.1} parent=1 // loop_footer_branch
      %24 = sbr.rel target = $region3
    $region8: #{tpu_custom_call.1} parent=1 // loop_exit
      _
    %5507 = vsyncpa [#allocation4], 1
    %s5508 = scalar_lea.sflag [#allocation4], 1
    %5509 = vsyncpa %s5508, 1
    %5510 = vsyncpa [#allocation5], 1
    %s5511 = scalar_lea.sflag [#allocation5], 1
    %5512 = vsyncpa %s5511, 1
    %5513 = vsyncpa [#allocation8], 1
    %5514 = vsyncpa [#allocation11], 1
    %5515 = vsyncpa [#allocation14], 1
    %5516 = vsyncpa [#allocation6], 1
    %s5517 = scalar_lea.sflag [#allocation6], 1
    %5518 = vsyncpa %s5517, 1
    %5519 = vsyncpa [#allocation17], 1

</llo_original>
